<compile_context>
chip_gen: v5e
topology: v5e:2x2
jax: 0.10.0
libtpu: 0.0.40
codegen_flags: <defaults>
</compile_context>

<pallas_src>
import jax
import jax.numpy as jnp
from jax.experimental import pallas as pl
from jax.experimental.pallas import tpu as pltpu


# -----------------------------------------------------------------------------
# Configuration (architecture identical to the PyTorch module; npoint / radius /
# nsample hyper-parameters scaled down so the demo runs at small shapes).
# -----------------------------------------------------------------------------
CFG = {
    "sa1": dict(npoint=32, radius=0.2, nsample=16, mlp=[0 + 3, 64, 64, 128]),
    "sa2": dict(npoint=16, radius=0.4, nsample=8, mlp=[128 + 3, 128, 128, 256]),
    "sa3": dict(npoint=8, radius=0.8, nsample=8, mlp=[256 + 3, 128, 128, 256]),
    "sa4": dict(npoint=4, radius=1.2, nsample=8, mlp=[256 + 3, 128, 128, 256]),
    "fp1": dict(mlp=[256 + 256, 256, 256]),
    "fp2": dict(mlp=[256 + 256, 256, 256]),
}

# Safe on all generations: below v7x's 64 MiB physical VMEM (with headroom),
# and raises the 16/32 MiB scoped defaults on v5e/v6e for large lane tiles.
VMEM_LIMIT_BYTES = 48 * 1024 * 1024


def _round_up(x, m):
    return ((x + m - 1) // m) * m


def _pick_lane_tile(lp):
    """Lane-dense tile (multiple of 128) dividing lp.  Prefer large tiles to
    amortize per-grid-step overhead, but keep >= 2 blocks on the parallel axis
    whenever possible so both v7x TensorCores get work."""
    for t in (1024, 512, 256, 128):
        if lp % t == 0 and lp // t >= 2:
            return t
    return lp  # lp == 128: single block; nothing to split


def _pick_sublane_tile(mp):
    for t in (512, 256, 128, 64, 32, 16, 8):
        if mp % t == 0:
            return t
    return mp


# -----------------------------------------------------------------------------
# Pallas kernels
# -----------------------------------------------------------------------------
def _make_fused_mlp_kernel(n_layers, bias_offsets, pooled):
    """Kernel: chained (w @ x + b, ReLU) layers with bf16 MXU operands and f32
    accumulation; optional fused max over grid axis 1 (the nsample axis)."""

    def kernel(*refs):
        x_ref = refs[0]
        w_refs = refs[1:1 + n_layers]
        b_ref = refs[1 + n_layers]
        o_ref = refs[2 + n_layers]

        b_all = b_ref[...]  # (total_cout, 1) f32, one lane-sparse DMA per step
        y = x_ref[0] if pooled else x_ref[...]          # bf16 (cin_p, TP)
        for i in range(n_layers):
            off, cout = bias_offsets[i]
            w = w_refs[i][...]                           # bf16 (cout, cin_prev)
            b = b_all[off:off + cout, :]                 # f32  (cout, 1)
            acc = jnp.dot(w, y, preferred_element_type=jnp.float32) + b
            acc = jnp.maximum(acc, 0.0)                  # f32 VPU (v5e-safe)
            y = acc.astype(jnp.bfloat16) if i + 1 < n_layers else acc

        if pooled:
            s = pl.program_id(1)

            @pl.when(s == 0)
            def _():
                o_ref[...] = y.astype(o_ref.dtype)

            @pl.when(s > 0)
            def _():
                # exactly one unmasked load + one unmasked store per s step
                o_ref[...] = jnp.maximum(o_ref[...], y.astype(o_ref.dtype))
        else:
            o_ref[...] = y.astype(o_ref.dtype)

    return kernel


def _prep_mlp_operands(layers, cin, cin_p):
    """Cast weights to bf16 (pad layer-0 cin), pack all biases into one operand."""
    ws, bs, offs = [], [], []
    off = 0
    for i, (w, b) in enumerate(layers):
        if i == 0 and cin_p != cin:
            w = jnp.pad(w, ((0, 0), (0, cin_p - cin)))
        ws.append(w.astype(jnp.bfloat16))
        bs.append(b.astype(jnp.float32))
        offs.append((off, w.shape[0]))
        off += w.shape[0]
    b_all = jnp.concatenate(bs, axis=0)                  # (total_cout, 1) f32
    return ws, b_all, tuple(offs)


def fused_mlp(x, layers):
    """x: (Cin, L).  layers: list of (w_eff, bias) with BN folded into w.
    Runs the whole SharedMLP stack in one pallas_call.  Returns (Cout, L) f32."""
    cin, L = x.shape
    cin_p = _round_up(cin, 16)          # bf16-friendly sublane multiple
    Lp = _round_up(L, 128)
    TP = _pick_lane_tile(Lp)
    if cin_p != cin or Lp != L:
        x = jnp.pad(x, ((0, cin_p - cin), (0, Lp - L)))
    x = x.astype(jnp.bfloat16)

    ws, b_all, offs = _prep_mlp_operands(layers, cin, cin_p)
    cout = ws[-1].shape[0]
    n_layers = len(ws)

    in_specs = [pl.BlockSpec((cin_p, TP), lambda l: (0, l))]
    operands = [x]
    for w in ws:
        in_specs.append(pl.BlockSpec(w.shape, lambda l: (0, 0)))
        operands.append(w)
    in_specs.append(pl.BlockSpec(b_all.shape, lambda l: (0, 0)))
    operands.append(b_all)

    out = pl.pallas_call(
        _make_fused_mlp_kernel(n_layers, offs, pooled=False),
        out_shape=jax.ShapeDtypeStruct((cout, Lp), jnp.float32),
        grid_spec=pltpu.PrefetchScalarGridSpec(
            num_scalar_prefetch=0,
            grid=(Lp // TP,),
            in_specs=in_specs,
            out_specs=pl.BlockSpec((cout, TP), lambda l: (0, l)),
        ),
        compiler_params=pltpu.CompilerParams(
            dimension_semantics=("parallel",),
            vmem_limit_bytes=VMEM_LIMIT_BYTES),
    )(*operands)
    return out[:, :L]


def fused_mlp_maxpool(x, layers):
    """x: (S, Cin, L) grouped point features (S = nsample, L = B*npoint tokens),
    bf16.  Runs the SharedMLP stack and fuses the max over S into the kernel
    epilogue (output block is the running-max accumulator resident across the
    S axis).  Returns (Cout, L) f32."""
    S, cin, L = x.shape
    cin_p = _round_up(cin, 16)
    Lp = _round_up(L, 128)
    TP = _pick_lane_tile(Lp)
    if cin_p != cin or Lp != L:
        x = jnp.pad(x, ((0, 0), (0, cin_p - cin), (0, Lp - L)))
    x = x.astype(jnp.bfloat16)

    ws, b_all, offs = _prep_mlp_operands(layers, cin, cin_p)
    cout = ws[-1].shape[0]
    n_layers = len(ws)

    in_specs = [pl.BlockSpec((1, cin_p, TP), lambda p, s: (s, 0, p))]
    operands = [x]
    for w in ws:
        in_specs.append(pl.BlockSpec(w.shape, lambda p, s: (0, 0)))
        operands.append(w)
    in_specs.append(pl.BlockSpec(b_all.shape, lambda p, s: (0, 0)))
    operands.append(b_all)

    out = pl.pallas_call(
        _make_fused_mlp_kernel(n_layers, offs, pooled=True),
        out_shape=jax.ShapeDtypeStruct((cout, Lp), jnp.float32),
        grid_spec=pltpu.PrefetchScalarGridSpec(
            num_scalar_prefetch=0,
            grid=(Lp // TP, S),   # reduction (nsample) axis last
            in_specs=in_specs,
            out_specs=pl.BlockSpec((cout, TP), lambda p, s: (0, p)),
        ),
        compiler_params=pltpu.CompilerParams(
            dimension_semantics=("parallel", "arbitrary"),
            vmem_limit_bytes=VMEM_LIMIT_BYTES),
    )(*operands)
    return out[:, :L]


def _sqdist_kernel(a_ref, bt_ref, o_ref):
    # a: (tm, 3), bt: (3, tn) -> d2 = |a|^2 + |b|^2 - 2 a.b^T, lane-dense (tm, tn).
    a = a_ref[0]
    bt = bt_ref[0]
    cross = jnp.dot(a, bt, preferred_element_type=jnp.float32)      # MXU
    na = jnp.sum(a * a, axis=-1, keepdims=True)                     # (tm, 1)
    nb = jnp.sum(bt * bt, axis=0, keepdims=True)                    # (1, tn)
    d2 = jnp.maximum(na + nb - 2.0 * cross, 0.0)                    # clamp cancellation
    o_ref[...] = d2[None].astype(o_ref.dtype)


def pairwise_sqdist(a, b):
    """a: (B, M, 3), b: (B, N, 3) -> (B, M, N) squared euclidean distances.
    Tiled over (B, M, N) so each block fits VMEM at any point count and the
    output store is an unmasked lane-dense vst."""
    B, M, _ = a.shape
    N = b.shape[1]
    Mp = _round_up(M, 8)
    Np = _round_up(N, 128)
    tm = _pick_sublane_tile(Mp)
    tn = _pick_lane_tile(Np)
    if Mp != M:
        a = jnp.pad(a, ((0, 0), (0, Mp - M), (0, 0)))
    bt = jnp.transpose(b, (0, 2, 1))                                 # (B, 3, N)
    if Np != N:
        bt = jnp.pad(bt, ((0, 0), (0, 0), (0, Np - N)))

    out = pl.pallas_call(
        _sqdist_kernel,
        out_shape=jax.ShapeDtypeStruct((B, Mp, Np), jnp.float32),
        grid_spec=pltpu.PrefetchScalarGridSpec(
            num_scalar_prefetch=0,
            grid=(B, Mp // tm, Np // tn),
            in_specs=[
                pl.BlockSpec((1, tm, 3), lambda b, i, j: (b, i, 0)),
                pl.BlockSpec((1, 3, tn), lambda b, i, j: (b, 0, j)),
            ],
            out_specs=pl.BlockSpec((1, tm, tn), lambda b, i, j: (b, i, j)),
        ),
        compiler_params=pltpu.CompilerParams(
            dimension_semantics=("parallel", "parallel", "parallel")),
    )(a, bt)
    return out[:, :M, :N]


# -----------------------------------------------------------------------------
# Plain-JAX glue (sampling / index selection / gathers)
# -----------------------------------------------------------------------------
def furthest_point_sample(xyz, npoint):
    """xyz: (B, N, 3) -> (B, npoint) int32 indices (matches pointnet2 FPS)."""
    # TODO(synk): the serial FPS loop stays in plain JAX; a Pallas FPS kernel
    # (min-dist vector resident in VMEM) only pays off at graspnet-scale N.
    def single(pts):
        N = pts.shape[0]
        inds = jnp.zeros((npoint,), jnp.int32)
        dist = jnp.full((N,), 1e10, jnp.float32)

        def body(i, carry):
            dist, inds = carry
            last = pts[inds[i - 1]]
            d = jnp.sum((pts - last) ** 2, axis=-1)
            dist = jnp.minimum(dist, d)
            inds = inds.at[i].set(jnp.argmax(dist).astype(jnp.int32))
            return dist, inds

        _, inds = jax.lax.fori_loop(1, npoint, body, (dist, inds))
        return inds

    return jax.vmap(single)(xyz)


def ball_query(radius, nsample, xyz, new_xyz):
    """Indices of up to `nsample` points of xyz within `radius` of each new_xyz."""
    # TODO(synk): at graspnet-scale N a masked streaming-selection epilogue fused
    # into the sqdist kernel would avoid materializing the (B, M, N) matrix.
    d2 = pairwise_sqdist(new_xyz, xyz)  # (B, M, N)
    N = xyz.shape[1]
    ar = jnp.arange(N, dtype=jnp.int32)[None, None, :]
    mask = d2 < radius * radius
    key = jnp.where(mask, ar, N + ar).astype(jnp.float32)   # valid first, index order
    _, idx = jax.lax.top_k(-key, nsample)                   # smallest keys
    idx = idx.astype(jnp.int32)
    cnt = jnp.sum(mask, axis=-1)                             # (B, M)
    first = idx[..., :1]
    slot = jnp.arange(nsample)[None, None, :]
    idx = jnp.where(slot < jnp.maximum(cnt, 1)[..., None], idx, first)
    idx = jnp.where(cnt[..., None] > 0, idx, 0)  # CUDA kernel leaves zeros if empty
    return idx


def query_and_group(xyz, new_xyz, features, idx, radius):
    """Returns grouped tensor laid out as (nsample, C_in, B*npoint) bf16 with the
    flattened point axis lane-dense (ready for the fused MLP+maxpool kernel)."""
    # TODO(synk): fuse this gather into fused_mlp_maxpool via scalar-prefetched idx
    # + manual DMA so the grouped tensor never hits HBM at graspnet scale; casting
    # to bf16 here already halves its HBM footprint.
    B, M, S = idx.shape
    grouped_xyz = jax.vmap(lambda p, i: p[i])(xyz, idx)             # (B, M, S, 3)
    grouped_xyz = (grouped_xyz - new_xyz[:, :, None, :]) / radius   # normalize_xyz
    gx = jnp.transpose(grouped_xyz, (2, 3, 0, 1)).reshape(S, 3, B * M)
    gx = gx.astype(jnp.bfloat16)
    if features is None:
        return gx                                                   # use_xyz=True
    grouped_feats = jax.vmap(lambda f, i: f[:, i])(features, idx)   # (B, C, M, S)
    gf = jnp.transpose(grouped_feats, (3, 1, 0, 2)).reshape(S, -1, B * M)
    gf = gf.astype(jnp.bfloat16)
    return jnp.concatenate([gx, gf], axis=1)


# -----------------------------------------------------------------------------
# Module building blocks
# -----------------------------------------------------------------------------
def sa_module(xyz, features, layers, npoint, radius, nsample):
    B = xyz.shape[0]
    fps_inds = furthest_point_sample(xyz, npoint)
    new_xyz = jax.vmap(lambda p, i: p[i])(xyz, fps_inds)            # (B, M, 3)
    idx = ball_query(radius, nsample, xyz, new_xyz)
    grouped = query_and_group(xyz, new_xyz, features, idx, radius)  # (S, Cin, B*M)
    pooled_flat = fused_mlp_maxpool(grouped, layers)                # (Cout, B*M)
    cout = pooled_flat.shape[0]
    pooled = pooled_flat.reshape(cout, B, npoint).transpose(1, 0, 2)  # (B, Cout, M)
    return new_xyz, pooled, fps_inds


def fp_module(unknown_xyz, known_xyz, unknown_feats, known_feats, layers):
    B, n, _ = unknown_xyz.shape
    d2 = pairwise_sqdist(unknown_xyz, known_xyz)                    # (B, n, m)
    dist = jnp.sqrt(jnp.maximum(d2, 0.0))
    neg_d, idx = jax.lax.top_k(-dist, 3)                            # 3 nearest known
    d3 = -neg_d
    dist_recip = 1.0 / (d3 + 1e-8)
    weight = dist_recip / jnp.sum(dist_recip, axis=-1, keepdims=True)
    gathered = jax.vmap(lambda f, i: f[:, i])(known_feats, idx)     # (B, C2, n, 3)
    interp = jnp.sum(gathered * weight[:, None, :, :], axis=-1)     # (B, C2, n)
    new_feats = jnp.concatenate([interp, unknown_feats], axis=1)    # (B, C2+C1, n)
    C = new_feats.shape[1]
    x = jnp.transpose(new_feats, (1, 0, 2)).reshape(C, B * n)
    x = x.astype(jnp.bfloat16)
    x = fused_mlp(x, layers)                                        # (Cout, B*n)
    cout = x.shape[0]
    return x.reshape(cout, B, n).transpose(1, 0, 2)


# -----------------------------------------------------------------------------
# Full forward pass (mirrors Pointnet2Backbone.forward)
# -----------------------------------------------------------------------------
def backbone_forward(pointcloud, params):
    end_points = {}
    xyz = pointcloud[..., 0:3]
    features = (
        jnp.transpose(pointcloud[..., 3:], (0, 2, 1))
        if pointcloud.shape[-1] > 3
        else None
    )
    end_points["input_xyz"] = xyz
    end_points["input_features"] = features

    # --------------------------- Set Abstraction layers ----------------------
    xyz, features, fps_inds = sa_module(
        xyz, features, params["sa1"],
        CFG["sa1"]["npoint"], CFG["sa1"]["radius"], CFG["sa1"]["nsample"])
    end_points["sa1_inds"] = fps_inds
    end_points["sa1_xyz"] = xyz
    end_points["sa1_features"] = features

    xyz, features, fps_inds = sa_module(
        xyz, features, params["sa2"],
        CFG["sa2"]["npoint"], CFG["sa2"]["radius"], CFG["sa2"]["nsample"])
    end_points["sa2_inds"] = fps_inds
    end_points["sa2_xyz"] = xyz
    end_points["sa2_features"] = features

    xyz, features, fps_inds = sa_module(
        xyz, features, params["sa3"],
        CFG["sa3"]["npoint"], CFG["sa3"]["radius"], CFG["sa3"]["nsample"])
    end_points["sa3_xyz"] = xyz
    end_points["sa3_features"] = features

    xyz, features, fps_inds = sa_module(
        xyz, features, params["sa4"],
        CFG["sa4"]["npoint"], CFG["sa4"]["radius"], CFG["sa4"]["nsample"])
    end_points["sa4_xyz"] = xyz
    end_points["sa4_features"] = features

    # --------------------------- Feature Propagation --------------------------
    features = fp_module(
        end_points["sa3_xyz"], end_points["sa4_xyz"],
        end_points["sa3_features"], end_points["sa4_features"], params["fp1"])
    features = fp_module(
        end_points["sa2_xyz"], end_points["sa3_xyz"],
        end_points["sa2_features"], features, params["fp2"])

    end_points["fp2_features"] = features
    end_points["fp2_xyz"] = end_points["sa2_xyz"]
    num_seed = end_points["fp2_xyz"].shape[1]
    end_points["fp2_inds"] = end_points["sa1_inds"][:, 0:num_seed]
    return features, end_points["fp2_xyz"], end_points


# -----------------------------------------------------------------------------
# Deterministic synthetic parameters (1x1-Conv weights; BN affine folded into w)
# -----------------------------------------------------------------------------
def init_mlp(key, dims):
    layers = []
    for cin, cout in zip(dims[:-1], dims[1:]):
        key, k1, k2, k3 = jax.random.split(key, 4)
        w = jax.random.normal(k1, (cout, cin), jnp.float32) / jnp.sqrt(float(cin))
        scale = 1.0 + 0.1 * jax.random.normal(k2, (cout, 1), jnp.float32)
        bias = 0.1 * jax.random.normal(k3, (cout, 1), jnp.float32)
        # Fold the BatchNorm affine into the conv weight (numerically identical,
        # saves a VPU multiply and a lane-sparse (Cout,1) DMA per tile).
        layers.append((scale * w, bias))
    return layers


def init_params(key):
    params = {}
    for name in ["sa1", "sa2", "sa3", "sa4", "fp1", "fp2"]:
        key, sub = jax.random.split(key)
        params[name] = init_mlp(sub, CFG[name]["mlp"])
    return params


# -----------------------------------------------------------------------------
if __name__ == "__main__":
    B, N = 2, 64  # input_feature_dim = 0 -> pointcloud is (B, N, 3)
    key = jax.random.PRNGKey(0)
    key, kpc = jax.random.split(key)
    pointcloud = jax.random.uniform(
        kpc, (B, N, 3), dtype=jnp.float32, minval=-1.0, maxval=1.0
    )
    params = init_params(jax.random.PRNGKey(1))

    fwd = jax.jit(backbone_forward)
    features, fp2_xyz, end_points = fwd(pointcloud, params)
    jax.block_until_ready(features)
    jax.block_until_ready(fp2_xyz)
    jax.block_until_ready(end_points["fp2_inds"])

    num_seed = CFG["sa2"]["npoint"]
    assert features.shape == (B, 256, num_seed)
    assert fp2_xyz.shape == (B, num_seed, 3)
    assert end_points["fp2_inds"].shape == (B, num_seed)
    assert bool(jnp.all(jnp.isfinite(features)))
    print("KERNEL_OK")
</pallas_src>

<mosaic_0001>
module attributes {stable_mosaic.version = 11 : i64} {
  func.func @_sqdist_kernel(%arg0: i32, %arg1: i32, %arg2: i32, %arg3: memref<1x8x3xf32, #tpu.memory_space<vmem>>, %arg4: memref<1x3x128xf32, #tpu.memory_space<vmem>>, %arg5: memref<1x8x128xf32, #tpu.memory_space<vmem>>) attributes {dimension_semantics = [#tpu.dimension_semantics<parallel>, #tpu.dimension_semantics<parallel>, #tpu.dimension_semantics<parallel>], iteration_bounds = array<i64: 2, 1, 1>, scalar_prefetch = 0 : i64, scratch_operands = 0 : i64, tpu.core_type = #tpu.core_type<tc>, window_params = [{transform_indices = @transform_0, window_bounds = array<i64: 1, 8, 3>}, {transform_indices = @transform_1, window_bounds = array<i64: 1, 3, 128>}, {transform_indices = @transform_2, window_bounds = array<i64: 1, 8, 128>}]} {
    %c0 = arith.constant 0 : index
    %c0_0 = arith.constant 0 : index
    %c0_1 = arith.constant 0 : index
    %0 = vector.load %arg3[%c0, %c0_0, %c0_1] : memref<1x8x3xf32, #tpu.memory_space<vmem>>, vector<1x8x3xf32>
    %1 = vector.shape_cast %0 : vector<1x8x3xf32> to vector<8x3xf32>
    %c0_2 = arith.constant 0 : index
    %c0_3 = arith.constant 0 : index
    %c0_4 = arith.constant 0 : index
    %2 = vector.load %arg4[%c0_2, %c0_3, %c0_4] : memref<1x3x128xf32, #tpu.memory_space<vmem>>, vector<1x3x128xf32>
    %3 = vector.shape_cast %2 : vector<1x3x128xf32> to vector<3x128xf32>
    %cst = arith.constant dense<0.000000e+00> : vector<8x128xf32>
    %4 = tpu.matmul %1, %3, %cst {dimension_numbers = #tpu.dot_dimension_numbers<[1], [0], [0], [1], [0, 0, 1, 1], [], []>} : vector<8x3xf32>, vector<3x128xf32>, vector<8x128xf32> -> vector<8x128xf32>
    %5 = arith.mulf %1, %1 : vector<8x3xf32>
    %cst_5 = arith.constant dense<0.000000e+00> : vector<8xf32>
    %6 = vector.multi_reduction <add>, %5, %cst_5 [1] : vector<8x3xf32> to vector<8xf32>
    %7 = vector.shape_cast %6 : vector<8xf32> to vector<8x1xf32>
    %8 = arith.mulf %3, %3 : vector<3x128xf32>
    %cst_6 = arith.constant dense<0.000000e+00> : vector<128xf32>
    %9 = vector.multi_reduction <add>, %8, %cst_6 [0] : vector<3x128xf32> to vector<128xf32>
    %10 = vector.shape_cast %9 : vector<128xf32> to vector<1x128xf32>
    %11 = vector.broadcast %7 : vector<8x1xf32> to vector<8x128xf32>
    %12 = vector.broadcast %10 : vector<1x128xf32> to vector<8x128xf32>
    %13 = arith.addf %11, %12 : vector<8x128xf32>
    %cst_7 = arith.constant 2.000000e+00 : f32
    %14 = vector.broadcast %cst_7 : f32 to vector<8x128xf32>
    %15 = arith.mulf %14, %4 : vector<8x128xf32>
    %16 = arith.subf %13, %15 : vector<8x128xf32>
    %cst_8 = arith.constant 0.000000e+00 : f32
    %17 = vector.broadcast %cst_8 : f32 to vector<8x128xf32>
    %18 = arith.maximumf %16, %17 : vector<8x128xf32>
    %19 = vector.shape_cast %18 : vector<8x128xf32> to vector<1x8x128xf32>
    %c0_9 = arith.constant 0 : index
    %c0_10 = arith.constant 0 : index
    %c0_11 = arith.constant 0 : index
    %20 = vector.load %arg5[%c0_9, %c0_10, %c0_11] : memref<1x8x128xf32, #tpu.memory_space<vmem>>, vector<1x8x128xf32>
    tpu.vector_store %arg5[%c0_9, %c0_10, %c0_11], %19 {strides = array<i32>} : memref<1x8x128xf32, #tpu.memory_space<vmem>>, vector<1x8x128xf32>,
    return
  }
  func.func @transform_0(%arg0: i32, %arg1: i32, %arg2: i32) -> (i32, i32, i32) {
    %c0_i32 = arith.constant 0 : i32
    %c0_i32_0 = arith.constant 0 : i32
    return %arg0, %arg1, %c0_i32 : i32, i32, i32
  }
  func.func @transform_1(%arg0: i32, %arg1: i32, %arg2: i32) -> (i32, i32, i32) {
    %c0_i32 = arith.constant 0 : i32
    %c0_i32_0 = arith.constant 0 : i32
    return %arg0, %c0_i32, %arg2 : i32, i32, i32
  }
  func.func @transform_2(%arg0: i32, %arg1: i32, %arg2: i32) -> (i32, i32, i32) {
    %c0_i32 = arith.constant 0 : i32
    return %arg0, %arg1, %arg2 : i32, i32, i32
  }
}

module attributes {stable_mosaic.version = 11 : i64} {
  func.func @_sqdist_kernel(%arg0: i32, %arg1: i32, %arg2: i32, %arg3: memref<1x16x3xf32, #tpu.memory_space<vmem>>, %arg4: memref<1x3x128xf32, #tpu.memory_space<vmem>>, %arg5: memref<1x16x128xf32, #tpu.memory_space<vmem>>) attributes {dimension_semantics = [#tpu.dimension_semantics<parallel>, #tpu.dimension_semantics<parallel>, #tpu.dimension_semantics<parallel>], iteration_bounds = array<i64: 2, 1, 1>, scalar_prefetch = 0 : i64, scratch_operands = 0 : i64, tpu.core_type = #tpu.core_type<tc>, window_params = [{transform_indices = @transform_0, window_bounds = array<i64: 1, 16, 3>}, {transform_indices = @transform_1, window_bounds = array<i64: 1, 3, 128>}, {transform_indices = @transform_2, window_bounds = array<i64: 1, 16, 128>}]} {
    %c0 = arith.constant 0 : index
    %c0_0 = arith.constant 0 : index
    %c0_1 = arith.constant 0 : index
    %0 = vector.load %arg3[%c0, %c0_0, %c0_1] : memref<1x16x3xf32, #tpu.memory_space<vmem>>, vector<1x16x3xf32>
    %1 = vector.shape_cast %0 : vector<1x16x3xf32> to vector<16x3xf32>
    %c0_2 = arith.constant 0 : index
    %c0_3 = arith.constant 0 : index
    %c0_4 = arith.constant 0 : index
    %2 = vector.load %arg4[%c0_2, %c0_3, %c0_4] : memref<1x3x128xf32, #tpu.memory_space<vmem>>, vector<1x3x128xf32>
    %3 = vector.shape_cast %2 : vector<1x3x128xf32> to vector<3x128xf32>
    %cst = arith.constant dense<0.000000e+00> : vector<16x128xf32>
    %4 = tpu.matmul %1, %3, %cst {dimension_numbers = #tpu.dot_dimension_numbers<[1], [0], [0], [1], [0, 0, 1, 1], [], []>} : vector<16x3xf32>, vector<3x128xf32>, vector<16x128xf32> -> vector<16x128xf32>
    %5 = arith.mulf %1, %1 : vector<16x3xf32>
    %cst_5 = arith.constant dense<0.000000e+00> : vector<16xf32>
    %6 = vector.multi_reduction <add>, %5, %cst_5 [1] : vector<16x3xf32> to vector<16xf32>
    %7 = vector.shape_cast %6 : vector<16xf32> to vector<16x1xf32>
    %8 = arith.mulf %3, %3 : vector<3x128xf32>
    %cst_6 = arith.constant dense<0.000000e+00> : vector<128xf32>
    %9 = vector.multi_reduction <add>, %8, %cst_6 [0] : vector<3x128xf32> to vector<128xf32>
    %10 = vector.shape_cast %9 : vector<128xf32> to vector<1x128xf32>
    %11 = vector.broadcast %7 : vector<16x1xf32> to vector<16x128xf32>
    %12 = vector.broadcast %10 : vector<1x128xf32> to vector<16x128xf32>
    %13 = arith.addf %11, %12 : vector<16x128xf32>
    %cst_7 = arith.constant 2.000000e+00 : f32
    %14 = vector.broadcast %cst_7 : f32 to vector<16x128xf32>
    %15 = arith.mulf %14, %4 : vector<16x128xf32>
    %16 = arith.subf %13, %15 : vector<16x128xf32>
    %cst_8 = arith.constant 0.000000e+00 : f32
    %17 = vector.broadcast %cst_8 : f32 to vector<16x128xf32>
    %18 = arith.maximumf %16, %17 : vector<16x128xf32>
    %19 = vector.shape_cast %18 : vector<16x128xf32> to vector<1x16x128xf32>
    %c0_9 = arith.constant 0 : index
    %c0_10 = arith.constant 0 : index
    %c0_11 = arith.constant 0 : index
    %20 = vector.load %arg5[%c0_9, %c0_10, %c0_11] : memref<1x16x128xf32, #tpu.memory_space<vmem>>, vector<1x16x128xf32>
    tpu.vector_store %arg5[%c0_9, %c0_10, %c0_11], %19 {strides = array<i32>} : memref<1x16x128xf32, #tpu.memory_space<vmem>>, vector<1x16x128xf32>,
    return
  }
  func.func @transform_0(%arg0: i32, %arg1: i32, %arg2: i32) -> (i32, i32, i32) {
    %c0_i32 = arith.constant 0 : i32
    %c0_i32_0 = arith.constant 0 : i32
    return %arg0, %arg1, %c0_i32 : i32, i32, i32
  }
  func.func @transform_1(%arg0: i32, %arg1: i32, %arg2: i32) -> (i32, i32, i32) {
    %c0_i32 = arith.constant 0 : i32
    %c0_i32_0 = arith.constant 0 : i32
    return %arg0, %c0_i32, %arg2 : i32, i32, i32
  }
  func.func @transform_2(%arg0: i32, %arg1: i32, %arg2: i32) -> (i32, i32, i32) {
    %c0_i32 = arith.constant 0 : i32
    return %arg0, %arg1, %arg2 : i32, i32, i32
  }
}

module attributes {stable_mosaic.version = 11 : i64} {
  func.func @_sqdist_kernel(%arg0: i32, %arg1: i32, %arg2: i32, %arg3: memref<1x32x3xf32, #tpu.memory_space<vmem>>, %arg4: memref<1x3x128xf32, #tpu.memory_space<vmem>>, %arg5: memref<1x32x128xf32, #tpu.memory_space<vmem>>) attributes {dimension_semantics = [#tpu.dimension_semantics<parallel>, #tpu.dimension_semantics<parallel>, #tpu.dimension_semantics<parallel>], iteration_bounds = array<i64: 2, 1, 1>, scalar_prefetch = 0 : i64, scratch_operands = 0 : i64, tpu.core_type = #tpu.core_type<tc>, window_params = [{transform_indices = @transform_0, window_bounds = array<i64: 1, 32, 3>}, {transform_indices = @transform_1, window_bounds = array<i64: 1, 3, 128>}, {transform_indices = @transform_2, window_bounds = array<i64: 1, 32, 128>}]} {
    %c0 = arith.constant 0 : index
    %c0_0 = arith.constant 0 : index
    %c0_1 = arith.constant 0 : index
    %0 = vector.load %arg3[%c0, %c0_0, %c0_1] : memref<1x32x3xf32, #tpu.memory_space<vmem>>, vector<1x32x3xf32>
    %1 = vector.shape_cast %0 : vector<1x32x3xf32> to vector<32x3xf32>
    %c0_2 = arith.constant 0 : index
    %c0_3 = arith.constant 0 : index
    %c0_4 = arith.constant 0 : index
    %2 = vector.load %arg4[%c0_2, %c0_3, %c0_4] : memref<1x3x128xf32, #tpu.memory_space<vmem>>, vector<1x3x128xf32>
    %3 = vector.shape_cast %2 : vector<1x3x128xf32> to vector<3x128xf32>
    %cst = arith.constant dense<0.000000e+00> : vector<32x128xf32>
    %4 = tpu.matmul %1, %3, %cst {dimension_numbers = #tpu.dot_dimension_numbers<[1], [0], [0], [1], [0, 0, 1, 1], [], []>} : vector<32x3xf32>, vector<3x128xf32>, vector<32x128xf32> -> vector<32x128xf32>
    %5 = arith.mulf %1, %1 : vector<32x3xf32>
    %cst_5 = arith.constant dense<0.000000e+00> : vector<32xf32>
    %6 = vector.multi_reduction <add>, %5, %cst_5 [1] : vector<32x3xf32> to vector<32xf32>
    %7 = vector.shape_cast %6 : vector<32xf32> to vector<32x1xf32>
    %8 = arith.mulf %3, %3 : vector<3x128xf32>
    %cst_6 = arith.constant dense<0.000000e+00> : vector<128xf32>
    %9 = vector.multi_reduction <add>, %8, %cst_6 [0] : vector<3x128xf32> to vector<128xf32>
    %10 = vector.shape_cast %9 : vector<128xf32> to vector<1x128xf32>
    %11 = vector.broadcast %7 : vector<32x1xf32> to vector<32x128xf32>
    %12 = vector.broadcast %10 : vector<1x128xf32> to vector<32x128xf32>
    %13 = arith.addf %11, %12 : vector<32x128xf32>
    %cst_7 = arith.constant 2.000000e+00 : f32
    %14 = vector.broadcast %cst_7 : f32 to vector<32x128xf32>
    %15 = arith.mulf %14, %4 : vector<32x128xf32>
    %16 = arith.subf %13, %15 : vector<32x128xf32>
    %cst_8 = arith.constant 0.000000e+00 : f32
    %17 = vector.broadcast %cst_8 : f32 to vector<32x128xf32>
    %18 = arith.maximumf %16, %17 : vector<32x128xf32>
    %19 = vector.shape_cast %18 : vector<32x128xf32> to vector<1x32x128xf32>
    %c0_9 = arith.constant 0 : index
    %c0_10 = arith.constant 0 : index
    %c0_11 = arith.constant 0 : index
    %20 = vector.load %arg5[%c0_9, %c0_10, %c0_11] : memref<1x32x128xf32, #tpu.memory_space<vmem>>, vector<1x32x128xf32>
    tpu.vector_store %arg5[%c0_9, %c0_10, %c0_11], %19 {strides = array<i32>} : memref<1x32x128xf32, #tpu.memory_space<vmem>>, vector<1x32x128xf32>,
    return
  }
  func.func @transform_0(%arg0: i32, %arg1: i32, %arg2: i32) -> (i32, i32, i32) {
    %c0_i32 = arith.constant 0 : i32
    %c0_i32_0 = arith.constant 0 : i32
    return %arg0, %arg1, %c0_i32 : i32, i32, i32
  }
  func.func @transform_1(%arg0: i32, %arg1: i32, %arg2: i32) -> (i32, i32, i32) {
    %c0_i32 = arith.constant 0 : i32
    %c0_i32_0 = arith.constant 0 : i32
    return %arg0, %c0_i32, %arg2 : i32, i32, i32
  }
  func.func @transform_2(%arg0: i32, %arg1: i32, %arg2: i32) -> (i32, i32, i32) {
    %c0_i32 = arith.constant 0 : i32
    return %arg0, %arg1, %arg2 : i32, i32, i32
  }
}

module attributes {stable_mosaic.version = 11 : i64} {
  func.func @kernel(%arg0: i32, %arg1: i32, %arg2: memref<1x16x128xbf16, #tpu.memory_space<vmem>>, %arg3: memref<64x16xbf16, #tpu.memory_space<vmem>>, %arg4: memref<64x64xbf16, #tpu.memory_space<vmem>>, %arg5: memref<128x64xbf16, #tpu.memory_space<vmem>>, %arg6: memref<256x1xf32, #tpu.memory_space<vmem>>, %arg7: memref<128x128xf32, #tpu.memory_space<vmem>>) attributes {dimension_semantics = [#tpu.dimension_semantics<parallel>, #tpu.dimension_semantics<arbitrary>], iteration_bounds = array<i64: 1, 16>, scalar_prefetch = 0 : i64, scratch_operands = 0 : i64, tpu.core_type = #tpu.core_type<tc>, window_params = [{transform_indices = @transform_0, window_bounds = array<i64: 1, 16, 128>}, {pipeline_mode = #tpu.pipeline_mode<synchronous>, transform_indices = @transform_1, window_bounds = array<i64: 64, 16>}, {pipeline_mode = #tpu.pipeline_mode<synchronous>, transform_indices = @transform_2, window_bounds = array<i64: 64, 64>}, {pipeline_mode = #tpu.pipeline_mode<synchronous>, transform_indices = @transform_3, window_bounds = array<i64: 128, 64>}, {pipeline_mode = #tpu.pipeline_mode<synchronous>, transform_indices = @transform_4, window_bounds = array<i64: 256, 1>}, {transform_indices = @transform_5, window_bounds = array<i64: 128, 128>}]} {
    %c0 = arith.constant 0 : index
    %c0_0 = arith.constant 0 : index
    %0 = vector.load %arg6[%c0, %c0_0] : memref<256x1xf32, #tpu.memory_space<vmem>>, vector<256x1xf32>
    %c0_1 = arith.constant 0 : index
    %c0_2 = arith.constant 0 : index
    %c0_3 = arith.constant 0 : index
    %1 = vector.load %arg2[%c0_1, %c0_2, %c0_3] : memref<1x16x128xbf16, #tpu.memory_space<vmem>>, vector<1x16x128xbf16>
    %2 = vector.shape_cast %1 : vector<1x16x128xbf16> to vector<16x128xbf16>
    %c0_4 = arith.constant 0 : index
    %c0_5 = arith.constant 0 : index
    %3 = vector.load %arg3[%c0_4, %c0_5] : memref<64x16xbf16, #tpu.memory_space<vmem>>, vector<64x16xbf16>
    %4 = vector.extract_strided_slice %0 {offsets = [0, 0], sizes = [64, 1], strides = [1, 1]} : vector<256x1xf32> to vector<64x1xf32>
    %cst = arith.constant dense<0.000000e+00> : vector<64x128xf32>
    %5 = tpu.matmul %3, %2, %cst {dimension_numbers = #tpu.dot_dimension_numbers<[1], [0], [0], [1], [0, 0, 1, 1], [], []>} : vector<64x16xbf16>, vector<16x128xbf16>, vector<64x128xf32> -> vector<64x128xf32>
    %6 = vector.broadcast %4 : vector<64x1xf32> to vector<64x128xf32>
    %7 = arith.addf %5, %6 : vector<64x128xf32>
    %cst_6 = arith.constant 0.000000e+00 : f32
    %8 = vector.broadcast %cst_6 : f32 to vector<64x128xf32>
    %9 = arith.maximumf %7, %8 : vector<64x128xf32>
    %10 = arith.truncf %9 : vector<64x128xf32> to vector<64x128xbf16>
    %c0_7 = arith.constant 0 : index
    %c0_8 = arith.constant 0 : index
    %11 = vector.load %arg4[%c0_7, %c0_8] : memref<64x64xbf16, #tpu.memory_space<vmem>>, vector<64x64xbf16>
    %12 = vector.extract_strided_slice %0 {offsets = [64, 0], sizes = [64, 1], strides = [1, 1]} : vector<256x1xf32> to vector<64x1xf32>
    %cst_9 = arith.constant dense<0.000000e+00> : vector<64x128xf32>
    %13 = tpu.matmul %11, %10, %cst_9 {dimension_numbers = #tpu.dot_dimension_numbers<[1], [0], [0], [1], [0, 0, 1, 1], [], []>} : vector<64x64xbf16>, vector<64x128xbf16>, vector<64x128xf32> -> vector<64x128xf32>
    %14 = vector.broadcast %12 : vector<64x1xf32> to vector<64x128xf32>
    %15 = arith.addf %13, %14 : vector<64x128xf32>
    %cst_10 = arith.constant 0.000000e+00 : f32
    %16 = vector.broadcast %cst_10 : f32 to vector<64x128xf32>
    %17 = arith.maximumf %15, %16 : vector<64x128xf32>
    %18 = arith.truncf %17 : vector<64x128xf32> to vector<64x128xbf16>
    %c0_11 = arith.constant 0 : index
    %c0_12 = arith.constant 0 : index
    %19 = vector.load %arg5[%c0_11, %c0_12] : memref<128x64xbf16, #tpu.memory_space<vmem>>, vector<128x64xbf16>
    %20 = vector.extract_strided_slice %0 {offsets = [128, 0], sizes = [128, 1], strides = [1, 1]} : vector<256x1xf32> to vector<128x1xf32>
    %cst_13 = arith.constant dense<0.000000e+00> : vector<128x128xf32>
    %21 = tpu.matmul %19, %18, %cst_13 {dimension_numbers = #tpu.dot_dimension_numbers<[1], [0], [0], [1], [0, 0, 1, 1], [], []>} : vector<128x64xbf16>, vector<64x128xbf16>, vector<128x128xf32> -> vector<128x128xf32>
    %22 = vector.broadcast %20 : vector<128x1xf32> to vector<128x128xf32>
    %23 = arith.addf %21, %22 : vector<128x128xf32>
    %cst_14 = arith.constant 0.000000e+00 : f32
    %24 = vector.broadcast %cst_14 : f32 to vector<128x128xf32>
    %25 = arith.maximumf %23, %24 : vector<128x128xf32>
    %c0_i32 = arith.constant 0 : i32
    %26 = arith.cmpi eq, %arg1, %c0_i32 : i32
    %27 = arith.extui %26 : i1 to i32
    %c0_i32_15 = arith.constant 0 : i32
    %28 = arith.cmpi ne, %27, %c0_i32_15 : i32
    scf.if %28 {
      %c0_18 = arith.constant 0 : index
      %c0_19 = arith.constant 0 : index
      %32 = vector.load %arg7[%c0_18, %c0_19] : memref<128x128xf32, #tpu.memory_space<vmem>>, vector<128x128xf32>
      tpu.vector_store %arg7[%c0_18, %c0_19], %25 {strides = array<i32>} : memref<128x128xf32, #tpu.memory_space<vmem>>, vector<128x128xf32>,
    } else {
    }
    %c0_i32_16 = arith.constant 0 : i32
    %29 = arith.cmpi sgt, %arg1, %c0_i32_16 : i32
    %30 = arith.extui %29 : i1 to i32
    %c0_i32_17 = arith.constant 0 : i32
    %31 = arith.cmpi ne, %30, %c0_i32_17 : i32
    scf.if %31 {
      %c0_18 = arith.constant 0 : index
      %c0_19 = arith.constant 0 : index
      %32 = vector.load %arg7[%c0_18, %c0_19] : memref<128x128xf32, #tpu.memory_space<vmem>>, vector<128x128xf32>
      %33 = arith.maximumf %32, %25 : vector<128x128xf32>
      %c0_20 = arith.constant 0 : index
      %c0_21 = arith.constant 0 : index
      %34 = vector.load %arg7[%c0_20, %c0_21] : memref<128x128xf32, #tpu.memory_space<vmem>>, vector<128x128xf32>
      tpu.vector_store %arg7[%c0_20, %c0_21], %33 {strides = array<i32>} : memref<128x128xf32, #tpu.memory_space<vmem>>, vector<128x128xf32>,
    } else {
    }
    return
  }
  func.func @transform_0(%arg0: i32, %arg1: i32) -> (i32, i32, i32) {
    %c0_i32 = arith.constant 0 : i32
    %c0_i32_0 = arith.constant 0 : i32
    return %arg1, %c0_i32, %arg0 : i32, i32, i32
  }
  func.func @transform_1(%arg0: i32, %arg1: i32) -> (i32, i32) {
    %c0_i32 = arith.constant 0 : i32
    %c0_i32_0 = arith.constant 0 : i32
    %c0_i32_1 = arith.constant 0 : i32
    return %c0_i32, %c0_i32_0 : i32, i32
  }
  func.func @transform_2(%arg0: i32, %arg1: i32) -> (i32, i32) {
    %c0_i32 = arith.constant 0 : i32
    %c0_i32_0 = arith.constant 0 : i32
    %c0_i32_1 = arith.constant 0 : i32
    return %c0_i32, %c0_i32_0 : i32, i32
  }
  func.func @transform_3(%arg0: i32, %arg1: i32) -> (i32, i32) {
    %c0_i32 = arith.constant 0 : i32
    %c0_i32_0 = arith.constant 0 : i32
    %c0_i32_1 = arith.constant 0 : i32
    return %c0_i32, %c0_i32_0 : i32, i32
  }
  func.func @transform_4(%arg0: i32, %arg1: i32) -> (i32, i32) {
    %c0_i32 = arith.constant 0 : i32
    %c0_i32_0 = arith.constant 0 : i32
    %c0_i32_1 = arith.constant 0 : i32
    return %c0_i32, %c0_i32_0 : i32, i32
  }
  func.func @transform_5(%arg0: i32, %arg1: i32) -> (i32, i32) {
    %c0_i32 = arith.constant 0 : i32
    %c0_i32_0 = arith.constant 0 : i32
    return %c0_i32, %arg0 : i32, i32
  }
}

module attributes {stable_mosaic.version = 11 : i64} {
  func.func @kernel(%arg0: i32, %arg1: i32, %arg2: memref<1x144x128xbf16, #tpu.memory_space<vmem>>, %arg3: memref<128x144xbf16, #tpu.memory_space<vmem>>, %arg4: memref<128x128xbf16, #tpu.memory_space<vmem>>, %arg5: memref<256x128xbf16, #tpu.memory_space<vmem>>, %arg6: memref<512x1xf32, #tpu.memory_space<vmem>>, %arg7: memref<256x128xf32, #tpu.memory_space<vmem>>) attributes {dimension_semantics = [#tpu.dimension_semantics<parallel>, #tpu.dimension_semantics<arbitrary>], iteration_bounds = array<i64: 1, 8>, scalar_prefetch = 0 : i64, scratch_operands = 0 : i64, tpu.core_type = #tpu.core_type<tc>, window_params = [{transform_indices = @transform_0, window_bounds = array<i64: 1, 144, 128>}, {pipeline_mode = #tpu.pipeline_mode<synchronous>, transform_indices = @transform_1, window_bounds = array<i64: 128, 144>}, {pipeline_mode = #tpu.pipeline_mode<synchronous>, transform_indices = @transform_2, window_bounds = array<i64: 128, 128>}, {pipeline_mode = #tpu.pipeline_mode<synchronous>, transform_indices = @transform_3, window_bounds = array<i64: 256, 128>}, {pipeline_mode = #tpu.pipeline_mode<synchronous>, transform_indices = @transform_4, window_bounds = array<i64: 512, 1>}, {transform_indices = @transform_5, window_bounds = array<i64: 256, 128>}]} {
    %c0 = arith.constant 0 : index
    %c0_0 = arith.constant 0 : index
    %0 = vector.load %arg6[%c0, %c0_0] : memref<512x1xf32, #tpu.memory_space<vmem>>, vector<512x1xf32>
    %c0_1 = arith.constant 0 : index
    %c0_2 = arith.constant 0 : index
    %c0_3 = arith.constant 0 : index
    %1 = vector.load %arg2[%c0_1, %c0_2, %c0_3] : memref<1x144x128xbf16, #tpu.memory_space<vmem>>, vector<1x144x128xbf16>
    %2 = vector.shape_cast %1 : vector<1x144x128xbf16> to vector<144x128xbf16>
    %c0_4 = arith.constant 0 : index
    %c0_5 = arith.constant 0 : index
    %3 = vector.load %arg3[%c0_4, %c0_5] : memref<128x144xbf16, #tpu.memory_space<vmem>>, vector<128x144xbf16>
    %4 = vector.extract_strided_slice %0 {offsets = [0, 0], sizes = [128, 1], strides = [1, 1]} : vector<512x1xf32> to vector<128x1xf32>
    %cst = arith.constant dense<0.000000e+00> : vector<128x128xf32>
    %5 = tpu.matmul %3, %2, %cst {dimension_numbers = #tpu.dot_dimension_numbers<[1], [0], [0], [1], [0, 0, 1, 1], [], []>} : vector<128x144xbf16>, vector<144x128xbf16>, vector<128x128xf32> -> vector<128x128xf32>
    %6 = vector.broadcast %4 : vector<128x1xf32> to vector<128x128xf32>
    %7 = arith.addf %5, %6 : vector<128x128xf32>
    %cst_6 = arith.constant 0.000000e+00 : f32
    %8 = vector.broadcast %cst_6 : f32 to vector<128x128xf32>
    %9 = arith.maximumf %7, %8 : vector<128x128xf32>
    %10 = arith.truncf %9 : vector<128x128xf32> to vector<128x128xbf16>
    %c0_7 = arith.constant 0 : index
    %c0_8 = arith.constant 0 : index
    %11 = vector.load %arg4[%c0_7, %c0_8] : memref<128x128xbf16, #tpu.memory_space<vmem>>, vector<128x128xbf16>
    %12 = vector.extract_strided_slice %0 {offsets = [128, 0], sizes = [128, 1], strides = [1, 1]} : vector<512x1xf32> to vector<128x1xf32>
    %cst_9 = arith.constant dense<0.000000e+00> : vector<128x128xf32>
    %13 = tpu.matmul %11, %10, %cst_9 {dimension_numbers = #tpu.dot_dimension_numbers<[1], [0], [0], [1], [0, 0, 1, 1], [], []>} : vector<128x128xbf16>, vector<128x128xbf16>, vector<128x128xf32> -> vector<128x128xf32>
    %14 = vector.broadcast %12 : vector<128x1xf32> to vector<128x128xf32>
    %15 = arith.addf %13, %14 : vector<128x128xf32>
    %cst_10 = arith.constant 0.000000e+00 : f32
    %16 = vector.broadcast %cst_10 : f32 to vector<128x128xf32>
    %17 = arith.maximumf %15, %16 : vector<128x128xf32>
    %18 = arith.truncf %17 : vector<128x128xf32> to vector<128x128xbf16>
    %c0_11 = arith.constant 0 : index
    %c0_12 = arith.constant 0 : index
    %19 = vector.load %arg5[%c0_11, %c0_12] : memref<256x128xbf16, #tpu.memory_space<vmem>>, vector<256x128xbf16>
    %20 = vector.extract_strided_slice %0 {offsets = [256, 0], sizes = [256, 1], strides = [1, 1]} : vector<512x1xf32> to vector<256x1xf32>
    %cst_13 = arith.constant dense<0.000000e+00> : vector<256x128xf32>
    %21 = tpu.matmul %19, %18, %cst_13 {dimension_numbers = #tpu.dot_dimension_numbers<[1], [0], [0], [1], [0, 0, 1, 1], [], []>} : vector<256x128xbf16>, vector<128x128xbf16>, vector<256x128xf32> -> vector<256x128xf32>
    %22 = vector.broadcast %20 : vector<256x1xf32> to vector<256x128xf32>
    %23 = arith.addf %21, %22 : vector<256x128xf32>
    %cst_14 = arith.constant 0.000000e+00 : f32
    %24 = vector.broadcast %cst_14 : f32 to vector<256x128xf32>
    %25 = arith.maximumf %23, %24 : vector<256x128xf32>
    %c0_i32 = arith.constant 0 : i32
    %26 = arith.cmpi eq, %arg1, %c0_i32 : i32
    %27 = arith.extui %26 : i1 to i32
    %c0_i32_15 = arith.constant 0 : i32
    %28 = arith.cmpi ne, %27, %c0_i32_15 : i32
    scf.if %28 {
      %c0_18 = arith.constant 0 : index
      %c0_19 = arith.constant 0 : index
      %32 = vector.load %arg7[%c0_18, %c0_19] : memref<256x128xf32, #tpu.memory_space<vmem>>, vector<256x128xf32>
      tpu.vector_store %arg7[%c0_18, %c0_19], %25 {strides = array<i32>} : memref<256x128xf32, #tpu.memory_space<vmem>>, vector<256x128xf32>,
    } else {
    }
    %c0_i32_16 = arith.constant 0 : i32
    %29 = arith.cmpi sgt, %arg1, %c0_i32_16 : i32
    %30 = arith.extui %29 : i1 to i32
    %c0_i32_17 = arith.constant 0 : i32
    %31 = arith.cmpi ne, %30, %c0_i32_17 : i32
    scf.if %31 {
      %c0_18 = arith.constant 0 : index
      %c0_19 = arith.constant 0 : index
      %32 = vector.load %arg7[%c0_18, %c0_19] : memref<256x128xf32, #tpu.memory_space<vmem>>, vector<256x128xf32>
      %33 = arith.maximumf %32, %25 : vector<256x128xf32>
      %c0_20 = arith.constant 0 : index
      %c0_21 = arith.constant 0 : index
      %34 = vector.load %arg7[%c0_20, %c0_21] : memref<256x128xf32, #tpu.memory_space<vmem>>, vector<256x128xf32>
      tpu.vector_store %arg7[%c0_20, %c0_21], %33 {strides = array<i32>} : memref<256x128xf32, #tpu.memory_space<vmem>>, vector<256x128xf32>,
    } else {
    }
    return
  }
  func.func @transform_0(%arg0: i32, %arg1: i32) -> (i32, i32, i32) {
    %c0_i32 = arith.constant 0 : i32
    %c0_i32_0 = arith.constant 0 : i32
    return %arg1, %c0_i32, %arg0 : i32, i32, i32
  }
  func.func @transform_1(%arg0: i32, %arg1: i32) -> (i32, i32) {
    %c0_i32 = arith.constant 0 : i32
    %c0_i32_0 = arith.constant 0 : i32
    %c0_i32_1 = arith.constant 0 : i32
    return %c0_i32, %c0_i32_0 : i32, i32
  }
  func.func @transform_2(%arg0: i32, %arg1: i32) -> (i32, i32) {
    %c0_i32 = arith.constant 0 : i32
    %c0_i32_0 = arith.constant 0 : i32
    %c0_i32_1 = arith.constant 0 : i32
    return %c0_i32, %c0_i32_0 : i32, i32
  }
  func.func @transform_3(%arg0: i32, %arg1: i32) -> (i32, i32) {
    %c0_i32 = arith.constant 0 : i32
    %c0_i32_0 = arith.constant 0 : i32
    %c0_i32_1 = arith.constant 0 : i32
    return %c0_i32, %c0_i32_0 : i32, i32
  }
  func.func @transform_4(%arg0: i32, %arg1: i32) -> (i32, i32) {
    %c0_i32 = arith.constant 0 : i32
    %c0_i32_0 = arith.constant 0 : i32
    %c0_i32_1 = arith.constant 0 : i32
    return %c0_i32, %c0_i32_0 : i32, i32
  }
  func.func @transform_5(%arg0: i32, %arg1: i32) -> (i32, i32) {
    %c0_i32 = arith.constant 0 : i32
    %c0_i32_0 = arith.constant 0 : i32
    return %c0_i32, %arg0 : i32, i32
  }
}

module attributes {stable_mosaic.version = 11 : i64} {
  func.func @kernel(%arg0: i32, %arg1: i32, %arg2: memref<1x272x128xbf16, #tpu.memory_space<vmem>>, %arg3: memref<128x272xbf16, #tpu.memory_space<vmem>>, %arg4: memref<128x128xbf16, #tpu.memory_space<vmem>>, %arg5: memref<256x128xbf16, #tpu.memory_space<vmem>>, %arg6: memref<512x1xf32, #tpu.memory_space<vmem>>, %arg7: memref<256x128xf32, #tpu.memory_space<vmem>>) attributes {dimension_semantics = [#tpu.dimension_semantics<parallel>, #tpu.dimension_semantics<arbitrary>], iteration_bounds = array<i64: 1, 8>, scalar_prefetch = 0 : i64, scratch_operands = 0 : i64, tpu.core_type = #tpu.core_type<tc>, window_params = [{transform_indices = @transform_0, window_bounds = array<i64: 1, 272, 128>}, {pipeline_mode = #tpu.pipeline_mode<synchronous>, transform_indices = @transform_1, window_bounds = array<i64: 128, 272>}, {pipeline_mode = #tpu.pipeline_mode<synchronous>, transform_indices = @transform_2, window_bounds = array<i64: 128, 128>}, {pipeline_mode = #tpu.pipeline_mode<synchronous>, transform_indices = @transform_3, window_bounds = array<i64: 256, 128>}, {pipeline_mode = #tpu.pipeline_mode<synchronous>, transform_indices = @transform_4, window_bounds = array<i64: 512, 1>}, {transform_indices = @transform_5, window_bounds = array<i64: 256, 128>}]} {
    %c0 = arith.constant 0 : index
    %c0_0 = arith.constant 0 : index
    %0 = vector.load %arg6[%c0, %c0_0] : memref<512x1xf32, #tpu.memory_space<vmem>>, vector<512x1xf32>
    %c0_1 = arith.constant 0 : index
    %c0_2 = arith.constant 0 : index
    %c0_3 = arith.constant 0 : index
    %1 = vector.load %arg2[%c0_1, %c0_2, %c0_3] : memref<1x272x128xbf16, #tpu.memory_space<vmem>>, vector<1x272x128xbf16>
    %2 = vector.shape_cast %1 : vector<1x272x128xbf16> to vector<272x128xbf16>
    %c0_4 = arith.constant 0 : index
    %c0_5 = arith.constant 0 : index
    %3 = vector.load %arg3[%c0_4, %c0_5] : memref<128x272xbf16, #tpu.memory_space<vmem>>, vector<128x272xbf16>
    %4 = vector.extract_strided_slice %0 {offsets = [0, 0], sizes = [128, 1], strides = [1, 1]} : vector<512x1xf32> to vector<128x1xf32>
    %cst = arith.constant dense<0.000000e+00> : vector<128x128xf32>
    %5 = tpu.matmul %3, %2, %cst {dimension_numbers = #tpu.dot_dimension_numbers<[1], [0], [0], [1], [0, 0, 1, 1], [], []>} : vector<128x272xbf16>, vector<272x128xbf16>, vector<128x128xf32> -> vector<128x128xf32>
    %6 = vector.broadcast %4 : vector<128x1xf32> to vector<128x128xf32>
    %7 = arith.addf %5, %6 : vector<128x128xf32>
    %cst_6 = arith.constant 0.000000e+00 : f32
    %8 = vector.broadcast %cst_6 : f32 to vector<128x128xf32>
    %9 = arith.maximumf %7, %8 : vector<128x128xf32>
    %10 = arith.truncf %9 : vector<128x128xf32> to vector<128x128xbf16>
    %c0_7 = arith.constant 0 : index
    %c0_8 = arith.constant 0 : index
    %11 = vector.load %arg4[%c0_7, %c0_8] : memref<128x128xbf16, #tpu.memory_space<vmem>>, vector<128x128xbf16>
    %12 = vector.extract_strided_slice %0 {offsets = [128, 0], sizes = [128, 1], strides = [1, 1]} : vector<512x1xf32> to vector<128x1xf32>
    %cst_9 = arith.constant dense<0.000000e+00> : vector<128x128xf32>
    %13 = tpu.matmul %11, %10, %cst_9 {dimension_numbers = #tpu.dot_dimension_numbers<[1], [0], [0], [1], [0, 0, 1, 1], [], []>} : vector<128x128xbf16>, vector<128x128xbf16>, vector<128x128xf32> -> vector<128x128xf32>
    %14 = vector.broadcast %12 : vector<128x1xf32> to vector<128x128xf32>
    %15 = arith.addf %13, %14 : vector<128x128xf32>
    %cst_10 = arith.constant 0.000000e+00 : f32
    %16 = vector.broadcast %cst_10 : f32 to vector<128x128xf32>
    %17 = arith.maximumf %15, %16 : vector<128x128xf32>
    %18 = arith.truncf %17 : vector<128x128xf32> to vector<128x128xbf16>
    %c0_11 = arith.constant 0 : index
    %c0_12 = arith.constant 0 : index
    %19 = vector.load %arg5[%c0_11, %c0_12] : memref<256x128xbf16, #tpu.memory_space<vmem>>, vector<256x128xbf16>
    %20 = vector.extract_strided_slice %0 {offsets = [256, 0], sizes = [256, 1], strides = [1, 1]} : vector<512x1xf32> to vector<256x1xf32>
    %cst_13 = arith.constant dense<0.000000e+00> : vector<256x128xf32>
    %21 = tpu.matmul %19, %18, %cst_13 {dimension_numbers = #tpu.dot_dimension_numbers<[1], [0], [0], [1], [0, 0, 1, 1], [], []>} : vector<256x128xbf16>, vector<128x128xbf16>, vector<256x128xf32> -> vector<256x128xf32>
    %22 = vector.broadcast %20 : vector<256x1xf32> to vector<256x128xf32>
    %23 = arith.addf %21, %22 : vector<256x128xf32>
    %cst_14 = arith.constant 0.000000e+00 : f32
    %24 = vector.broadcast %cst_14 : f32 to vector<256x128xf32>
    %25 = arith.maximumf %23, %24 : vector<256x128xf32>
    %c0_i32 = arith.constant 0 : i32
    %26 = arith.cmpi eq, %arg1, %c0_i32 : i32
    %27 = arith.extui %26 : i1 to i32
    %c0_i32_15 = arith.constant 0 : i32
    %28 = arith.cmpi ne, %27, %c0_i32_15 : i32
    scf.if %28 {
      %c0_18 = arith.constant 0 : index
      %c0_19 = arith.constant 0 : index
      %32 = vector.load %arg7[%c0_18, %c0_19] : memref<256x128xf32, #tpu.memory_space<vmem>>, vector<256x128xf32>
      tpu.vector_store %arg7[%c0_18, %c0_19], %25 {strides = array<i32>} : memref<256x128xf32, #tpu.memory_space<vmem>>, vector<256x128xf32>,
    } else {
    }
    %c0_i32_16 = arith.constant 0 : i32
    %29 = arith.cmpi sgt, %arg1, %c0_i32_16 : i32
    %30 = arith.extui %29 : i1 to i32
    %c0_i32_17 = arith.constant 0 : i32
    %31 = arith.cmpi ne, %30, %c0_i32_17 : i32
    scf.if %31 {
      %c0_18 = arith.constant 0 : index
      %c0_19 = arith.constant 0 : index
      %32 = vector.load %arg7[%c0_18, %c0_19] : memref<256x128xf32, #tpu.memory_space<vmem>>, vector<256x128xf32>
      %33 = arith.maximumf %32, %25 : vector<256x128xf32>
      %c0_20 = arith.constant 0 : index
      %c0_21 = arith.constant 0 : index
      %34 = vector.load %arg7[%c0_20, %c0_21] : memref<256x128xf32, #tpu.memory_space<vmem>>, vector<256x128xf32>
      tpu.vector_store %arg7[%c0_20, %c0_21], %33 {strides = array<i32>} : memref<256x128xf32, #tpu.memory_space<vmem>>, vector<256x128xf32>,
    } else {
    }
    return
  }
  func.func @transform_0(%arg0: i32, %arg1: i32) -> (i32, i32, i32) {
    %c0_i32 = arith.constant 0 : i32
    %c0_i32_0 = arith.constant 0 : i32
    return %arg1, %c0_i32, %arg0 : i32, i32, i32
  }
  func.func @transform_1(%arg0: i32, %arg1: i32) -> (i32, i32) {
    %c0_i32 = arith.constant 0 : i32
    %c0_i32_0 = arith.constant 0 : i32
    %c0_i32_1 = arith.constant 0 : i32
    return %c0_i32, %c0_i32_0 : i32, i32
  }
  func.func @transform_2(%arg0: i32, %arg1: i32) -> (i32, i32) {
    %c0_i32 = arith.constant 0 : i32
    %c0_i32_0 = arith.constant 0 : i32
    %c0_i32_1 = arith.constant 0 : i32
    return %c0_i32, %c0_i32_0 : i32, i32
  }
  func.func @transform_3(%arg0: i32, %arg1: i32) -> (i32, i32) {
    %c0_i32 = arith.constant 0 : i32
    %c0_i32_0 = arith.constant 0 : i32
    %c0_i32_1 = arith.constant 0 : i32
    return %c0_i32, %c0_i32_0 : i32, i32
  }
  func.func @transform_4(%arg0: i32, %arg1: i32) -> (i32, i32) {
    %c0_i32 = arith.constant 0 : i32
    %c0_i32_0 = arith.constant 0 : i32
    %c0_i32_1 = arith.constant 0 : i32
    return %c0_i32, %c0_i32_0 : i32, i32
  }
  func.func @transform_5(%arg0: i32, %arg1: i32) -> (i32, i32) {
    %c0_i32 = arith.constant 0 : i32
    %c0_i32_0 = arith.constant 0 : i32
    return %c0_i32, %arg0 : i32, i32
  }
}

module attributes {stable_mosaic.version = 11 : i64} {
  func.func @kernel(%arg0: i32, %arg1: memref<512x128xbf16, #tpu.memory_space<vmem>>, %arg2: memref<256x512xbf16, #tpu.memory_space<vmem>>, %arg3: memref<256x256xbf16, #tpu.memory_space<vmem>>, %arg4: memref<512x1xf32, #tpu.memory_space<vmem>>, %arg5: memref<256x128xf32, #tpu.memory_space<vmem>>) attributes {dimension_semantics = [#tpu.dimension_semantics<parallel>], iteration_bounds = array<i64: 1>, scalar_prefetch = 0 : i64, scratch_operands = 0 : i64, tpu.core_type = #tpu.core_type<tc>, window_params = [{transform_indices = @transform_0, window_bounds = array<i64: 512, 128>}, {pipeline_mode = #tpu.pipeline_mode<synchronous>, transform_indices = @transform_1, window_bounds = array<i64: 256, 512>}, {pipeline_mode = #tpu.pipeline_mode<synchronous>, transform_indices = @transform_2, window_bounds = array<i64: 256, 256>}, {pipeline_mode = #tpu.pipeline_mode<synchronous>, transform_indices = @transform_3, window_bounds = array<i64: 512, 1>}, {transform_indices = @transform_4, window_bounds = array<i64: 256, 128>}]} {
    %c0 = arith.constant 0 : index
    %c0_0 = arith.constant 0 : index
    %0 = vector.load %arg4[%c0, %c0_0] : memref<512x1xf32, #tpu.memory_space<vmem>>, vector<512x1xf32>
    %c0_1 = arith.constant 0 : index
    %c0_2 = arith.constant 0 : index
    %1 = vector.load %arg1[%c0_1, %c0_2] : memref<512x128xbf16, #tpu.memory_space<vmem>>, vector<512x128xbf16>
    %c0_3 = arith.constant 0 : index
    %c0_4 = arith.constant 0 : index
    %2 = vector.load %arg2[%c0_3, %c0_4] : memref<256x512xbf16, #tpu.memory_space<vmem>>, vector<256x512xbf16>
    %3 = vector.extract_strided_slice %0 {offsets = [0, 0], sizes = [256, 1], strides = [1, 1]} : vector<512x1xf32> to vector<256x1xf32>
    %cst = arith.constant dense<0.000000e+00> : vector<256x128xf32>
    %4 = tpu.matmul %2, %1, %cst {dimension_numbers = #tpu.dot_dimension_numbers<[1], [0], [0], [1], [0, 0, 1, 1], [], []>} : vector<256x512xbf16>, vector<512x128xbf16>, vector<256x128xf32> -> vector<256x128xf32>
    %5 = vector.broadcast %3 : vector<256x1xf32> to vector<256x128xf32>
    %6 = arith.addf %4, %5 : vector<256x128xf32>
    %cst_5 = arith.constant 0.000000e+00 : f32
    %7 = vector.broadcast %cst_5 : f32 to vector<256x128xf32>
    %8 = arith.maximumf %6, %7 : vector<256x128xf32>
    %9 = arith.truncf %8 : vector<256x128xf32> to vector<256x128xbf16>
    %c0_6 = arith.constant 0 : index
    %c0_7 = arith.constant 0 : index
    %10 = vector.load %arg3[%c0_6, %c0_7] : memref<256x256xbf16, #tpu.memory_space<vmem>>, vector<256x256xbf16>
    %11 = vector.extract_strided_slice %0 {offsets = [256, 0], sizes = [256, 1], strides = [1, 1]} : vector<512x1xf32> to vector<256x1xf32>
    %cst_8 = arith.constant dense<0.000000e+00> : vector<256x128xf32>
    %12 = tpu.matmul %10, %9, %cst_8 {dimension_numbers = #tpu.dot_dimension_numbers<[1], [0], [0], [1], [0, 0, 1, 1], [], []>} : vector<256x256xbf16>, vector<256x128xbf16>, vector<256x128xf32> -> vector<256x128xf32>
    %13 = vector.broadcast %11 : vector<256x1xf32> to vector<256x128xf32>
    %14 = arith.addf %12, %13 : vector<256x128xf32>
    %cst_9 = arith.constant 0.000000e+00 : f32
    %15 = vector.broadcast %cst_9 : f32 to vector<256x128xf32>
    %16 = arith.maximumf %14, %15 : vector<256x128xf32>
    %c0_10 = arith.constant 0 : index
    %c0_11 = arith.constant 0 : index
    %17 = vector.load %arg5[%c0_10, %c0_11] : memref<256x128xf32, #tpu.memory_space<vmem>>, vector<256x128xf32>
    tpu.vector_store %arg5[%c0_10, %c0_11], %16 {strides = array<i32>} : memref<256x128xf32, #tpu.memory_space<vmem>>, vector<256x128xf32>,
    return
  }
  func.func @transform_0(%arg0: i32) -> (i32, i32) {
    %c0_i32 = arith.constant 0 : i32
    %c0_i32_0 = arith.constant 0 : i32
    return %c0_i32, %arg0 : i32, i32
  }
  func.func @transform_1(%arg0: i32) -> (i32, i32) {
    %c0_i32 = arith.constant 0 : i32
    %c0_i32_0 = arith.constant 0 : i32
    %c0_i32_1 = arith.constant 0 : i32
    return %c0_i32, %c0_i32_0 : i32, i32
  }
  func.func @transform_2(%arg0: i32) -> (i32, i32) {
    %c0_i32 = arith.constant 0 : i32
    %c0_i32_0 = arith.constant 0 : i32
    %c0_i32_1 = arith.constant 0 : i32
    return %c0_i32, %c0_i32_0 : i32, i32
  }
  func.func @transform_3(%arg0: i32) -> (i32, i32) {
    %c0_i32 = arith.constant 0 : i32
    %c0_i32_0 = arith.constant 0 : i32
    %c0_i32_1 = arith.constant 0 : i32
    return %c0_i32, %c0_i32_0 : i32, i32
  }
  func.func @transform_4(%arg0: i32) -> (i32, i32) {
    %c0_i32 = arith.constant 0 : i32
    %c0_i32_0 = arith.constant 0 : i32
    return %c0_i32, %arg0 : i32, i32
  }
}

</mosaic_0001>

<llo_original>
// kernel: custom-call.34
$region0: #{custom-call.34}
  %s0 = inlined_call_operand.vmem [shape: f32[2,64], index: 0, kind: output, shape index: {}]

// kernel: custom-call.35
$region0: #{custom-call.35}
  %s0 = inlined_call_operand.vmem [shape: f32[2,32], index: 0, kind: output, shape index: {}]

// kernel: custom-call.36
$region0: #{custom-call.36}
  %s0 = inlined_call_operand.vmem [shape: f32[2,16], index: 0, kind: output, shape index: {}]

// kernel: custom-call.37
$region0: #{custom-call.37}
  %s0 = inlined_call_operand.vmem [shape: f32[2,8], index: 0, kind: output, shape index: {}]

// kernel: backbone_forward.18
$region0: #{backbone_forward.18}
  #allocation0 [shape = 'u32[]', space=smem, size = 0x4, offset = 0x4, fixed_abs, tag = 'smem constant byte address 0x4 - core index']
  #allocation1 [shape = 'u32[72,128]{1,0:T(1,128)}', space=vmem, size = 0x9000, scoped, tag = 'internal scratch']
  %s0 = inlined_call_operand.vmem [shape: f32[2,8,3], index: 0, kind: input, shape index: {}]
  %s1 = inlined_call_operand.vmem [shape: f32[2,3,128], index: 1, kind: input, shape index: {}]
  %s2 = inlined_call_operand.vmem [shape: f32[2,8,128], index: 2, kind: output, shape index: {}]
  %s3 = sld [smem:[#allocation0]]
  $region41: #{backbone_forward.18} parent=0
    _
  %s5 = ssub.s32 1, %s3
  %s6 = scalar_select 0, %s5, %s3
  loop: start=0, step=1, limit=4
  $region2: #{backbone_forward.18} parent=0 // loop_pre_header
    _
  $region3: #{backbone_forward.18} parent=0 // loop_header
    %s8 = sphi 0, %s12
    %p9 = scmp.ge.s32.totalorder %s8, 4
    %s15 = sphi 0, %s34
    %s16 = sphi 0, %s30
    %s17 = sphi 0, %s26
    %s18 = sphi 0, %s15
    %s19 = sphi 0, %s16
    %s20 = sphi 0, %s17
    %s21 = sphi 0, %s18
    %s22 = sphi 0, %s19
    %s23 = sphi 0, %s20
    %s39 = sphi 0, %s41
    %s42 = sphi 0, %s39
    %s43 = sphi 0, %s42
    %s59 = sphi 0, %s43
    %s67 = sphi 0, %s69
    %s70 = sphi 0, %s67
    %s71 = sphi 0, %s70
    %s87 = sphi 0, %s71
    %s97 = sphi 0, %s99
    %s100 = sphi 0, %s97
    %s101 = sphi 0, %s100
    %s117 = sphi 0, %s101
  $region4: #{backbone_forward.18} parent=0 // loop_header_branch
    %11 = sbr.rel (%p9) target = $region8
  $region5: #{backbone_forward.18} parent=0 // loop_body
    %s13 = ssub.s32 %s8, 1
    %s14 = ssub.s32 %s8, 2
    %s24 = sadd.s32 1, %s17
    %p25 = scmp.ge.s32.totalorder %s24, 1
    %s26 = scalar_select %p25, 0, %s24
    %s27 = sadd.s32 1, %s16
    %s28 = scalar_select %p25, %s27, %s16
    %p29 = scmp.ge.s32.totalorder %s28, 1
    %s30 = scalar_select %p29, 0, %s28
    %s31 = sadd.s32 1, %s15
    %s32 = scalar_select %p29, %s31, %s15
    %p33 = scmp.ge.s32.totalorder %s32, 2
    %s34 = scalar_select %p33, 0, %s32
    %s35 = ssub.s32 %s15, %s34
    %s36 = ssub.s32 %s16, %s30
    %s37 = sor.u32 %s35, %s36
    %p38 = scmp.eq.s32.totalorder %s37, 0
    %s40 = sadd.s32 %s39, 1
    %s41 = scalar_select %p38, %s39, %s40
    %p44 = pneg %p38
    %p45 = scmp.eq.s32.totalorder %s8, 1
    %p46 = por %p44, %p45
    %p47 = scmp.ne.s32.totalorder %s39, %s42
    %p48 = scmp.eq.s32.totalorder %s8, 0
    %p49 = por %p47, %p48
    %p50 = scmp.ne.s32.totalorder %s39, %s42
    %p51 = scmp.eq.s32.totalorder %s13, 1
    %p52 = por %p50, %p51
    %p53 = scmp.ne.s32.totalorder %s42, %s43
    %p54 = scmp.eq.s32.totalorder %s13, 0
    %p55 = por %p53, %p54
    %p56 = scmp.ne.s32.totalorder %s42, %s43
    %p57 = scmp.eq.s32.totalorder %s14, 1
    %p58 = por %p56, %p57
    %p60 = scmp.ne.s32.totalorder %s43, %s59
    %p61 = scmp.eq.s32.totalorder %s14, 0
    %p62 = por %p60, %p61
    %s63 = ssub.s32 %s15, %s34
    %s64 = ssub.s32 %s17, %s26
    %s65 = sor.u32 %s63, %s64
    %p66 = scmp.eq.s32.totalorder %s65, 0
    %s68 = sadd.s32 %s67, 1
    %s69 = scalar_select %p66, %s67, %s68
    %p72 = pneg %p66
    %p73 = scmp.eq.s32.totalorder %s8, 1
    %p74 = por %p72, %p73
    %p75 = scmp.ne.s32.totalorder %s67, %s70
    %p76 = scmp.eq.s32.totalorder %s8, 0
    %p77 = por %p75, %p76
    %p78 = scmp.ne.s32.totalorder %s67, %s70
    %p79 = scmp.eq.s32.totalorder %s13, 1
    %p80 = por %p78, %p79
    %p81 = scmp.ne.s32.totalorder %s70, %s71
    %p82 = scmp.eq.s32.totalorder %s13, 0
    %p83 = por %p81, %p82
    %p84 = scmp.ne.s32.totalorder %s70, %s71
    %p85 = scmp.eq.s32.totalorder %s14, 1
    %p86 = por %p84, %p85
    %p88 = scmp.ne.s32.totalorder %s71, %s87
    %p89 = scmp.eq.s32.totalorder %s14, 0
    %p90 = por %p88, %p89
    %s91 = ssub.s32 %s15, %s34
    %s92 = ssub.s32 %s16, %s30
    %s93 = sor.u32 %s91, %s92
    %s94 = ssub.s32 %s17, %s26
    %s95 = sor.u32 %s93, %s94
    %p96 = scmp.eq.s32.totalorder %s95, 0
    %s98 = sadd.s32 %s97, 1
    %s99 = scalar_select %p96, %s97, %s98
    %p102 = pneg %p96
    %p103 = scmp.eq.s32.totalorder %s8, 1
    %p104 = por %p102, %p103
    %p105 = scmp.ne.s32.totalorder %s97, %s100
    %p106 = scmp.eq.s32.totalorder %s8, 0
    %p107 = por %p105, %p106
    %p108 = scmp.ne.s32.totalorder %s97, %s100
    %p109 = scmp.eq.s32.totalorder %s13, 1
    %p110 = por %p108, %p109
    %p111 = scmp.ne.s32.totalorder %s100, %s101
    %p112 = scmp.eq.s32.totalorder %s13, 0
    %p113 = por %p111, %p112
    %p114 = scmp.ne.s32.totalorder %s100, %s101
    %p115 = scmp.eq.s32.totalorder %s14, 1
    %p116 = por %p114, %p115
    %p118 = scmp.ne.s32.totalorder %s101, %s117
    %p119 = scmp.eq.s32.totalorder %s14, 0
    %p120 = por %p118, %p119
    %p121 = scmp.le.s32.totalorder 1, %s8
    %p122 = scmp.lt.s32.totalorder %s8, 3
    %p123 = pnand %p121, %p122
    %p124 = pneg %p123
    // Predicated region
    $region9: #{backbone_forward.18} parent=5 // pred_check
      _
    $region10: #{backbone_forward.18} parent=5 // pred_check_branch
      %126 = sbr.rel (%p123) target = $region12
    $region11: #{backbone_forward.18} parent=5 // pred_region
      %s127 = ssub.s32 %s8, 1
    $region12: #{backbone_forward.18} parent=5 // pred_fallthru
      _
    %p128 = scmp.lt.s32.totalorder %s8, 2
    // Predicated region
    $region13: #{backbone_forward.18} parent=5 // pred_check
      %p129 = pneg %p128
    $region14: #{backbone_forward.18} parent=5 // pred_check_branch
      %131 = sbr.rel (%p129) target = $region16
    $region15: #{backbone_forward.18} parent=5 // pred_region
      // Predicated region
      $region17: #{backbone_forward.18} parent=15 // pred_check
        %p132 = pneg %p49
      $region18: #{backbone_forward.18} parent=15 // pred_check_branch
        %134 = sbr.rel (%p132) target = $region20
      $region19: #{backbone_forward.18} parent=15 // pred_region
        %p135 = scmp.lt.s32.totalorder %s15, 1
        %s136 = scalar_select %p135, %s15, 1
        %p137 = scmp.lt.s32.totalorder %s16, 0
        %s138 = scalar_select %p137, %s16, 0
        %s139 = sadd.s32 %s138, %s136
        %s140 = smul.addr %s139, 8
        %s141 = scalar_lea.vmem %s0, %s140
      $region20: #{backbone_forward.18} parent=15 // pred_fallthru
        _
      // Predicated region
      $region21: #{backbone_forward.18} parent=15 // pred_check
        %p142 = pneg %p77
      $region22: #{backbone_forward.18} parent=15 // pred_check_branch
        %144 = sbr.rel (%p142) target = $region24
      $region23: #{backbone_forward.18} parent=15 // pred_region
        %p145 = scmp.lt.s32.totalorder %s15, 1
        %s146 = scalar_select %p145, %s15, 1
        %p147 = scmp.lt.s32.totalorder %s17, 0
        %s148 = scalar_select %p147, %s17, 0
        %s149 = sadd.s32 %s148, %s146
        %s150 = smul.addr %s149, 4
        %s151 = scalar_lea.vmem %s1, %s150
      $region24: #{backbone_forward.18} parent=15 // pred_fallthru
        _
    $region16: #{backbone_forward.18} parent=5 // pred_fallthru
      _
    %p152 = scmp.le.s32.totalorder 1, %s8
    %p153 = scmp.lt.s32.totalorder %s8, 3
    %p154 = pnand %p152, %p153
    %p155 = pneg %p154
    // Predicated region
    $region25: #{backbone_forward.18} parent=5 // pred_check
      _
    $region26: #{backbone_forward.18} parent=5 // pred_check_branch
      %157 = sbr.rel (%p154) target = $region28
    $region27: #{backbone_forward.18} parent=5 // pred_region
      %s158 = ssub.s32 %s8, 1
      %p159 = scmp.lt.s32.totalorder %s18, 1
      %s160 = scalar_select %p159, %s18, 1
      %p161 = scmp.lt.s32.totalorder %s19, 0
      %s162 = scalar_select %p161, %s19, 0
      %s163 = sadd.s32 %s162, %s160
      %s164 = smul.addr %s163, 8
      %s165 = scalar_lea.vmem %s0, %s164
      %p166 = pneg %p55
      %p167 = pneg %p52
      %p168 = scmp.lt.s32.totalorder %s18, 1
      %s169 = scalar_select %p168, %s18, 1
      %p170 = scmp.lt.s32.totalorder %s20, 0
      %s171 = scalar_select %p170, %s20, 0
      %s172 = sadd.s32 %s171, %s169
      %s173 = smul.addr %s172, 4
      %s174 = scalar_lea.vmem %s1, %s173
      %p175 = pneg %p83
      %p176 = pneg %p80
      %p177 = pneg %p113
      %p178 = pneg %p110
      %p179 = scmp.lt.s32.totalorder %s18, 1
      %s180 = scalar_select %p179, %s18, 1
      %p181 = scmp.lt.s32.totalorder %s19, 0
      %s182 = scalar_select %p181, %s19, 0
      %p183 = scmp.lt.s32.totalorder %s20, 0
      %s184 = scalar_select %p183, %s20, 0
      %s185 = sadd.s32 %s184, %s182
      %s186 = sadd.s32 %s185, %s180
      %s187 = smul.addr %s186, 8
      %s188 = scalar_lea.vmem %s2, %s187
      %p189 = scmp.lt.s32.totalorder %s18, 1
      %s190 = scalar_select %p189, %s18, 1
      %p191 = scmp.lt.s32.totalorder %s19, 0
      %s192 = scalar_select %p191, %s19, 0
      %s193 = sadd.s32 %s192, %s190
      %s194 = smul.addr %s193, 8
      %s195 = scalar_lea.vmem %s0, %s194
      %p196 = scmp.lt.s32.totalorder %s18, 1
      %s197 = scalar_select %p196, %s18, 1
      %p198 = scmp.lt.s32.totalorder %s20, 0
      %s199 = scalar_select %p198, %s20, 0
      %s200 = sadd.s32 %s199, %s197
      %s201 = smul.addr %s200, 4
      %s202 = scalar_lea.vmem %s1, %s201
      %p203 = scmp.lt.s32.totalorder %s18, 1
      %s204 = scalar_select %p203, %s18, 1
      %p205 = scmp.lt.s32.totalorder %s19, 0
      %s206 = scalar_select %p205, %s19, 0
      %p207 = scmp.lt.s32.totalorder %s20, 0
      %s208 = scalar_select %p207, %s20, 0
      %s209 = sadd.s32 %s208, %s206
      %s210 = sadd.s32 %s209, %s204
      %s211 = smul.addr %s210, 8
      %s212 = scalar_lea.vmem %s2, %s211
      %v213 = vld [vmem:[%s195] sm:$0xff]
      %v214 = vld [vmem:[%s202] sm:$0x7]
      %vm215 = vcmask 23552
      %v217 = vsel %vm215, %v213, 0
      %vm219 = vcmask 1042432
      %v221 = vsel %vm219, %v214, 0
      %223 = vmatpush.msra.mxu0 0.0
      %224 = vmatpush.msra.mxu0 0.0
      %225 = vmatpush.msra.mxu0 0.0
      %226 = vmatpush.msra.mxu0 0.0
      %227 = vmatpush.msra.mxu0 0.0
      %228 = vmatpush.msra.mxu0 0.0
      %229 = vmatpush.msra.mxu0 0.0
      %230 = vmatpush.msra.mxu0 0.0
      %231 = vmatpush.msra.mxu0 0.0
      %232 = vmatpush.msra.mxu0 0.0
      %233 = vmatpush.msra.mxu0 0.0
      %234 = vmatpush.msra.mxu0 0.0
      %235 = vmatpush.msra.mxu0 0.0
      %236 = vmatpush.msra.mxu0 0.0
      %237 = vmatpush.msra.mxu0 0.0
      %238 = vmatpush.msra.mxu0 %v221
      %239 = vmatmul.f32.gmra.mxu0 %v217
      %v240 = vpop.f32.mrf.mxu0
      %v241 = vadd.f32 0.0, %v240
      %242 = vdwg.mxu0
      %v243 = vmul.f32 %v213, %v213
      %v244 = vsel %vm215, %v243, 0.0
      %245 = vadd.xlane.f32.xlu0 %v244
      %v246 = vpop.xlane.xlu0 %245
      %v247 = vmul.f32 %v214, %v214
      %v248 = vsel %vm219, %v247, 0.0
      %v249 = vrot.slane %v248, 4
      %v250 = vadd.f32 %v248, %v249
      %v251 = vrot.slane %v250, 2
      %v252 = vadd.f32 %v250, %v251
      %v253 = vrot.slane %v252, 1
      %v254 = vadd.f32 %v252, %v253
      %v255 = vadd.f32 %v246, %v254
      %v256 = vmul.f32 %v241, 2.0
      %v257 = vsub.f32 %v255, %v256
      %v258 = vmax.f32 %v257, 0.0
      %259 = vst [vmem:[%s212] sm:$0xff] %v258
      %p260 = scmp.lt.s32.totalorder %s18, 1
      %s261 = scalar_select %p260, %s18, 1
      %p262 = scmp.lt.s32.totalorder %s19, 0
      %s263 = scalar_select %p262, %s19, 0
      %p264 = scmp.lt.s32.totalorder %s20, 0
      %s265 = scalar_select %p264, %s20, 0
      %s266 = sadd.s32 %s265, %s263
      %s267 = sadd.s32 %s266, %s261
      %s268 = smul.addr %s267, 8
      %s269 = scalar_lea.vmem %s2, %s268
      // Predicated region
      $region29: #{backbone_forward.18} parent=27 // pred_check
        %p270 = pneg %p110
      $region30: #{backbone_forward.18} parent=27 // pred_check_branch
        %272 = sbr.rel (%p270) target = $region32
      $region31: #{backbone_forward.18} parent=27 // pred_region
        _
      $region32: #{backbone_forward.18} parent=27 // pred_fallthru
        _
    $region28: #{backbone_forward.18} parent=5 // pred_fallthru
      _
    %p273 = scmp.le.s32.totalorder 2, %s8
    // Predicated region
    $region33: #{backbone_forward.18} parent=5 // pred_check
      %p274 = pneg %p273
    $region34: #{backbone_forward.18} parent=5 // pred_check_branch
      %276 = sbr.rel (%p274) target = $region36
    $region35: #{backbone_forward.18} parent=5 // pred_region
      %s277 = ssub.s32 %s8, 2
      // Predicated region
      $region37: #{backbone_forward.18} parent=35 // pred_check
        %p278 = pneg %p116
      $region38: #{backbone_forward.18} parent=35 // pred_check_branch
        %280 = sbr.rel (%p278) target = $region40
      $region39: #{backbone_forward.18} parent=35 // pred_region
        %p281 = scmp.lt.s32.totalorder %s21, 1
        %s282 = scalar_select %p281, %s21, 1
        %p283 = scmp.lt.s32.totalorder %s22, 0
        %s284 = scalar_select %p283, %s22, 0
        %p285 = scmp.lt.s32.totalorder %s23, 0
        %s286 = scalar_select %p285, %s23, 0
        %s287 = sadd.s32 %s286, %s284
        %s288 = sadd.s32 %s287, %s282
        %s289 = smul.addr %s288, 8
        %s290 = scalar_lea.vmem %s2, %s289
      $region40: #{backbone_forward.18} parent=35 // pred_fallthru
        _
    $region36: #{backbone_forward.18} parent=5 // pred_fallthru
      _
  $region6: #{backbone_forward.18} parent=0 // loop_footer
    %s12 = sadd.s32 1, %s8
  $region7: #{backbone_forward.18} parent=0 // loop_footer_branch
    %7 = sbr.rel target = $region3
  $region8: #{backbone_forward.18} parent=0 // loop_exit
    _

// kernel: backbone_forward.14
$region0: #{backbone_forward.14}
  #allocation0 [shape = 'u32[]', space=smem, size = 0x4, offset = 0x4, fixed_abs, tag = 'smem constant byte address 0x4 - core index']
  #allocation1 [shape = 'u32[72,128]{1,0:T(1,128)}', space=vmem, size = 0x9000, scoped, tag = 'internal scratch']
  %s0 = inlined_call_operand.vmem [shape: f32[2,16,3], index: 0, kind: input, shape index: {}]
  %s1 = inlined_call_operand.vmem [shape: f32[2,3,128], index: 1, kind: input, shape index: {}]
  %s2 = inlined_call_operand.vmem [shape: f32[2,16,128], index: 2, kind: output, shape index: {}]
  %s3 = sld [smem:[#allocation0]]
  $region41: #{backbone_forward.14} parent=0
    _
  %s5 = ssub.s32 1, %s3
  %s6 = scalar_select 0, %s5, %s3
  loop: start=0, step=1, limit=4
  $region2: #{backbone_forward.14} parent=0 // loop_pre_header
    _
  $region3: #{backbone_forward.14} parent=0 // loop_header
    %s8 = sphi 0, %s12
    %p9 = scmp.ge.s32.totalorder %s8, 4
    %s15 = sphi 0, %s34
    %s16 = sphi 0, %s30
    %s17 = sphi 0, %s26
    %s18 = sphi 0, %s15
    %s19 = sphi 0, %s16
    %s20 = sphi 0, %s17
    %s21 = sphi 0, %s18
    %s22 = sphi 0, %s19
    %s23 = sphi 0, %s20
    %s39 = sphi 0, %s41
    %s42 = sphi 0, %s39
    %s43 = sphi 0, %s42
    %s59 = sphi 0, %s43
    %s67 = sphi 0, %s69
    %s70 = sphi 0, %s67
    %s71 = sphi 0, %s70
    %s87 = sphi 0, %s71
    %s97 = sphi 0, %s99
    %s100 = sphi 0, %s97
    %s101 = sphi 0, %s100
    %s117 = sphi 0, %s101
  $region4: #{backbone_forward.14} parent=0 // loop_header_branch
    %11 = sbr.rel (%p9) target = $region8
  $region5: #{backbone_forward.14} parent=0 // loop_body
    %s13 = ssub.s32 %s8, 1
    %s14 = ssub.s32 %s8, 2
    %s24 = sadd.s32 1, %s17
    %p25 = scmp.ge.s32.totalorder %s24, 1
    %s26 = scalar_select %p25, 0, %s24
    %s27 = sadd.s32 1, %s16
    %s28 = scalar_select %p25, %s27, %s16
    %p29 = scmp.ge.s32.totalorder %s28, 1
    %s30 = scalar_select %p29, 0, %s28
    %s31 = sadd.s32 1, %s15
    %s32 = scalar_select %p29, %s31, %s15
    %p33 = scmp.ge.s32.totalorder %s32, 2
    %s34 = scalar_select %p33, 0, %s32
    %s35 = ssub.s32 %s15, %s34
    %s36 = ssub.s32 %s16, %s30
    %s37 = sor.u32 %s35, %s36
    %p38 = scmp.eq.s32.totalorder %s37, 0
    %s40 = sadd.s32 %s39, 1
    %s41 = scalar_select %p38, %s39, %s40
    %p44 = pneg %p38
    %p45 = scmp.eq.s32.totalorder %s8, 1
    %p46 = por %p44, %p45
    %p47 = scmp.ne.s32.totalorder %s39, %s42
    %p48 = scmp.eq.s32.totalorder %s8, 0
    %p49 = por %p47, %p48
    %p50 = scmp.ne.s32.totalorder %s39, %s42
    %p51 = scmp.eq.s32.totalorder %s13, 1
    %p52 = por %p50, %p51
    %p53 = scmp.ne.s32.totalorder %s42, %s43
    %p54 = scmp.eq.s32.totalorder %s13, 0
    %p55 = por %p53, %p54
    %p56 = scmp.ne.s32.totalorder %s42, %s43
    %p57 = scmp.eq.s32.totalorder %s14, 1
    %p58 = por %p56, %p57
    %p60 = scmp.ne.s32.totalorder %s43, %s59
    %p61 = scmp.eq.s32.totalorder %s14, 0
    %p62 = por %p60, %p61
    %s63 = ssub.s32 %s15, %s34
    %s64 = ssub.s32 %s17, %s26
    %s65 = sor.u32 %s63, %s64
    %p66 = scmp.eq.s32.totalorder %s65, 0
    %s68 = sadd.s32 %s67, 1
    %s69 = scalar_select %p66, %s67, %s68
    %p72 = pneg %p66
    %p73 = scmp.eq.s32.totalorder %s8, 1
    %p74 = por %p72, %p73
    %p75 = scmp.ne.s32.totalorder %s67, %s70
    %p76 = scmp.eq.s32.totalorder %s8, 0
    %p77 = por %p75, %p76
    %p78 = scmp.ne.s32.totalorder %s67, %s70
    %p79 = scmp.eq.s32.totalorder %s13, 1
    %p80 = por %p78, %p79
    %p81 = scmp.ne.s32.totalorder %s70, %s71
    %p82 = scmp.eq.s32.totalorder %s13, 0
    %p83 = por %p81, %p82
    %p84 = scmp.ne.s32.totalorder %s70, %s71
    %p85 = scmp.eq.s32.totalorder %s14, 1
    %p86 = por %p84, %p85
    %p88 = scmp.ne.s32.totalorder %s71, %s87
    %p89 = scmp.eq.s32.totalorder %s14, 0
    %p90 = por %p88, %p89
    %s91 = ssub.s32 %s15, %s34
    %s92 = ssub.s32 %s16, %s30
    %s93 = sor.u32 %s91, %s92
    %s94 = ssub.s32 %s17, %s26
    %s95 = sor.u32 %s93, %s94
    %p96 = scmp.eq.s32.totalorder %s95, 0
    %s98 = sadd.s32 %s97, 1
    %s99 = scalar_select %p96, %s97, %s98
    %p102 = pneg %p96
    %p103 = scmp.eq.s32.totalorder %s8, 1
    %p104 = por %p102, %p103
    %p105 = scmp.ne.s32.totalorder %s97, %s100
    %p106 = scmp.eq.s32.totalorder %s8, 0
    %p107 = por %p105, %p106
    %p108 = scmp.ne.s32.totalorder %s97, %s100
    %p109 = scmp.eq.s32.totalorder %s13, 1
    %p110 = por %p108, %p109
    %p111 = scmp.ne.s32.totalorder %s100, %s101
    %p112 = scmp.eq.s32.totalorder %s13, 0
    %p113 = por %p111, %p112
    %p114 = scmp.ne.s32.totalorder %s100, %s101
    %p115 = scmp.eq.s32.totalorder %s14, 1
    %p116 = por %p114, %p115
    %p118 = scmp.ne.s32.totalorder %s101, %s117
    %p119 = scmp.eq.s32.totalorder %s14, 0
    %p120 = por %p118, %p119
    %p121 = scmp.le.s32.totalorder 1, %s8
    %p122 = scmp.lt.s32.totalorder %s8, 3
    %p123 = pnand %p121, %p122
    %p124 = pneg %p123
    // Predicated region
    $region9: #{backbone_forward.14} parent=5 // pred_check
      _
    $region10: #{backbone_forward.14} parent=5 // pred_check_branch
      %126 = sbr.rel (%p123) target = $region12
    $region11: #{backbone_forward.14} parent=5 // pred_region
      %s127 = ssub.s32 %s8, 1
    $region12: #{backbone_forward.14} parent=5 // pred_fallthru
      _
    %p128 = scmp.lt.s32.totalorder %s8, 2
    // Predicated region
    $region13: #{backbone_forward.14} parent=5 // pred_check
      %p129 = pneg %p128
    $region14: #{backbone_forward.14} parent=5 // pred_check_branch
      %131 = sbr.rel (%p129) target = $region16
    $region15: #{backbone_forward.14} parent=5 // pred_region
      // Predicated region
      $region17: #{backbone_forward.14} parent=15 // pred_check
        %p132 = pneg %p49
      $region18: #{backbone_forward.14} parent=15 // pred_check_branch
        %134 = sbr.rel (%p132) target = $region20
      $region19: #{backbone_forward.14} parent=15 // pred_region
        %s135 = smul.u32 2, %s16
        %p136 = scmp.lt.s32.totalorder %s15, 1
        %s137 = scalar_select %p136, %s15, 1
        %p138 = scmp.lt.s32.totalorder %s135, 1
        %s139 = scalar_select %p138, %s135, 1
        %s140 = smul.addr %s137, 2
        %s141 = sadd.s32 %s139, %s140
        %s142 = smul.addr %s141, 8
        %s143 = scalar_lea.vmem %s0, %s142
        %s144 = smul.u32 2, %s16
      $region20: #{backbone_forward.14} parent=15 // pred_fallthru
        _
      // Predicated region
      $region21: #{backbone_forward.14} parent=15 // pred_check
        %p145 = pneg %p77
      $region22: #{backbone_forward.14} parent=15 // pred_check_branch
        %147 = sbr.rel (%p145) target = $region24
      $region23: #{backbone_forward.14} parent=15 // pred_region
        %p148 = scmp.lt.s32.totalorder %s15, 1
        %s149 = scalar_select %p148, %s15, 1
        %p150 = scmp.lt.s32.totalorder %s17, 0
        %s151 = scalar_select %p150, %s17, 0
        %s152 = sadd.s32 %s151, %s149
        %s153 = smul.addr %s152, 4
        %s154 = scalar_lea.vmem %s1, %s153
      $region24: #{backbone_forward.14} parent=15 // pred_fallthru
        _
    $region16: #{backbone_forward.14} parent=5 // pred_fallthru
      _
    %p155 = scmp.le.s32.totalorder 1, %s8
    %p156 = scmp.lt.s32.totalorder %s8, 3
    %p157 = pnand %p155, %p156
    %p158 = pneg %p157
    // Predicated region
    $region25: #{backbone_forward.14} parent=5 // pred_check
      _
    $region26: #{backbone_forward.14} parent=5 // pred_check_branch
      %160 = sbr.rel (%p157) target = $region28
    $region27: #{backbone_forward.14} parent=5 // pred_region
      %s161 = ssub.s32 %s8, 1
      %s162 = smul.u32 2, %s19
      %p163 = scmp.lt.s32.totalorder %s18, 1
      %s164 = scalar_select %p163, %s18, 1
      %p165 = scmp.lt.s32.totalorder %s162, 1
      %s166 = scalar_select %p165, %s162, 1
      %s167 = smul.addr %s164, 2
      %s168 = sadd.s32 %s166, %s167
      %s169 = smul.addr %s168, 8
      %s170 = scalar_lea.vmem %s0, %s169
      %p171 = pneg %p55
      %p172 = pneg %p52
      %p173 = scmp.lt.s32.totalorder %s18, 1
      %s174 = scalar_select %p173, %s18, 1
      %p175 = scmp.lt.s32.totalorder %s20, 0
      %s176 = scalar_select %p175, %s20, 0
      %s177 = sadd.s32 %s176, %s174
      %s178 = smul.addr %s177, 4
      %s179 = scalar_lea.vmem %s1, %s178
      %p180 = pneg %p83
      %p181 = pneg %p80
      %p182 = pneg %p113
      %p183 = pneg %p110
      %s184 = smul.u32 2, %s19
      %p185 = scmp.lt.s32.totalorder %s18, 1
      %s186 = scalar_select %p185, %s18, 1
      %p187 = scmp.lt.s32.totalorder %s184, 1
      %s188 = scalar_select %p187, %s184, 1
      %p189 = scmp.lt.s32.totalorder %s20, 0
      %s190 = scalar_select %p189, %s20, 0
      %s191 = sadd.s32 %s190, %s188
      %s192 = smul.addr %s186, 2
      %s193 = sadd.s32 %s191, %s192
      %s194 = smul.addr %s193, 8
      %s195 = scalar_lea.vmem %s2, %s194
      %s196 = smul.u32 2, %s19
      %p197 = scmp.lt.s32.totalorder %s18, 1
      %s198 = scalar_select %p197, %s18, 1
      %p199 = scmp.lt.s32.totalorder %s196, 1
      %s200 = scalar_select %p199, %s196, 1
      %s201 = smul.addr %s198, 2
      %s202 = sadd.s32 %s200, %s201
      %s203 = smul.addr %s202, 8
      %s204 = scalar_lea.vmem %s0, %s203
      %s205 = smul.u32 2, %s19
      %p206 = scmp.lt.s32.totalorder %s18, 1
      %s207 = scalar_select %p206, %s18, 1
      %p208 = scmp.lt.s32.totalorder %s20, 0
      %s209 = scalar_select %p208, %s20, 0
      %s210 = sadd.s32 %s209, %s207
      %s211 = smul.addr %s210, 4
      %s212 = scalar_lea.vmem %s1, %s211
      %s213 = smul.u32 2, %s19
      %p214 = scmp.lt.s32.totalorder %s18, 1
      %s215 = scalar_select %p214, %s18, 1
      %p216 = scmp.lt.s32.totalorder %s213, 1
      %s217 = scalar_select %p216, %s213, 1
      %p218 = scmp.lt.s32.totalorder %s20, 0
      %s219 = scalar_select %p218, %s20, 0
      %s220 = sadd.s32 %s219, %s217
      %s221 = smul.addr %s215, 2
      %s222 = sadd.s32 %s220, %s221
      %s223 = smul.addr %s222, 8
      %s224 = scalar_lea.vmem %s2, %s223
      %s225 = smul.u32 2, %s19
      %v226 = vld [vmem:[%s204] sm:$0xff]
      %v227 = vld [vmem:[%s204 + $0x8] sm:$0xff]
      %v228 = vld [vmem:[%s212] sm:$0x7]
      %vm229 = vcmask 23552
      %v231 = vsel %vm229, %v226, 0
      %v234 = vsel %vm229, %v227, 0
      %vm236 = vcmask 1042432
      %v238 = vsel %vm236, %v228, 0
      %240 = vmatpush.msra.mxu0 0.0
      %241 = vmatpush.msra.mxu0 0.0
      %242 = vmatpush.msra.mxu0 0.0
      %243 = vmatpush.msra.mxu0 0.0
      %244 = vmatpush.msra.mxu0 0.0
      %245 = vmatpush.msra.mxu0 0.0
      %246 = vmatpush.msra.mxu0 0.0
      %247 = vmatpush.msra.mxu0 0.0
      %248 = vmatpush.msra.mxu0 0.0
      %249 = vmatpush.msra.mxu0 0.0
      %250 = vmatpush.msra.mxu0 0.0
      %251 = vmatpush.msra.mxu0 0.0
      %252 = vmatpush.msra.mxu0 0.0
      %253 = vmatpush.msra.mxu0 0.0
      %254 = vmatpush.msra.mxu0 0.0
      %255 = vmatpush.msra.mxu0 %v238
      %256 = vmatmul.f32.gmra.mxu0 %v231
      %v257 = vpop.f32.mrf.mxu0
      %v258 = vadd.f32 0.0, %v257
      %259 = vmatmul.f32.gmra.mxu0 %v234
      %v260 = vpop.f32.mrf.mxu0
      %v261 = vadd.f32 0.0, %v260
      %262 = vdwg.mxu0
      %v263 = vmul.f32 %v226, %v226
      %v264 = vmul.f32 %v227, %v227
      %v265 = vsel %vm229, %v263, 0.0
      %266 = vadd.xlane.f32.xlu0 %v265
      %v267 = vpop.xlane.xlu0 %266
      %v268 = vsel %vm229, %v264, 0.0
      %269 = vadd.xlane.f32.xlu0 %v268
      %v270 = vpop.xlane.xlu0 %269
      %v271 = vmul.f32 %v228, %v228
      %v272 = vsel %vm236, %v271, 0.0
      %v273 = vrot.slane %v272, 4
      %v274 = vadd.f32 %v272, %v273
      %v275 = vrot.slane %v274, 2
      %v276 = vadd.f32 %v274, %v275
      %v277 = vrot.slane %v276, 1
      %v278 = vadd.f32 %v276, %v277
      %v279 = vadd.f32 %v267, %v278
      %v280 = vadd.f32 %v270, %v278
      %v281 = vmul.f32 %v258, 2.0
      %v282 = vmul.f32 %v261, 2.0
      %v283 = vsub.f32 %v279, %v281
      %v284 = vsub.f32 %v280, %v282
      %v285 = vmax.f32 %v283, 0.0
      %v286 = vmax.f32 %v284, 0.0
      %287 = vst [vmem:[%s224] sm:$0xff] %v285
      %288 = vst [vmem:[%s224 + $0x8] sm:$0xff] %v286
      %s289 = smul.u32 2, %s19
      %p290 = scmp.lt.s32.totalorder %s18, 1
      %s291 = scalar_select %p290, %s18, 1
      %p292 = scmp.lt.s32.totalorder %s289, 1
      %s293 = scalar_select %p292, %s289, 1
      %p294 = scmp.lt.s32.totalorder %s20, 0
      %s295 = scalar_select %p294, %s20, 0
      %s296 = sadd.s32 %s295, %s293
      %s297 = smul.addr %s291, 2
      %s298 = sadd.s32 %s296, %s297
      %s299 = smul.addr %s298, 8
      %s300 = scalar_lea.vmem %s2, %s299
      // Predicated region
      $region29: #{backbone_forward.14} parent=27 // pred_check
        %p301 = pneg %p110
      $region30: #{backbone_forward.14} parent=27 // pred_check_branch
        %303 = sbr.rel (%p301) target = $region32
      $region31: #{backbone_forward.14} parent=27 // pred_region
        %s304 = smul.u32 2, %s19
      $region32: #{backbone_forward.14} parent=27 // pred_fallthru
        _
    $region28: #{backbone_forward.14} parent=5 // pred_fallthru
      _
    %p305 = scmp.le.s32.totalorder 2, %s8
    // Predicated region
    $region33: #{backbone_forward.14} parent=5 // pred_check
      %p306 = pneg %p305
    $region34: #{backbone_forward.14} parent=5 // pred_check_branch
      %308 = sbr.rel (%p306) target = $region36
    $region35: #{backbone_forward.14} parent=5 // pred_region
      %s309 = ssub.s32 %s8, 2
      // Predicated region
      $region37: #{backbone_forward.14} parent=35 // pred_check
        %p310 = pneg %p116
      $region38: #{backbone_forward.14} parent=35 // pred_check_branch
        %312 = sbr.rel (%p310) target = $region40
      $region39: #{backbone_forward.14} parent=35 // pred_region
        %s313 = smul.u32 2, %s22
        %p314 = scmp.lt.s32.totalorder %s21, 1
        %s315 = scalar_select %p314, %s21, 1
        %p316 = scmp.lt.s32.totalorder %s313, 1
        %s317 = scalar_select %p316, %s313, 1
        %p318 = scmp.lt.s32.totalorder %s23, 0
        %s319 = scalar_select %p318, %s23, 0
        %s320 = sadd.s32 %s319, %s317
        %s321 = smul.addr %s315, 2
        %s322 = sadd.s32 %s320, %s321
        %s323 = smul.addr %s322, 8
        %s324 = scalar_lea.vmem %s2, %s323
      $region40: #{backbone_forward.14} parent=35 // pred_fallthru
        _
    $region36: #{backbone_forward.14} parent=5 // pred_fallthru
      _
  $region6: #{backbone_forward.14} parent=0 // loop_footer
    %s12 = sadd.s32 1, %s8
  $region7: #{backbone_forward.14} parent=0 // loop_footer_branch
    %7 = sbr.rel target = $region3
  $region8: #{backbone_forward.14} parent=0 // loop_exit
    _

// kernel: backbone_forward.12
$region0: #{backbone_forward.12}
  #allocation0 [shape = 'u32[]', space=smem, size = 0x4, offset = 0x4, fixed_abs, tag = 'smem constant byte address 0x4 - core index']
  #allocation1 [shape = 'u32[72,128]{1,0:T(1,128)}', space=vmem, size = 0x9000, scoped, tag = 'internal scratch']
  %s0 = inlined_call_operand.vmem [shape: f32[2,32,3], index: 0, kind: input, shape index: {}]
  %s1 = inlined_call_operand.vmem [shape: f32[2,3,128], index: 1, kind: input, shape index: {}]
  %s2 = inlined_call_operand.vmem [shape: f32[2,32,128], index: 2, kind: output, shape index: {}]
  %s3 = sld [smem:[#allocation0]]
  $region41: #{backbone_forward.12} parent=0
    _
  %s5 = ssub.s32 1, %s3
  %s6 = scalar_select 0, %s5, %s3
  loop: start=0, step=1, limit=4
  $region2: #{backbone_forward.12} parent=0 // loop_pre_header
    _
  $region3: #{backbone_forward.12} parent=0 // loop_header
    %s8 = sphi 0, %s12
    %p9 = scmp.ge.s32.totalorder %s8, 4
    %s15 = sphi 0, %s34
    %s16 = sphi 0, %s30
    %s17 = sphi 0, %s26
    %s18 = sphi 0, %s15
    %s19 = sphi 0, %s16
    %s20 = sphi 0, %s17
    %s21 = sphi 0, %s18
    %s22 = sphi 0, %s19
    %s23 = sphi 0, %s20
    %s39 = sphi 0, %s41
    %s42 = sphi 0, %s39
    %s43 = sphi 0, %s42
    %s59 = sphi 0, %s43
    %s67 = sphi 0, %s69
    %s70 = sphi 0, %s67
    %s71 = sphi 0, %s70
    %s87 = sphi 0, %s71
    %s97 = sphi 0, %s99
    %s100 = sphi 0, %s97
    %s101 = sphi 0, %s100
    %s117 = sphi 0, %s101
  $region4: #{backbone_forward.12} parent=0 // loop_header_branch
    %11 = sbr.rel (%p9) target = $region8
  $region5: #{backbone_forward.12} parent=0 // loop_body
    %s13 = ssub.s32 %s8, 1
    %s14 = ssub.s32 %s8, 2
    %s24 = sadd.s32 1, %s17
    %p25 = scmp.ge.s32.totalorder %s24, 1
    %s26 = scalar_select %p25, 0, %s24
    %s27 = sadd.s32 1, %s16
    %s28 = scalar_select %p25, %s27, %s16
    %p29 = scmp.ge.s32.totalorder %s28, 1
    %s30 = scalar_select %p29, 0, %s28
    %s31 = sadd.s32 1, %s15
    %s32 = scalar_select %p29, %s31, %s15
    %p33 = scmp.ge.s32.totalorder %s32, 2
    %s34 = scalar_select %p33, 0, %s32
    %s35 = ssub.s32 %s15, %s34
    %s36 = ssub.s32 %s16, %s30
    %s37 = sor.u32 %s35, %s36
    %p38 = scmp.eq.s32.totalorder %s37, 0
    %s40 = sadd.s32 %s39, 1
    %s41 = scalar_select %p38, %s39, %s40
    %p44 = pneg %p38
    %p45 = scmp.eq.s32.totalorder %s8, 1
    %p46 = por %p44, %p45
    %p47 = scmp.ne.s32.totalorder %s39, %s42
    %p48 = scmp.eq.s32.totalorder %s8, 0
    %p49 = por %p47, %p48
    %p50 = scmp.ne.s32.totalorder %s39, %s42
    %p51 = scmp.eq.s32.totalorder %s13, 1
    %p52 = por %p50, %p51
    %p53 = scmp.ne.s32.totalorder %s42, %s43
    %p54 = scmp.eq.s32.totalorder %s13, 0
    %p55 = por %p53, %p54
    %p56 = scmp.ne.s32.totalorder %s42, %s43
    %p57 = scmp.eq.s32.totalorder %s14, 1
    %p58 = por %p56, %p57
    %p60 = scmp.ne.s32.totalorder %s43, %s59
    %p61 = scmp.eq.s32.totalorder %s14, 0
    %p62 = por %p60, %p61
    %s63 = ssub.s32 %s15, %s34
    %s64 = ssub.s32 %s17, %s26
    %s65 = sor.u32 %s63, %s64
    %p66 = scmp.eq.s32.totalorder %s65, 0
    %s68 = sadd.s32 %s67, 1
    %s69 = scalar_select %p66, %s67, %s68
    %p72 = pneg %p66
    %p73 = scmp.eq.s32.totalorder %s8, 1
    %p74 = por %p72, %p73
    %p75 = scmp.ne.s32.totalorder %s67, %s70
    %p76 = scmp.eq.s32.totalorder %s8, 0
    %p77 = por %p75, %p76
    %p78 = scmp.ne.s32.totalorder %s67, %s70
    %p79 = scmp.eq.s32.totalorder %s13, 1
    %p80 = por %p78, %p79
    %p81 = scmp.ne.s32.totalorder %s70, %s71
    %p82 = scmp.eq.s32.totalorder %s13, 0
    %p83 = por %p81, %p82
    %p84 = scmp.ne.s32.totalorder %s70, %s71
    %p85 = scmp.eq.s32.totalorder %s14, 1
    %p86 = por %p84, %p85
    %p88 = scmp.ne.s32.totalorder %s71, %s87
    %p89 = scmp.eq.s32.totalorder %s14, 0
    %p90 = por %p88, %p89
    %s91 = ssub.s32 %s15, %s34
    %s92 = ssub.s32 %s16, %s30
    %s93 = sor.u32 %s91, %s92
    %s94 = ssub.s32 %s17, %s26
    %s95 = sor.u32 %s93, %s94
    %p96 = scmp.eq.s32.totalorder %s95, 0
    %s98 = sadd.s32 %s97, 1
    %s99 = scalar_select %p96, %s97, %s98
    %p102 = pneg %p96
    %p103 = scmp.eq.s32.totalorder %s8, 1
    %p104 = por %p102, %p103
    %p105 = scmp.ne.s32.totalorder %s97, %s100
    %p106 = scmp.eq.s32.totalorder %s8, 0
    %p107 = por %p105, %p106
    %p108 = scmp.ne.s32.totalorder %s97, %s100
    %p109 = scmp.eq.s32.totalorder %s13, 1
    %p110 = por %p108, %p109
    %p111 = scmp.ne.s32.totalorder %s100, %s101
    %p112 = scmp.eq.s32.totalorder %s13, 0
    %p113 = por %p111, %p112
    %p114 = scmp.ne.s32.totalorder %s100, %s101
    %p115 = scmp.eq.s32.totalorder %s14, 1
    %p116 = por %p114, %p115
    %p118 = scmp.ne.s32.totalorder %s101, %s117
    %p119 = scmp.eq.s32.totalorder %s14, 0
    %p120 = por %p118, %p119
    %p121 = scmp.le.s32.totalorder 1, %s8
    %p122 = scmp.lt.s32.totalorder %s8, 3
    %p123 = pnand %p121, %p122
    %p124 = pneg %p123
    // Predicated region
    $region9: #{backbone_forward.12} parent=5 // pred_check
      _
    $region10: #{backbone_forward.12} parent=5 // pred_check_branch
      %126 = sbr.rel (%p123) target = $region12
    $region11: #{backbone_forward.12} parent=5 // pred_region
      %s127 = ssub.s32 %s8, 1
    $region12: #{backbone_forward.12} parent=5 // pred_fallthru
      _
    %p128 = scmp.lt.s32.totalorder %s8, 2
    // Predicated region
    $region13: #{backbone_forward.12} parent=5 // pred_check
      %p129 = pneg %p128
    $region14: #{backbone_forward.12} parent=5 // pred_check_branch
      %131 = sbr.rel (%p129) target = $region16
    $region15: #{backbone_forward.12} parent=5 // pred_region
      // Predicated region
      $region17: #{backbone_forward.12} parent=15 // pred_check
        %p132 = pneg %p49
      $region18: #{backbone_forward.12} parent=15 // pred_check_branch
        %134 = sbr.rel (%p132) target = $region20
      $region19: #{backbone_forward.12} parent=15 // pred_region
        %s135 = smul.u32 4, %s16
        %p136 = scmp.lt.s32.totalorder %s15, 1
        %s137 = scalar_select %p136, %s15, 1
        %p138 = scmp.lt.s32.totalorder %s135, 3
        %s139 = scalar_select %p138, %s135, 3
        %s140 = smul.addr %s137, 4
        %s141 = sadd.s32 %s139, %s140
        %s142 = smul.addr %s141, 8
        %s143 = scalar_lea.vmem %s0, %s142
        %s144 = smul.u32 4, %s16
      $region20: #{backbone_forward.12} parent=15 // pred_fallthru
        _
      // Predicated region
      $region21: #{backbone_forward.12} parent=15 // pred_check
        %p145 = pneg %p77
      $region22: #{backbone_forward.12} parent=15 // pred_check_branch
        %147 = sbr.rel (%p145) target = $region24
      $region23: #{backbone_forward.12} parent=15 // pred_region
        %p148 = scmp.lt.s32.totalorder %s15, 1
        %s149 = scalar_select %p148, %s15, 1
        %p150 = scmp.lt.s32.totalorder %s17, 0
        %s151 = scalar_select %p150, %s17, 0
        %s152 = sadd.s32 %s151, %s149
        %s153 = smul.addr %s152, 4
        %s154 = scalar_lea.vmem %s1, %s153
      $region24: #{backbone_forward.12} parent=15 // pred_fallthru
        _
    $region16: #{backbone_forward.12} parent=5 // pred_fallthru
      _
    %p155 = scmp.le.s32.totalorder 1, %s8
    %p156 = scmp.lt.s32.totalorder %s8, 3
    %p157 = pnand %p155, %p156
    %p158 = pneg %p157
    // Predicated region
    $region25: #{backbone_forward.12} parent=5 // pred_check
      _
    $region26: #{backbone_forward.12} parent=5 // pred_check_branch
      %160 = sbr.rel (%p157) target = $region28
    $region27: #{backbone_forward.12} parent=5 // pred_region
      %s161 = ssub.s32 %s8, 1
      %s162 = smul.u32 4, %s19
      %p163 = scmp.lt.s32.totalorder %s18, 1
      %s164 = scalar_select %p163, %s18, 1
      %p165 = scmp.lt.s32.totalorder %s162, 3
      %s166 = scalar_select %p165, %s162, 3
      %s167 = smul.addr %s164, 4
      %s168 = sadd.s32 %s166, %s167
      %s169 = smul.addr %s168, 8
      %s170 = scalar_lea.vmem %s0, %s169
      %p171 = pneg %p55
      %p172 = pneg %p52
      %p173 = scmp.lt.s32.totalorder %s18, 1
      %s174 = scalar_select %p173, %s18, 1
      %p175 = scmp.lt.s32.totalorder %s20, 0
      %s176 = scalar_select %p175, %s20, 0
      %s177 = sadd.s32 %s176, %s174
      %s178 = smul.addr %s177, 4
      %s179 = scalar_lea.vmem %s1, %s178
      %p180 = pneg %p83
      %p181 = pneg %p80
      %p182 = pneg %p113
      %p183 = pneg %p110
      %s184 = smul.u32 4, %s19
      %p185 = scmp.lt.s32.totalorder %s18, 1
      %s186 = scalar_select %p185, %s18, 1
      %p187 = scmp.lt.s32.totalorder %s184, 3
      %s188 = scalar_select %p187, %s184, 3
      %p189 = scmp.lt.s32.totalorder %s20, 0
      %s190 = scalar_select %p189, %s20, 0
      %s191 = sadd.s32 %s190, %s188
      %s192 = smul.addr %s186, 4
      %s193 = sadd.s32 %s191, %s192
      %s194 = smul.addr %s193, 8
      %s195 = scalar_lea.vmem %s2, %s194
      %s196 = smul.u32 4, %s19
      %p197 = scmp.lt.s32.totalorder %s18, 1
      %s198 = scalar_select %p197, %s18, 1
      %p199 = scmp.lt.s32.totalorder %s196, 3
      %s200 = scalar_select %p199, %s196, 3
      %s201 = smul.addr %s198, 4
      %s202 = sadd.s32 %s200, %s201
      %s203 = smul.addr %s202, 8
      %s204 = scalar_lea.vmem %s0, %s203
      %s205 = smul.u32 4, %s19
      %p206 = scmp.lt.s32.totalorder %s18, 1
      %s207 = scalar_select %p206, %s18, 1
      %p208 = scmp.lt.s32.totalorder %s20, 0
      %s209 = scalar_select %p208, %s20, 0
      %s210 = sadd.s32 %s209, %s207
      %s211 = smul.addr %s210, 4
      %s212 = scalar_lea.vmem %s1, %s211
      %s213 = smul.u32 4, %s19
      %p214 = scmp.lt.s32.totalorder %s18, 1
      %s215 = scalar_select %p214, %s18, 1
      %p216 = scmp.lt.s32.totalorder %s213, 3
      %s217 = scalar_select %p216, %s213, 3
      %p218 = scmp.lt.s32.totalorder %s20, 0
      %s219 = scalar_select %p218, %s20, 0
      %s220 = sadd.s32 %s219, %s217
      %s221 = smul.addr %s215, 4
      %s222 = sadd.s32 %s220, %s221
      %s223 = smul.addr %s222, 8
      %s224 = scalar_lea.vmem %s2, %s223
      %s225 = smul.u32 4, %s19
      %v226 = vld [vmem:[%s204] sm:$0xff]
      %v227 = vld [vmem:[%s204 + $0x8] sm:$0xff]
      %v228 = vld [vmem:[%s204 + $0x10] sm:$0xff]
      %v229 = vld [vmem:[%s204 + $0x18] sm:$0xff]
      %v230 = vld [vmem:[%s212] sm:$0x7]
      %vm231 = vcmask 23552
      %v233 = vsel %vm231, %v226, 0
      %v236 = vsel %vm231, %v227, 0
      %v239 = vsel %vm231, %v228, 0
      %v242 = vsel %vm231, %v229, 0
      %vm244 = vcmask 1042432
      %v246 = vsel %vm244, %v230, 0
      %248 = vmatpush.msra.mxu0 0.0
      %249 = vmatpush.msra.mxu0 0.0
      %250 = vmatpush.msra.mxu0 0.0
      %251 = vmatpush.msra.mxu0 0.0
      %252 = vmatpush.msra.mxu0 0.0
      %253 = vmatpush.msra.mxu0 0.0
      %254 = vmatpush.msra.mxu0 0.0
      %255 = vmatpush.msra.mxu0 0.0
      %256 = vmatpush.msra.mxu0 0.0
      %257 = vmatpush.msra.mxu0 0.0
      %258 = vmatpush.msra.mxu0 0.0
      %259 = vmatpush.msra.mxu0 0.0
      %260 = vmatpush.msra.mxu0 0.0
      %261 = vmatpush.msra.mxu0 0.0
      %262 = vmatpush.msra.mxu0 0.0
      %263 = vmatpush.msra.mxu0 %v246
      %264 = vmatmul.f32.gmra.mxu0 %v233
      %v265 = vpop.f32.mrf.mxu0
      %v266 = vadd.f32 0.0, %v265
      %267 = vmatmul.f32.gmra.mxu0 %v236
      %v268 = vpop.f32.mrf.mxu0
      %v269 = vadd.f32 0.0, %v268
      %270 = vmatmul.f32.gmra.mxu0 %v239
      %v271 = vpop.f32.mrf.mxu0
      %v272 = vadd.f32 0.0, %v271
      %273 = vmatmul.f32.gmra.mxu0 %v242
      %v274 = vpop.f32.mrf.mxu0
      %v275 = vadd.f32 0.0, %v274
      %276 = vdwg.mxu0
      %v277 = vmul.f32 %v226, %v226
      %v278 = vmul.f32 %v227, %v227
      %v279 = vmul.f32 %v228, %v228
      %v280 = vmul.f32 %v229, %v229
      %v281 = vsel %vm231, %v277, 0.0
      %282 = vadd.xlane.f32.xlu0 %v281
      %v283 = vpop.xlane.xlu0 %282
      %v284 = vsel %vm231, %v278, 0.0
      %285 = vadd.xlane.f32.xlu0 %v284
      %v286 = vpop.xlane.xlu0 %285
      %v287 = vsel %vm231, %v279, 0.0
      %288 = vadd.xlane.f32.xlu0 %v287
      %v289 = vpop.xlane.xlu0 %288
      %v290 = vsel %vm231, %v280, 0.0
      %291 = vadd.xlane.f32.xlu0 %v290
      %v292 = vpop.xlane.xlu0 %291
      %v293 = vmul.f32 %v230, %v230
      %v294 = vsel %vm244, %v293, 0.0
      %v295 = vrot.slane %v294, 4
      %v296 = vadd.f32 %v294, %v295
      %v297 = vrot.slane %v296, 2
      %v298 = vadd.f32 %v296, %v297
      %v299 = vrot.slane %v298, 1
      %v300 = vadd.f32 %v298, %v299
      %v301 = vadd.f32 %v283, %v300
      %v302 = vadd.f32 %v286, %v300
      %v303 = vadd.f32 %v289, %v300
      %v304 = vadd.f32 %v292, %v300
      %v305 = vmul.f32 %v266, 2.0
      %v306 = vmul.f32 %v269, 2.0
      %v307 = vmul.f32 %v272, 2.0
      %v308 = vmul.f32 %v275, 2.0
      %v309 = vsub.f32 %v301, %v305
      %v310 = vsub.f32 %v302, %v306
      %v311 = vsub.f32 %v303, %v307
      %v312 = vsub.f32 %v304, %v308
      %v313 = vmax.f32 %v309, 0.0
      %v314 = vmax.f32 %v310, 0.0
      %v315 = vmax.f32 %v311, 0.0
      %v316 = vmax.f32 %v312, 0.0
      %317 = vst [vmem:[%s224] sm:$0xff] %v313
      %318 = vst [vmem:[%s224 + $0x8] sm:$0xff] %v314
      %319 = vst [vmem:[%s224 + $0x10] sm:$0xff] %v315
      %320 = vst [vmem:[%s224 + $0x18] sm:$0xff] %v316
      %s321 = smul.u32 4, %s19
      %p322 = scmp.lt.s32.totalorder %s18, 1
      %s323 = scalar_select %p322, %s18, 1
      %p324 = scmp.lt.s32.totalorder %s321, 3
      %s325 = scalar_select %p324, %s321, 3
      %p326 = scmp.lt.s32.totalorder %s20, 0
      %s327 = scalar_select %p326, %s20, 0
      %s328 = sadd.s32 %s327, %s325
      %s329 = smul.addr %s323, 4
      %s330 = sadd.s32 %s328, %s329
      %s331 = smul.addr %s330, 8
      %s332 = scalar_lea.vmem %s2, %s331
      // Predicated region
      $region29: #{backbone_forward.12} parent=27 // pred_check
        %p333 = pneg %p110
      $region30: #{backbone_forward.12} parent=27 // pred_check_branch
        %335 = sbr.rel (%p333) target = $region32
      $region31: #{backbone_forward.12} parent=27 // pred_region
        %s336 = smul.u32 4, %s19
      $region32: #{backbone_forward.12} parent=27 // pred_fallthru
        _
    $region28: #{backbone_forward.12} parent=5 // pred_fallthru
      _
    %p337 = scmp.le.s32.totalorder 2, %s8
    // Predicated region
    $region33: #{backbone_forward.12} parent=5 // pred_check
      %p338 = pneg %p337
    $region34: #{backbone_forward.12} parent=5 // pred_check_branch
      %340 = sbr.rel (%p338) target = $region36
    $region35: #{backbone_forward.12} parent=5 // pred_region
      %s341 = ssub.s32 %s8, 2
      // Predicated region
      $region37: #{backbone_forward.12} parent=35 // pred_check
        %p342 = pneg %p116
      $region38: #{backbone_forward.12} parent=35 // pred_check_branch
        %344 = sbr.rel (%p342) target = $region40
      $region39: #{backbone_forward.12} parent=35 // pred_region
        %s345 = smul.u32 4, %s22
        %p346 = scmp.lt.s32.totalorder %s21, 1
        %s347 = scalar_select %p346, %s21, 1
        %p348 = scmp.lt.s32.totalorder %s345, 3
        %s349 = scalar_select %p348, %s345, 3
        %p350 = scmp.lt.s32.totalorder %s23, 0
        %s351 = scalar_select %p350, %s23, 0
        %s352 = sadd.s32 %s351, %s349
        %s353 = smul.addr %s347, 4
        %s354 = sadd.s32 %s352, %s353
        %s355 = smul.addr %s354, 8
        %s356 = scalar_lea.vmem %s2, %s355
      $region40: #{backbone_forward.12} parent=35 // pred_fallthru
        _
    $region36: #{backbone_forward.12} parent=5 // pred_fallthru
      _
  $region6: #{backbone_forward.12} parent=0 // loop_footer
    %s12 = sadd.s32 1, %s8
  $region7: #{backbone_forward.12} parent=0 // loop_footer_branch
    %7 = sbr.rel target = $region3
  $region8: #{backbone_forward.12} parent=0 // loop_exit
    _

// kernel: backbone_forward.13
$region0: #{backbone_forward.13}
  #allocation0 [shape = 'u32[]', space=smem, size = 0x4, offset = 0x4, fixed_abs, tag = 'smem constant byte address 0x4 - core index']
  #allocation1 [shape = 'u32[72,128]{1,0:T(1,128)}', space=vmem, size = 0x9000, scoped, tag = 'internal scratch']
  %s0 = inlined_call_operand.vmem [shape: bf16[16,16,128], index: 0, kind: input, shape index: {}]
  %s1 = inlined_call_operand.vmem [shape: bf16[64,16], index: 1, kind: input, shape index: {}]
  %s2 = inlined_call_operand.vmem [shape: bf16[64,64], index: 2, kind: input, shape index: {}]
  %s3 = inlined_call_operand.vmem [shape: bf16[128,64], index: 3, kind: input, shape index: {}]
  %s4 = inlined_call_operand.vmem [shape: f32[256,1], index: 4, kind: input, shape index: {}]
  %s5 = inlined_call_operand.vmem [shape: f32[128,128], index: 5, kind: output, shape index: {}]
  %s6 = sld [smem:[#allocation0]]
  $region61: #{backbone_forward.13} parent=0
    _
  %s8 = ssub.s32 1, %s6
  %s9 = scalar_select 0, %s8, %s6
  loop: start=0, step=1, limit=18
  $region2: #{backbone_forward.13} parent=0 // loop_pre_header
    _
  $region3: #{backbone_forward.13} parent=0 // loop_header
    %s11 = sphi 0, %s15
    %p12 = scmp.ge.s32.totalorder %s11, 18
    %s18 = sphi 0, %s30
    %s19 = sphi 0, %s26
    %s20 = sphi 0, %s18
    %s21 = sphi 0, %s19
    %s22 = sphi 0, %s20
    %s23 = sphi 0, %s21
    %s35 = sphi 0, %s37
    %s38 = sphi 0, %s35
    %s39 = sphi 0, %s38
    %s55 = sphi 0, %s39
    %s59 = sphi 0, %s59
    %s61 = sphi 0, %s59
    %s62 = sphi 0, %s61
    %s76 = sphi 0, %s62
    %s80 = sphi 0, %s80
    %s82 = sphi 0, %s80
    %s83 = sphi 0, %s82
    %s97 = sphi 0, %s83
    %s101 = sphi 0, %s101
    %s103 = sphi 0, %s101
    %s104 = sphi 0, %s103
    %s118 = sphi 0, %s104
    %s122 = sphi 0, %s122
    %s124 = sphi 0, %s122
    %s125 = sphi 0, %s124
    %s139 = sphi 0, %s125
    %s145 = sphi 0, %s147
    %s148 = sphi 0, %s145
    %s149 = sphi 0, %s148
    %s165 = sphi 0, %s149
  $region4: #{backbone_forward.13} parent=0 // loop_header_branch
    %14 = sbr.rel (%p12) target = $region8
  $region5: #{backbone_forward.13} parent=0 // loop_body
    %s16 = ssub.s32 %s11, 1
    %s17 = ssub.s32 %s11, 2
    %s24 = sadd.s32 1, %s19
    %p25 = scmp.ge.s32.totalorder %s24, 16
    %s26 = scalar_select %p25, 0, %s24
    %s27 = sadd.s32 1, %s18
    %s28 = scalar_select %p25, %s27, %s18
    %p29 = scmp.ge.s32.totalorder %s28, 1
    %s30 = scalar_select %p29, 0, %s28
    %s31 = ssub.s32 %s19, %s26
    %s32 = ssub.s32 %s18, %s30
    %s33 = sor.u32 %s31, %s32
    %p34 = scmp.eq.s32.totalorder %s33, 0
    %s36 = sadd.s32 %s35, 1
    %s37 = scalar_select %p34, %s35, %s36
    %p40 = pneg %p34
    %p41 = scmp.eq.s32.totalorder %s11, 15
    %p42 = por %p40, %p41
    %p43 = scmp.ne.s32.totalorder %s35, %s38
    %p44 = scmp.eq.s32.totalorder %s11, 0
    %p45 = por %p43, %p44
    %p46 = scmp.ne.s32.totalorder %s35, %s38
    %p47 = scmp.eq.s32.totalorder %s16, 15
    %p48 = por %p46, %p47
    %p49 = scmp.ne.s32.totalorder %s38, %s39
    %p50 = scmp.eq.s32.totalorder %s16, 0
    %p51 = por %p49, %p50
    %p52 = scmp.ne.s32.totalorder %s38, %s39
    %p53 = scmp.eq.s32.totalorder %s17, 15
    %p54 = por %p52, %p53
    %p56 = scmp.ne.s32.totalorder %s39, %s55
    %p57 = scmp.eq.s32.totalorder %s17, 0
    %p58 = por %p56, %p57
    %s60 = sadd.s32 %s59, 1
    %p63 = scmp.eq.s32.totalorder %s11, 15
    %p64 = scmp.ne.s32.totalorder %s59, %s61
    %p65 = scmp.eq.s32.totalorder %s11, 0
    %p66 = por %p64, %p65
    %p67 = scmp.ne.s32.totalorder %s59, %s61
    %p68 = scmp.eq.s32.totalorder %s16, 15
    %p69 = por %p67, %p68
    %p70 = scmp.ne.s32.totalorder %s61, %s62
    %p71 = scmp.eq.s32.totalorder %s16, 0
    %p72 = por %p70, %p71
    %p73 = scmp.ne.s32.totalorder %s61, %s62
    %p74 = scmp.eq.s32.totalorder %s17, 15
    %p75 = por %p73, %p74
    %p77 = scmp.ne.s32.totalorder %s62, %s76
    %p78 = scmp.eq.s32.totalorder %s17, 0
    %p79 = por %p77, %p78
    %s81 = sadd.s32 %s80, 1
    %p84 = scmp.eq.s32.totalorder %s11, 15
    %p85 = scmp.ne.s32.totalorder %s80, %s82
    %p86 = scmp.eq.s32.totalorder %s11, 0
    %p87 = por %p85, %p86
    %p88 = scmp.ne.s32.totalorder %s80, %s82
    %p89 = scmp.eq.s32.totalorder %s16, 15
    %p90 = por %p88, %p89
    %p91 = scmp.ne.s32.totalorder %s82, %s83
    %p92 = scmp.eq.s32.totalorder %s16, 0
    %p93 = por %p91, %p92
    %p94 = scmp.ne.s32.totalorder %s82, %s83
    %p95 = scmp.eq.s32.totalorder %s17, 15
    %p96 = por %p94, %p95
    %p98 = scmp.ne.s32.totalorder %s83, %s97
    %p99 = scmp.eq.s32.totalorder %s17, 0
    %p100 = por %p98, %p99
    %s102 = sadd.s32 %s101, 1
    %p105 = scmp.eq.s32.totalorder %s11, 15
    %p106 = scmp.ne.s32.totalorder %s101, %s103
    %p107 = scmp.eq.s32.totalorder %s11, 0
    %p108 = por %p106, %p107
    %p109 = scmp.ne.s32.totalorder %s101, %s103
    %p110 = scmp.eq.s32.totalorder %s16, 15
    %p111 = por %p109, %p110
    %p112 = scmp.ne.s32.totalorder %s103, %s104
    %p113 = scmp.eq.s32.totalorder %s16, 0
    %p114 = por %p112, %p113
    %p115 = scmp.ne.s32.totalorder %s103, %s104
    %p116 = scmp.eq.s32.totalorder %s17, 15
    %p117 = por %p115, %p116
    %p119 = scmp.ne.s32.totalorder %s104, %s118
    %p120 = scmp.eq.s32.totalorder %s17, 0
    %p121 = por %p119, %p120
    %s123 = sadd.s32 %s122, 1
    %p126 = scmp.eq.s32.totalorder %s11, 15
    %p127 = scmp.ne.s32.totalorder %s122, %s124
    %p128 = scmp.eq.s32.totalorder %s11, 0
    %p129 = por %p127, %p128
    %p130 = scmp.ne.s32.totalorder %s122, %s124
    %p131 = scmp.eq.s32.totalorder %s16, 15
    %p132 = por %p130, %p131
    %p133 = scmp.ne.s32.totalorder %s124, %s125
    %p134 = scmp.eq.s32.totalorder %s16, 0
    %p135 = por %p133, %p134
    %p136 = scmp.ne.s32.totalorder %s124, %s125
    %p137 = scmp.eq.s32.totalorder %s17, 15
    %p138 = por %p136, %p137
    %p140 = scmp.ne.s32.totalorder %s125, %s139
    %p141 = scmp.eq.s32.totalorder %s17, 0
    %p142 = por %p140, %p141
    %s143 = ssub.s32 %s18, %s30
    %p144 = scmp.eq.s32.totalorder %s143, 0
    %s146 = sadd.s32 %s145, 1
    %s147 = scalar_select %p144, %s145, %s146
    %p150 = pneg %p144
    %p151 = scmp.eq.s32.totalorder %s11, 15
    %p152 = por %p150, %p151
    %p153 = scmp.ne.s32.totalorder %s145, %s148
    %p154 = scmp.eq.s32.totalorder %s11, 0
    %p155 = por %p153, %p154
    %p156 = scmp.ne.s32.totalorder %s145, %s148
    %p157 = scmp.eq.s32.totalorder %s16, 15
    %p158 = por %p156, %p157
    %p159 = scmp.ne.s32.totalorder %s148, %s149
    %p160 = scmp.eq.s32.totalorder %s16, 0
    %p161 = por %p159, %p160
    %p162 = scmp.ne.s32.totalorder %s148, %s149
    %p163 = scmp.eq.s32.totalorder %s17, 15
    %p164 = por %p162, %p163
    %p166 = scmp.ne.s32.totalorder %s149, %s165
    %p167 = scmp.eq.s32.totalorder %s17, 0
    %p168 = por %p166, %p167
    %p169 = scmp.le.s32.totalorder 1, %s11
    %p170 = scmp.lt.s32.totalorder %s11, 17
    %p171 = pnand %p169, %p170
    %p172 = pneg %p171
    // Predicated region
    $region9: #{backbone_forward.13} parent=5 // pred_check
      _
    $region10: #{backbone_forward.13} parent=5 // pred_check_branch
      %174 = sbr.rel (%p171) target = $region12
    $region11: #{backbone_forward.13} parent=5 // pred_region
      %s175 = ssub.s32 %s11, 1
      // Predicated region
      $region13: #{backbone_forward.13} parent=11 // pred_check
        %p176 = pneg %p72
      $region14: #{backbone_forward.13} parent=11 // pred_check_branch
        %178 = sbr.rel (%p176) target = $region16
      $region15: #{backbone_forward.13} parent=11 // pred_region
        _
      $region16: #{backbone_forward.13} parent=11 // pred_fallthru
        _
      // Predicated region
      $region17: #{backbone_forward.13} parent=11 // pred_check
        %p179 = pneg %p93
      $region18: #{backbone_forward.13} parent=11 // pred_check_branch
        %181 = sbr.rel (%p179) target = $region20
      $region19: #{backbone_forward.13} parent=11 // pred_region
        _
      $region20: #{backbone_forward.13} parent=11 // pred_fallthru
        _
      // Predicated region
      $region21: #{backbone_forward.13} parent=11 // pred_check
        %p182 = pneg %p114
      $region22: #{backbone_forward.13} parent=11 // pred_check_branch
        %184 = sbr.rel (%p182) target = $region24
      $region23: #{backbone_forward.13} parent=11 // pred_region
        _
      $region24: #{backbone_forward.13} parent=11 // pred_fallthru
        _
      // Predicated region
      $region25: #{backbone_forward.13} parent=11 // pred_check
        %p185 = pneg %p135
      $region26: #{backbone_forward.13} parent=11 // pred_check_branch
        %187 = sbr.rel (%p185) target = $region28
      $region27: #{backbone_forward.13} parent=11 // pred_region
        _
      $region28: #{backbone_forward.13} parent=11 // pred_fallthru
        _
    $region12: #{backbone_forward.13} parent=5 // pred_fallthru
      _
    %p188 = scmp.lt.s32.totalorder %s11, 16
    // Predicated region
    $region29: #{backbone_forward.13} parent=5 // pred_check
      %p189 = pneg %p188
    $region30: #{backbone_forward.13} parent=5 // pred_check_branch
      %191 = sbr.rel (%p189) target = $region32
    $region31: #{backbone_forward.13} parent=5 // pred_region
      // Predicated region
      $region33: #{backbone_forward.13} parent=31 // pred_check
        %p192 = pneg %p45
      $region34: #{backbone_forward.13} parent=31 // pred_check_branch
        %194 = sbr.rel (%p192) target = $region36
      $region35: #{backbone_forward.13} parent=31 // pred_region
        %p195 = scmp.lt.s32.totalorder %s19, 15
        %s196 = scalar_select %p195, %s19, 15
        %p197 = scmp.lt.s32.totalorder %s18, 0
        %s198 = scalar_select %p197, %s18, 0
        %s199 = smul.addr %s196, 2
        %s200 = sadd.s32 %s198, %s199
        %s201 = smul.addr %s200, 4
        %s202 = scalar_lea.vmem %s0, %s201
      $region36: #{backbone_forward.13} parent=31 // pred_fallthru
        _
    $region32: #{backbone_forward.13} parent=5 // pred_fallthru
      _
    %p203 = scmp.le.s32.totalorder 1, %s11
    %p204 = scmp.lt.s32.totalorder %s11, 17
    %p205 = pnand %p203, %p204
    %p206 = pneg %p205
    // Predicated region
    $region37: #{backbone_forward.13} parent=5 // pred_check
      _
    $region38: #{backbone_forward.13} parent=5 // pred_check_branch
      %208 = sbr.rel (%p205) target = $region40
    $region39: #{backbone_forward.13} parent=5 // pred_region
      %s209 = ssub.s32 %s11, 1
      %p210 = scmp.lt.s32.totalorder %s21, 15
      %s211 = scalar_select %p210, %s21, 15
      %p212 = scmp.lt.s32.totalorder %s20, 0
      %s213 = scalar_select %p212, %s20, 0
      %s214 = smul.addr %s211, 2
      %s215 = sadd.s32 %s213, %s214
      %s216 = smul.addr %s215, 4
      %s217 = scalar_lea.vmem %s0, %s216
      %p218 = pneg %p51
      %p219 = pneg %p48
      %p220 = pneg %p72
      %p221 = pneg %p69
      %p222 = pneg %p93
      %p223 = pneg %p90
      %p224 = pneg %p114
      %p225 = pneg %p111
      %p226 = pneg %p135
      %p227 = pneg %p132
      %p228 = pneg %p161
      %p229 = pneg %p158
      %p230 = scmp.lt.s32.totalorder %s20, 0
      %s231 = scalar_select %p230, %s20, 0
      %s232 = smul.addr %s231, 8
      %s233 = scalar_lea.vmem %s5, %s232
      %p234 = scmp.lt.s32.totalorder %s21, 15
      %s235 = scalar_select %p234, %s21, 15
      %p236 = scmp.lt.s32.totalorder %s20, 0
      %s237 = scalar_select %p236, %s20, 0
      %s238 = smul.addr %s235, 2
      %s239 = sadd.s32 %s237, %s238
      %s240 = smul.addr %s239, 4
      %s241 = scalar_lea.vmem %s0, %s240
      %p242 = scmp.lt.s32.totalorder %s20, 0
      %s243 = scalar_select %p242, %s20, 0
      %s244 = smul.addr %s243, 8
      %s245 = scalar_lea.vmem %s5, %s244
      %v247 = vld [vmem:[%s4] sm:$0xff]
      %v248 = vld [vmem:[%s4 + $0x8] sm:$0xff]
      %v249 = vld [vmem:[%s4 + $0x10] sm:$0xff]
      %v250 = vld [vmem:[%s4 + $0x18] sm:$0xff]
      %v251 = vld [vmem:[%s4 + $0x20] sm:$0xff]
      %v252 = vld [vmem:[%s4 + $0x28] sm:$0xff]
      %v253 = vld [vmem:[%s4 + $0x30] sm:$0xff]
      %v254 = vld [vmem:[%s4 + $0x38] sm:$0xff]
      %v255 = vld [vmem:[%s4 + $0x40] sm:$0xff]
      %v256 = vld [vmem:[%s4 + $0x48] sm:$0xff]
      %v257 = vld [vmem:[%s4 + $0x50] sm:$0xff]
      %v258 = vld [vmem:[%s4 + $0x58] sm:$0xff]
      %v259 = vld [vmem:[%s4 + $0x60] sm:$0xff]
      %v260 = vld [vmem:[%s4 + $0x68] sm:$0xff]
      %v261 = vld [vmem:[%s4 + $0x70] sm:$0xff]
      %v262 = vld [vmem:[%s4 + $0x78] sm:$0xff]
      %v263 = vld [vmem:[%s4 + $0x80] sm:$0xff]
      %v264 = vld [vmem:[%s4 + $0x88] sm:$0xff]
      %v265 = vld [vmem:[%s4 + $0x90] sm:$0xff]
      %v266 = vld [vmem:[%s4 + $0x98] sm:$0xff]
      %v267 = vld [vmem:[%s4 + $0xa0] sm:$0xff]
      %v268 = vld [vmem:[%s4 + $0xa8] sm:$0xff]
      %v269 = vld [vmem:[%s4 + $0xb0] sm:$0xff]
      %v270 = vld [vmem:[%s4 + $0xb8] sm:$0xff]
      %v271 = vld [vmem:[%s4 + $0xc0] sm:$0xff]
      %v272 = vld [vmem:[%s4 + $0xc8] sm:$0xff]
      %v273 = vld [vmem:[%s4 + $0xd0] sm:$0xff]
      %v274 = vld [vmem:[%s4 + $0xd8] sm:$0xff]
      %v275 = vld [vmem:[%s4 + $0xe0] sm:$0xff]
      %v276 = vld [vmem:[%s4 + $0xe8] sm:$0xff]
      %v277 = vld [vmem:[%s4 + $0xf0] sm:$0xff]
      %v278 = vld [vmem:[%s4 + $0xf8] sm:$0xff]
      %v279 = vld [vmem:[%s241] sm:$0xf]
      %v280 = vld [vmem:[%s241 + $0x4] sm:$0xf]
      %v281 = vld [vmem:[%s1] sm:$0xf]
      %v282 = vld [vmem:[%s1 + $0x4] sm:$0xf]
      %v283 = vld [vmem:[%s1 + $0x8] sm:$0xf]
      %v284 = vld [vmem:[%s1 + $0xc] sm:$0xf]
      %v285 = vld [vmem:[%s1 + $0x10] sm:$0xf]
      %v286 = vld [vmem:[%s1 + $0x14] sm:$0xf]
      %v287 = vld [vmem:[%s1 + $0x18] sm:$0xf]
      %v288 = vld [vmem:[%s1 + $0x1c] sm:$0xf]
      %290 = vset.pattern.permute.xlu0 0
      %291 = vperm.xlu0 %290, %v247
      %v292 = vpop.permute.xlu0 %291
      %295 = vset.pattern.permute.xlu0 0
      %296 = vperm.xlu0 %295, %v248
      %v297 = vpop.permute.xlu0 %296
      %300 = vset.pattern.permute.xlu0 0
      %301 = vperm.xlu0 %300, %v249
      %v302 = vpop.permute.xlu0 %301
      %305 = vset.pattern.permute.xlu0 0
      %306 = vperm.xlu0 %305, %v250
      %v307 = vpop.permute.xlu0 %306
      %310 = vset.pattern.permute.xlu0 0
      %311 = vperm.xlu0 %310, %v251
      %v312 = vpop.permute.xlu0 %311
      %315 = vset.pattern.permute.xlu0 0
      %316 = vperm.xlu0 %315, %v252
      %v317 = vpop.permute.xlu0 %316
      %320 = vset.pattern.permute.xlu0 0
      %321 = vperm.xlu0 %320, %v253
      %v322 = vpop.permute.xlu0 %321
      %325 = vset.pattern.permute.xlu0 0
      %326 = vperm.xlu0 %325, %v254
      %v327 = vpop.permute.xlu0 %326
      %v337 = vunpack.c.l.b16 %v281
      %v338 = vunpack.c.l.b16 %v282
      %v339 = vunpack.c.l.b16 %v283
      %v340 = vunpack.c.l.b16 %v284
      %v341 = vunpack.c.l.b16 %v285
      %v342 = vunpack.c.l.b16 %v286
      %v343 = vunpack.c.l.b16 %v287
      %v344 = vunpack.c.l.b16 %v288
      %v345 = vpack.c.b16 %v338, %v337
      %v346 = vpack.c.b16 %v340, %v339
      %v347 = vpack.c.b16 %v342, %v341
      %v348 = vpack.c.b16 %v344, %v343
      %v351 = vunpack.c.l.b16 %v279
      %v352 = vunpack.c.l.b16 %v280
      %v353 = vpack.c.b16 %v352, %v351
      %vm355 = vcmask 130048
      %v357 = vsel %vm355, %v345, 0
      %v360 = vsel %vm355, %v346, 0
      %v363 = vsel %vm355, %v347, 0
      %v366 = vsel %vm355, %v348, 0
      %368 = vmatpush.bf16.msra.mxu0 0
      %369 = vmatpush.bf16.msra.mxu0 0
      %370 = vmatpush.bf16.msra.mxu0 0
      %371 = vmatpush.bf16.msra.mxu0 0
      %372 = vmatpush.bf16.msra.mxu0 0
      %373 = vmatpush.bf16.msra.mxu0 0
      %374 = vmatpush.bf16.msra.mxu0 0
      %375 = vmatpush.bf16.msra.mxu0 %v353
      %376 = vmatmul.bf16.gmra.mxu0 %v357
      %v377 = vpop.f32.mrf.mxu0
      %v378 = vadd.f32 %v292, %v377
      %v379 = vpop.f32.mrf.mxu0
      %v380 = vadd.f32 %v297, %v379
      %381 = vmatmul.bf16.gmra.mxu0 %v360
      %v382 = vpop.f32.mrf.mxu0
      %v383 = vadd.f32 %v302, %v382
      %v384 = vpop.f32.mrf.mxu0
      %v385 = vadd.f32 %v307, %v384
      %386 = vmatmul.bf16.gmra.mxu0 %v363
      %v387 = vpop.f32.mrf.mxu0
      %v388 = vadd.f32 %v312, %v387
      %v389 = vpop.f32.mrf.mxu0
      %v390 = vadd.f32 %v317, %v389
      %391 = vmatmul.bf16.gmra.mxu0 %v366
      %v392 = vpop.f32.mrf.mxu0
      %v393 = vadd.f32 %v322, %v392
      %v394 = vpop.f32.mrf.mxu0
      %v395 = vadd.f32 %v327, %v394
      %396 = vdwg.mxu0
      %v397 = vmax.f32 %v378, 0.0
      %v398 = vmax.f32 %v380, 0.0
      %v399 = vmax.f32 %v383, 0.0
      %v400 = vmax.f32 %v385, 0.0
      %v401 = vmax.f32 %v388, 0.0
      %v402 = vmax.f32 %v390, 0.0
      %v403 = vmax.f32 %v393, 0.0
      %v404 = vmax.f32 %v395, 0.0
      %v405 = vpack.c.bf16 %v398, %v397
      %v406 = vpack.c.bf16 %v400, %v399
      %v407 = vpack.c.bf16 %v402, %v401
      %v408 = vpack.c.bf16 %v404, %v403
      %v409 = vld [vmem:[%s2] sm:$0xf]
      %v410 = vld [vmem:[%s2 + $0x4] sm:$0xf]
      %v411 = vld [vmem:[%s2 + $0x8] sm:$0xf]
      %v412 = vld [vmem:[%s2 + $0xc] sm:$0xf]
      %v413 = vld [vmem:[%s2 + $0x10] sm:$0xf]
      %v414 = vld [vmem:[%s2 + $0x14] sm:$0xf]
      %v415 = vld [vmem:[%s2 + $0x18] sm:$0xf]
      %v416 = vld [vmem:[%s2 + $0x1c] sm:$0xf]
      %418 = vset.pattern.permute.xlu0 0
      %419 = vperm.xlu0 %418, %v255
      %v420 = vpop.permute.xlu0 %419
      %423 = vset.pattern.permute.xlu0 0
      %424 = vperm.xlu0 %423, %v256
      %v425 = vpop.permute.xlu0 %424
      %428 = vset.pattern.permute.xlu0 0
      %429 = vperm.xlu0 %428, %v257
      %v430 = vpop.permute.xlu0 %429
      %433 = vset.pattern.permute.xlu0 0
      %434 = vperm.xlu0 %433, %v258
      %v435 = vpop.permute.xlu0 %434
      %438 = vset.pattern.permute.xlu0 0
      %439 = vperm.xlu0 %438, %v259
      %v440 = vpop.permute.xlu0 %439
      %443 = vset.pattern.permute.xlu0 0
      %444 = vperm.xlu0 %443, %v260
      %v445 = vpop.permute.xlu0 %444
      %448 = vset.pattern.permute.xlu0 0
      %449 = vperm.xlu0 %448, %v261
      %v450 = vpop.permute.xlu0 %449
      %453 = vset.pattern.permute.xlu0 0
      %454 = vperm.xlu0 %453, %v262
      %v455 = vpop.permute.xlu0 %454
      %v465 = vunpack.c.l.b16 %v409
      %v466 = vunpack.c.l.b16 %v410
      %v467 = vunpack.c.l.b16 %v411
      %v468 = vunpack.c.l.b16 %v412
      %v469 = vunpack.c.l.b16 %v413
      %v470 = vunpack.c.l.b16 %v414
      %v471 = vunpack.c.l.b16 %v415
      %v472 = vunpack.c.l.b16 %v416
      %v473 = vpack.c.b16 %v466, %v465
      %v474 = vpack.c.b16 %v468, %v467
      %v475 = vpack.c.b16 %v470, %v469
      %v476 = vpack.c.b16 %v472, %v471
      %vm477 = vcmask 523264
      %v479 = vsel %vm477, %v473, 0
      %v482 = vsel %vm477, %v474, 0
      %v485 = vsel %vm477, %v475, 0
      %v488 = vsel %vm477, %v476, 0
      %490 = vmatpush.bf16.msra.mxu0 0
      %491 = vmatpush.bf16.msra.mxu0 0
      %492 = vmatpush.bf16.msra.mxu0 0
      %493 = vmatpush.bf16.msra.mxu0 0
      %494 = vmatpush.bf16.msra.mxu0 %v408
      %495 = vmatpush.bf16.msra.mxu0 %v407
      %496 = vmatpush.bf16.msra.mxu0 %v406
      %497 = vmatpush.bf16.msra.mxu0 %v405
      %498 = vmatmul.bf16.gmra.mxu0 %v479
      %v499 = vpop.f32.mrf.mxu0
      %v500 = vadd.f32 %v420, %v499
      %v501 = vpop.f32.mrf.mxu0
      %v502 = vadd.f32 %v425, %v501
      %503 = vmatmul.bf16.gmra.mxu0 %v482
      %v504 = vpop.f32.mrf.mxu0
      %v505 = vadd.f32 %v430, %v504
      %v506 = vpop.f32.mrf.mxu0
      %v507 = vadd.f32 %v435, %v506
      %508 = vmatmul.bf16.gmra.mxu0 %v485
      %v509 = vpop.f32.mrf.mxu0
      %v510 = vadd.f32 %v440, %v509
      %v511 = vpop.f32.mrf.mxu0
      %v512 = vadd.f32 %v445, %v511
      %513 = vmatmul.bf16.gmra.mxu0 %v488
      %v514 = vpop.f32.mrf.mxu0
      %v515 = vadd.f32 %v450, %v514
      %v516 = vpop.f32.mrf.mxu0
      %v517 = vadd.f32 %v455, %v516
      %518 = vdwg.mxu0
      %v519 = vmax.f32 %v500, 0.0
      %v520 = vmax.f32 %v502, 0.0
      %v521 = vmax.f32 %v505, 0.0
      %v522 = vmax.f32 %v507, 0.0
      %v523 = vmax.f32 %v510, 0.0
      %v524 = vmax.f32 %v512, 0.0
      %v525 = vmax.f32 %v515, 0.0
      %v526 = vmax.f32 %v517, 0.0
      %v527 = vpack.c.bf16 %v520, %v519
      %v528 = vpack.c.bf16 %v522, %v521
      %v529 = vpack.c.bf16 %v524, %v523
      %v530 = vpack.c.bf16 %v526, %v525
      %v531 = vld [vmem:[%s3] sm:$0xf]
      %v532 = vld [vmem:[%s3 + $0x4] sm:$0xf]
      %v533 = vld [vmem:[%s3 + $0x8] sm:$0xf]
      %v534 = vld [vmem:[%s3 + $0xc] sm:$0xf]
      %v535 = vld [vmem:[%s3 + $0x10] sm:$0xf]
      %v536 = vld [vmem:[%s3 + $0x14] sm:$0xf]
      %v537 = vld [vmem:[%s3 + $0x18] sm:$0xf]
      %v538 = vld [vmem:[%s3 + $0x1c] sm:$0xf]
      %v539 = vld [vmem:[%s3 + $0x20] sm:$0xf]
      %v540 = vld [vmem:[%s3 + $0x24] sm:$0xf]
      %v541 = vld [vmem:[%s3 + $0x28] sm:$0xf]
      %v542 = vld [vmem:[%s3 + $0x2c] sm:$0xf]
      %v543 = vld [vmem:[%s3 + $0x30] sm:$0xf]
      %v544 = vld [vmem:[%s3 + $0x34] sm:$0xf]
      %v545 = vld [vmem:[%s3 + $0x38] sm:$0xf]
      %v546 = vld [vmem:[%s3 + $0x3c] sm:$0xf]
      %548 = vset.pattern.permute.xlu0 0
      %549 = vperm.xlu0 %548, %v263
      %v550 = vpop.permute.xlu0 %549
      %553 = vset.pattern.permute.xlu0 0
      %554 = vperm.xlu0 %553, %v264
      %v555 = vpop.permute.xlu0 %554
      %558 = vset.pattern.permute.xlu0 0
      %559 = vperm.xlu0 %558, %v265
      %v560 = vpop.permute.xlu0 %559
      %563 = vset.pattern.permute.xlu0 0
      %564 = vperm.xlu0 %563, %v266
      %v565 = vpop.permute.xlu0 %564
      %568 = vset.pattern.permute.xlu0 0
      %569 = vperm.xlu0 %568, %v267
      %v570 = vpop.permute.xlu0 %569
      %573 = vset.pattern.permute.xlu0 0
      %574 = vperm.xlu0 %573, %v268
      %v575 = vpop.permute.xlu0 %574
      %578 = vset.pattern.permute.xlu0 0
      %579 = vperm.xlu0 %578, %v269
      %v580 = vpop.permute.xlu0 %579
      %583 = vset.pattern.permute.xlu0 0
      %584 = vperm.xlu0 %583, %v270
      %v585 = vpop.permute.xlu0 %584
      %588 = vset.pattern.permute.xlu0 0
      %589 = vperm.xlu0 %588, %v271
      %v590 = vpop.permute.xlu0 %589
      %593 = vset.pattern.permute.xlu0 0
      %594 = vperm.xlu0 %593, %v272
      %v595 = vpop.permute.xlu0 %594
      %598 = vset.pattern.permute.xlu0 0
      %599 = vperm.xlu0 %598, %v273
      %v600 = vpop.permute.xlu0 %599
      %603 = vset.pattern.permute.xlu0 0
      %604 = vperm.xlu0 %603, %v274
      %v605 = vpop.permute.xlu0 %604
      %608 = vset.pattern.permute.xlu0 0
      %609 = vperm.xlu0 %608, %v275
      %v610 = vpop.permute.xlu0 %609
      %613 = vset.pattern.permute.xlu0 0
      %614 = vperm.xlu0 %613, %v276
      %v615 = vpop.permute.xlu0 %614
      %618 = vset.pattern.permute.xlu0 0
      %619 = vperm.xlu0 %618, %v277
      %v620 = vpop.permute.xlu0 %619
      %623 = vset.pattern.permute.xlu0 0
      %624 = vperm.xlu0 %623, %v278
      %v625 = vpop.permute.xlu0 %624
      %v643 = vunpack.c.l.b16 %v531
      %v644 = vunpack.c.l.b16 %v532
      %v645 = vunpack.c.l.b16 %v533
      %v646 = vunpack.c.l.b16 %v534
      %v647 = vunpack.c.l.b16 %v535
      %v648 = vunpack.c.l.b16 %v536
      %v649 = vunpack.c.l.b16 %v537
      %v650 = vunpack.c.l.b16 %v538
      %v651 = vunpack.c.l.b16 %v539
      %v652 = vunpack.c.l.b16 %v540
      %v653 = vunpack.c.l.b16 %v541
      %v654 = vunpack.c.l.b16 %v542
      %v655 = vunpack.c.l.b16 %v543
      %v656 = vunpack.c.l.b16 %v544
      %v657 = vunpack.c.l.b16 %v545
      %v658 = vunpack.c.l.b16 %v546
      %v659 = vpack.c.b16 %v644, %v643
      %v660 = vpack.c.b16 %v646, %v645
      %v661 = vpack.c.b16 %v648, %v647
      %v662 = vpack.c.b16 %v650, %v649
      %v663 = vpack.c.b16 %v652, %v651
      %v664 = vpack.c.b16 %v654, %v653
      %v665 = vpack.c.b16 %v656, %v655
      %v666 = vpack.c.b16 %v658, %v657
      %v668 = vsel %vm477, %v659, 0
      %v671 = vsel %vm477, %v660, 0
      %v674 = vsel %vm477, %v661, 0
      %v677 = vsel %vm477, %v662, 0
      %v680 = vsel %vm477, %v663, 0
      %v683 = vsel %vm477, %v664, 0
      %v686 = vsel %vm477, %v665, 0
      %v689 = vsel %vm477, %v666, 0
      %691 = vmatpush.bf16.msra.mxu0 0
      %692 = vmatpush.bf16.msra.mxu0 0
      %693 = vmatpush.bf16.msra.mxu0 0
      %694 = vmatpush.bf16.msra.mxu0 0
      %695 = vmatpush.bf16.msra.mxu0 %v530
      %696 = vmatpush.bf16.msra.mxu0 %v529
      %697 = vmatpush.bf16.msra.mxu0 %v528
      %698 = vmatpush.bf16.msra.mxu0 %v527
      %699 = vmatmul.bf16.gmra.mxu0 %v668
      %v700 = vpop.f32.mrf.mxu0
      %v701 = vadd.f32 %v550, %v700
      %v702 = vpop.f32.mrf.mxu0
      %v703 = vadd.f32 %v555, %v702
      %704 = vmatmul.bf16.gmra.mxu0 %v671
      %v705 = vpop.f32.mrf.mxu0
      %v706 = vadd.f32 %v560, %v705
      %v707 = vpop.f32.mrf.mxu0
      %v708 = vadd.f32 %v565, %v707
      %709 = vmatmul.bf16.gmra.mxu0 %v674
      %v710 = vpop.f32.mrf.mxu0
      %v711 = vadd.f32 %v570, %v710
      %v712 = vpop.f32.mrf.mxu0
      %v713 = vadd.f32 %v575, %v712
      %714 = vmatmul.bf16.gmra.mxu0 %v677
      %v715 = vpop.f32.mrf.mxu0
      %v716 = vadd.f32 %v580, %v715
      %v717 = vpop.f32.mrf.mxu0
      %v718 = vadd.f32 %v585, %v717
      %719 = vmatmul.bf16.gmra.mxu0 %v680
      %v720 = vpop.f32.mrf.mxu0
      %v721 = vadd.f32 %v590, %v720
      %v722 = vpop.f32.mrf.mxu0
      %v723 = vadd.f32 %v595, %v722
      %724 = vmatmul.bf16.gmra.mxu0 %v683
      %v725 = vpop.f32.mrf.mxu0
      %v726 = vadd.f32 %v600, %v725
      %v727 = vpop.f32.mrf.mxu0
      %v728 = vadd.f32 %v605, %v727
      %729 = vmatmul.bf16.gmra.mxu0 %v686
      %v730 = vpop.f32.mrf.mxu0
      %v731 = vadd.f32 %v610, %v730
      %v732 = vpop.f32.mrf.mxu0
      %v733 = vadd.f32 %v615, %v732
      %734 = vmatmul.bf16.gmra.mxu0 %v689
      %v735 = vpop.f32.mrf.mxu0
      %v736 = vadd.f32 %v620, %v735
      %v737 = vpop.f32.mrf.mxu0
      %v738 = vadd.f32 %v625, %v737
      %739 = vdwg.mxu0
      %v740 = vmax.f32 %v701, 0.0
      %v741 = vmax.f32 %v703, 0.0
      %v742 = vmax.f32 %v706, 0.0
      %v743 = vmax.f32 %v708, 0.0
      %v744 = vmax.f32 %v711, 0.0
      %v745 = vmax.f32 %v713, 0.0
      %v746 = vmax.f32 %v716, 0.0
      %v747 = vmax.f32 %v718, 0.0
      %v748 = vmax.f32 %v721, 0.0
      %v749 = vmax.f32 %v723, 0.0
      %v750 = vmax.f32 %v726, 0.0
      %v751 = vmax.f32 %v728, 0.0
      %v752 = vmax.f32 %v731, 0.0
      %v753 = vmax.f32 %v733, 0.0
      %v754 = vmax.f32 %v736, 0.0
      %v755 = vmax.f32 %v738, 0.0
      %p756 = scmp.eq.s32.totalorder %s21, 0
      // Predicated region
      $region41: #{backbone_forward.13} parent=39 // pred_check
        %p757 = pneg %p756
      $region42: #{backbone_forward.13} parent=39 // pred_check_branch
        %759 = sbr.rel (%p757) target = $region44
      $region43: #{backbone_forward.13} parent=39 // pred_region
        %760 = vst [vmem:[%s245] sm:$0xff] %v740
        %761 = vst [vmem:[%s245 + $0x8] sm:$0xff] %v741
        %762 = vst [vmem:[%s245 + $0x10] sm:$0xff] %v742
        %763 = vst [vmem:[%s245 + $0x18] sm:$0xff] %v743
        %764 = vst [vmem:[%s245 + $0x20] sm:$0xff] %v744
        %765 = vst [vmem:[%s245 + $0x28] sm:$0xff] %v745
        %766 = vst [vmem:[%s245 + $0x30] sm:$0xff] %v746
        %767 = vst [vmem:[%s245 + $0x38] sm:$0xff] %v747
        %768 = vst [vmem:[%s245 + $0x40] sm:$0xff] %v748
        %769 = vst [vmem:[%s245 + $0x48] sm:$0xff] %v749
        %770 = vst [vmem:[%s245 + $0x50] sm:$0xff] %v750
        %771 = vst [vmem:[%s245 + $0x58] sm:$0xff] %v751
        %772 = vst [vmem:[%s245 + $0x60] sm:$0xff] %v752
        %773 = vst [vmem:[%s245 + $0x68] sm:$0xff] %v753
        %774 = vst [vmem:[%s245 + $0x70] sm:$0xff] %v754
        %775 = vst [vmem:[%s245 + $0x78] sm:$0xff] %v755
      $region44: #{backbone_forward.13} parent=39 // pred_fallthru
        _
      %p776 = scmp.gt.s32.totalorder %s21, 0
      // Predicated region
      $region45: #{backbone_forward.13} parent=39 // pred_check
        %p777 = pneg %p776
      $region46: #{backbone_forward.13} parent=39 // pred_check_branch
        %779 = sbr.rel (%p777) target = $region48
      $region47: #{backbone_forward.13} parent=39 // pred_region
        %v780 = vld [vmem:[%s245] sm:$0xff]
        %v781 = vld [vmem:[%s245 + $0x8] sm:$0xff]
        %v782 = vld [vmem:[%s245 + $0x10] sm:$0xff]
        %v783 = vld [vmem:[%s245 + $0x18] sm:$0xff]
        %v784 = vld [vmem:[%s245 + $0x20] sm:$0xff]
        %v785 = vld [vmem:[%s245 + $0x28] sm:$0xff]
        %v786 = vld [vmem:[%s245 + $0x30] sm:$0xff]
        %v787 = vld [vmem:[%s245 + $0x38] sm:$0xff]
        %v788 = vld [vmem:[%s245 + $0x40] sm:$0xff]
        %v789 = vld [vmem:[%s245 + $0x48] sm:$0xff]
        %v790 = vld [vmem:[%s245 + $0x50] sm:$0xff]
        %v791 = vld [vmem:[%s245 + $0x58] sm:$0xff]
        %v792 = vld [vmem:[%s245 + $0x60] sm:$0xff]
        %v793 = vld [vmem:[%s245 + $0x68] sm:$0xff]
        %v794 = vld [vmem:[%s245 + $0x70] sm:$0xff]
        %v795 = vld [vmem:[%s245 + $0x78] sm:$0xff]
        %v796 = vmax.f32 %v780, %v740
        %v797 = vmax.f32 %v781, %v741
        %v798 = vmax.f32 %v782, %v742
        %v799 = vmax.f32 %v783, %v743
        %v800 = vmax.f32 %v784, %v744
        %v801 = vmax.f32 %v785, %v745
        %v802 = vmax.f32 %v786, %v746
        %v803 = vmax.f32 %v787, %v747
        %v804 = vmax.f32 %v788, %v748
        %v805 = vmax.f32 %v789, %v749
        %v806 = vmax.f32 %v790, %v750
        %v807 = vmax.f32 %v791, %v751
        %v808 = vmax.f32 %v792, %v752
        %v809 = vmax.f32 %v793, %v753
        %v810 = vmax.f32 %v794, %v754
        %v811 = vmax.f32 %v795, %v755
        %812 = vst [vmem:[%s245] sm:$0xff] %v796
        %813 = vst [vmem:[%s245 + $0x8] sm:$0xff] %v797
        %814 = vst [vmem:[%s245 + $0x10] sm:$0xff] %v798
        %815 = vst [vmem:[%s245 + $0x18] sm:$0xff] %v799
        %816 = vst [vmem:[%s245 + $0x20] sm:$0xff] %v800
        %817 = vst [vmem:[%s245 + $0x28] sm:$0xff] %v801
        %818 = vst [vmem:[%s245 + $0x30] sm:$0xff] %v802
        %819 = vst [vmem:[%s245 + $0x38] sm:$0xff] %v803
        %820 = vst [vmem:[%s245 + $0x40] sm:$0xff] %v804
        %821 = vst [vmem:[%s245 + $0x48] sm:$0xff] %v805
        %822 = vst [vmem:[%s245 + $0x50] sm:$0xff] %v806
        %823 = vst [vmem:[%s245 + $0x58] sm:$0xff] %v807
        %824 = vst [vmem:[%s245 + $0x60] sm:$0xff] %v808
        %825 = vst [vmem:[%s245 + $0x68] sm:$0xff] %v809
        %826 = vst [vmem:[%s245 + $0x70] sm:$0xff] %v810
        %827 = vst [vmem:[%s245 + $0x78] sm:$0xff] %v811
      $region48: #{backbone_forward.13} parent=39 // pred_fallthru
        _
      %p828 = scmp.lt.s32.totalorder %s20, 0
      %s829 = scalar_select %p828, %s20, 0
      %s830 = smul.addr %s829, 8
      %s831 = scalar_lea.vmem %s5, %s830
      // Predicated region
      $region49: #{backbone_forward.13} parent=39 // pred_check
        %p832 = pneg %p158
      $region50: #{backbone_forward.13} parent=39 // pred_check_branch
        %834 = sbr.rel (%p832) target = $region52
      $region51: #{backbone_forward.13} parent=39 // pred_region
        _
      $region52: #{backbone_forward.13} parent=39 // pred_fallthru
        _
      // Predicated region
      $region53: #{backbone_forward.13} parent=39 // pred_check
        %p835 = pneg %p158
      $region54: #{backbone_forward.13} parent=39 // pred_check_branch
        %837 = sbr.rel (%p835) target = $region56
      $region55: #{backbone_forward.13} parent=39 // pred_region
        %p838 = scmp.lt.s32.totalorder %s20, 0
        %s839 = scalar_select %p838, %s20, 0
        %s840 = smul.addr %s839, 8
        %s841 = scalar_lea.vmem %s5, %s840
      $region56: #{backbone_forward.13} parent=39 // pred_fallthru
        _
    $region40: #{backbone_forward.13} parent=5 // pred_fallthru
      _
    %p842 = scmp.le.s32.totalorder 2, %s11
    // Predicated region
    $region57: #{backbone_forward.13} parent=5 // pred_check
      %p843 = pneg %p842
    $region58: #{backbone_forward.13} parent=5 // pred_check_branch
      %845 = sbr.rel (%p843) target = $region60
    $region59: #{backbone_forward.13} parent=5 // pred_region
      %s846 = ssub.s32 %s11, 2
    $region60: #{backbone_forward.13} parent=5 // pred_fallthru
      _
  $region6: #{backbone_forward.13} parent=0 // loop_footer
    %s15 = sadd.s32 1, %s11
  $region7: #{backbone_forward.13} parent=0 // loop_footer_branch
    %10 = sbr.rel target = $region3
  $region8: #{backbone_forward.13} parent=0 // loop_exit
    _

// kernel: backbone_forward.15
$region0: #{backbone_forward.15}
  #allocation0 [shape = 'u32[]', space=smem, size = 0x4, offset = 0x4, fixed_abs, tag = 'smem constant byte address 0x4 - core index']
  #allocation1 [shape = 'u32[72,128]{1,0:T(1,128)}', space=vmem, size = 0x9000, scoped, tag = 'internal scratch']
  %s0 = inlined_call_operand.vmem [shape: bf16[8,144,128], index: 0, kind: input, shape index: {}]
  %s1 = inlined_call_operand.vmem [shape: bf16[128,144], index: 1, kind: input, shape index: {}]
  %s2 = inlined_call_operand.vmem [shape: bf16[128,128], index: 2, kind: input, shape index: {}]
  %s3 = inlined_call_operand.vmem [shape: bf16[256,128], index: 3, kind: input, shape index: {}]
  %s4 = inlined_call_operand.vmem [shape: f32[512,1], index: 4, kind: input, shape index: {}]
  %s5 = inlined_call_operand.vmem [shape: f32[256,128], index: 5, kind: output, shape index: {}]
  %s6 = sld [smem:[#allocation0]]
  $region61: #{backbone_forward.15} parent=0
    _
  %s8 = ssub.s32 1, %s6
  %s9 = scalar_select 0, %s8, %s6
  loop: start=0, step=1, limit=10
  $region2: #{backbone_forward.15} parent=0 // loop_pre_header
    _
  $region3: #{backbone_forward.15} parent=0 // loop_header
    %s11 = sphi 0, %s15
    %p12 = scmp.ge.s32.totalorder %s11, 10
    %s18 = sphi 0, %s30
    %s19 = sphi 0, %s26
    %s20 = sphi 0, %s18
    %s21 = sphi 0, %s19
    %s22 = sphi 0, %s20
    %s23 = sphi 0, %s21
    %s35 = sphi 0, %s37
    %s38 = sphi 0, %s35
    %s39 = sphi 0, %s38
    %s55 = sphi 0, %s39
    %s59 = sphi 0, %s59
    %s61 = sphi 0, %s59
    %s62 = sphi 0, %s61
    %s76 = sphi 0, %s62
    %s80 = sphi 0, %s80
    %s82 = sphi 0, %s80
    %s83 = sphi 0, %s82
    %s97 = sphi 0, %s83
    %s101 = sphi 0, %s101
    %s103 = sphi 0, %s101
    %s104 = sphi 0, %s103
    %s118 = sphi 0, %s104
    %s122 = sphi 0, %s122
    %s124 = sphi 0, %s122
    %s125 = sphi 0, %s124
    %s139 = sphi 0, %s125
    %s145 = sphi 0, %s147
    %s148 = sphi 0, %s145
    %s149 = sphi 0, %s148
    %s165 = sphi 0, %s149
  $region4: #{backbone_forward.15} parent=0 // loop_header_branch
    %14 = sbr.rel (%p12) target = $region8
  $region5: #{backbone_forward.15} parent=0 // loop_body
    %s16 = ssub.s32 %s11, 1
    %s17 = ssub.s32 %s11, 2
    %s24 = sadd.s32 1, %s19
    %p25 = scmp.ge.s32.totalorder %s24, 8
    %s26 = scalar_select %p25, 0, %s24
    %s27 = sadd.s32 1, %s18
    %s28 = scalar_select %p25, %s27, %s18
    %p29 = scmp.ge.s32.totalorder %s28, 1
    %s30 = scalar_select %p29, 0, %s28
    %s31 = ssub.s32 %s19, %s26
    %s32 = ssub.s32 %s18, %s30
    %s33 = sor.u32 %s31, %s32
    %p34 = scmp.eq.s32.totalorder %s33, 0
    %s36 = sadd.s32 %s35, 1
    %s37 = scalar_select %p34, %s35, %s36
    %p40 = pneg %p34
    %p41 = scmp.eq.s32.totalorder %s11, 7
    %p42 = por %p40, %p41
    %p43 = scmp.ne.s32.totalorder %s35, %s38
    %p44 = scmp.eq.s32.totalorder %s11, 0
    %p45 = por %p43, %p44
    %p46 = scmp.ne.s32.totalorder %s35, %s38
    %p47 = scmp.eq.s32.totalorder %s16, 7
    %p48 = por %p46, %p47
    %p49 = scmp.ne.s32.totalorder %s38, %s39
    %p50 = scmp.eq.s32.totalorder %s16, 0
    %p51 = por %p49, %p50
    %p52 = scmp.ne.s32.totalorder %s38, %s39
    %p53 = scmp.eq.s32.totalorder %s17, 7
    %p54 = por %p52, %p53
    %p56 = scmp.ne.s32.totalorder %s39, %s55
    %p57 = scmp.eq.s32.totalorder %s17, 0
    %p58 = por %p56, %p57
    %s60 = sadd.s32 %s59, 1
    %p63 = scmp.eq.s32.totalorder %s11, 7
    %p64 = scmp.ne.s32.totalorder %s59, %s61
    %p65 = scmp.eq.s32.totalorder %s11, 0
    %p66 = por %p64, %p65
    %p67 = scmp.ne.s32.totalorder %s59, %s61
    %p68 = scmp.eq.s32.totalorder %s16, 7
    %p69 = por %p67, %p68
    %p70 = scmp.ne.s32.totalorder %s61, %s62
    %p71 = scmp.eq.s32.totalorder %s16, 0
    %p72 = por %p70, %p71
    %p73 = scmp.ne.s32.totalorder %s61, %s62
    %p74 = scmp.eq.s32.totalorder %s17, 7
    %p75 = por %p73, %p74
    %p77 = scmp.ne.s32.totalorder %s62, %s76
    %p78 = scmp.eq.s32.totalorder %s17, 0
    %p79 = por %p77, %p78
    %s81 = sadd.s32 %s80, 1
    %p84 = scmp.eq.s32.totalorder %s11, 7
    %p85 = scmp.ne.s32.totalorder %s80, %s82
    %p86 = scmp.eq.s32.totalorder %s11, 0
    %p87 = por %p85, %p86
    %p88 = scmp.ne.s32.totalorder %s80, %s82
    %p89 = scmp.eq.s32.totalorder %s16, 7
    %p90 = por %p88, %p89
    %p91 = scmp.ne.s32.totalorder %s82, %s83
    %p92 = scmp.eq.s32.totalorder %s16, 0
    %p93 = por %p91, %p92
    %p94 = scmp.ne.s32.totalorder %s82, %s83
    %p95 = scmp.eq.s32.totalorder %s17, 7
    %p96 = por %p94, %p95
    %p98 = scmp.ne.s32.totalorder %s83, %s97
    %p99 = scmp.eq.s32.totalorder %s17, 0
    %p100 = por %p98, %p99
    %s102 = sadd.s32 %s101, 1
    %p105 = scmp.eq.s32.totalorder %s11, 7
    %p106 = scmp.ne.s32.totalorder %s101, %s103
    %p107 = scmp.eq.s32.totalorder %s11, 0
    %p108 = por %p106, %p107
    %p109 = scmp.ne.s32.totalorder %s101, %s103
    %p110 = scmp.eq.s32.totalorder %s16, 7
    %p111 = por %p109, %p110
    %p112 = scmp.ne.s32.totalorder %s103, %s104
    %p113 = scmp.eq.s32.totalorder %s16, 0
    %p114 = por %p112, %p113
    %p115 = scmp.ne.s32.totalorder %s103, %s104
    %p116 = scmp.eq.s32.totalorder %s17, 7
    %p117 = por %p115, %p116
    %p119 = scmp.ne.s32.totalorder %s104, %s118
    %p120 = scmp.eq.s32.totalorder %s17, 0
    %p121 = por %p119, %p120
    %s123 = sadd.s32 %s122, 1
    %p126 = scmp.eq.s32.totalorder %s11, 7
    %p127 = scmp.ne.s32.totalorder %s122, %s124
    %p128 = scmp.eq.s32.totalorder %s11, 0
    %p129 = por %p127, %p128
    %p130 = scmp.ne.s32.totalorder %s122, %s124
    %p131 = scmp.eq.s32.totalorder %s16, 7
    %p132 = por %p130, %p131
    %p133 = scmp.ne.s32.totalorder %s124, %s125
    %p134 = scmp.eq.s32.totalorder %s16, 0
    %p135 = por %p133, %p134
    %p136 = scmp.ne.s32.totalorder %s124, %s125
    %p137 = scmp.eq.s32.totalorder %s17, 7
    %p138 = por %p136, %p137
    %p140 = scmp.ne.s32.totalorder %s125, %s139
    %p141 = scmp.eq.s32.totalorder %s17, 0
    %p142 = por %p140, %p141
    %s143 = ssub.s32 %s18, %s30
    %p144 = scmp.eq.s32.totalorder %s143, 0
    %s146 = sadd.s32 %s145, 1
    %s147 = scalar_select %p144, %s145, %s146
    %p150 = pneg %p144
    %p151 = scmp.eq.s32.totalorder %s11, 7
    %p152 = por %p150, %p151
    %p153 = scmp.ne.s32.totalorder %s145, %s148
    %p154 = scmp.eq.s32.totalorder %s11, 0
    %p155 = por %p153, %p154
    %p156 = scmp.ne.s32.totalorder %s145, %s148
    %p157 = scmp.eq.s32.totalorder %s16, 7
    %p158 = por %p156, %p157
    %p159 = scmp.ne.s32.totalorder %s148, %s149
    %p160 = scmp.eq.s32.totalorder %s16, 0
    %p161 = por %p159, %p160
    %p162 = scmp.ne.s32.totalorder %s148, %s149
    %p163 = scmp.eq.s32.totalorder %s17, 7
    %p164 = por %p162, %p163
    %p166 = scmp.ne.s32.totalorder %s149, %s165
    %p167 = scmp.eq.s32.totalorder %s17, 0
    %p168 = por %p166, %p167
    %p169 = scmp.le.s32.totalorder 1, %s11
    %p170 = scmp.lt.s32.totalorder %s11, 9
    %p171 = pnand %p169, %p170
    %p172 = pneg %p171
    // Predicated region
    $region9: #{backbone_forward.15} parent=5 // pred_check
      _
    $region10: #{backbone_forward.15} parent=5 // pred_check_branch
      %174 = sbr.rel (%p171) target = $region12
    $region11: #{backbone_forward.15} parent=5 // pred_region
      %s175 = ssub.s32 %s11, 1
      // Predicated region
      $region13: #{backbone_forward.15} parent=11 // pred_check
        %p176 = pneg %p72
      $region14: #{backbone_forward.15} parent=11 // pred_check_branch
        %178 = sbr.rel (%p176) target = $region16
      $region15: #{backbone_forward.15} parent=11 // pred_region
        _
      $region16: #{backbone_forward.15} parent=11 // pred_fallthru
        _
      // Predicated region
      $region17: #{backbone_forward.15} parent=11 // pred_check
        %p179 = pneg %p93
      $region18: #{backbone_forward.15} parent=11 // pred_check_branch
        %181 = sbr.rel (%p179) target = $region20
      $region19: #{backbone_forward.15} parent=11 // pred_region
        _
      $region20: #{backbone_forward.15} parent=11 // pred_fallthru
        _
      // Predicated region
      $region21: #{backbone_forward.15} parent=11 // pred_check
        %p182 = pneg %p114
      $region22: #{backbone_forward.15} parent=11 // pred_check_branch
        %184 = sbr.rel (%p182) target = $region24
      $region23: #{backbone_forward.15} parent=11 // pred_region
        _
      $region24: #{backbone_forward.15} parent=11 // pred_fallthru
        _
      // Predicated region
      $region25: #{backbone_forward.15} parent=11 // pred_check
        %p185 = pneg %p135
      $region26: #{backbone_forward.15} parent=11 // pred_check_branch
        %187 = sbr.rel (%p185) target = $region28
      $region27: #{backbone_forward.15} parent=11 // pred_region
        _
      $region28: #{backbone_forward.15} parent=11 // pred_fallthru
        _
    $region12: #{backbone_forward.15} parent=5 // pred_fallthru
      _
    %p188 = scmp.lt.s32.totalorder %s11, 8
    // Predicated region
    $region29: #{backbone_forward.15} parent=5 // pred_check
      %p189 = pneg %p188
    $region30: #{backbone_forward.15} parent=5 // pred_check_branch
      %191 = sbr.rel (%p189) target = $region32
    $region31: #{backbone_forward.15} parent=5 // pred_region
      // Predicated region
      $region33: #{backbone_forward.15} parent=31 // pred_check
        %p192 = pneg %p45
      $region34: #{backbone_forward.15} parent=31 // pred_check_branch
        %194 = sbr.rel (%p192) target = $region36
      $region35: #{backbone_forward.15} parent=31 // pred_region
        %p195 = scmp.lt.s32.totalorder %s19, 7
        %s196 = scalar_select %p195, %s19, 7
        %p197 = scmp.lt.s32.totalorder %s18, 0
        %s198 = scalar_select %p197, %s18, 0
        %s199 = smul.addr %s196, 18
        %s200 = sadd.s32 %s198, %s199
        %s201 = smul.addr %s200, 4
        %s202 = scalar_lea.vmem %s0, %s201
      $region36: #{backbone_forward.15} parent=31 // pred_fallthru
        _
    $region32: #{backbone_forward.15} parent=5 // pred_fallthru
      _
    %p203 = scmp.le.s32.totalorder 1, %s11
    %p204 = scmp.lt.s32.totalorder %s11, 9
    %p205 = pnand %p203, %p204
    %p206 = pneg %p205
    // Predicated region
    $region37: #{backbone_forward.15} parent=5 // pred_check
      _
    $region38: #{backbone_forward.15} parent=5 // pred_check_branch
      %208 = sbr.rel (%p205) target = $region40
    $region39: #{backbone_forward.15} parent=5 // pred_region
      %s209 = ssub.s32 %s11, 1
      %p210 = scmp.lt.s32.totalorder %s21, 7
      %s211 = scalar_select %p210, %s21, 7
      %p212 = scmp.lt.s32.totalorder %s20, 0
      %s213 = scalar_select %p212, %s20, 0
      %s214 = smul.addr %s211, 18
      %s215 = sadd.s32 %s213, %s214
      %s216 = smul.addr %s215, 4
      %s217 = scalar_lea.vmem %s0, %s216
      %p218 = pneg %p51
      %p219 = pneg %p48
      %p220 = pneg %p72
      %p221 = pneg %p69
      %p222 = pneg %p93
      %p223 = pneg %p90
      %p224 = pneg %p114
      %p225 = pneg %p111
      %p226 = pneg %p135
      %p227 = pneg %p132
      %p228 = pneg %p161
      %p229 = pneg %p158
      %p230 = scmp.lt.s32.totalorder %s20, 0
      %s231 = scalar_select %p230, %s20, 0
      %s232 = smul.addr %s231, 8
      %s233 = scalar_lea.vmem %s5, %s232
      %p234 = scmp.lt.s32.totalorder %s21, 7
      %s235 = scalar_select %p234, %s21, 7
      %p236 = scmp.lt.s32.totalorder %s20, 0
      %s237 = scalar_select %p236, %s20, 0
      %s238 = smul.addr %s235, 18
      %s239 = sadd.s32 %s237, %s238
      %s240 = smul.addr %s239, 4
      %s241 = scalar_lea.vmem %s0, %s240
      %p242 = scmp.lt.s32.totalorder %s20, 0
      %s243 = scalar_select %p242, %s20, 0
      %s244 = smul.addr %s243, 8
      %s245 = scalar_lea.vmem %s5, %s244
      %v247 = vld [vmem:[%s4] sm:$0xff]
      %v248 = vld [vmem:[%s4 + $0x8] sm:$0xff]
      %v249 = vld [vmem:[%s4 + $0x10] sm:$0xff]
      %v250 = vld [vmem:[%s4 + $0x18] sm:$0xff]
      %v251 = vld [vmem:[%s4 + $0x20] sm:$0xff]
      %v252 = vld [vmem:[%s4 + $0x28] sm:$0xff]
      %v253 = vld [vmem:[%s4 + $0x30] sm:$0xff]
      %v254 = vld [vmem:[%s4 + $0x38] sm:$0xff]
      %v255 = vld [vmem:[%s4 + $0x40] sm:$0xff]
      %v256 = vld [vmem:[%s4 + $0x48] sm:$0xff]
      %v257 = vld [vmem:[%s4 + $0x50] sm:$0xff]
      %v258 = vld [vmem:[%s4 + $0x58] sm:$0xff]
      %v259 = vld [vmem:[%s4 + $0x60] sm:$0xff]
      %v260 = vld [vmem:[%s4 + $0x68] sm:$0xff]
      %v261 = vld [vmem:[%s4 + $0x70] sm:$0xff]
      %v262 = vld [vmem:[%s4 + $0x78] sm:$0xff]
      %v263 = vld [vmem:[%s4 + $0x80] sm:$0xff]
      %v264 = vld [vmem:[%s4 + $0x88] sm:$0xff]
      %v265 = vld [vmem:[%s4 + $0x90] sm:$0xff]
      %v266 = vld [vmem:[%s4 + $0x98] sm:$0xff]
      %v267 = vld [vmem:[%s4 + $0xa0] sm:$0xff]
      %v268 = vld [vmem:[%s4 + $0xa8] sm:$0xff]
      %v269 = vld [vmem:[%s4 + $0xb0] sm:$0xff]
      %v270 = vld [vmem:[%s4 + $0xb8] sm:$0xff]
      %v271 = vld [vmem:[%s4 + $0xc0] sm:$0xff]
      %v272 = vld [vmem:[%s4 + $0xc8] sm:$0xff]
      %v273 = vld [vmem:[%s4 + $0xd0] sm:$0xff]
      %v274 = vld [vmem:[%s4 + $0xd8] sm:$0xff]
      %v275 = vld [vmem:[%s4 + $0xe0] sm:$0xff]
      %v276 = vld [vmem:[%s4 + $0xe8] sm:$0xff]
      %v277 = vld [vmem:[%s4 + $0xf0] sm:$0xff]
      %v278 = vld [vmem:[%s4 + $0xf8] sm:$0xff]
      %v279 = vld [vmem:[%s4 + $0x100] sm:$0xff]
      %v280 = vld [vmem:[%s4 + $0x108] sm:$0xff]
      %v281 = vld [vmem:[%s4 + $0x110] sm:$0xff]
      %v282 = vld [vmem:[%s4 + $0x118] sm:$0xff]
      %v283 = vld [vmem:[%s4 + $0x120] sm:$0xff]
      %v284 = vld [vmem:[%s4 + $0x128] sm:$0xff]
      %v285 = vld [vmem:[%s4 + $0x130] sm:$0xff]
      %v286 = vld [vmem:[%s4 + $0x138] sm:$0xff]
      %v287 = vld [vmem:[%s4 + $0x140] sm:$0xff]
      %v288 = vld [vmem:[%s4 + $0x148] sm:$0xff]
      %v289 = vld [vmem:[%s4 + $0x150] sm:$0xff]
      %v290 = vld [vmem:[%s4 + $0x158] sm:$0xff]
      %v291 = vld [vmem:[%s4 + $0x160] sm:$0xff]
      %v292 = vld [vmem:[%s4 + $0x168] sm:$0xff]
      %v293 = vld [vmem:[%s4 + $0x170] sm:$0xff]
      %v294 = vld [vmem:[%s4 + $0x178] sm:$0xff]
      %v295 = vld [vmem:[%s4 + $0x180] sm:$0xff]
      %v296 = vld [vmem:[%s4 + $0x188] sm:$0xff]
      %v297 = vld [vmem:[%s4 + $0x190] sm:$0xff]
      %v298 = vld [vmem:[%s4 + $0x198] sm:$0xff]
      %v299 = vld [vmem:[%s4 + $0x1a0] sm:$0xff]
      %v300 = vld [vmem:[%s4 + $0x1a8] sm:$0xff]
      %v301 = vld [vmem:[%s4 + $0x1b0] sm:$0xff]
      %v302 = vld [vmem:[%s4 + $0x1b8] sm:$0xff]
      %v303 = vld [vmem:[%s4 + $0x1c0] sm:$0xff]
      %v304 = vld [vmem:[%s4 + $0x1c8] sm:$0xff]
      %v305 = vld [vmem:[%s4 + $0x1d0] sm:$0xff]
      %v306 = vld [vmem:[%s4 + $0x1d8] sm:$0xff]
      %v307 = vld [vmem:[%s4 + $0x1e0] sm:$0xff]
      %v308 = vld [vmem:[%s4 + $0x1e8] sm:$0xff]
      %v309 = vld [vmem:[%s4 + $0x1f0] sm:$0xff]
      %v310 = vld [vmem:[%s4 + $0x1f8] sm:$0xff]
      %v311 = vld [vmem:[%s241] sm:$0xf]
      %v312 = vld [vmem:[%s241 + $0x4] sm:$0xf]
      %v313 = vld [vmem:[%s241 + $0x8] sm:$0xf]
      %v314 = vld [vmem:[%s241 + $0xc] sm:$0xf]
      %v315 = vld [vmem:[%s241 + $0x10] sm:$0xf]
      %v316 = vld [vmem:[%s241 + $0x14] sm:$0xf]
      %v317 = vld [vmem:[%s241 + $0x18] sm:$0xf]
      %v318 = vld [vmem:[%s241 + $0x1c] sm:$0xf]
      %v319 = vld [vmem:[%s241 + $0x20] sm:$0xf]
      %v320 = vld [vmem:[%s241 + $0x24] sm:$0xf]
      %v321 = vld [vmem:[%s241 + $0x28] sm:$0xf]
      %v322 = vld [vmem:[%s241 + $0x2c] sm:$0xf]
      %v323 = vld [vmem:[%s241 + $0x30] sm:$0xf]
      %v324 = vld [vmem:[%s241 + $0x34] sm:$0xf]
      %v325 = vld [vmem:[%s241 + $0x38] sm:$0xf]
      %v326 = vld [vmem:[%s241 + $0x3c] sm:$0xf]
      %v327 = vld [vmem:[%s241 + $0x40] sm:$0xf]
      %v328 = vld [vmem:[%s241 + $0x44] sm:$0xf]
      %v329 = vld [vmem:[%s1] sm:$0xff]
      %v330 = vld [vmem:[%s1 + $0x8] sm:$0xff]
      %v331 = vld [vmem:[%s1 + $0x10] sm:$0xff]
      %v332 = vld [vmem:[%s1 + $0x18] sm:$0xff]
      %v333 = vld [vmem:[%s1 + $0x20] sm:$0xff]
      %v334 = vld [vmem:[%s1 + $0x28] sm:$0xff]
      %v335 = vld [vmem:[%s1 + $0x30] sm:$0xff]
      %v336 = vld [vmem:[%s1 + $0x38] sm:$0xff]
      %v337 = vld [vmem:[%s1 + $0x40] sm:$0xff]
      %v338 = vld [vmem:[%s1 + $0x48] sm:$0xff]
      %v339 = vld [vmem:[%s1 + $0x50] sm:$0xff]
      %v340 = vld [vmem:[%s1 + $0x58] sm:$0xff]
      %v341 = vld [vmem:[%s1 + $0x60] sm:$0xff]
      %v342 = vld [vmem:[%s1 + $0x68] sm:$0xff]
      %v343 = vld [vmem:[%s1 + $0x70] sm:$0xff]
      %v344 = vld [vmem:[%s1 + $0x78] sm:$0xff]
      %346 = vset.pattern.permute.xlu0 0
      %347 = vperm.xlu0 %346, %v247
      %v348 = vpop.permute.xlu0 %347
      %351 = vset.pattern.permute.xlu0 0
      %352 = vperm.xlu0 %351, %v248
      %v353 = vpop.permute.xlu0 %352
      %356 = vset.pattern.permute.xlu0 0
      %357 = vperm.xlu0 %356, %v249
      %v358 = vpop.permute.xlu0 %357
      %361 = vset.pattern.permute.xlu0 0
      %362 = vperm.xlu0 %361, %v250
      %v363 = vpop.permute.xlu0 %362
      %366 = vset.pattern.permute.xlu0 0
      %367 = vperm.xlu0 %366, %v251
      %v368 = vpop.permute.xlu0 %367
      %371 = vset.pattern.permute.xlu0 0
      %372 = vperm.xlu0 %371, %v252
      %v373 = vpop.permute.xlu0 %372
      %376 = vset.pattern.permute.xlu0 0
      %377 = vperm.xlu0 %376, %v253
      %v378 = vpop.permute.xlu0 %377
      %381 = vset.pattern.permute.xlu0 0
      %382 = vperm.xlu0 %381, %v254
      %v383 = vpop.permute.xlu0 %382
      %386 = vset.pattern.permute.xlu0 0
      %387 = vperm.xlu0 %386, %v255
      %v388 = vpop.permute.xlu0 %387
      %391 = vset.pattern.permute.xlu0 0
      %392 = vperm.xlu0 %391, %v256
      %v393 = vpop.permute.xlu0 %392
      %396 = vset.pattern.permute.xlu0 0
      %397 = vperm.xlu0 %396, %v257
      %v398 = vpop.permute.xlu0 %397
      %401 = vset.pattern.permute.xlu0 0
      %402 = vperm.xlu0 %401, %v258
      %v403 = vpop.permute.xlu0 %402
      %406 = vset.pattern.permute.xlu0 0
      %407 = vperm.xlu0 %406, %v259
      %v408 = vpop.permute.xlu0 %407
      %411 = vset.pattern.permute.xlu0 0
      %412 = vperm.xlu0 %411, %v260
      %v413 = vpop.permute.xlu0 %412
      %416 = vset.pattern.permute.xlu0 0
      %417 = vperm.xlu0 %416, %v261
      %v418 = vpop.permute.xlu0 %417
      %421 = vset.pattern.permute.xlu0 0
      %422 = vperm.xlu0 %421, %v262
      %v423 = vpop.permute.xlu0 %422
      %v441 = vunpack.c.l.b16 %v329
      %v442 = vunpack.c.h.b16 %v329
      %v443 = vunpack.c.l.b16 %v330
      %v444 = vunpack.c.h.b16 %v330
      %v445 = vunpack.c.l.b16 %v331
      %v446 = vunpack.c.h.b16 %v331
      %v447 = vunpack.c.l.b16 %v332
      %v448 = vunpack.c.h.b16 %v332
      %v449 = vunpack.c.l.b16 %v333
      %v450 = vunpack.c.h.b16 %v333
      %v451 = vunpack.c.l.b16 %v334
      %v452 = vunpack.c.h.b16 %v334
      %v453 = vunpack.c.l.b16 %v335
      %v454 = vunpack.c.h.b16 %v335
      %v455 = vunpack.c.l.b16 %v336
      %v456 = vunpack.c.h.b16 %v336
      %v457 = vunpack.c.l.b16 %v337
      %v458 = vunpack.c.h.b16 %v337
      %v459 = vunpack.c.l.b16 %v338
      %v460 = vunpack.c.h.b16 %v338
      %v461 = vunpack.c.l.b16 %v339
      %v462 = vunpack.c.h.b16 %v339
      %v463 = vunpack.c.l.b16 %v340
      %v464 = vunpack.c.h.b16 %v340
      %v465 = vunpack.c.l.b16 %v341
      %v466 = vunpack.c.h.b16 %v341
      %v467 = vunpack.c.l.b16 %v342
      %v468 = vunpack.c.h.b16 %v342
      %v469 = vunpack.c.l.b16 %v343
      %v470 = vunpack.c.h.b16 %v343
      %v471 = vunpack.c.l.b16 %v344
      %v472 = vunpack.c.h.b16 %v344
      %v473 = vpack.c.b16 %v443, %v441
      %v474 = vpack.c.b16 %v444, %v442
      %v475 = vpack.c.b16 %v447, %v445
      %v476 = vpack.c.b16 %v448, %v446
      %v477 = vpack.c.b16 %v451, %v449
      %v478 = vpack.c.b16 %v452, %v450
      %v479 = vpack.c.b16 %v455, %v453
      %v480 = vpack.c.b16 %v456, %v454
      %v481 = vpack.c.b16 %v459, %v457
      %v482 = vpack.c.b16 %v460, %v458
      %v483 = vpack.c.b16 %v463, %v461
      %v484 = vpack.c.b16 %v464, %v462
      %v485 = vpack.c.b16 %v467, %v465
      %v486 = vpack.c.b16 %v468, %v466
      %v487 = vpack.c.b16 %v471, %v469
      %v488 = vpack.c.b16 %v472, %v470
      %v515 = vunpack.c.l.b16 %v311
      %v516 = vunpack.c.l.b16 %v312
      %v517 = vunpack.c.l.b16 %v313
      %v518 = vunpack.c.l.b16 %v314
      %v519 = vunpack.c.l.b16 %v315
      %v520 = vunpack.c.l.b16 %v316
      %v521 = vunpack.c.l.b16 %v317
      %v522 = vunpack.c.l.b16 %v318
      %v523 = vunpack.c.l.b16 %v319
      %v524 = vunpack.c.l.b16 %v320
      %v525 = vunpack.c.l.b16 %v321
      %v526 = vunpack.c.l.b16 %v322
      %v527 = vunpack.c.l.b16 %v323
      %v528 = vunpack.c.l.b16 %v324
      %v529 = vunpack.c.l.b16 %v325
      %v530 = vunpack.c.l.b16 %v326
      %v531 = vunpack.c.l.b16 %v327
      %v532 = vunpack.c.l.b16 %v328
      %v533 = vpack.c.b16 %v516, %v515
      %v534 = vpack.c.b16 %v518, %v517
      %v535 = vpack.c.b16 %v520, %v519
      %v536 = vpack.c.b16 %v522, %v521
      %v537 = vpack.c.b16 %v524, %v523
      %v538 = vpack.c.b16 %v526, %v525
      %v539 = vpack.c.b16 %v528, %v527
      %v540 = vpack.c.b16 %v530, %v529
      %v541 = vpack.c.b16 %v532, %v531
      %vm551 = vcmask 130048
      %v553 = vsel %vm551, %v474, 0
      %v556 = vsel %vm551, %v476, 0
      %v559 = vsel %vm551, %v478, 0
      %v562 = vsel %vm551, %v480, 0
      %v565 = vsel %vm551, %v482, 0
      %v568 = vsel %vm551, %v484, 0
      %v571 = vsel %vm551, %v486, 0
      %v574 = vsel %vm551, %v488, 0
      %576 = vmatpush.bf16.msra.mxu0 %v540
      %577 = vmatpush.bf16.msra.mxu0 %v539
      %578 = vmatpush.bf16.msra.mxu0 %v538
      %579 = vmatpush.bf16.msra.mxu0 %v537
      %580 = vmatpush.bf16.msra.mxu0 %v536
      %581 = vmatpush.bf16.msra.mxu0 %v535
      %582 = vmatpush.bf16.msra.mxu0 %v534
      %583 = vmatpush.bf16.msra.mxu0 %v533
      %584 = vmatmul.bf16.gmra.mxu0 %v473
      %v585 = vpop.f32.mrf.mxu0
      %v586 = vadd.f32 %v348, %v585
      %v587 = vpop.f32.mrf.mxu0
      %v588 = vadd.f32 %v353, %v587
      %589 = vmatmul.bf16.gmra.mxu0 %v475
      %v590 = vpop.f32.mrf.mxu0
      %v591 = vadd.f32 %v358, %v590
      %v592 = vpop.f32.mrf.mxu0
      %v593 = vadd.f32 %v363, %v592
      %594 = vmatmul.bf16.gmra.mxu0 %v477
      %v595 = vpop.f32.mrf.mxu0
      %v596 = vadd.f32 %v368, %v595
      %v597 = vpop.f32.mrf.mxu0
      %v598 = vadd.f32 %v373, %v597
      %599 = vmatmul.bf16.gmra.mxu0 %v479
      %v600 = vpop.f32.mrf.mxu0
      %v601 = vadd.f32 %v378, %v600
      %v602 = vpop.f32.mrf.mxu0
      %v603 = vadd.f32 %v383, %v602
      %604 = vmatmul.bf16.gmra.mxu0 %v481
      %v605 = vpop.f32.mrf.mxu0
      %v606 = vadd.f32 %v388, %v605
      %v607 = vpop.f32.mrf.mxu0
      %v608 = vadd.f32 %v393, %v607
      %609 = vmatmul.bf16.gmra.mxu0 %v483
      %v610 = vpop.f32.mrf.mxu0
      %v611 = vadd.f32 %v398, %v610
      %v612 = vpop.f32.mrf.mxu0
      %v613 = vadd.f32 %v403, %v612
      %614 = vmatmul.bf16.gmra.mxu0 %v485
      %v615 = vpop.f32.mrf.mxu0
      %v616 = vadd.f32 %v408, %v615
      %v617 = vpop.f32.mrf.mxu0
      %v618 = vadd.f32 %v413, %v617
      %619 = vmatmul.bf16.gmra.mxu0 %v487
      %v620 = vpop.f32.mrf.mxu0
      %v621 = vadd.f32 %v418, %v620
      %v622 = vpop.f32.mrf.mxu0
      %v623 = vadd.f32 %v423, %v622
      %624 = vdwg.mxu0
      %625 = vmatpush.bf16.msra.mxu0 0
      %626 = vmatpush.bf16.msra.mxu0 0
      %627 = vmatpush.bf16.msra.mxu0 0
      %628 = vmatpush.bf16.msra.mxu0 0
      %629 = vmatpush.bf16.msra.mxu0 0
      %630 = vmatpush.bf16.msra.mxu0 0
      %631 = vmatpush.bf16.msra.mxu0 0
      %632 = vmatpush.bf16.msra.mxu0 %v541
      %633 = vmatmul.bf16.gmra.mxu0 %v553
      %v634 = vpop.f32.mrf.mxu0
      %v635 = vadd.f32 %v586, %v634
      %v636 = vpop.f32.mrf.mxu0
      %v637 = vadd.f32 %v588, %v636
      %638 = vmatmul.bf16.gmra.mxu0 %v556
      %v639 = vpop.f32.mrf.mxu0
      %v640 = vadd.f32 %v591, %v639
      %v641 = vpop.f32.mrf.mxu0
      %v642 = vadd.f32 %v593, %v641
      %643 = vmatmul.bf16.gmra.mxu0 %v559
      %v644 = vpop.f32.mrf.mxu0
      %v645 = vadd.f32 %v596, %v644
      %v646 = vpop.f32.mrf.mxu0
      %v647 = vadd.f32 %v598, %v646
      %648 = vmatmul.bf16.gmra.mxu0 %v562
      %v649 = vpop.f32.mrf.mxu0
      %v650 = vadd.f32 %v601, %v649
      %v651 = vpop.f32.mrf.mxu0
      %v652 = vadd.f32 %v603, %v651
      %653 = vmatmul.bf16.gmra.mxu0 %v565
      %v654 = vpop.f32.mrf.mxu0
      %v655 = vadd.f32 %v606, %v654
      %v656 = vpop.f32.mrf.mxu0
      %v657 = vadd.f32 %v608, %v656
      %658 = vmatmul.bf16.gmra.mxu0 %v568
      %v659 = vpop.f32.mrf.mxu0
      %v660 = vadd.f32 %v611, %v659
      %v661 = vpop.f32.mrf.mxu0
      %v662 = vadd.f32 %v613, %v661
      %663 = vmatmul.bf16.gmra.mxu0 %v571
      %v664 = vpop.f32.mrf.mxu0
      %v665 = vadd.f32 %v616, %v664
      %v666 = vpop.f32.mrf.mxu0
      %v667 = vadd.f32 %v618, %v666
      %668 = vmatmul.bf16.gmra.mxu0 %v574
      %v669 = vpop.f32.mrf.mxu0
      %v670 = vadd.f32 %v621, %v669
      %v671 = vpop.f32.mrf.mxu0
      %v672 = vadd.f32 %v623, %v671
      %673 = vdwg.mxu0
      %v674 = vmax.f32 %v635, 0.0
      %v675 = vmax.f32 %v637, 0.0
      %v676 = vmax.f32 %v640, 0.0
      %v677 = vmax.f32 %v642, 0.0
      %v678 = vmax.f32 %v645, 0.0
      %v679 = vmax.f32 %v647, 0.0
      %v680 = vmax.f32 %v650, 0.0
      %v681 = vmax.f32 %v652, 0.0
      %v682 = vmax.f32 %v655, 0.0
      %v683 = vmax.f32 %v657, 0.0
      %v684 = vmax.f32 %v660, 0.0
      %v685 = vmax.f32 %v662, 0.0
      %v686 = vmax.f32 %v665, 0.0
      %v687 = vmax.f32 %v667, 0.0
      %v688 = vmax.f32 %v670, 0.0
      %v689 = vmax.f32 %v672, 0.0
      %v690 = vpack.c.bf16 %v675, %v674
      %v691 = vpack.c.bf16 %v677, %v676
      %v692 = vpack.c.bf16 %v679, %v678
      %v693 = vpack.c.bf16 %v681, %v680
      %v694 = vpack.c.bf16 %v683, %v682
      %v695 = vpack.c.bf16 %v685, %v684
      %v696 = vpack.c.bf16 %v687, %v686
      %v697 = vpack.c.bf16 %v689, %v688
      %v698 = vld [vmem:[%s2] sm:$0xf]
      %v699 = vld [vmem:[%s2 + $0x4] sm:$0xf]
      %v700 = vld [vmem:[%s2 + $0x8] sm:$0xf]
      %v701 = vld [vmem:[%s2 + $0xc] sm:$0xf]
      %v702 = vld [vmem:[%s2 + $0x10] sm:$0xf]
      %v703 = vld [vmem:[%s2 + $0x14] sm:$0xf]
      %v704 = vld [vmem:[%s2 + $0x18] sm:$0xf]
      %v705 = vld [vmem:[%s2 + $0x1c] sm:$0xf]
      %v706 = vld [vmem:[%s2 + $0x20] sm:$0xf]
      %v707 = vld [vmem:[%s2 + $0x24] sm:$0xf]
      %v708 = vld [vmem:[%s2 + $0x28] sm:$0xf]
      %v709 = vld [vmem:[%s2 + $0x2c] sm:$0xf]
      %v710 = vld [vmem:[%s2 + $0x30] sm:$0xf]
      %v711 = vld [vmem:[%s2 + $0x34] sm:$0xf]
      %v712 = vld [vmem:[%s2 + $0x38] sm:$0xf]
      %v713 = vld [vmem:[%s2 + $0x3c] sm:$0xf]
      %715 = vset.pattern.permute.xlu0 0
      %716 = vperm.xlu0 %715, %v263
      %v717 = vpop.permute.xlu0 %716
      %720 = vset.pattern.permute.xlu0 0
      %721 = vperm.xlu0 %720, %v264
      %v722 = vpop.permute.xlu0 %721
      %725 = vset.pattern.permute.xlu0 0
      %726 = vperm.xlu0 %725, %v265
      %v727 = vpop.permute.xlu0 %726
      %730 = vset.pattern.permute.xlu0 0
      %731 = vperm.xlu0 %730, %v266
      %v732 = vpop.permute.xlu0 %731
      %735 = vset.pattern.permute.xlu0 0
      %736 = vperm.xlu0 %735, %v267
      %v737 = vpop.permute.xlu0 %736
      %740 = vset.pattern.permute.xlu0 0
      %741 = vperm.xlu0 %740, %v268
      %v742 = vpop.permute.xlu0 %741
      %745 = vset.pattern.permute.xlu0 0
      %746 = vperm.xlu0 %745, %v269
      %v747 = vpop.permute.xlu0 %746
      %750 = vset.pattern.permute.xlu0 0
      %751 = vperm.xlu0 %750, %v270
      %v752 = vpop.permute.xlu0 %751
      %755 = vset.pattern.permute.xlu0 0
      %756 = vperm.xlu0 %755, %v271
      %v757 = vpop.permute.xlu0 %756
      %760 = vset.pattern.permute.xlu0 0
      %761 = vperm.xlu0 %760, %v272
      %v762 = vpop.permute.xlu0 %761
      %765 = vset.pattern.permute.xlu0 0
      %766 = vperm.xlu0 %765, %v273
      %v767 = vpop.permute.xlu0 %766
      %770 = vset.pattern.permute.xlu0 0
      %771 = vperm.xlu0 %770, %v274
      %v772 = vpop.permute.xlu0 %771
      %775 = vset.pattern.permute.xlu0 0
      %776 = vperm.xlu0 %775, %v275
      %v777 = vpop.permute.xlu0 %776
      %780 = vset.pattern.permute.xlu0 0
      %781 = vperm.xlu0 %780, %v276
      %v782 = vpop.permute.xlu0 %781
      %785 = vset.pattern.permute.xlu0 0
      %786 = vperm.xlu0 %785, %v277
      %v787 = vpop.permute.xlu0 %786
      %790 = vset.pattern.permute.xlu0 0
      %791 = vperm.xlu0 %790, %v278
      %v792 = vpop.permute.xlu0 %791
      %v810 = vunpack.c.l.b16 %v698
      %v811 = vunpack.c.l.b16 %v699
      %v812 = vunpack.c.l.b16 %v700
      %v813 = vunpack.c.l.b16 %v701
      %v814 = vunpack.c.l.b16 %v702
      %v815 = vunpack.c.l.b16 %v703
      %v816 = vunpack.c.l.b16 %v704
      %v817 = vunpack.c.l.b16 %v705
      %v818 = vunpack.c.l.b16 %v706
      %v819 = vunpack.c.l.b16 %v707
      %v820 = vunpack.c.l.b16 %v708
      %v821 = vunpack.c.l.b16 %v709
      %v822 = vunpack.c.l.b16 %v710
      %v823 = vunpack.c.l.b16 %v711
      %v824 = vunpack.c.l.b16 %v712
      %v825 = vunpack.c.l.b16 %v713
      %v826 = vpack.c.b16 %v811, %v810
      %v827 = vpack.c.b16 %v813, %v812
      %v828 = vpack.c.b16 %v815, %v814
      %v829 = vpack.c.b16 %v817, %v816
      %v830 = vpack.c.b16 %v819, %v818
      %v831 = vpack.c.b16 %v821, %v820
      %v832 = vpack.c.b16 %v823, %v822
      %v833 = vpack.c.b16 %v825, %v824
      %842 = vmatpush.bf16.msra.mxu0 %v697
      %843 = vmatpush.bf16.msra.mxu0 %v696
      %844 = vmatpush.bf16.msra.mxu0 %v695
      %845 = vmatpush.bf16.msra.mxu0 %v694
      %846 = vmatpush.bf16.msra.mxu0 %v693
      %847 = vmatpush.bf16.msra.mxu0 %v692
      %848 = vmatpush.bf16.msra.mxu0 %v691
      %849 = vmatpush.bf16.msra.mxu0 %v690
      %850 = vmatmul.bf16.gmra.mxu0 %v826
      %v851 = vpop.f32.mrf.mxu0
      %v852 = vadd.f32 %v717, %v851
      %v853 = vpop.f32.mrf.mxu0
      %v854 = vadd.f32 %v722, %v853
      %855 = vmatmul.bf16.gmra.mxu0 %v827
      %v856 = vpop.f32.mrf.mxu0
      %v857 = vadd.f32 %v727, %v856
      %v858 = vpop.f32.mrf.mxu0
      %v859 = vadd.f32 %v732, %v858
      %860 = vmatmul.bf16.gmra.mxu0 %v828
      %v861 = vpop.f32.mrf.mxu0
      %v862 = vadd.f32 %v737, %v861
      %v863 = vpop.f32.mrf.mxu0
      %v864 = vadd.f32 %v742, %v863
      %865 = vmatmul.bf16.gmra.mxu0 %v829
      %v866 = vpop.f32.mrf.mxu0
      %v867 = vadd.f32 %v747, %v866
      %v868 = vpop.f32.mrf.mxu0
      %v869 = vadd.f32 %v752, %v868
      %870 = vmatmul.bf16.gmra.mxu0 %v830
      %v871 = vpop.f32.mrf.mxu0
      %v872 = vadd.f32 %v757, %v871
      %v873 = vpop.f32.mrf.mxu0
      %v874 = vadd.f32 %v762, %v873
      %875 = vmatmul.bf16.gmra.mxu0 %v831
      %v876 = vpop.f32.mrf.mxu0
      %v877 = vadd.f32 %v767, %v876
      %v878 = vpop.f32.mrf.mxu0
      %v879 = vadd.f32 %v772, %v878
      %880 = vmatmul.bf16.gmra.mxu0 %v832
      %v881 = vpop.f32.mrf.mxu0
      %v882 = vadd.f32 %v777, %v881
      %v883 = vpop.f32.mrf.mxu0
      %v884 = vadd.f32 %v782, %v883
      %885 = vmatmul.bf16.gmra.mxu0 %v833
      %v886 = vpop.f32.mrf.mxu0
      %v887 = vadd.f32 %v787, %v886
      %v888 = vpop.f32.mrf.mxu0
      %v889 = vadd.f32 %v792, %v888
      %890 = vdwg.mxu0
      %v891 = vmax.f32 %v852, 0.0
      %v892 = vmax.f32 %v854, 0.0
      %v893 = vmax.f32 %v857, 0.0
      %v894 = vmax.f32 %v859, 0.0
      %v895 = vmax.f32 %v862, 0.0
      %v896 = vmax.f32 %v864, 0.0
      %v897 = vmax.f32 %v867, 0.0
      %v898 = vmax.f32 %v869, 0.0
      %v899 = vmax.f32 %v872, 0.0
      %v900 = vmax.f32 %v874, 0.0
      %v901 = vmax.f32 %v877, 0.0
      %v902 = vmax.f32 %v879, 0.0
      %v903 = vmax.f32 %v882, 0.0
      %v904 = vmax.f32 %v884, 0.0
      %v905 = vmax.f32 %v887, 0.0
      %v906 = vmax.f32 %v889, 0.0
      %v907 = vpack.c.bf16 %v892, %v891
      %v908 = vpack.c.bf16 %v894, %v893
      %v909 = vpack.c.bf16 %v896, %v895
      %v910 = vpack.c.bf16 %v898, %v897
      %v911 = vpack.c.bf16 %v900, %v899
      %v912 = vpack.c.bf16 %v902, %v901
      %v913 = vpack.c.bf16 %v904, %v903
      %v914 = vpack.c.bf16 %v906, %v905
      %v915 = vld [vmem:[%s3] sm:$0xf]
      %v916 = vld [vmem:[%s3 + $0x4] sm:$0xf]
      %v917 = vld [vmem:[%s3 + $0x8] sm:$0xf]
      %v918 = vld [vmem:[%s3 + $0xc] sm:$0xf]
      %v919 = vld [vmem:[%s3 + $0x10] sm:$0xf]
      %v920 = vld [vmem:[%s3 + $0x14] sm:$0xf]
      %v921 = vld [vmem:[%s3 + $0x18] sm:$0xf]
      %v922 = vld [vmem:[%s3 + $0x1c] sm:$0xf]
      %v923 = vld [vmem:[%s3 + $0x20] sm:$0xf]
      %v924 = vld [vmem:[%s3 + $0x24] sm:$0xf]
      %v925 = vld [vmem:[%s3 + $0x28] sm:$0xf]
      %v926 = vld [vmem:[%s3 + $0x2c] sm:$0xf]
      %v927 = vld [vmem:[%s3 + $0x30] sm:$0xf]
      %v928 = vld [vmem:[%s3 + $0x34] sm:$0xf]
      %v929 = vld [vmem:[%s3 + $0x38] sm:$0xf]
      %v930 = vld [vmem:[%s3 + $0x3c] sm:$0xf]
      %v931 = vld [vmem:[%s3 + $0x40] sm:$0xf]
      %v932 = vld [vmem:[%s3 + $0x44] sm:$0xf]
      %v933 = vld [vmem:[%s3 + $0x48] sm:$0xf]
      %v934 = vld [vmem:[%s3 + $0x4c] sm:$0xf]
      %v935 = vld [vmem:[%s3 + $0x50] sm:$0xf]
      %v936 = vld [vmem:[%s3 + $0x54] sm:$0xf]
      %v937 = vld [vmem:[%s3 + $0x58] sm:$0xf]
      %v938 = vld [vmem:[%s3 + $0x5c] sm:$0xf]
      %v939 = vld [vmem:[%s3 + $0x60] sm:$0xf]
      %v940 = vld [vmem:[%s3 + $0x64] sm:$0xf]
      %v941 = vld [vmem:[%s3 + $0x68] sm:$0xf]
      %v942 = vld [vmem:[%s3 + $0x6c] sm:$0xf]
      %v943 = vld [vmem:[%s3 + $0x70] sm:$0xf]
      %v944 = vld [vmem:[%s3 + $0x74] sm:$0xf]
      %v945 = vld [vmem:[%s3 + $0x78] sm:$0xf]
      %v946 = vld [vmem:[%s3 + $0x7c] sm:$0xf]
      %948 = vset.pattern.permute.xlu0 0
      %949 = vperm.xlu0 %948, %v279
      %v950 = vpop.permute.xlu0 %949
      %953 = vset.pattern.permute.xlu0 0
      %954 = vperm.xlu0 %953, %v280
      %v955 = vpop.permute.xlu0 %954
      %958 = vset.pattern.permute.xlu0 0
      %959 = vperm.xlu0 %958, %v281
      %v960 = vpop.permute.xlu0 %959
      %963 = vset.pattern.permute.xlu0 0
      %964 = vperm.xlu0 %963, %v282
      %v965 = vpop.permute.xlu0 %964
      %968 = vset.pattern.permute.xlu0 0
      %969 = vperm.xlu0 %968, %v283
      %v970 = vpop.permute.xlu0 %969
      %973 = vset.pattern.permute.xlu0 0
      %974 = vperm.xlu0 %973, %v284
      %v975 = vpop.permute.xlu0 %974
      %978 = vset.pattern.permute.xlu0 0
      %979 = vperm.xlu0 %978, %v285
      %v980 = vpop.permute.xlu0 %979
      %983 = vset.pattern.permute.xlu0 0
      %984 = vperm.xlu0 %983, %v286
      %v985 = vpop.permute.xlu0 %984
      %988 = vset.pattern.permute.xlu0 0
      %989 = vperm.xlu0 %988, %v287
      %v990 = vpop.permute.xlu0 %989
      %993 = vset.pattern.permute.xlu0 0
      %994 = vperm.xlu0 %993, %v288
      %v995 = vpop.permute.xlu0 %994
      %998 = vset.pattern.permute.xlu0 0
      %999 = vperm.xlu0 %998, %v289
      %v1000 = vpop.permute.xlu0 %999
      %1003 = vset.pattern.permute.xlu0 0
      %1004 = vperm.xlu0 %1003, %v290
      %v1005 = vpop.permute.xlu0 %1004
      %1008 = vset.pattern.permute.xlu0 0
      %1009 = vperm.xlu0 %1008, %v291
      %v1010 = vpop.permute.xlu0 %1009
      %1013 = vset.pattern.permute.xlu0 0
      %1014 = vperm.xlu0 %1013, %v292
      %v1015 = vpop.permute.xlu0 %1014
      %1018 = vset.pattern.permute.xlu0 0
      %1019 = vperm.xlu0 %1018, %v293
      %v1020 = vpop.permute.xlu0 %1019
      %1023 = vset.pattern.permute.xlu0 0
      %1024 = vperm.xlu0 %1023, %v294
      %v1025 = vpop.permute.xlu0 %1024
      %1028 = vset.pattern.permute.xlu0 0
      %1029 = vperm.xlu0 %1028, %v295
      %v1030 = vpop.permute.xlu0 %1029
      %1033 = vset.pattern.permute.xlu0 0
      %1034 = vperm.xlu0 %1033, %v296
      %v1035 = vpop.permute.xlu0 %1034
      %1038 = vset.pattern.permute.xlu0 0
      %1039 = vperm.xlu0 %1038, %v297
      %v1040 = vpop.permute.xlu0 %1039
      %1043 = vset.pattern.permute.xlu0 0
      %1044 = vperm.xlu0 %1043, %v298
      %v1045 = vpop.permute.xlu0 %1044
      %1048 = vset.pattern.permute.xlu0 0
      %1049 = vperm.xlu0 %1048, %v299
      %v1050 = vpop.permute.xlu0 %1049
      %1053 = vset.pattern.permute.xlu0 0
      %1054 = vperm.xlu0 %1053, %v300
      %v1055 = vpop.permute.xlu0 %1054
      %1058 = vset.pattern.permute.xlu0 0
      %1059 = vperm.xlu0 %1058, %v301
      %v1060 = vpop.permute.xlu0 %1059
      %1063 = vset.pattern.permute.xlu0 0
      %1064 = vperm.xlu0 %1063, %v302
      %v1065 = vpop.permute.xlu0 %1064
      %1068 = vset.pattern.permute.xlu0 0
      %1069 = vperm.xlu0 %1068, %v303
      %v1070 = vpop.permute.xlu0 %1069
      %1073 = vset.pattern.permute.xlu0 0
      %1074 = vperm.xlu0 %1073, %v304
      %v1075 = vpop.permute.xlu0 %1074
      %1078 = vset.pattern.permute.xlu0 0
      %1079 = vperm.xlu0 %1078, %v305
      %v1080 = vpop.permute.xlu0 %1079
      %1083 = vset.pattern.permute.xlu0 0
      %1084 = vperm.xlu0 %1083, %v306
      %v1085 = vpop.permute.xlu0 %1084
      %1088 = vset.pattern.permute.xlu0 0
      %1089 = vperm.xlu0 %1088, %v307
      %v1090 = vpop.permute.xlu0 %1089
      %1093 = vset.pattern.permute.xlu0 0
      %1094 = vperm.xlu0 %1093, %v308
      %v1095 = vpop.permute.xlu0 %1094
      %1098 = vset.pattern.permute.xlu0 0
      %1099 = vperm.xlu0 %1098, %v309
      %v1100 = vpop.permute.xlu0 %1099
      %1103 = vset.pattern.permute.xlu0 0
      %1104 = vperm.xlu0 %1103, %v310
      %v1105 = vpop.permute.xlu0 %1104
      %v1139 = vunpack.c.l.b16 %v915
      %v1140 = vunpack.c.l.b16 %v916
      %v1141 = vunpack.c.l.b16 %v917
      %v1142 = vunpack.c.l.b16 %v918
      %v1143 = vunpack.c.l.b16 %v919
      %v1144 = vunpack.c.l.b16 %v920
      %v1145 = vunpack.c.l.b16 %v921
      %v1146 = vunpack.c.l.b16 %v922
      %v1147 = vunpack.c.l.b16 %v923
      %v1148 = vunpack.c.l.b16 %v924
      %v1149 = vunpack.c.l.b16 %v925
      %v1150 = vunpack.c.l.b16 %v926
      %v1151 = vunpack.c.l.b16 %v927
      %v1152 = vunpack.c.l.b16 %v928
      %v1153 = vunpack.c.l.b16 %v929
      %v1154 = vunpack.c.l.b16 %v930
      %v1155 = vunpack.c.l.b16 %v931
      %v1156 = vunpack.c.l.b16 %v932
      %v1157 = vunpack.c.l.b16 %v933
      %v1158 = vunpack.c.l.b16 %v934
      %v1159 = vunpack.c.l.b16 %v935
      %v1160 = vunpack.c.l.b16 %v936
      %v1161 = vunpack.c.l.b16 %v937
      %v1162 = vunpack.c.l.b16 %v938
      %v1163 = vunpack.c.l.b16 %v939
      %v1164 = vunpack.c.l.b16 %v940
      %v1165 = vunpack.c.l.b16 %v941
      %v1166 = vunpack.c.l.b16 %v942
      %v1167 = vunpack.c.l.b16 %v943
      %v1168 = vunpack.c.l.b16 %v944
      %v1169 = vunpack.c.l.b16 %v945
      %v1170 = vunpack.c.l.b16 %v946
      %v1171 = vpack.c.b16 %v1140, %v1139
      %v1172 = vpack.c.b16 %v1142, %v1141
      %v1173 = vpack.c.b16 %v1144, %v1143
      %v1174 = vpack.c.b16 %v1146, %v1145
      %v1175 = vpack.c.b16 %v1148, %v1147
      %v1176 = vpack.c.b16 %v1150, %v1149
      %v1177 = vpack.c.b16 %v1152, %v1151
      %v1178 = vpack.c.b16 %v1154, %v1153
      %v1179 = vpack.c.b16 %v1156, %v1155
      %v1180 = vpack.c.b16 %v1158, %v1157
      %v1181 = vpack.c.b16 %v1160, %v1159
      %v1182 = vpack.c.b16 %v1162, %v1161
      %v1183 = vpack.c.b16 %v1164, %v1163
      %v1184 = vpack.c.b16 %v1166, %v1165
      %v1185 = vpack.c.b16 %v1168, %v1167
      %v1186 = vpack.c.b16 %v1170, %v1169
      %1203 = vmatpush.bf16.msra.mxu0 %v914
      %1204 = vmatpush.bf16.msra.mxu0 %v913
      %1205 = vmatpush.bf16.msra.mxu0 %v912
      %1206 = vmatpush.bf16.msra.mxu0 %v911
      %1207 = vmatpush.bf16.msra.mxu0 %v910
      %1208 = vmatpush.bf16.msra.mxu0 %v909
      %1209 = vmatpush.bf16.msra.mxu0 %v908
      %1210 = vmatpush.bf16.msra.mxu0 %v907
      %1211 = vmatmul.bf16.gmra.mxu0 %v1171
      %v1212 = vpop.f32.mrf.mxu0
      %v1213 = vadd.f32 %v950, %v1212
      %v1214 = vpop.f32.mrf.mxu0
      %v1215 = vadd.f32 %v955, %v1214
      %1216 = vmatmul.bf16.gmra.mxu0 %v1172
      %v1217 = vpop.f32.mrf.mxu0
      %v1218 = vadd.f32 %v960, %v1217
      %v1219 = vpop.f32.mrf.mxu0
      %v1220 = vadd.f32 %v965, %v1219
      %1221 = vmatmul.bf16.gmra.mxu0 %v1173
      %v1222 = vpop.f32.mrf.mxu0
      %v1223 = vadd.f32 %v970, %v1222
      %v1224 = vpop.f32.mrf.mxu0
      %v1225 = vadd.f32 %v975, %v1224
      %1226 = vmatmul.bf16.gmra.mxu0 %v1174
      %v1227 = vpop.f32.mrf.mxu0
      %v1228 = vadd.f32 %v980, %v1227
      %v1229 = vpop.f32.mrf.mxu0
      %v1230 = vadd.f32 %v985, %v1229
      %1231 = vmatmul.bf16.gmra.mxu0 %v1175
      %v1232 = vpop.f32.mrf.mxu0
      %v1233 = vadd.f32 %v990, %v1232
      %v1234 = vpop.f32.mrf.mxu0
      %v1235 = vadd.f32 %v995, %v1234
      %1236 = vmatmul.bf16.gmra.mxu0 %v1176
      %v1237 = vpop.f32.mrf.mxu0
      %v1238 = vadd.f32 %v1000, %v1237
      %v1239 = vpop.f32.mrf.mxu0
      %v1240 = vadd.f32 %v1005, %v1239
      %1241 = vmatmul.bf16.gmra.mxu0 %v1177
      %v1242 = vpop.f32.mrf.mxu0
      %v1243 = vadd.f32 %v1010, %v1242
      %v1244 = vpop.f32.mrf.mxu0
      %v1245 = vadd.f32 %v1015, %v1244
      %1246 = vmatmul.bf16.gmra.mxu0 %v1178
      %v1247 = vpop.f32.mrf.mxu0
      %v1248 = vadd.f32 %v1020, %v1247
      %v1249 = vpop.f32.mrf.mxu0
      %v1250 = vadd.f32 %v1025, %v1249
      %1251 = vmatmul.bf16.gmra.mxu0 %v1179
      %v1252 = vpop.f32.mrf.mxu0
      %v1253 = vadd.f32 %v1030, %v1252
      %v1254 = vpop.f32.mrf.mxu0
      %v1255 = vadd.f32 %v1035, %v1254
      %1256 = vmatmul.bf16.gmra.mxu0 %v1180
      %v1257 = vpop.f32.mrf.mxu0
      %v1258 = vadd.f32 %v1040, %v1257
      %v1259 = vpop.f32.mrf.mxu0
      %v1260 = vadd.f32 %v1045, %v1259
      %1261 = vmatmul.bf16.gmra.mxu0 %v1181
      %v1262 = vpop.f32.mrf.mxu0
      %v1263 = vadd.f32 %v1050, %v1262
      %v1264 = vpop.f32.mrf.mxu0
      %v1265 = vadd.f32 %v1055, %v1264
      %1266 = vmatmul.bf16.gmra.mxu0 %v1182
      %v1267 = vpop.f32.mrf.mxu0
      %v1268 = vadd.f32 %v1060, %v1267
      %v1269 = vpop.f32.mrf.mxu0
      %v1270 = vadd.f32 %v1065, %v1269
      %1271 = vmatmul.bf16.gmra.mxu0 %v1183
      %v1272 = vpop.f32.mrf.mxu0
      %v1273 = vadd.f32 %v1070, %v1272
      %v1274 = vpop.f32.mrf.mxu0
      %v1275 = vadd.f32 %v1075, %v1274
      %1276 = vmatmul.bf16.gmra.mxu0 %v1184
      %v1277 = vpop.f32.mrf.mxu0
      %v1278 = vadd.f32 %v1080, %v1277
      %v1279 = vpop.f32.mrf.mxu0
      %v1280 = vadd.f32 %v1085, %v1279
      %1281 = vmatmul.bf16.gmra.mxu0 %v1185
      %v1282 = vpop.f32.mrf.mxu0
      %v1283 = vadd.f32 %v1090, %v1282
      %v1284 = vpop.f32.mrf.mxu0
      %v1285 = vadd.f32 %v1095, %v1284
      %1286 = vmatmul.bf16.gmra.mxu0 %v1186
      %v1287 = vpop.f32.mrf.mxu0
      %v1288 = vadd.f32 %v1100, %v1287
      %v1289 = vpop.f32.mrf.mxu0
      %v1290 = vadd.f32 %v1105, %v1289
      %1291 = vdwg.mxu0
      %v1292 = vmax.f32 %v1213, 0.0
      %v1293 = vmax.f32 %v1215, 0.0
      %v1294 = vmax.f32 %v1218, 0.0
      %v1295 = vmax.f32 %v1220, 0.0
      %v1296 = vmax.f32 %v1223, 0.0
      %v1297 = vmax.f32 %v1225, 0.0
      %v1298 = vmax.f32 %v1228, 0.0
      %v1299 = vmax.f32 %v1230, 0.0
      %v1300 = vmax.f32 %v1233, 0.0
      %v1301 = vmax.f32 %v1235, 0.0
      %v1302 = vmax.f32 %v1238, 0.0
      %v1303 = vmax.f32 %v1240, 0.0
      %v1304 = vmax.f32 %v1243, 0.0
      %v1305 = vmax.f32 %v1245, 0.0
      %v1306 = vmax.f32 %v1248, 0.0
      %v1307 = vmax.f32 %v1250, 0.0
      %v1308 = vmax.f32 %v1253, 0.0
      %v1309 = vmax.f32 %v1255, 0.0
      %v1310 = vmax.f32 %v1258, 0.0
      %v1311 = vmax.f32 %v1260, 0.0
      %v1312 = vmax.f32 %v1263, 0.0
      %v1313 = vmax.f32 %v1265, 0.0
      %v1314 = vmax.f32 %v1268, 0.0
      %v1315 = vmax.f32 %v1270, 0.0
      %v1316 = vmax.f32 %v1273, 0.0
      %v1317 = vmax.f32 %v1275, 0.0
      %v1318 = vmax.f32 %v1278, 0.0
      %v1319 = vmax.f32 %v1280, 0.0
      %v1320 = vmax.f32 %v1283, 0.0
      %v1321 = vmax.f32 %v1285, 0.0
      %v1322 = vmax.f32 %v1288, 0.0
      %v1323 = vmax.f32 %v1290, 0.0
      %p1324 = scmp.eq.s32.totalorder %s21, 0
      // Predicated region
      $region41: #{backbone_forward.15} parent=39 // pred_check
        %p1325 = pneg %p1324
      $region42: #{backbone_forward.15} parent=39 // pred_check_branch
        %1327 = sbr.rel (%p1325) target = $region44
      $region43: #{backbone_forward.15} parent=39 // pred_region
        %1328 = vst [vmem:[%s245] sm:$0xff] %v1292
        %1329 = vst [vmem:[%s245 + $0x8] sm:$0xff] %v1293
        %1330 = vst [vmem:[%s245 + $0x10] sm:$0xff] %v1294
        %1331 = vst [vmem:[%s245 + $0x18] sm:$0xff] %v1295
        %1332 = vst [vmem:[%s245 + $0x20] sm:$0xff] %v1296
        %1333 = vst [vmem:[%s245 + $0x28] sm:$0xff] %v1297
        %1334 = vst [vmem:[%s245 + $0x30] sm:$0xff] %v1298
        %1335 = vst [vmem:[%s245 + $0x38] sm:$0xff] %v1299
        %1336 = vst [vmem:[%s245 + $0x40] sm:$0xff] %v1300
        %1337 = vst [vmem:[%s245 + $0x48] sm:$0xff] %v1301
        %1338 = vst [vmem:[%s245 + $0x50] sm:$0xff] %v1302
        %1339 = vst [vmem:[%s245 + $0x58] sm:$0xff] %v1303
        %1340 = vst [vmem:[%s245 + $0x60] sm:$0xff] %v1304
        %1341 = vst [vmem:[%s245 + $0x68] sm:$0xff] %v1305
        %1342 = vst [vmem:[%s245 + $0x70] sm:$0xff] %v1306
        %1343 = vst [vmem:[%s245 + $0x78] sm:$0xff] %v1307
        %1344 = vst [vmem:[%s245 + $0x80] sm:$0xff] %v1308
        %1345 = vst [vmem:[%s245 + $0x88] sm:$0xff] %v1309
        %1346 = vst [vmem:[%s245 + $0x90] sm:$0xff] %v1310
        %1347 = vst [vmem:[%s245 + $0x98] sm:$0xff] %v1311
        %1348 = vst [vmem:[%s245 + $0xa0] sm:$0xff] %v1312
        %1349 = vst [vmem:[%s245 + $0xa8] sm:$0xff] %v1313
        %1350 = vst [vmem:[%s245 + $0xb0] sm:$0xff] %v1314
        %1351 = vst [vmem:[%s245 + $0xb8] sm:$0xff] %v1315
        %1352 = vst [vmem:[%s245 + $0xc0] sm:$0xff] %v1316
        %1353 = vst [vmem:[%s245 + $0xc8] sm:$0xff] %v1317
        %1354 = vst [vmem:[%s245 + $0xd0] sm:$0xff] %v1318
        %1355 = vst [vmem:[%s245 + $0xd8] sm:$0xff] %v1319
        %1356 = vst [vmem:[%s245 + $0xe0] sm:$0xff] %v1320
        %1357 = vst [vmem:[%s245 + $0xe8] sm:$0xff] %v1321
        %1358 = vst [vmem:[%s245 + $0xf0] sm:$0xff] %v1322
        %1359 = vst [vmem:[%s245 + $0xf8] sm:$0xff] %v1323
      $region44: #{backbone_forward.15} parent=39 // pred_fallthru
        _
      %p1360 = scmp.gt.s32.totalorder %s21, 0
      // Predicated region
      $region45: #{backbone_forward.15} parent=39 // pred_check
        %p1361 = pneg %p1360
      $region46: #{backbone_forward.15} parent=39 // pred_check_branch
        %1363 = sbr.rel (%p1361) target = $region48
      $region47: #{backbone_forward.15} parent=39 // pred_region
        %v1364 = vld [vmem:[%s245] sm:$0xff]
        %v1365 = vld [vmem:[%s245 + $0x8] sm:$0xff]
        %v1366 = vld [vmem:[%s245 + $0x10] sm:$0xff]
        %v1367 = vld [vmem:[%s245 + $0x18] sm:$0xff]
        %v1368 = vld [vmem:[%s245 + $0x20] sm:$0xff]
        %v1369 = vld [vmem:[%s245 + $0x28] sm:$0xff]
        %v1370 = vld [vmem:[%s245 + $0x30] sm:$0xff]
        %v1371 = vld [vmem:[%s245 + $0x38] sm:$0xff]
        %v1372 = vld [vmem:[%s245 + $0x40] sm:$0xff]
        %v1373 = vld [vmem:[%s245 + $0x48] sm:$0xff]
        %v1374 = vld [vmem:[%s245 + $0x50] sm:$0xff]
        %v1375 = vld [vmem:[%s245 + $0x58] sm:$0xff]
        %v1376 = vld [vmem:[%s245 + $0x60] sm:$0xff]
        %v1377 = vld [vmem:[%s245 + $0x68] sm:$0xff]
        %v1378 = vld [vmem:[%s245 + $0x70] sm:$0xff]
        %v1379 = vld [vmem:[%s245 + $0x78] sm:$0xff]
        %v1380 = vld [vmem:[%s245 + $0x80] sm:$0xff]
        %v1381 = vld [vmem:[%s245 + $0x88] sm:$0xff]
        %v1382 = vld [vmem:[%s245 + $0x90] sm:$0xff]
        %v1383 = vld [vmem:[%s245 + $0x98] sm:$0xff]
        %v1384 = vld [vmem:[%s245 + $0xa0] sm:$0xff]
        %v1385 = vld [vmem:[%s245 + $0xa8] sm:$0xff]
        %v1386 = vld [vmem:[%s245 + $0xb0] sm:$0xff]
        %v1387 = vld [vmem:[%s245 + $0xb8] sm:$0xff]
        %v1388 = vld [vmem:[%s245 + $0xc0] sm:$0xff]
        %v1389 = vld [vmem:[%s245 + $0xc8] sm:$0xff]
        %v1390 = vld [vmem:[%s245 + $0xd0] sm:$0xff]
        %v1391 = vld [vmem:[%s245 + $0xd8] sm:$0xff]
        %v1392 = vld [vmem:[%s245 + $0xe0] sm:$0xff]
        %v1393 = vld [vmem:[%s245 + $0xe8] sm:$0xff]
        %v1394 = vld [vmem:[%s245 + $0xf0] sm:$0xff]
        %v1395 = vld [vmem:[%s245 + $0xf8] sm:$0xff]
        %v1396 = vmax.f32 %v1364, %v1292
        %v1397 = vmax.f32 %v1365, %v1293
        %v1398 = vmax.f32 %v1366, %v1294
        %v1399 = vmax.f32 %v1367, %v1295
        %v1400 = vmax.f32 %v1368, %v1296
        %v1401 = vmax.f32 %v1369, %v1297
        %v1402 = vmax.f32 %v1370, %v1298
        %v1403 = vmax.f32 %v1371, %v1299
        %v1404 = vmax.f32 %v1372, %v1300
        %v1405 = vmax.f32 %v1373, %v1301
        %v1406 = vmax.f32 %v1374, %v1302
        %v1407 = vmax.f32 %v1375, %v1303
        %v1408 = vmax.f32 %v1376, %v1304
        %v1409 = vmax.f32 %v1377, %v1305
        %v1410 = vmax.f32 %v1378, %v1306
        %v1411 = vmax.f32 %v1379, %v1307
        %v1412 = vmax.f32 %v1380, %v1308
        %v1413 = vmax.f32 %v1381, %v1309
        %v1414 = vmax.f32 %v1382, %v1310
        %v1415 = vmax.f32 %v1383, %v1311
        %v1416 = vmax.f32 %v1384, %v1312
        %v1417 = vmax.f32 %v1385, %v1313
        %v1418 = vmax.f32 %v1386, %v1314
        %v1419 = vmax.f32 %v1387, %v1315
        %v1420 = vmax.f32 %v1388, %v1316
        %v1421 = vmax.f32 %v1389, %v1317
        %v1422 = vmax.f32 %v1390, %v1318
        %v1423 = vmax.f32 %v1391, %v1319
        %v1424 = vmax.f32 %v1392, %v1320
        %v1425 = vmax.f32 %v1393, %v1321
        %v1426 = vmax.f32 %v1394, %v1322
        %v1427 = vmax.f32 %v1395, %v1323
        %1428 = vst [vmem:[%s245] sm:$0xff] %v1396
        %1429 = vst [vmem:[%s245 + $0x8] sm:$0xff] %v1397
        %1430 = vst [vmem:[%s245 + $0x10] sm:$0xff] %v1398
        %1431 = vst [vmem:[%s245 + $0x18] sm:$0xff] %v1399
        %1432 = vst [vmem:[%s245 + $0x20] sm:$0xff] %v1400
        %1433 = vst [vmem:[%s245 + $0x28] sm:$0xff] %v1401
        %1434 = vst [vmem:[%s245 + $0x30] sm:$0xff] %v1402
        %1435 = vst [vmem:[%s245 + $0x38] sm:$0xff] %v1403
        %1436 = vst [vmem:[%s245 + $0x40] sm:$0xff] %v1404
        %1437 = vst [vmem:[%s245 + $0x48] sm:$0xff] %v1405
        %1438 = vst [vmem:[%s245 + $0x50] sm:$0xff] %v1406
        %1439 = vst [vmem:[%s245 + $0x58] sm:$0xff] %v1407
        %1440 = vst [vmem:[%s245 + $0x60] sm:$0xff] %v1408
        %1441 = vst [vmem:[%s245 + $0x68] sm:$0xff] %v1409
        %1442 = vst [vmem:[%s245 + $0x70] sm:$0xff] %v1410
        %1443 = vst [vmem:[%s245 + $0x78] sm:$0xff] %v1411
        %1444 = vst [vmem:[%s245 + $0x80] sm:$0xff] %v1412
        %1445 = vst [vmem:[%s245 + $0x88] sm:$0xff] %v1413
        %1446 = vst [vmem:[%s245 + $0x90] sm:$0xff] %v1414
        %1447 = vst [vmem:[%s245 + $0x98] sm:$0xff] %v1415
        %1448 = vst [vmem:[%s245 + $0xa0] sm:$0xff] %v1416
        %1449 = vst [vmem:[%s245 + $0xa8] sm:$0xff] %v1417
        %1450 = vst [vmem:[%s245 + $0xb0] sm:$0xff] %v1418
        %1451 = vst [vmem:[%s245 + $0xb8] sm:$0xff] %v1419
        %1452 = vst [vmem:[%s245 + $0xc0] sm:$0xff] %v1420
        %1453 = vst [vmem:[%s245 + $0xc8] sm:$0xff] %v1421
        %1454 = vst [vmem:[%s245 + $0xd0] sm:$0xff] %v1422
        %1455 = vst [vmem:[%s245 + $0xd8] sm:$0xff] %v1423
        %1456 = vst [vmem:[%s245 + $0xe0] sm:$0xff] %v1424
        %1457 = vst [vmem:[%s245 + $0xe8] sm:$0xff] %v1425
        %1458 = vst [vmem:[%s245 + $0xf0] sm:$0xff] %v1426
        %1459 = vst [vmem:[%s245 + $0xf8] sm:$0xff] %v1427
      $region48: #{backbone_forward.15} parent=39 // pred_fallthru
        _
      %p1460 = scmp.lt.s32.totalorder %s20, 0
      %s1461 = scalar_select %p1460, %s20, 0
      %s1462 = smul.addr %s1461, 8
      %s1463 = scalar_lea.vmem %s5, %s1462
      // Predicated region
      $region49: #{backbone_forward.15} parent=39 // pred_check
        %p1464 = pneg %p158
      $region50: #{backbone_forward.15} parent=39 // pred_check_branch
        %1466 = sbr.rel (%p1464) target = $region52
      $region51: #{backbone_forward.15} parent=39 // pred_region
        _
      $region52: #{backbone_forward.15} parent=39 // pred_fallthru
        _
      // Predicated region
      $region53: #{backbone_forward.15} parent=39 // pred_check
        %p1467 = pneg %p158
      $region54: #{backbone_forward.15} parent=39 // pred_check_branch
        %1469 = sbr.rel (%p1467) target = $region56
      $region55: #{backbone_forward.15} parent=39 // pred_region
        %p1470 = scmp.lt.s32.totalorder %s20, 0
        %s1471 = scalar_select %p1470, %s20, 0
        %s1472 = smul.addr %s1471, 8
        %s1473 = scalar_lea.vmem %s5, %s1472
      $region56: #{backbone_forward.15} parent=39 // pred_fallthru
        _
    $region40: #{backbone_forward.15} parent=5 // pred_fallthru
      _
    %p1474 = scmp.le.s32.totalorder 2, %s11
    // Predicated region
    $region57: #{backbone_forward.15} parent=5 // pred_check
      %p1475 = pneg %p1474
    $region58: #{backbone_forward.15} parent=5 // pred_check_branch
      %1477 = sbr.rel (%p1475) target = $region60
    $region59: #{backbone_forward.15} parent=5 // pred_region
      %s1478 = ssub.s32 %s11, 2
    $region60: #{backbone_forward.15} parent=5 // pred_fallthru
      _
  $region6: #{backbone_forward.15} parent=0 // loop_footer
    %s15 = sadd.s32 1, %s11
  $region7: #{backbone_forward.15} parent=0 // loop_footer_branch
    %10 = sbr.rel target = $region3
  $region8: #{backbone_forward.15} parent=0 // loop_exit
    _

// kernel: backbone_forward.17
$region0: #{backbone_forward.17}
  #allocation0 [shape = 'u32[]', space=smem, size = 0x4, offset = 0x4, fixed_abs, tag = 'smem constant byte address 0x4 - core index']
  #allocation1 [shape = 'u32[72,128]{1,0:T(1,128)}', space=vmem, size = 0x9000, scoped, tag = 'internal scratch']
  %s0 = inlined_call_operand.vmem [shape: bf16[8,272,128], index: 0, kind: input, shape index: {}]
  %s1 = inlined_call_operand.vmem [shape: bf16[128,272], index: 1, kind: input, shape index: {}]
  %s2 = inlined_call_operand.vmem [shape: bf16[128,128], index: 2, kind: input, shape index: {}]
  %s3 = inlined_call_operand.vmem [shape: bf16[256,128], index: 3, kind: input, shape index: {}]
  %s4 = inlined_call_operand.vmem [shape: f32[512,1], index: 4, kind: input, shape index: {}]
  %s5 = inlined_call_operand.vmem [shape: f32[256,128], index: 5, kind: output, shape index: {}]
  %s6 = sld [smem:[#allocation0]]
  $region61: #{backbone_forward.17} parent=0
    _
  %s8 = ssub.s32 1, %s6
  %s9 = scalar_select 0, %s8, %s6
  loop: start=0, step=1, limit=10
  $region2: #{backbone_forward.17} parent=0 // loop_pre_header
    _
  $region3: #{backbone_forward.17} parent=0 // loop_header
    %s11 = sphi 0, %s15
    %p12 = scmp.ge.s32.totalorder %s11, 10
    %s18 = sphi 0, %s30
    %s19 = sphi 0, %s26
    %s20 = sphi 0, %s18
    %s21 = sphi 0, %s19
    %s22 = sphi 0, %s20
    %s23 = sphi 0, %s21
    %s35 = sphi 0, %s37
    %s38 = sphi 0, %s35
    %s39 = sphi 0, %s38
    %s55 = sphi 0, %s39
    %s59 = sphi 0, %s59
    %s61 = sphi 0, %s59
    %s62 = sphi 0, %s61
    %s76 = sphi 0, %s62
    %s80 = sphi 0, %s80
    %s82 = sphi 0, %s80
    %s83 = sphi 0, %s82
    %s97 = sphi 0, %s83
    %s101 = sphi 0, %s101
    %s103 = sphi 0, %s101
    %s104 = sphi 0, %s103
    %s118 = sphi 0, %s104
    %s122 = sphi 0, %s122
    %s124 = sphi 0, %s122
    %s125 = sphi 0, %s124
    %s139 = sphi 0, %s125
    %s145 = sphi 0, %s147
    %s148 = sphi 0, %s145
    %s149 = sphi 0, %s148
    %s165 = sphi 0, %s149
  $region4: #{backbone_forward.17} parent=0 // loop_header_branch
    %14 = sbr.rel (%p12) target = $region8
  $region5: #{backbone_forward.17} parent=0 // loop_body
    %s16 = ssub.s32 %s11, 1
    %s17 = ssub.s32 %s11, 2
    %s24 = sadd.s32 1, %s19
    %p25 = scmp.ge.s32.totalorder %s24, 8
    %s26 = scalar_select %p25, 0, %s24
    %s27 = sadd.s32 1, %s18
    %s28 = scalar_select %p25, %s27, %s18
    %p29 = scmp.ge.s32.totalorder %s28, 1
    %s30 = scalar_select %p29, 0, %s28
    %s31 = ssub.s32 %s19, %s26
    %s32 = ssub.s32 %s18, %s30
    %s33 = sor.u32 %s31, %s32
    %p34 = scmp.eq.s32.totalorder %s33, 0
    %s36 = sadd.s32 %s35, 1
    %s37 = scalar_select %p34, %s35, %s36
    %p40 = pneg %p34
    %p41 = scmp.eq.s32.totalorder %s11, 7
    %p42 = por %p40, %p41
    %p43 = scmp.ne.s32.totalorder %s35, %s38
    %p44 = scmp.eq.s32.totalorder %s11, 0
    %p45 = por %p43, %p44
    %p46 = scmp.ne.s32.totalorder %s35, %s38
    %p47 = scmp.eq.s32.totalorder %s16, 7
    %p48 = por %p46, %p47
    %p49 = scmp.ne.s32.totalorder %s38, %s39
    %p50 = scmp.eq.s32.totalorder %s16, 0
    %p51 = por %p49, %p50
    %p52 = scmp.ne.s32.totalorder %s38, %s39
    %p53 = scmp.eq.s32.totalorder %s17, 7
    %p54 = por %p52, %p53
    %p56 = scmp.ne.s32.totalorder %s39, %s55
    %p57 = scmp.eq.s32.totalorder %s17, 0
    %p58 = por %p56, %p57
    %s60 = sadd.s32 %s59, 1
    %p63 = scmp.eq.s32.totalorder %s11, 7
    %p64 = scmp.ne.s32.totalorder %s59, %s61
    %p65 = scmp.eq.s32.totalorder %s11, 0
    %p66 = por %p64, %p65
    %p67 = scmp.ne.s32.totalorder %s59, %s61
    %p68 = scmp.eq.s32.totalorder %s16, 7
    %p69 = por %p67, %p68
    %p70 = scmp.ne.s32.totalorder %s61, %s62
    %p71 = scmp.eq.s32.totalorder %s16, 0
    %p72 = por %p70, %p71
    %p73 = scmp.ne.s32.totalorder %s61, %s62
    %p74 = scmp.eq.s32.totalorder %s17, 7
    %p75 = por %p73, %p74
    %p77 = scmp.ne.s32.totalorder %s62, %s76
    %p78 = scmp.eq.s32.totalorder %s17, 0
    %p79 = por %p77, %p78
    %s81 = sadd.s32 %s80, 1
    %p84 = scmp.eq.s32.totalorder %s11, 7
    %p85 = scmp.ne.s32.totalorder %s80, %s82
    %p86 = scmp.eq.s32.totalorder %s11, 0
    %p87 = por %p85, %p86
    %p88 = scmp.ne.s32.totalorder %s80, %s82
    %p89 = scmp.eq.s32.totalorder %s16, 7
    %p90 = por %p88, %p89
    %p91 = scmp.ne.s32.totalorder %s82, %s83
    %p92 = scmp.eq.s32.totalorder %s16, 0
    %p93 = por %p91, %p92
    %p94 = scmp.ne.s32.totalorder %s82, %s83
    %p95 = scmp.eq.s32.totalorder %s17, 7
    %p96 = por %p94, %p95
    %p98 = scmp.ne.s32.totalorder %s83, %s97
    %p99 = scmp.eq.s32.totalorder %s17, 0
    %p100 = por %p98, %p99
    %s102 = sadd.s32 %s101, 1
    %p105 = scmp.eq.s32.totalorder %s11, 7
    %p106 = scmp.ne.s32.totalorder %s101, %s103
    %p107 = scmp.eq.s32.totalorder %s11, 0
    %p108 = por %p106, %p107
    %p109 = scmp.ne.s32.totalorder %s101, %s103
    %p110 = scmp.eq.s32.totalorder %s16, 7
    %p111 = por %p109, %p110
    %p112 = scmp.ne.s32.totalorder %s103, %s104
    %p113 = scmp.eq.s32.totalorder %s16, 0
    %p114 = por %p112, %p113
    %p115 = scmp.ne.s32.totalorder %s103, %s104
    %p116 = scmp.eq.s32.totalorder %s17, 7
    %p117 = por %p115, %p116
    %p119 = scmp.ne.s32.totalorder %s104, %s118
    %p120 = scmp.eq.s32.totalorder %s17, 0
    %p121 = por %p119, %p120
    %s123 = sadd.s32 %s122, 1
    %p126 = scmp.eq.s32.totalorder %s11, 7
    %p127 = scmp.ne.s32.totalorder %s122, %s124
    %p128 = scmp.eq.s32.totalorder %s11, 0
    %p129 = por %p127, %p128
    %p130 = scmp.ne.s32.totalorder %s122, %s124
    %p131 = scmp.eq.s32.totalorder %s16, 7
    %p132 = por %p130, %p131
    %p133 = scmp.ne.s32.totalorder %s124, %s125
    %p134 = scmp.eq.s32.totalorder %s16, 0
    %p135 = por %p133, %p134
    %p136 = scmp.ne.s32.totalorder %s124, %s125
    %p137 = scmp.eq.s32.totalorder %s17, 7
    %p138 = por %p136, %p137
    %p140 = scmp.ne.s32.totalorder %s125, %s139
    %p141 = scmp.eq.s32.totalorder %s17, 0
    %p142 = por %p140, %p141
    %s143 = ssub.s32 %s18, %s30
    %p144 = scmp.eq.s32.totalorder %s143, 0
    %s146 = sadd.s32 %s145, 1
    %s147 = scalar_select %p144, %s145, %s146
    %p150 = pneg %p144
    %p151 = scmp.eq.s32.totalorder %s11, 7
    %p152 = por %p150, %p151
    %p153 = scmp.ne.s32.totalorder %s145, %s148
    %p154 = scmp.eq.s32.totalorder %s11, 0
    %p155 = por %p153, %p154
    %p156 = scmp.ne.s32.totalorder %s145, %s148
    %p157 = scmp.eq.s32.totalorder %s16, 7
    %p158 = por %p156, %p157
    %p159 = scmp.ne.s32.totalorder %s148, %s149
    %p160 = scmp.eq.s32.totalorder %s16, 0
    %p161 = por %p159, %p160
    %p162 = scmp.ne.s32.totalorder %s148, %s149
    %p163 = scmp.eq.s32.totalorder %s17, 7
    %p164 = por %p162, %p163
    %p166 = scmp.ne.s32.totalorder %s149, %s165
    %p167 = scmp.eq.s32.totalorder %s17, 0
    %p168 = por %p166, %p167
    %p169 = scmp.le.s32.totalorder 1, %s11
    %p170 = scmp.lt.s32.totalorder %s11, 9
    %p171 = pnand %p169, %p170
    %p172 = pneg %p171
    // Predicated region
    $region9: #{backbone_forward.17} parent=5 // pred_check
      _
    $region10: #{backbone_forward.17} parent=5 // pred_check_branch
      %174 = sbr.rel (%p171) target = $region12
    $region11: #{backbone_forward.17} parent=5 // pred_region
      %s175 = ssub.s32 %s11, 1
      // Predicated region
      $region13: #{backbone_forward.17} parent=11 // pred_check
        %p176 = pneg %p72
      $region14: #{backbone_forward.17} parent=11 // pred_check_branch
        %178 = sbr.rel (%p176) target = $region16
      $region15: #{backbone_forward.17} parent=11 // pred_region
        _
      $region16: #{backbone_forward.17} parent=11 // pred_fallthru
        _
      // Predicated region
      $region17: #{backbone_forward.17} parent=11 // pred_check
        %p179 = pneg %p93
      $region18: #{backbone_forward.17} parent=11 // pred_check_branch
        %181 = sbr.rel (%p179) target = $region20
      $region19: #{backbone_forward.17} parent=11 // pred_region
        _
      $region20: #{backbone_forward.17} parent=11 // pred_fallthru
        _
      // Predicated region
      $region21: #{backbone_forward.17} parent=11 // pred_check
        %p182 = pneg %p114
      $region22: #{backbone_forward.17} parent=11 // pred_check_branch
        %184 = sbr.rel (%p182) target = $region24
      $region23: #{backbone_forward.17} parent=11 // pred_region
        _
      $region24: #{backbone_forward.17} parent=11 // pred_fallthru
        _
      // Predicated region
      $region25: #{backbone_forward.17} parent=11 // pred_check
        %p185 = pneg %p135
      $region26: #{backbone_forward.17} parent=11 // pred_check_branch
        %187 = sbr.rel (%p185) target = $region28
      $region27: #{backbone_forward.17} parent=11 // pred_region
        _
      $region28: #{backbone_forward.17} parent=11 // pred_fallthru
        _
    $region12: #{backbone_forward.17} parent=5 // pred_fallthru
      _
    %p188 = scmp.lt.s32.totalorder %s11, 8
    // Predicated region
    $region29: #{backbone_forward.17} parent=5 // pred_check
      %p189 = pneg %p188
    $region30: #{backbone_forward.17} parent=5 // pred_check_branch
      %191 = sbr.rel (%p189) target = $region32
    $region31: #{backbone_forward.17} parent=5 // pred_region
      // Predicated region
      $region33: #{backbone_forward.17} parent=31 // pred_check
        %p192 = pneg %p45
      $region34: #{backbone_forward.17} parent=31 // pred_check_branch
        %194 = sbr.rel (%p192) target = $region36
      $region35: #{backbone_forward.17} parent=31 // pred_region
        %p195 = scmp.lt.s32.totalorder %s19, 7
        %s196 = scalar_select %p195, %s19, 7
        %p197 = scmp.lt.s32.totalorder %s18, 0
        %s198 = scalar_select %p197, %s18, 0
        %s199 = smul.addr %s196, 34
        %s200 = sadd.s32 %s198, %s199
        %s201 = smul.addr %s200, 4
        %s202 = scalar_lea.vmem %s0, %s201
      $region36: #{backbone_forward.17} parent=31 // pred_fallthru
        _
    $region32: #{backbone_forward.17} parent=5 // pred_fallthru
      _
    %p203 = scmp.le.s32.totalorder 1, %s11
    %p204 = scmp.lt.s32.totalorder %s11, 9
    %p205 = pnand %p203, %p204
    %p206 = pneg %p205
    // Predicated region
    $region37: #{backbone_forward.17} parent=5 // pred_check
      _
    $region38: #{backbone_forward.17} parent=5 // pred_check_branch
      %208 = sbr.rel (%p205) target = $region40
    $region39: #{backbone_forward.17} parent=5 // pred_region
      %s209 = ssub.s32 %s11, 1
      %p210 = scmp.lt.s32.totalorder %s21, 7
      %s211 = scalar_select %p210, %s21, 7
      %p212 = scmp.lt.s32.totalorder %s20, 0
      %s213 = scalar_select %p212, %s20, 0
      %s214 = smul.addr %s211, 34
      %s215 = sadd.s32 %s213, %s214
      %s216 = smul.addr %s215, 4
      %s217 = scalar_lea.vmem %s0, %s216
      %p218 = pneg %p51
      %p219 = pneg %p48
      %p220 = pneg %p72
      %p221 = pneg %p69
      %p222 = pneg %p93
      %p223 = pneg %p90
      %p224 = pneg %p114
      %p225 = pneg %p111
      %p226 = pneg %p135
      %p227 = pneg %p132
      %p228 = pneg %p161
      %p229 = pneg %p158
      %p230 = scmp.lt.s32.totalorder %s20, 0
      %s231 = scalar_select %p230, %s20, 0
      %s232 = smul.addr %s231, 8
      %s233 = scalar_lea.vmem %s5, %s232
      %p234 = scmp.lt.s32.totalorder %s21, 7
      %s235 = scalar_select %p234, %s21, 7
      %p236 = scmp.lt.s32.totalorder %s20, 0
      %s237 = scalar_select %p236, %s20, 0
      %s238 = smul.addr %s235, 34
      %s239 = sadd.s32 %s237, %s238
      %s240 = smul.addr %s239, 4
      %s241 = scalar_lea.vmem %s0, %s240
      %p242 = scmp.lt.s32.totalorder %s20, 0
      %s243 = scalar_select %p242, %s20, 0
      %s244 = smul.addr %s243, 8
      %s245 = scalar_lea.vmem %s5, %s244
      %v247 = vld [vmem:[%s4] sm:$0xff]
      %v248 = vld [vmem:[%s4 + $0x8] sm:$0xff]
      %v249 = vld [vmem:[%s4 + $0x10] sm:$0xff]
      %v250 = vld [vmem:[%s4 + $0x18] sm:$0xff]
      %v251 = vld [vmem:[%s4 + $0x20] sm:$0xff]
      %v252 = vld [vmem:[%s4 + $0x28] sm:$0xff]
      %v253 = vld [vmem:[%s4 + $0x30] sm:$0xff]
      %v254 = vld [vmem:[%s4 + $0x38] sm:$0xff]
      %v255 = vld [vmem:[%s4 + $0x40] sm:$0xff]
      %v256 = vld [vmem:[%s4 + $0x48] sm:$0xff]
      %v257 = vld [vmem:[%s4 + $0x50] sm:$0xff]
      %v258 = vld [vmem:[%s4 + $0x58] sm:$0xff]
      %v259 = vld [vmem:[%s4 + $0x60] sm:$0xff]
      %v260 = vld [vmem:[%s4 + $0x68] sm:$0xff]
      %v261 = vld [vmem:[%s4 + $0x70] sm:$0xff]
      %v262 = vld [vmem:[%s4 + $0x78] sm:$0xff]
      %v263 = vld [vmem:[%s4 + $0x80] sm:$0xff]
      %v264 = vld [vmem:[%s4 + $0x88] sm:$0xff]
      %v265 = vld [vmem:[%s4 + $0x90] sm:$0xff]
      %v266 = vld [vmem:[%s4 + $0x98] sm:$0xff]
      %v267 = vld [vmem:[%s4 + $0xa0] sm:$0xff]
      %v268 = vld [vmem:[%s4 + $0xa8] sm:$0xff]
      %v269 = vld [vmem:[%s4 + $0xb0] sm:$0xff]
      %v270 = vld [vmem:[%s4 + $0xb8] sm:$0xff]
      %v271 = vld [vmem:[%s4 + $0xc0] sm:$0xff]
      %v272 = vld [vmem:[%s4 + $0xc8] sm:$0xff]
      %v273 = vld [vmem:[%s4 + $0xd0] sm:$0xff]
      %v274 = vld [vmem:[%s4 + $0xd8] sm:$0xff]
      %v275 = vld [vmem:[%s4 + $0xe0] sm:$0xff]
      %v276 = vld [vmem:[%s4 + $0xe8] sm:$0xff]
      %v277 = vld [vmem:[%s4 + $0xf0] sm:$0xff]
      %v278 = vld [vmem:[%s4 + $0xf8] sm:$0xff]
      %v279 = vld [vmem:[%s4 + $0x100] sm:$0xff]
      %v280 = vld [vmem:[%s4 + $0x108] sm:$0xff]
      %v281 = vld [vmem:[%s4 + $0x110] sm:$0xff]
      %v282 = vld [vmem:[%s4 + $0x118] sm:$0xff]
      %v283 = vld [vmem:[%s4 + $0x120] sm:$0xff]
      %v284 = vld [vmem:[%s4 + $0x128] sm:$0xff]
      %v285 = vld [vmem:[%s4 + $0x130] sm:$0xff]
      %v286 = vld [vmem:[%s4 + $0x138] sm:$0xff]
      %v287 = vld [vmem:[%s4 + $0x140] sm:$0xff]
      %v288 = vld [vmem:[%s4 + $0x148] sm:$0xff]
      %v289 = vld [vmem:[%s4 + $0x150] sm:$0xff]
      %v290 = vld [vmem:[%s4 + $0x158] sm:$0xff]
      %v291 = vld [vmem:[%s4 + $0x160] sm:$0xff]
      %v292 = vld [vmem:[%s4 + $0x168] sm:$0xff]
      %v293 = vld [vmem:[%s4 + $0x170] sm:$0xff]
      %v294 = vld [vmem:[%s4 + $0x178] sm:$0xff]
      %v295 = vld [vmem:[%s4 + $0x180] sm:$0xff]
      %v296 = vld [vmem:[%s4 + $0x188] sm:$0xff]
      %v297 = vld [vmem:[%s4 + $0x190] sm:$0xff]
      %v298 = vld [vmem:[%s4 + $0x198] sm:$0xff]
      %v299 = vld [vmem:[%s4 + $0x1a0] sm:$0xff]
      %v300 = vld [vmem:[%s4 + $0x1a8] sm:$0xff]
      %v301 = vld [vmem:[%s4 + $0x1b0] sm:$0xff]
      %v302 = vld [vmem:[%s4 + $0x1b8] sm:$0xff]
      %v303 = vld [vmem:[%s4 + $0x1c0] sm:$0xff]
      %v304 = vld [vmem:[%s4 + $0x1c8] sm:$0xff]
      %v305 = vld [vmem:[%s4 + $0x1d0] sm:$0xff]
      %v306 = vld [vmem:[%s4 + $0x1d8] sm:$0xff]
      %v307 = vld [vmem:[%s4 + $0x1e0] sm:$0xff]
      %v308 = vld [vmem:[%s4 + $0x1e8] sm:$0xff]
      %v309 = vld [vmem:[%s4 + $0x1f0] sm:$0xff]
      %v310 = vld [vmem:[%s4 + $0x1f8] sm:$0xff]
      %v311 = vld [vmem:[%s241] sm:$0xf]
      %v312 = vld [vmem:[%s241 + $0x4] sm:$0xf]
      %v313 = vld [vmem:[%s241 + $0x8] sm:$0xf]
      %v314 = vld [vmem:[%s241 + $0xc] sm:$0xf]
      %v315 = vld [vmem:[%s241 + $0x10] sm:$0xf]
      %v316 = vld [vmem:[%s241 + $0x14] sm:$0xf]
      %v317 = vld [vmem:[%s241 + $0x18] sm:$0xf]
      %v318 = vld [vmem:[%s241 + $0x1c] sm:$0xf]
      %v319 = vld [vmem:[%s241 + $0x20] sm:$0xf]
      %v320 = vld [vmem:[%s241 + $0x24] sm:$0xf]
      %v321 = vld [vmem:[%s241 + $0x28] sm:$0xf]
      %v322 = vld [vmem:[%s241 + $0x2c] sm:$0xf]
      %v323 = vld [vmem:[%s241 + $0x30] sm:$0xf]
      %v324 = vld [vmem:[%s241 + $0x34] sm:$0xf]
      %v325 = vld [vmem:[%s241 + $0x38] sm:$0xf]
      %v326 = vld [vmem:[%s241 + $0x3c] sm:$0xf]
      %v327 = vld [vmem:[%s241 + $0x40] sm:$0xf]
      %v328 = vld [vmem:[%s241 + $0x44] sm:$0xf]
      %v329 = vld [vmem:[%s241 + $0x48] sm:$0xf]
      %v330 = vld [vmem:[%s241 + $0x4c] sm:$0xf]
      %v331 = vld [vmem:[%s241 + $0x50] sm:$0xf]
      %v332 = vld [vmem:[%s241 + $0x54] sm:$0xf]
      %v333 = vld [vmem:[%s241 + $0x58] sm:$0xf]
      %v334 = vld [vmem:[%s241 + $0x5c] sm:$0xf]
      %v335 = vld [vmem:[%s241 + $0x60] sm:$0xf]
      %v336 = vld [vmem:[%s241 + $0x64] sm:$0xf]
      %v337 = vld [vmem:[%s241 + $0x68] sm:$0xf]
      %v338 = vld [vmem:[%s241 + $0x6c] sm:$0xf]
      %v339 = vld [vmem:[%s241 + $0x70] sm:$0xf]
      %v340 = vld [vmem:[%s241 + $0x74] sm:$0xf]
      %v341 = vld [vmem:[%s241 + $0x78] sm:$0xf]
      %v342 = vld [vmem:[%s241 + $0x7c] sm:$0xf]
      %v343 = vld [vmem:[%s241 + $0x80] sm:$0xf]
      %v344 = vld [vmem:[%s241 + $0x84] sm:$0xf]
      %v345 = vld [vmem:[%s1] sm:$0xff]
      %v346 = vld [vmem:[%s1 + $0x8] sm:$0xf]
      %v347 = vld [vmem:[%s1 + $0xc] sm:$0xff]
      %v348 = vld [vmem:[%s1 + $0x14] sm:$0xf]
      %v349 = vld [vmem:[%s1 + $0x18] sm:$0xff]
      %v350 = vld [vmem:[%s1 + $0x20] sm:$0xf]
      %v351 = vld [vmem:[%s1 + $0x24] sm:$0xff]
      %v352 = vld [vmem:[%s1 + $0x2c] sm:$0xf]
      %v353 = vld [vmem:[%s1 + $0x30] sm:$0xff]
      %v354 = vld [vmem:[%s1 + $0x38] sm:$0xf]
      %v355 = vld [vmem:[%s1 + $0x3c] sm:$0xff]
      %v356 = vld [vmem:[%s1 + $0x44] sm:$0xf]
      %v357 = vld [vmem:[%s1 + $0x48] sm:$0xff]
      %v358 = vld [vmem:[%s1 + $0x50] sm:$0xf]
      %v359 = vld [vmem:[%s1 + $0x54] sm:$0xff]
      %v360 = vld [vmem:[%s1 + $0x5c] sm:$0xf]
      %v361 = vld [vmem:[%s1 + $0x60] sm:$0xff]
      %v362 = vld [vmem:[%s1 + $0x68] sm:$0xf]
      %v363 = vld [vmem:[%s1 + $0x6c] sm:$0xff]
      %v364 = vld [vmem:[%s1 + $0x74] sm:$0xf]
      %v365 = vld [vmem:[%s1 + $0x78] sm:$0xff]
      %v366 = vld [vmem:[%s1 + $0x80] sm:$0xf]
      %v367 = vld [vmem:[%s1 + $0x84] sm:$0xff]
      %v368 = vld [vmem:[%s1 + $0x8c] sm:$0xf]
      %v369 = vld [vmem:[%s1 + $0x90] sm:$0xff]
      %v370 = vld [vmem:[%s1 + $0x98] sm:$0xf]
      %v371 = vld [vmem:[%s1 + $0x9c] sm:$0xff]
      %v372 = vld [vmem:[%s1 + $0xa4] sm:$0xf]
      %v373 = vld [vmem:[%s1 + $0xa8] sm:$0xff]
      %v374 = vld [vmem:[%s1 + $0xb0] sm:$0xf]
      %v375 = vld [vmem:[%s1 + $0xb4] sm:$0xff]
      %v376 = vld [vmem:[%s1 + $0xbc] sm:$0xf]
      %378 = vset.pattern.permute.xlu0 0
      %379 = vperm.xlu0 %378, %v247
      %v380 = vpop.permute.xlu0 %379
      %383 = vset.pattern.permute.xlu0 0
      %384 = vperm.xlu0 %383, %v248
      %v385 = vpop.permute.xlu0 %384
      %388 = vset.pattern.permute.xlu0 0
      %389 = vperm.xlu0 %388, %v249
      %v390 = vpop.permute.xlu0 %389
      %393 = vset.pattern.permute.xlu0 0
      %394 = vperm.xlu0 %393, %v250
      %v395 = vpop.permute.xlu0 %394
      %398 = vset.pattern.permute.xlu0 0
      %399 = vperm.xlu0 %398, %v251
      %v400 = vpop.permute.xlu0 %399
      %403 = vset.pattern.permute.xlu0 0
      %404 = vperm.xlu0 %403, %v252
      %v405 = vpop.permute.xlu0 %404
      %408 = vset.pattern.permute.xlu0 0
      %409 = vperm.xlu0 %408, %v253
      %v410 = vpop.permute.xlu0 %409
      %413 = vset.pattern.permute.xlu0 0
      %414 = vperm.xlu0 %413, %v254
      %v415 = vpop.permute.xlu0 %414
      %418 = vset.pattern.permute.xlu0 0
      %419 = vperm.xlu0 %418, %v255
      %v420 = vpop.permute.xlu0 %419
      %423 = vset.pattern.permute.xlu0 0
      %424 = vperm.xlu0 %423, %v256
      %v425 = vpop.permute.xlu0 %424
      %428 = vset.pattern.permute.xlu0 0
      %429 = vperm.xlu0 %428, %v257
      %v430 = vpop.permute.xlu0 %429
      %433 = vset.pattern.permute.xlu0 0
      %434 = vperm.xlu0 %433, %v258
      %v435 = vpop.permute.xlu0 %434
      %438 = vset.pattern.permute.xlu0 0
      %439 = vperm.xlu0 %438, %v259
      %v440 = vpop.permute.xlu0 %439
      %443 = vset.pattern.permute.xlu0 0
      %444 = vperm.xlu0 %443, %v260
      %v445 = vpop.permute.xlu0 %444
      %448 = vset.pattern.permute.xlu0 0
      %449 = vperm.xlu0 %448, %v261
      %v450 = vpop.permute.xlu0 %449
      %453 = vset.pattern.permute.xlu0 0
      %454 = vperm.xlu0 %453, %v262
      %v455 = vpop.permute.xlu0 %454
      %v489 = vunpack.c.l.b16 %v345
      %v490 = vunpack.c.h.b16 %v345
      %v491 = vunpack.c.l.b16 %v346
      %v492 = vunpack.c.l.b16 %v347
      %v493 = vunpack.c.h.b16 %v347
      %v494 = vunpack.c.l.b16 %v348
      %v495 = vunpack.c.l.b16 %v349
      %v496 = vunpack.c.h.b16 %v349
      %v497 = vunpack.c.l.b16 %v350
      %v498 = vunpack.c.l.b16 %v351
      %v499 = vunpack.c.h.b16 %v351
      %v500 = vunpack.c.l.b16 %v352
      %v501 = vunpack.c.l.b16 %v353
      %v502 = vunpack.c.h.b16 %v353
      %v503 = vunpack.c.l.b16 %v354
      %v504 = vunpack.c.l.b16 %v355
      %v505 = vunpack.c.h.b16 %v355
      %v506 = vunpack.c.l.b16 %v356
      %v507 = vunpack.c.l.b16 %v357
      %v508 = vunpack.c.h.b16 %v357
      %v509 = vunpack.c.l.b16 %v358
      %v510 = vunpack.c.l.b16 %v359
      %v511 = vunpack.c.h.b16 %v359
      %v512 = vunpack.c.l.b16 %v360
      %v513 = vunpack.c.l.b16 %v361
      %v514 = vunpack.c.h.b16 %v361
      %v515 = vunpack.c.l.b16 %v362
      %v516 = vunpack.c.l.b16 %v363
      %v517 = vunpack.c.h.b16 %v363
      %v518 = vunpack.c.l.b16 %v364
      %v519 = vunpack.c.l.b16 %v365
      %v520 = vunpack.c.h.b16 %v365
      %v521 = vunpack.c.l.b16 %v366
      %v522 = vunpack.c.l.b16 %v367
      %v523 = vunpack.c.h.b16 %v367
      %v524 = vunpack.c.l.b16 %v368
      %v525 = vunpack.c.l.b16 %v369
      %v526 = vunpack.c.h.b16 %v369
      %v527 = vunpack.c.l.b16 %v370
      %v528 = vunpack.c.l.b16 %v371
      %v529 = vunpack.c.h.b16 %v371
      %v530 = vunpack.c.l.b16 %v372
      %v531 = vunpack.c.l.b16 %v373
      %v532 = vunpack.c.h.b16 %v373
      %v533 = vunpack.c.l.b16 %v374
      %v534 = vunpack.c.l.b16 %v375
      %v535 = vunpack.c.h.b16 %v375
      %v536 = vunpack.c.l.b16 %v376
      %v537 = vpack.c.b16 %v492, %v489
      %v538 = vpack.c.b16 %v493, %v490
      %v539 = vpack.c.b16 %v494, %v491
      %v540 = vpack.c.b16 %v498, %v495
      %v541 = vpack.c.b16 %v499, %v496
      %v542 = vpack.c.b16 %v500, %v497
      %v543 = vpack.c.b16 %v504, %v501
      %v544 = vpack.c.b16 %v505, %v502
      %v545 = vpack.c.b16 %v506, %v503
      %v546 = vpack.c.b16 %v510, %v507
      %v547 = vpack.c.b16 %v511, %v508
      %v548 = vpack.c.b16 %v512, %v509
      %v549 = vpack.c.b16 %v516, %v513
      %v550 = vpack.c.b16 %v517, %v514
      %v551 = vpack.c.b16 %v518, %v515
      %v552 = vpack.c.b16 %v522, %v519
      %v553 = vpack.c.b16 %v523, %v520
      %v554 = vpack.c.b16 %v524, %v521
      %v555 = vpack.c.b16 %v528, %v525
      %v556 = vpack.c.b16 %v529, %v526
      %v557 = vpack.c.b16 %v530, %v527
      %v558 = vpack.c.b16 %v534, %v531
      %v559 = vpack.c.b16 %v535, %v532
      %v560 = vpack.c.b16 %v536, %v533
      %v611 = vunpack.c.l.b16 %v311
      %v612 = vunpack.c.l.b16 %v312
      %v613 = vunpack.c.l.b16 %v313
      %v614 = vunpack.c.l.b16 %v314
      %v615 = vunpack.c.l.b16 %v315
      %v616 = vunpack.c.l.b16 %v316
      %v617 = vunpack.c.l.b16 %v317
      %v618 = vunpack.c.l.b16 %v318
      %v619 = vunpack.c.l.b16 %v319
      %v620 = vunpack.c.l.b16 %v320
      %v621 = vunpack.c.l.b16 %v321
      %v622 = vunpack.c.l.b16 %v322
      %v623 = vunpack.c.l.b16 %v323
      %v624 = vunpack.c.l.b16 %v324
      %v625 = vunpack.c.l.b16 %v325
      %v626 = vunpack.c.l.b16 %v326
      %v627 = vunpack.c.l.b16 %v327
      %v628 = vunpack.c.l.b16 %v328
      %v629 = vunpack.c.l.b16 %v329
      %v630 = vunpack.c.l.b16 %v330
      %v631 = vunpack.c.l.b16 %v331
      %v632 = vunpack.c.l.b16 %v332
      %v633 = vunpack.c.l.b16 %v333
      %v634 = vunpack.c.l.b16 %v334
      %v635 = vunpack.c.l.b16 %v335
      %v636 = vunpack.c.l.b16 %v336
      %v637 = vunpack.c.l.b16 %v337
      %v638 = vunpack.c.l.b16 %v338
      %v639 = vunpack.c.l.b16 %v339
      %v640 = vunpack.c.l.b16 %v340
      %v641 = vunpack.c.l.b16 %v341
      %v642 = vunpack.c.l.b16 %v342
      %v643 = vunpack.c.l.b16 %v343
      %v644 = vunpack.c.l.b16 %v344
      %v645 = vpack.c.b16 %v612, %v611
      %v646 = vpack.c.b16 %v614, %v613
      %v647 = vpack.c.b16 %v616, %v615
      %v648 = vpack.c.b16 %v618, %v617
      %v649 = vpack.c.b16 %v620, %v619
      %v650 = vpack.c.b16 %v622, %v621
      %v651 = vpack.c.b16 %v624, %v623
      %v652 = vpack.c.b16 %v626, %v625
      %v653 = vpack.c.b16 %v628, %v627
      %v654 = vpack.c.b16 %v630, %v629
      %v655 = vpack.c.b16 %v632, %v631
      %v656 = vpack.c.b16 %v634, %v633
      %v657 = vpack.c.b16 %v636, %v635
      %v658 = vpack.c.b16 %v638, %v637
      %v659 = vpack.c.b16 %v640, %v639
      %v660 = vpack.c.b16 %v642, %v641
      %v661 = vpack.c.b16 %v644, %v643
      %vm679 = vcmask 130048
      %v681 = vsel %vm679, %v539, 0
      %v684 = vsel %vm679, %v542, 0
      %v687 = vsel %vm679, %v545, 0
      %v690 = vsel %vm679, %v548, 0
      %v693 = vsel %vm679, %v551, 0
      %v696 = vsel %vm679, %v554, 0
      %v699 = vsel %vm679, %v557, 0
      %v702 = vsel %vm679, %v560, 0
      %704 = vmatpush.bf16.msra.mxu0 %v652
      %705 = vmatpush.bf16.msra.mxu0 %v651
      %706 = vmatpush.bf16.msra.mxu0 %v650
      %707 = vmatpush.bf16.msra.mxu0 %v649
      %708 = vmatpush.bf16.msra.mxu0 %v648
      %709 = vmatpush.bf16.msra.mxu0 %v647
      %710 = vmatpush.bf16.msra.mxu0 %v646
      %711 = vmatpush.bf16.msra.mxu0 %v645
      %712 = vmatmul.bf16.gmra.mxu0 %v537
      %v713 = vpop.f32.mrf.mxu0
      %v714 = vadd.f32 %v380, %v713
      %v715 = vpop.f32.mrf.mxu0
      %v716 = vadd.f32 %v385, %v715
      %717 = vmatmul.bf16.gmra.mxu0 %v540
      %v718 = vpop.f32.mrf.mxu0
      %v719 = vadd.f32 %v390, %v718
      %v720 = vpop.f32.mrf.mxu0
      %v721 = vadd.f32 %v395, %v720
      %722 = vmatmul.bf16.gmra.mxu0 %v543
      %v723 = vpop.f32.mrf.mxu0
      %v724 = vadd.f32 %v400, %v723
      %v725 = vpop.f32.mrf.mxu0
      %v726 = vadd.f32 %v405, %v725
      %727 = vmatmul.bf16.gmra.mxu0 %v546
      %v728 = vpop.f32.mrf.mxu0
      %v729 = vadd.f32 %v410, %v728
      %v730 = vpop.f32.mrf.mxu0
      %v731 = vadd.f32 %v415, %v730
      %732 = vmatmul.bf16.gmra.mxu0 %v549
      %v733 = vpop.f32.mrf.mxu0
      %v734 = vadd.f32 %v420, %v733
      %v735 = vpop.f32.mrf.mxu0
      %v736 = vadd.f32 %v425, %v735
      %737 = vmatmul.bf16.gmra.mxu0 %v552
      %v738 = vpop.f32.mrf.mxu0
      %v739 = vadd.f32 %v430, %v738
      %v740 = vpop.f32.mrf.mxu0
      %v741 = vadd.f32 %v435, %v740
      %742 = vmatmul.bf16.gmra.mxu0 %v555
      %v743 = vpop.f32.mrf.mxu0
      %v744 = vadd.f32 %v440, %v743
      %v745 = vpop.f32.mrf.mxu0
      %v746 = vadd.f32 %v445, %v745
      %747 = vmatmul.bf16.gmra.mxu0 %v558
      %v748 = vpop.f32.mrf.mxu0
      %v749 = vadd.f32 %v450, %v748
      %v750 = vpop.f32.mrf.mxu0
      %v751 = vadd.f32 %v455, %v750
      %752 = vdwg.mxu0
      %753 = vmatpush.bf16.msra.mxu0 %v660
      %754 = vmatpush.bf16.msra.mxu0 %v659
      %755 = vmatpush.bf16.msra.mxu0 %v658
      %756 = vmatpush.bf16.msra.mxu0 %v657
      %757 = vmatpush.bf16.msra.mxu0 %v656
      %758 = vmatpush.bf16.msra.mxu0 %v655
      %759 = vmatpush.bf16.msra.mxu0 %v654
      %760 = vmatpush.bf16.msra.mxu0 %v653
      %761 = vmatmul.bf16.gmra.mxu0 %v538
      %v762 = vpop.f32.mrf.mxu0
      %v763 = vadd.f32 %v714, %v762
      %v764 = vpop.f32.mrf.mxu0
      %v765 = vadd.f32 %v716, %v764
      %766 = vmatmul.bf16.gmra.mxu0 %v541
      %v767 = vpop.f32.mrf.mxu0
      %v768 = vadd.f32 %v719, %v767
      %v769 = vpop.f32.mrf.mxu0
      %v770 = vadd.f32 %v721, %v769
      %771 = vmatmul.bf16.gmra.mxu0 %v544
      %v772 = vpop.f32.mrf.mxu0
      %v773 = vadd.f32 %v724, %v772
      %v774 = vpop.f32.mrf.mxu0
      %v775 = vadd.f32 %v726, %v774
      %776 = vmatmul.bf16.gmra.mxu0 %v547
      %v777 = vpop.f32.mrf.mxu0
      %v778 = vadd.f32 %v729, %v777
      %v779 = vpop.f32.mrf.mxu0
      %v780 = vadd.f32 %v731, %v779
      %781 = vmatmul.bf16.gmra.mxu0 %v550
      %v782 = vpop.f32.mrf.mxu0
      %v783 = vadd.f32 %v734, %v782
      %v784 = vpop.f32.mrf.mxu0
      %v785 = vadd.f32 %v736, %v784
      %786 = vmatmul.bf16.gmra.mxu0 %v553
      %v787 = vpop.f32.mrf.mxu0
      %v788 = vadd.f32 %v739, %v787
      %v789 = vpop.f32.mrf.mxu0
      %v790 = vadd.f32 %v741, %v789
      %791 = vmatmul.bf16.gmra.mxu0 %v556
      %v792 = vpop.f32.mrf.mxu0
      %v793 = vadd.f32 %v744, %v792
      %v794 = vpop.f32.mrf.mxu0
      %v795 = vadd.f32 %v746, %v794
      %796 = vmatmul.bf16.gmra.mxu0 %v559
      %v797 = vpop.f32.mrf.mxu0
      %v798 = vadd.f32 %v749, %v797
      %v799 = vpop.f32.mrf.mxu0
      %v800 = vadd.f32 %v751, %v799
      %801 = vdwg.mxu0
      %802 = vmatpush.bf16.msra.mxu0 0
      %803 = vmatpush.bf16.msra.mxu0 0
      %804 = vmatpush.bf16.msra.mxu0 0
      %805 = vmatpush.bf16.msra.mxu0 0
      %806 = vmatpush.bf16.msra.mxu0 0
      %807 = vmatpush.bf16.msra.mxu0 0
      %808 = vmatpush.bf16.msra.mxu0 0
      %809 = vmatpush.bf16.msra.mxu0 %v661
      %810 = vmatmul.bf16.gmra.mxu0 %v681
      %v811 = vpop.f32.mrf.mxu0
      %v812 = vadd.f32 %v763, %v811
      %v813 = vpop.f32.mrf.mxu0
      %v814 = vadd.f32 %v765, %v813
      %815 = vmatmul.bf16.gmra.mxu0 %v684
      %v816 = vpop.f32.mrf.mxu0
      %v817 = vadd.f32 %v768, %v816
      %v818 = vpop.f32.mrf.mxu0
      %v819 = vadd.f32 %v770, %v818
      %820 = vmatmul.bf16.gmra.mxu0 %v687
      %v821 = vpop.f32.mrf.mxu0
      %v822 = vadd.f32 %v773, %v821
      %v823 = vpop.f32.mrf.mxu0
      %v824 = vadd.f32 %v775, %v823
      %825 = vmatmul.bf16.gmra.mxu0 %v690
      %v826 = vpop.f32.mrf.mxu0
      %v827 = vadd.f32 %v778, %v826
      %v828 = vpop.f32.mrf.mxu0
      %v829 = vadd.f32 %v780, %v828
      %830 = vmatmul.bf16.gmra.mxu0 %v693
      %v831 = vpop.f32.mrf.mxu0
      %v832 = vadd.f32 %v783, %v831
      %v833 = vpop.f32.mrf.mxu0
      %v834 = vadd.f32 %v785, %v833
      %835 = vmatmul.bf16.gmra.mxu0 %v696
      %v836 = vpop.f32.mrf.mxu0
      %v837 = vadd.f32 %v788, %v836
      %v838 = vpop.f32.mrf.mxu0
      %v839 = vadd.f32 %v790, %v838
      %840 = vmatmul.bf16.gmra.mxu0 %v699
      %v841 = vpop.f32.mrf.mxu0
      %v842 = vadd.f32 %v793, %v841
      %v843 = vpop.f32.mrf.mxu0
      %v844 = vadd.f32 %v795, %v843
      %845 = vmatmul.bf16.gmra.mxu0 %v702
      %v846 = vpop.f32.mrf.mxu0
      %v847 = vadd.f32 %v798, %v846
      %v848 = vpop.f32.mrf.mxu0
      %v849 = vadd.f32 %v800, %v848
      %850 = vdwg.mxu0
      %v851 = vmax.f32 %v812, 0.0
      %v852 = vmax.f32 %v814, 0.0
      %v853 = vmax.f32 %v817, 0.0
      %v854 = vmax.f32 %v819, 0.0
      %v855 = vmax.f32 %v822, 0.0
      %v856 = vmax.f32 %v824, 0.0
      %v857 = vmax.f32 %v827, 0.0
      %v858 = vmax.f32 %v829, 0.0
      %v859 = vmax.f32 %v832, 0.0
      %v860 = vmax.f32 %v834, 0.0
      %v861 = vmax.f32 %v837, 0.0
      %v862 = vmax.f32 %v839, 0.0
      %v863 = vmax.f32 %v842, 0.0
      %v864 = vmax.f32 %v844, 0.0
      %v865 = vmax.f32 %v847, 0.0
      %v866 = vmax.f32 %v849, 0.0
      %v867 = vpack.c.bf16 %v852, %v851
      %v868 = vpack.c.bf16 %v854, %v853
      %v869 = vpack.c.bf16 %v856, %v855
      %v870 = vpack.c.bf16 %v858, %v857
      %v871 = vpack.c.bf16 %v860, %v859
      %v872 = vpack.c.bf16 %v862, %v861
      %v873 = vpack.c.bf16 %v864, %v863
      %v874 = vpack.c.bf16 %v866, %v865
      %v875 = vld [vmem:[%s2] sm:$0xf]
      %v876 = vld [vmem:[%s2 + $0x4] sm:$0xf]
      %v877 = vld [vmem:[%s2 + $0x8] sm:$0xf]
      %v878 = vld [vmem:[%s2 + $0xc] sm:$0xf]
      %v879 = vld [vmem:[%s2 + $0x10] sm:$0xf]
      %v880 = vld [vmem:[%s2 + $0x14] sm:$0xf]
      %v881 = vld [vmem:[%s2 + $0x18] sm:$0xf]
      %v882 = vld [vmem:[%s2 + $0x1c] sm:$0xf]
      %v883 = vld [vmem:[%s2 + $0x20] sm:$0xf]
      %v884 = vld [vmem:[%s2 + $0x24] sm:$0xf]
      %v885 = vld [vmem:[%s2 + $0x28] sm:$0xf]
      %v886 = vld [vmem:[%s2 + $0x2c] sm:$0xf]
      %v887 = vld [vmem:[%s2 + $0x30] sm:$0xf]
      %v888 = vld [vmem:[%s2 + $0x34] sm:$0xf]
      %v889 = vld [vmem:[%s2 + $0x38] sm:$0xf]
      %v890 = vld [vmem:[%s2 + $0x3c] sm:$0xf]
      %892 = vset.pattern.permute.xlu0 0
      %893 = vperm.xlu0 %892, %v263
      %v894 = vpop.permute.xlu0 %893
      %897 = vset.pattern.permute.xlu0 0
      %898 = vperm.xlu0 %897, %v264
      %v899 = vpop.permute.xlu0 %898
      %902 = vset.pattern.permute.xlu0 0
      %903 = vperm.xlu0 %902, %v265
      %v904 = vpop.permute.xlu0 %903
      %907 = vset.pattern.permute.xlu0 0
      %908 = vperm.xlu0 %907, %v266
      %v909 = vpop.permute.xlu0 %908
      %912 = vset.pattern.permute.xlu0 0
      %913 = vperm.xlu0 %912, %v267
      %v914 = vpop.permute.xlu0 %913
      %917 = vset.pattern.permute.xlu0 0
      %918 = vperm.xlu0 %917, %v268
      %v919 = vpop.permute.xlu0 %918
      %922 = vset.pattern.permute.xlu0 0
      %923 = vperm.xlu0 %922, %v269
      %v924 = vpop.permute.xlu0 %923
      %927 = vset.pattern.permute.xlu0 0
      %928 = vperm.xlu0 %927, %v270
      %v929 = vpop.permute.xlu0 %928
      %932 = vset.pattern.permute.xlu0 0
      %933 = vperm.xlu0 %932, %v271
      %v934 = vpop.permute.xlu0 %933
      %937 = vset.pattern.permute.xlu0 0
      %938 = vperm.xlu0 %937, %v272
      %v939 = vpop.permute.xlu0 %938
      %942 = vset.pattern.permute.xlu0 0
      %943 = vperm.xlu0 %942, %v273
      %v944 = vpop.permute.xlu0 %943
      %947 = vset.pattern.permute.xlu0 0
      %948 = vperm.xlu0 %947, %v274
      %v949 = vpop.permute.xlu0 %948
      %952 = vset.pattern.permute.xlu0 0
      %953 = vperm.xlu0 %952, %v275
      %v954 = vpop.permute.xlu0 %953
      %957 = vset.pattern.permute.xlu0 0
      %958 = vperm.xlu0 %957, %v276
      %v959 = vpop.permute.xlu0 %958
      %962 = vset.pattern.permute.xlu0 0
      %963 = vperm.xlu0 %962, %v277
      %v964 = vpop.permute.xlu0 %963
      %967 = vset.pattern.permute.xlu0 0
      %968 = vperm.xlu0 %967, %v278
      %v969 = vpop.permute.xlu0 %968
      %v987 = vunpack.c.l.b16 %v875
      %v988 = vunpack.c.l.b16 %v876
      %v989 = vunpack.c.l.b16 %v877
      %v990 = vunpack.c.l.b16 %v878
      %v991 = vunpack.c.l.b16 %v879
      %v992 = vunpack.c.l.b16 %v880
      %v993 = vunpack.c.l.b16 %v881
      %v994 = vunpack.c.l.b16 %v882
      %v995 = vunpack.c.l.b16 %v883
      %v996 = vunpack.c.l.b16 %v884
      %v997 = vunpack.c.l.b16 %v885
      %v998 = vunpack.c.l.b16 %v886
      %v999 = vunpack.c.l.b16 %v887
      %v1000 = vunpack.c.l.b16 %v888
      %v1001 = vunpack.c.l.b16 %v889
      %v1002 = vunpack.c.l.b16 %v890
      %v1003 = vpack.c.b16 %v988, %v987
      %v1004 = vpack.c.b16 %v990, %v989
      %v1005 = vpack.c.b16 %v992, %v991
      %v1006 = vpack.c.b16 %v994, %v993
      %v1007 = vpack.c.b16 %v996, %v995
      %v1008 = vpack.c.b16 %v998, %v997
      %v1009 = vpack.c.b16 %v1000, %v999
      %v1010 = vpack.c.b16 %v1002, %v1001
      %1019 = vmatpush.bf16.msra.mxu0 %v874
      %1020 = vmatpush.bf16.msra.mxu0 %v873
      %1021 = vmatpush.bf16.msra.mxu0 %v872
      %1022 = vmatpush.bf16.msra.mxu0 %v871
      %1023 = vmatpush.bf16.msra.mxu0 %v870
      %1024 = vmatpush.bf16.msra.mxu0 %v869
      %1025 = vmatpush.bf16.msra.mxu0 %v868
      %1026 = vmatpush.bf16.msra.mxu0 %v867
      %1027 = vmatmul.bf16.gmra.mxu0 %v1003
      %v1028 = vpop.f32.mrf.mxu0
      %v1029 = vadd.f32 %v894, %v1028
      %v1030 = vpop.f32.mrf.mxu0
      %v1031 = vadd.f32 %v899, %v1030
      %1032 = vmatmul.bf16.gmra.mxu0 %v1004
      %v1033 = vpop.f32.mrf.mxu0
      %v1034 = vadd.f32 %v904, %v1033
      %v1035 = vpop.f32.mrf.mxu0
      %v1036 = vadd.f32 %v909, %v1035
      %1037 = vmatmul.bf16.gmra.mxu0 %v1005
      %v1038 = vpop.f32.mrf.mxu0
      %v1039 = vadd.f32 %v914, %v1038
      %v1040 = vpop.f32.mrf.mxu0
      %v1041 = vadd.f32 %v919, %v1040
      %1042 = vmatmul.bf16.gmra.mxu0 %v1006
      %v1043 = vpop.f32.mrf.mxu0
      %v1044 = vadd.f32 %v924, %v1043
      %v1045 = vpop.f32.mrf.mxu0
      %v1046 = vadd.f32 %v929, %v1045
      %1047 = vmatmul.bf16.gmra.mxu0 %v1007
      %v1048 = vpop.f32.mrf.mxu0
      %v1049 = vadd.f32 %v934, %v1048
      %v1050 = vpop.f32.mrf.mxu0
      %v1051 = vadd.f32 %v939, %v1050
      %1052 = vmatmul.bf16.gmra.mxu0 %v1008
      %v1053 = vpop.f32.mrf.mxu0
      %v1054 = vadd.f32 %v944, %v1053
      %v1055 = vpop.f32.mrf.mxu0
      %v1056 = vadd.f32 %v949, %v1055
      %1057 = vmatmul.bf16.gmra.mxu0 %v1009
      %v1058 = vpop.f32.mrf.mxu0
      %v1059 = vadd.f32 %v954, %v1058
      %v1060 = vpop.f32.mrf.mxu0
      %v1061 = vadd.f32 %v959, %v1060
      %1062 = vmatmul.bf16.gmra.mxu0 %v1010
      %v1063 = vpop.f32.mrf.mxu0
      %v1064 = vadd.f32 %v964, %v1063
      %v1065 = vpop.f32.mrf.mxu0
      %v1066 = vadd.f32 %v969, %v1065
      %1067 = vdwg.mxu0
      %v1068 = vmax.f32 %v1029, 0.0
      %v1069 = vmax.f32 %v1031, 0.0
      %v1070 = vmax.f32 %v1034, 0.0
      %v1071 = vmax.f32 %v1036, 0.0
      %v1072 = vmax.f32 %v1039, 0.0
      %v1073 = vmax.f32 %v1041, 0.0
      %v1074 = vmax.f32 %v1044, 0.0
      %v1075 = vmax.f32 %v1046, 0.0
      %v1076 = vmax.f32 %v1049, 0.0
      %v1077 = vmax.f32 %v1051, 0.0
      %v1078 = vmax.f32 %v1054, 0.0
      %v1079 = vmax.f32 %v1056, 0.0
      %v1080 = vmax.f32 %v1059, 0.0
      %v1081 = vmax.f32 %v1061, 0.0
      %v1082 = vmax.f32 %v1064, 0.0
      %v1083 = vmax.f32 %v1066, 0.0
      %v1084 = vpack.c.bf16 %v1069, %v1068
      %v1085 = vpack.c.bf16 %v1071, %v1070
      %v1086 = vpack.c.bf16 %v1073, %v1072
      %v1087 = vpack.c.bf16 %v1075, %v1074
      %v1088 = vpack.c.bf16 %v1077, %v1076
      %v1089 = vpack.c.bf16 %v1079, %v1078
      %v1090 = vpack.c.bf16 %v1081, %v1080
      %v1091 = vpack.c.bf16 %v1083, %v1082
      %v1092 = vld [vmem:[%s3] sm:$0xf]
      %v1093 = vld [vmem:[%s3 + $0x4] sm:$0xf]
      %v1094 = vld [vmem:[%s3 + $0x8] sm:$0xf]
      %v1095 = vld [vmem:[%s3 + $0xc] sm:$0xf]
      %v1096 = vld [vmem:[%s3 + $0x10] sm:$0xf]
      %v1097 = vld [vmem:[%s3 + $0x14] sm:$0xf]
      %v1098 = vld [vmem:[%s3 + $0x18] sm:$0xf]
      %v1099 = vld [vmem:[%s3 + $0x1c] sm:$0xf]
      %v1100 = vld [vmem:[%s3 + $0x20] sm:$0xf]
      %v1101 = vld [vmem:[%s3 + $0x24] sm:$0xf]
      %v1102 = vld [vmem:[%s3 + $0x28] sm:$0xf]
      %v1103 = vld [vmem:[%s3 + $0x2c] sm:$0xf]
      %v1104 = vld [vmem:[%s3 + $0x30] sm:$0xf]
      %v1105 = vld [vmem:[%s3 + $0x34] sm:$0xf]
      %v1106 = vld [vmem:[%s3 + $0x38] sm:$0xf]
      %v1107 = vld [vmem:[%s3 + $0x3c] sm:$0xf]
      %v1108 = vld [vmem:[%s3 + $0x40] sm:$0xf]
      %v1109 = vld [vmem:[%s3 + $0x44] sm:$0xf]
      %v1110 = vld [vmem:[%s3 + $0x48] sm:$0xf]
      %v1111 = vld [vmem:[%s3 + $0x4c] sm:$0xf]
      %v1112 = vld [vmem:[%s3 + $0x50] sm:$0xf]
      %v1113 = vld [vmem:[%s3 + $0x54] sm:$0xf]
      %v1114 = vld [vmem:[%s3 + $0x58] sm:$0xf]
      %v1115 = vld [vmem:[%s3 + $0x5c] sm:$0xf]
      %v1116 = vld [vmem:[%s3 + $0x60] sm:$0xf]
      %v1117 = vld [vmem:[%s3 + $0x64] sm:$0xf]
      %v1118 = vld [vmem:[%s3 + $0x68] sm:$0xf]
      %v1119 = vld [vmem:[%s3 + $0x6c] sm:$0xf]
      %v1120 = vld [vmem:[%s3 + $0x70] sm:$0xf]
      %v1121 = vld [vmem:[%s3 + $0x74] sm:$0xf]
      %v1122 = vld [vmem:[%s3 + $0x78] sm:$0xf]
      %v1123 = vld [vmem:[%s3 + $0x7c] sm:$0xf]
      %1125 = vset.pattern.permute.xlu0 0
      %1126 = vperm.xlu0 %1125, %v279
      %v1127 = vpop.permute.xlu0 %1126
      %1130 = vset.pattern.permute.xlu0 0
      %1131 = vperm.xlu0 %1130, %v280
      %v1132 = vpop.permute.xlu0 %1131
      %1135 = vset.pattern.permute.xlu0 0
      %1136 = vperm.xlu0 %1135, %v281
      %v1137 = vpop.permute.xlu0 %1136
      %1140 = vset.pattern.permute.xlu0 0
      %1141 = vperm.xlu0 %1140, %v282
      %v1142 = vpop.permute.xlu0 %1141
      %1145 = vset.pattern.permute.xlu0 0
      %1146 = vperm.xlu0 %1145, %v283
      %v1147 = vpop.permute.xlu0 %1146
      %1150 = vset.pattern.permute.xlu0 0
      %1151 = vperm.xlu0 %1150, %v284
      %v1152 = vpop.permute.xlu0 %1151
      %1155 = vset.pattern.permute.xlu0 0
      %1156 = vperm.xlu0 %1155, %v285
      %v1157 = vpop.permute.xlu0 %1156
      %1160 = vset.pattern.permute.xlu0 0
      %1161 = vperm.xlu0 %1160, %v286
      %v1162 = vpop.permute.xlu0 %1161
      %1165 = vset.pattern.permute.xlu0 0
      %1166 = vperm.xlu0 %1165, %v287
      %v1167 = vpop.permute.xlu0 %1166
      %1170 = vset.pattern.permute.xlu0 0
      %1171 = vperm.xlu0 %1170, %v288
      %v1172 = vpop.permute.xlu0 %1171
      %1175 = vset.pattern.permute.xlu0 0
      %1176 = vperm.xlu0 %1175, %v289
      %v1177 = vpop.permute.xlu0 %1176
      %1180 = vset.pattern.permute.xlu0 0
      %1181 = vperm.xlu0 %1180, %v290
      %v1182 = vpop.permute.xlu0 %1181
      %1185 = vset.pattern.permute.xlu0 0
      %1186 = vperm.xlu0 %1185, %v291
      %v1187 = vpop.permute.xlu0 %1186
      %1190 = vset.pattern.permute.xlu0 0
      %1191 = vperm.xlu0 %1190, %v292
      %v1192 = vpop.permute.xlu0 %1191
      %1195 = vset.pattern.permute.xlu0 0
      %1196 = vperm.xlu0 %1195, %v293
      %v1197 = vpop.permute.xlu0 %1196
      %1200 = vset.pattern.permute.xlu0 0
      %1201 = vperm.xlu0 %1200, %v294
      %v1202 = vpop.permute.xlu0 %1201
      %1205 = vset.pattern.permute.xlu0 0
      %1206 = vperm.xlu0 %1205, %v295
      %v1207 = vpop.permute.xlu0 %1206
      %1210 = vset.pattern.permute.xlu0 0
      %1211 = vperm.xlu0 %1210, %v296
      %v1212 = vpop.permute.xlu0 %1211
      %1215 = vset.pattern.permute.xlu0 0
      %1216 = vperm.xlu0 %1215, %v297
      %v1217 = vpop.permute.xlu0 %1216
      %1220 = vset.pattern.permute.xlu0 0
      %1221 = vperm.xlu0 %1220, %v298
      %v1222 = vpop.permute.xlu0 %1221
      %1225 = vset.pattern.permute.xlu0 0
      %1226 = vperm.xlu0 %1225, %v299
      %v1227 = vpop.permute.xlu0 %1226
      %1230 = vset.pattern.permute.xlu0 0
      %1231 = vperm.xlu0 %1230, %v300
      %v1232 = vpop.permute.xlu0 %1231
      %1235 = vset.pattern.permute.xlu0 0
      %1236 = vperm.xlu0 %1235, %v301
      %v1237 = vpop.permute.xlu0 %1236
      %1240 = vset.pattern.permute.xlu0 0
      %1241 = vperm.xlu0 %1240, %v302
      %v1242 = vpop.permute.xlu0 %1241
      %1245 = vset.pattern.permute.xlu0 0
      %1246 = vperm.xlu0 %1245, %v303
      %v1247 = vpop.permute.xlu0 %1246
      %1250 = vset.pattern.permute.xlu0 0
      %1251 = vperm.xlu0 %1250, %v304
      %v1252 = vpop.permute.xlu0 %1251
      %1255 = vset.pattern.permute.xlu0 0
      %1256 = vperm.xlu0 %1255, %v305
      %v1257 = vpop.permute.xlu0 %1256
      %1260 = vset.pattern.permute.xlu0 0
      %1261 = vperm.xlu0 %1260, %v306
      %v1262 = vpop.permute.xlu0 %1261
      %1265 = vset.pattern.permute.xlu0 0
      %1266 = vperm.xlu0 %1265, %v307
      %v1267 = vpop.permute.xlu0 %1266
      %1270 = vset.pattern.permute.xlu0 0
      %1271 = vperm.xlu0 %1270, %v308
      %v1272 = vpop.permute.xlu0 %1271
      %1275 = vset.pattern.permute.xlu0 0
      %1276 = vperm.xlu0 %1275, %v309
      %v1277 = vpop.permute.xlu0 %1276
      %1280 = vset.pattern.permute.xlu0 0
      %1281 = vperm.xlu0 %1280, %v310
      %v1282 = vpop.permute.xlu0 %1281
      %v1316 = vunpack.c.l.b16 %v1092
      %v1317 = vunpack.c.l.b16 %v1093
      %v1318 = vunpack.c.l.b16 %v1094
      %v1319 = vunpack.c.l.b16 %v1095
      %v1320 = vunpack.c.l.b16 %v1096
      %v1321 = vunpack.c.l.b16 %v1097
      %v1322 = vunpack.c.l.b16 %v1098
      %v1323 = vunpack.c.l.b16 %v1099
      %v1324 = vunpack.c.l.b16 %v1100
      %v1325 = vunpack.c.l.b16 %v1101
      %v1326 = vunpack.c.l.b16 %v1102
      %v1327 = vunpack.c.l.b16 %v1103
      %v1328 = vunpack.c.l.b16 %v1104
      %v1329 = vunpack.c.l.b16 %v1105
      %v1330 = vunpack.c.l.b16 %v1106
      %v1331 = vunpack.c.l.b16 %v1107
      %v1332 = vunpack.c.l.b16 %v1108
      %v1333 = vunpack.c.l.b16 %v1109
      %v1334 = vunpack.c.l.b16 %v1110
      %v1335 = vunpack.c.l.b16 %v1111
      %v1336 = vunpack.c.l.b16 %v1112
      %v1337 = vunpack.c.l.b16 %v1113
      %v1338 = vunpack.c.l.b16 %v1114
      %v1339 = vunpack.c.l.b16 %v1115
      %v1340 = vunpack.c.l.b16 %v1116
      %v1341 = vunpack.c.l.b16 %v1117
      %v1342 = vunpack.c.l.b16 %v1118
      %v1343 = vunpack.c.l.b16 %v1119
      %v1344 = vunpack.c.l.b16 %v1120
      %v1345 = vunpack.c.l.b16 %v1121
      %v1346 = vunpack.c.l.b16 %v1122
      %v1347 = vunpack.c.l.b16 %v1123
      %v1348 = vpack.c.b16 %v1317, %v1316
      %v1349 = vpack.c.b16 %v1319, %v1318
      %v1350 = vpack.c.b16 %v1321, %v1320
      %v1351 = vpack.c.b16 %v1323, %v1322
      %v1352 = vpack.c.b16 %v1325, %v1324
      %v1353 = vpack.c.b16 %v1327, %v1326
      %v1354 = vpack.c.b16 %v1329, %v1328
      %v1355 = vpack.c.b16 %v1331, %v1330
      %v1356 = vpack.c.b16 %v1333, %v1332
      %v1357 = vpack.c.b16 %v1335, %v1334
      %v1358 = vpack.c.b16 %v1337, %v1336
      %v1359 = vpack.c.b16 %v1339, %v1338
      %v1360 = vpack.c.b16 %v1341, %v1340
      %v1361 = vpack.c.b16 %v1343, %v1342
      %v1362 = vpack.c.b16 %v1345, %v1344
      %v1363 = vpack.c.b16 %v1347, %v1346
      %1380 = vmatpush.bf16.msra.mxu0 %v1091
      %1381 = vmatpush.bf16.msra.mxu0 %v1090
      %1382 = vmatpush.bf16.msra.mxu0 %v1089
      %1383 = vmatpush.bf16.msra.mxu0 %v1088
      %1384 = vmatpush.bf16.msra.mxu0 %v1087
      %1385 = vmatpush.bf16.msra.mxu0 %v1086
      %1386 = vmatpush.bf16.msra.mxu0 %v1085
      %1387 = vmatpush.bf16.msra.mxu0 %v1084
      %1388 = vmatmul.bf16.gmra.mxu0 %v1348
      %v1389 = vpop.f32.mrf.mxu0
      %v1390 = vadd.f32 %v1127, %v1389
      %v1391 = vpop.f32.mrf.mxu0
      %v1392 = vadd.f32 %v1132, %v1391
      %1393 = vmatmul.bf16.gmra.mxu0 %v1349
      %v1394 = vpop.f32.mrf.mxu0
      %v1395 = vadd.f32 %v1137, %v1394
      %v1396 = vpop.f32.mrf.mxu0
      %v1397 = vadd.f32 %v1142, %v1396
      %1398 = vmatmul.bf16.gmra.mxu0 %v1350
      %v1399 = vpop.f32.mrf.mxu0
      %v1400 = vadd.f32 %v1147, %v1399
      %v1401 = vpop.f32.mrf.mxu0
      %v1402 = vadd.f32 %v1152, %v1401
      %1403 = vmatmul.bf16.gmra.mxu0 %v1351
      %v1404 = vpop.f32.mrf.mxu0
      %v1405 = vadd.f32 %v1157, %v1404
      %v1406 = vpop.f32.mrf.mxu0
      %v1407 = vadd.f32 %v1162, %v1406
      %1408 = vmatmul.bf16.gmra.mxu0 %v1352
      %v1409 = vpop.f32.mrf.mxu0
      %v1410 = vadd.f32 %v1167, %v1409
      %v1411 = vpop.f32.mrf.mxu0
      %v1412 = vadd.f32 %v1172, %v1411
      %1413 = vmatmul.bf16.gmra.mxu0 %v1353
      %v1414 = vpop.f32.mrf.mxu0
      %v1415 = vadd.f32 %v1177, %v1414
      %v1416 = vpop.f32.mrf.mxu0
      %v1417 = vadd.f32 %v1182, %v1416
      %1418 = vmatmul.bf16.gmra.mxu0 %v1354
      %v1419 = vpop.f32.mrf.mxu0
      %v1420 = vadd.f32 %v1187, %v1419
      %v1421 = vpop.f32.mrf.mxu0
      %v1422 = vadd.f32 %v1192, %v1421
      %1423 = vmatmul.bf16.gmra.mxu0 %v1355
      %v1424 = vpop.f32.mrf.mxu0
      %v1425 = vadd.f32 %v1197, %v1424
      %v1426 = vpop.f32.mrf.mxu0
      %v1427 = vadd.f32 %v1202, %v1426
      %1428 = vmatmul.bf16.gmra.mxu0 %v1356
      %v1429 = vpop.f32.mrf.mxu0
      %v1430 = vadd.f32 %v1207, %v1429
      %v1431 = vpop.f32.mrf.mxu0
      %v1432 = vadd.f32 %v1212, %v1431
      %1433 = vmatmul.bf16.gmra.mxu0 %v1357
      %v1434 = vpop.f32.mrf.mxu0
      %v1435 = vadd.f32 %v1217, %v1434
      %v1436 = vpop.f32.mrf.mxu0
      %v1437 = vadd.f32 %v1222, %v1436
      %1438 = vmatmul.bf16.gmra.mxu0 %v1358
      %v1439 = vpop.f32.mrf.mxu0
      %v1440 = vadd.f32 %v1227, %v1439
      %v1441 = vpop.f32.mrf.mxu0
      %v1442 = vadd.f32 %v1232, %v1441
      %1443 = vmatmul.bf16.gmra.mxu0 %v1359
      %v1444 = vpop.f32.mrf.mxu0
      %v1445 = vadd.f32 %v1237, %v1444
      %v1446 = vpop.f32.mrf.mxu0
      %v1447 = vadd.f32 %v1242, %v1446
      %1448 = vmatmul.bf16.gmra.mxu0 %v1360
      %v1449 = vpop.f32.mrf.mxu0
      %v1450 = vadd.f32 %v1247, %v1449
      %v1451 = vpop.f32.mrf.mxu0
      %v1452 = vadd.f32 %v1252, %v1451
      %1453 = vmatmul.bf16.gmra.mxu0 %v1361
      %v1454 = vpop.f32.mrf.mxu0
      %v1455 = vadd.f32 %v1257, %v1454
      %v1456 = vpop.f32.mrf.mxu0
      %v1457 = vadd.f32 %v1262, %v1456
      %1458 = vmatmul.bf16.gmra.mxu0 %v1362
      %v1459 = vpop.f32.mrf.mxu0
      %v1460 = vadd.f32 %v1267, %v1459
      %v1461 = vpop.f32.mrf.mxu0
      %v1462 = vadd.f32 %v1272, %v1461
      %1463 = vmatmul.bf16.gmra.mxu0 %v1363
      %v1464 = vpop.f32.mrf.mxu0
      %v1465 = vadd.f32 %v1277, %v1464
      %v1466 = vpop.f32.mrf.mxu0
      %v1467 = vadd.f32 %v1282, %v1466
      %1468 = vdwg.mxu0
      %v1469 = vmax.f32 %v1390, 0.0
      %v1470 = vmax.f32 %v1392, 0.0
      %v1471 = vmax.f32 %v1395, 0.0
      %v1472 = vmax.f32 %v1397, 0.0
      %v1473 = vmax.f32 %v1400, 0.0
      %v1474 = vmax.f32 %v1402, 0.0
      %v1475 = vmax.f32 %v1405, 0.0
      %v1476 = vmax.f32 %v1407, 0.0
      %v1477 = vmax.f32 %v1410, 0.0
      %v1478 = vmax.f32 %v1412, 0.0
      %v1479 = vmax.f32 %v1415, 0.0
      %v1480 = vmax.f32 %v1417, 0.0
      %v1481 = vmax.f32 %v1420, 0.0
      %v1482 = vmax.f32 %v1422, 0.0
      %v1483 = vmax.f32 %v1425, 0.0
      %v1484 = vmax.f32 %v1427, 0.0
      %v1485 = vmax.f32 %v1430, 0.0
      %v1486 = vmax.f32 %v1432, 0.0
      %v1487 = vmax.f32 %v1435, 0.0
      %v1488 = vmax.f32 %v1437, 0.0
      %v1489 = vmax.f32 %v1440, 0.0
      %v1490 = vmax.f32 %v1442, 0.0
      %v1491 = vmax.f32 %v1445, 0.0
      %v1492 = vmax.f32 %v1447, 0.0
      %v1493 = vmax.f32 %v1450, 0.0
      %v1494 = vmax.f32 %v1452, 0.0
      %v1495 = vmax.f32 %v1455, 0.0
      %v1496 = vmax.f32 %v1457, 0.0
      %v1497 = vmax.f32 %v1460, 0.0
      %v1498 = vmax.f32 %v1462, 0.0
      %v1499 = vmax.f32 %v1465, 0.0
      %v1500 = vmax.f32 %v1467, 0.0
      %p1501 = scmp.eq.s32.totalorder %s21, 0
      // Predicated region
      $region41: #{backbone_forward.17} parent=39 // pred_check
        %p1502 = pneg %p1501
      $region42: #{backbone_forward.17} parent=39 // pred_check_branch
        %1504 = sbr.rel (%p1502) target = $region44
      $region43: #{backbone_forward.17} parent=39 // pred_region
        %1505 = vst [vmem:[%s245] sm:$0xff] %v1469
        %1506 = vst [vmem:[%s245 + $0x8] sm:$0xff] %v1470
        %1507 = vst [vmem:[%s245 + $0x10] sm:$0xff] %v1471
        %1508 = vst [vmem:[%s245 + $0x18] sm:$0xff] %v1472
        %1509 = vst [vmem:[%s245 + $0x20] sm:$0xff] %v1473
        %1510 = vst [vmem:[%s245 + $0x28] sm:$0xff] %v1474
        %1511 = vst [vmem:[%s245 + $0x30] sm:$0xff] %v1475
        %1512 = vst [vmem:[%s245 + $0x38] sm:$0xff] %v1476
        %1513 = vst [vmem:[%s245 + $0x40] sm:$0xff] %v1477
        %1514 = vst [vmem:[%s245 + $0x48] sm:$0xff] %v1478
        %1515 = vst [vmem:[%s245 + $0x50] sm:$0xff] %v1479
        %1516 = vst [vmem:[%s245 + $0x58] sm:$0xff] %v1480
        %1517 = vst [vmem:[%s245 + $0x60] sm:$0xff] %v1481
        %1518 = vst [vmem:[%s245 + $0x68] sm:$0xff] %v1482
        %1519 = vst [vmem:[%s245 + $0x70] sm:$0xff] %v1483
        %1520 = vst [vmem:[%s245 + $0x78] sm:$0xff] %v1484
        %1521 = vst [vmem:[%s245 + $0x80] sm:$0xff] %v1485
        %1522 = vst [vmem:[%s245 + $0x88] sm:$0xff] %v1486
        %1523 = vst [vmem:[%s245 + $0x90] sm:$0xff] %v1487
        %1524 = vst [vmem:[%s245 + $0x98] sm:$0xff] %v1488
        %1525 = vst [vmem:[%s245 + $0xa0] sm:$0xff] %v1489
        %1526 = vst [vmem:[%s245 + $0xa8] sm:$0xff] %v1490
        %1527 = vst [vmem:[%s245 + $0xb0] sm:$0xff] %v1491
        %1528 = vst [vmem:[%s245 + $0xb8] sm:$0xff] %v1492
        %1529 = vst [vmem:[%s245 + $0xc0] sm:$0xff] %v1493
        %1530 = vst [vmem:[%s245 + $0xc8] sm:$0xff] %v1494
        %1531 = vst [vmem:[%s245 + $0xd0] sm:$0xff] %v1495
        %1532 = vst [vmem:[%s245 + $0xd8] sm:$0xff] %v1496
        %1533 = vst [vmem:[%s245 + $0xe0] sm:$0xff] %v1497
        %1534 = vst [vmem:[%s245 + $0xe8] sm:$0xff] %v1498
        %1535 = vst [vmem:[%s245 + $0xf0] sm:$0xff] %v1499
        %1536 = vst [vmem:[%s245 + $0xf8] sm:$0xff] %v1500
      $region44: #{backbone_forward.17} parent=39 // pred_fallthru
        _
      %p1537 = scmp.gt.s32.totalorder %s21, 0
      // Predicated region
      $region45: #{backbone_forward.17} parent=39 // pred_check
        %p1538 = pneg %p1537
      $region46: #{backbone_forward.17} parent=39 // pred_check_branch
        %1540 = sbr.rel (%p1538) target = $region48
      $region47: #{backbone_forward.17} parent=39 // pred_region
        %v1541 = vld [vmem:[%s245] sm:$0xff]
        %v1542 = vld [vmem:[%s245 + $0x8] sm:$0xff]
        %v1543 = vld [vmem:[%s245 + $0x10] sm:$0xff]
        %v1544 = vld [vmem:[%s245 + $0x18] sm:$0xff]
        %v1545 = vld [vmem:[%s245 + $0x20] sm:$0xff]
        %v1546 = vld [vmem:[%s245 + $0x28] sm:$0xff]
        %v1547 = vld [vmem:[%s245 + $0x30] sm:$0xff]
        %v1548 = vld [vmem:[%s245 + $0x38] sm:$0xff]
        %v1549 = vld [vmem:[%s245 + $0x40] sm:$0xff]
        %v1550 = vld [vmem:[%s245 + $0x48] sm:$0xff]
        %v1551 = vld [vmem:[%s245 + $0x50] sm:$0xff]
        %v1552 = vld [vmem:[%s245 + $0x58] sm:$0xff]
        %v1553 = vld [vmem:[%s245 + $0x60] sm:$0xff]
        %v1554 = vld [vmem:[%s245 + $0x68] sm:$0xff]
        %v1555 = vld [vmem:[%s245 + $0x70] sm:$0xff]
        %v1556 = vld [vmem:[%s245 + $0x78] sm:$0xff]
        %v1557 = vld [vmem:[%s245 + $0x80] sm:$0xff]
        %v1558 = vld [vmem:[%s245 + $0x88] sm:$0xff]
        %v1559 = vld [vmem:[%s245 + $0x90] sm:$0xff]
        %v1560 = vld [vmem:[%s245 + $0x98] sm:$0xff]
        %v1561 = vld [vmem:[%s245 + $0xa0] sm:$0xff]
        %v1562 = vld [vmem:[%s245 + $0xa8] sm:$0xff]
        %v1563 = vld [vmem:[%s245 + $0xb0] sm:$0xff]
        %v1564 = vld [vmem:[%s245 + $0xb8] sm:$0xff]
        %v1565 = vld [vmem:[%s245 + $0xc0] sm:$0xff]
        %v1566 = vld [vmem:[%s245 + $0xc8] sm:$0xff]
        %v1567 = vld [vmem:[%s245 + $0xd0] sm:$0xff]
        %v1568 = vld [vmem:[%s245 + $0xd8] sm:$0xff]
        %v1569 = vld [vmem:[%s245 + $0xe0] sm:$0xff]
        %v1570 = vld [vmem:[%s245 + $0xe8] sm:$0xff]
        %v1571 = vld [vmem:[%s245 + $0xf0] sm:$0xff]
        %v1572 = vld [vmem:[%s245 + $0xf8] sm:$0xff]
        %v1573 = vmax.f32 %v1541, %v1469
        %v1574 = vmax.f32 %v1542, %v1470
        %v1575 = vmax.f32 %v1543, %v1471
        %v1576 = vmax.f32 %v1544, %v1472
        %v1577 = vmax.f32 %v1545, %v1473
        %v1578 = vmax.f32 %v1546, %v1474
        %v1579 = vmax.f32 %v1547, %v1475
        %v1580 = vmax.f32 %v1548, %v1476
        %v1581 = vmax.f32 %v1549, %v1477
        %v1582 = vmax.f32 %v1550, %v1478
        %v1583 = vmax.f32 %v1551, %v1479
        %v1584 = vmax.f32 %v1552, %v1480
        %v1585 = vmax.f32 %v1553, %v1481
        %v1586 = vmax.f32 %v1554, %v1482
        %v1587 = vmax.f32 %v1555, %v1483
        %v1588 = vmax.f32 %v1556, %v1484
        %v1589 = vmax.f32 %v1557, %v1485
        %v1590 = vmax.f32 %v1558, %v1486
        %v1591 = vmax.f32 %v1559, %v1487
        %v1592 = vmax.f32 %v1560, %v1488
        %v1593 = vmax.f32 %v1561, %v1489
        %v1594 = vmax.f32 %v1562, %v1490
        %v1595 = vmax.f32 %v1563, %v1491
        %v1596 = vmax.f32 %v1564, %v1492
        %v1597 = vmax.f32 %v1565, %v1493
        %v1598 = vmax.f32 %v1566, %v1494
        %v1599 = vmax.f32 %v1567, %v1495
        %v1600 = vmax.f32 %v1568, %v1496
        %v1601 = vmax.f32 %v1569, %v1497
        %v1602 = vmax.f32 %v1570, %v1498
        %v1603 = vmax.f32 %v1571, %v1499
        %v1604 = vmax.f32 %v1572, %v1500
        %1605 = vst [vmem:[%s245] sm:$0xff] %v1573
        %1606 = vst [vmem:[%s245 + $0x8] sm:$0xff] %v1574
        %1607 = vst [vmem:[%s245 + $0x10] sm:$0xff] %v1575
        %1608 = vst [vmem:[%s245 + $0x18] sm:$0xff] %v1576
        %1609 = vst [vmem:[%s245 + $0x20] sm:$0xff] %v1577
        %1610 = vst [vmem:[%s245 + $0x28] sm:$0xff] %v1578
        %1611 = vst [vmem:[%s245 + $0x30] sm:$0xff] %v1579
        %1612 = vst [vmem:[%s245 + $0x38] sm:$0xff] %v1580
        %1613 = vst [vmem:[%s245 + $0x40] sm:$0xff] %v1581
        %1614 = vst [vmem:[%s245 + $0x48] sm:$0xff] %v1582
        %1615 = vst [vmem:[%s245 + $0x50] sm:$0xff] %v1583
        %1616 = vst [vmem:[%s245 + $0x58] sm:$0xff] %v1584
        %1617 = vst [vmem:[%s245 + $0x60] sm:$0xff] %v1585
        %1618 = vst [vmem:[%s245 + $0x68] sm:$0xff] %v1586
        %1619 = vst [vmem:[%s245 + $0x70] sm:$0xff] %v1587
        %1620 = vst [vmem:[%s245 + $0x78] sm:$0xff] %v1588
        %1621 = vst [vmem:[%s245 + $0x80] sm:$0xff] %v1589
        %1622 = vst [vmem:[%s245 + $0x88] sm:$0xff] %v1590
        %1623 = vst [vmem:[%s245 + $0x90] sm:$0xff] %v1591
        %1624 = vst [vmem:[%s245 + $0x98] sm:$0xff] %v1592
        %1625 = vst [vmem:[%s245 + $0xa0] sm:$0xff] %v1593
        %1626 = vst [vmem:[%s245 + $0xa8] sm:$0xff] %v1594
        %1627 = vst [vmem:[%s245 + $0xb0] sm:$0xff] %v1595
        %1628 = vst [vmem:[%s245 + $0xb8] sm:$0xff] %v1596
        %1629 = vst [vmem:[%s245 + $0xc0] sm:$0xff] %v1597
        %1630 = vst [vmem:[%s245 + $0xc8] sm:$0xff] %v1598
        %1631 = vst [vmem:[%s245 + $0xd0] sm:$0xff] %v1599
        %1632 = vst [vmem:[%s245 + $0xd8] sm:$0xff] %v1600
        %1633 = vst [vmem:[%s245 + $0xe0] sm:$0xff] %v1601
        %1634 = vst [vmem:[%s245 + $0xe8] sm:$0xff] %v1602
        %1635 = vst [vmem:[%s245 + $0xf0] sm:$0xff] %v1603
        %1636 = vst [vmem:[%s245 + $0xf8] sm:$0xff] %v1604
      $region48: #{backbone_forward.17} parent=39 // pred_fallthru
        _
      %p1637 = scmp.lt.s32.totalorder %s20, 0
      %s1638 = scalar_select %p1637, %s20, 0
      %s1639 = smul.addr %s1638, 8
      %s1640 = scalar_lea.vmem %s5, %s1639
      // Predicated region
      $region49: #{backbone_forward.17} parent=39 // pred_check
        %p1641 = pneg %p158
      $region50: #{backbone_forward.17} parent=39 // pred_check_branch
        %1643 = sbr.rel (%p1641) target = $region52
      $region51: #{backbone_forward.17} parent=39 // pred_region
        _
      $region52: #{backbone_forward.17} parent=39 // pred_fallthru
        _
      // Predicated region
      $region53: #{backbone_forward.17} parent=39 // pred_check
        %p1644 = pneg %p158
      $region54: #{backbone_forward.17} parent=39 // pred_check_branch
        %1646 = sbr.rel (%p1644) target = $region56
      $region55: #{backbone_forward.17} parent=39 // pred_region
        %p1647 = scmp.lt.s32.totalorder %s20, 0
        %s1648 = scalar_select %p1647, %s20, 0
        %s1649 = smul.addr %s1648, 8
        %s1650 = scalar_lea.vmem %s5, %s1649
      $region56: #{backbone_forward.17} parent=39 // pred_fallthru
        _
    $region40: #{backbone_forward.17} parent=5 // pred_fallthru
      _
    %p1651 = scmp.le.s32.totalorder 2, %s11
    // Predicated region
    $region57: #{backbone_forward.17} parent=5 // pred_check
      %p1652 = pneg %p1651
    $region58: #{backbone_forward.17} parent=5 // pred_check_branch
      %1654 = sbr.rel (%p1652) target = $region60
    $region59: #{backbone_forward.17} parent=5 // pred_region
      %s1655 = ssub.s32 %s11, 2
    $region60: #{backbone_forward.17} parent=5 // pred_fallthru
      _
  $region6: #{backbone_forward.17} parent=0 // loop_footer
    %s15 = sadd.s32 1, %s11
  $region7: #{backbone_forward.17} parent=0 // loop_footer_branch
    %10 = sbr.rel target = $region3
  $region8: #{backbone_forward.17} parent=0 // loop_exit
    _

// kernel: backbone_forward.21
$region0: #{backbone_forward.21}
  #allocation0 [shape = 'u32[]', space=smem, size = 0x4, offset = 0x4, fixed_abs, tag = 'smem constant byte address 0x4 - core index']
  #allocation1 [shape = 'u32[72,128]{1,0:T(1,128)}', space=vmem, size = 0x9000, scoped, tag = 'internal scratch']
  %s0 = inlined_call_operand.vmem [shape: bf16[512,128], index: 0, kind: input, shape index: {}]
  %s1 = inlined_call_operand.vmem [shape: bf16[256,512], index: 1, kind: input, shape index: {}]
  %s2 = inlined_call_operand.vmem [shape: bf16[256,256], index: 2, kind: input, shape index: {}]
  %s3 = inlined_call_operand.vmem [shape: f32[512,1], index: 3, kind: input, shape index: {}]
  %s4 = inlined_call_operand.vmem [shape: f32[256,128], index: 4, kind: output, shape index: {}]
  %s5 = sld [smem:[#allocation0]]
  $region26: #{backbone_forward.21} parent=0
    _
  %s7 = ssub.s32 1, %s5
  %s8 = scalar_select 0, %s7, %s5
  // Predicated region
  $region2: #{backbone_forward.21} parent=0 // pred_check
    _
  $region3: #{backbone_forward.21} parent=0 // pred_check_branch
    %10 = sbr.rel (0) target = $region5
  $region4: #{backbone_forward.21} parent=0 // pred_region
    _
  $region5: #{backbone_forward.21} parent=0 // pred_fallthru
    _
  // Predicated region
  $region6: #{backbone_forward.21} parent=0 // pred_check
    _
  $region7: #{backbone_forward.21} parent=0 // pred_check_branch
    %12 = sbr.rel (0) target = $region9
  $region8: #{backbone_forward.21} parent=0 // pred_region
    _
  $region9: #{backbone_forward.21} parent=0 // pred_fallthru
    _
  // Predicated region
  $region10: #{backbone_forward.21} parent=0 // pred_check
    _
  $region11: #{backbone_forward.21} parent=0 // pred_check_branch
    %14 = sbr.rel (0) target = $region13
  $region12: #{backbone_forward.21} parent=0 // pred_region
    _
  $region13: #{backbone_forward.21} parent=0 // pred_fallthru
    _
  // Predicated region
  $region14: #{backbone_forward.21} parent=0 // pred_check
    _
  $region15: #{backbone_forward.21} parent=0 // pred_check_branch
    %16 = sbr.rel (0) target = $region17
  $region16: #{backbone_forward.21} parent=0 // pred_region
    _
  $region17: #{backbone_forward.21} parent=0 // pred_fallthru
    _
  %v17 = vld [vmem:[%s3] sm:$0xff]
  %v18 = vld [vmem:[%s3 + $0x8] sm:$0xff]
  %v19 = vld [vmem:[%s3 + $0x10] sm:$0xff]
  %v20 = vld [vmem:[%s3 + $0x18] sm:$0xff]
  %v21 = vld [vmem:[%s3 + $0x20] sm:$0xff]
  %v22 = vld [vmem:[%s3 + $0x28] sm:$0xff]
  %v23 = vld [vmem:[%s3 + $0x30] sm:$0xff]
  %v24 = vld [vmem:[%s3 + $0x38] sm:$0xff]
  %v25 = vld [vmem:[%s3 + $0x40] sm:$0xff]
  %v26 = vld [vmem:[%s3 + $0x48] sm:$0xff]
  %v27 = vld [vmem:[%s3 + $0x50] sm:$0xff]
  %v28 = vld [vmem:[%s3 + $0x58] sm:$0xff]
  %v29 = vld [vmem:[%s3 + $0x60] sm:$0xff]
  %v30 = vld [vmem:[%s3 + $0x68] sm:$0xff]
  %v31 = vld [vmem:[%s3 + $0x70] sm:$0xff]
  %v32 = vld [vmem:[%s3 + $0x78] sm:$0xff]
  %v33 = vld [vmem:[%s3 + $0x80] sm:$0xff]
  %v34 = vld [vmem:[%s3 + $0x88] sm:$0xff]
  %v35 = vld [vmem:[%s3 + $0x90] sm:$0xff]
  %v36 = vld [vmem:[%s3 + $0x98] sm:$0xff]
  %v37 = vld [vmem:[%s3 + $0xa0] sm:$0xff]
  %v38 = vld [vmem:[%s3 + $0xa8] sm:$0xff]
  %v39 = vld [vmem:[%s3 + $0xb0] sm:$0xff]
  %v40 = vld [vmem:[%s3 + $0xb8] sm:$0xff]
  %v41 = vld [vmem:[%s3 + $0xc0] sm:$0xff]
  %v42 = vld [vmem:[%s3 + $0xc8] sm:$0xff]
  %v43 = vld [vmem:[%s3 + $0xd0] sm:$0xff]
  %v44 = vld [vmem:[%s3 + $0xd8] sm:$0xff]
  %v45 = vld [vmem:[%s3 + $0xe0] sm:$0xff]
  %v46 = vld [vmem:[%s3 + $0xe8] sm:$0xff]
  %v47 = vld [vmem:[%s3 + $0xf0] sm:$0xff]
  %v48 = vld [vmem:[%s3 + $0xf8] sm:$0xff]
  %v49 = vld [vmem:[%s3 + $0x100] sm:$0xff]
  %v50 = vld [vmem:[%s3 + $0x108] sm:$0xff]
  %v51 = vld [vmem:[%s3 + $0x110] sm:$0xff]
  %v52 = vld [vmem:[%s3 + $0x118] sm:$0xff]
  %v53 = vld [vmem:[%s3 + $0x120] sm:$0xff]
  %v54 = vld [vmem:[%s3 + $0x128] sm:$0xff]
  %v55 = vld [vmem:[%s3 + $0x130] sm:$0xff]
  %v56 = vld [vmem:[%s3 + $0x138] sm:$0xff]
  %v57 = vld [vmem:[%s3 + $0x140] sm:$0xff]
  %v58 = vld [vmem:[%s3 + $0x148] sm:$0xff]
  %v59 = vld [vmem:[%s3 + $0x150] sm:$0xff]
  %v60 = vld [vmem:[%s3 + $0x158] sm:$0xff]
  %v61 = vld [vmem:[%s3 + $0x160] sm:$0xff]
  %v62 = vld [vmem:[%s3 + $0x168] sm:$0xff]
  %v63 = vld [vmem:[%s3 + $0x170] sm:$0xff]
  %v64 = vld [vmem:[%s3 + $0x178] sm:$0xff]
  %v65 = vld [vmem:[%s3 + $0x180] sm:$0xff]
  %v66 = vld [vmem:[%s3 + $0x188] sm:$0xff]
  %v67 = vld [vmem:[%s3 + $0x190] sm:$0xff]
  %v68 = vld [vmem:[%s3 + $0x198] sm:$0xff]
  %v69 = vld [vmem:[%s3 + $0x1a0] sm:$0xff]
  %v70 = vld [vmem:[%s3 + $0x1a8] sm:$0xff]
  %v71 = vld [vmem:[%s3 + $0x1b0] sm:$0xff]
  %v72 = vld [vmem:[%s3 + $0x1b8] sm:$0xff]
  %v73 = vld [vmem:[%s3 + $0x1c0] sm:$0xff]
  %v74 = vld [vmem:[%s3 + $0x1c8] sm:$0xff]
  %v75 = vld [vmem:[%s3 + $0x1d0] sm:$0xff]
  %v76 = vld [vmem:[%s3 + $0x1d8] sm:$0xff]
  %v77 = vld [vmem:[%s3 + $0x1e0] sm:$0xff]
  %v78 = vld [vmem:[%s3 + $0x1e8] sm:$0xff]
  %v79 = vld [vmem:[%s3 + $0x1f0] sm:$0xff]
  %v80 = vld [vmem:[%s3 + $0x1f8] sm:$0xff]
  %v81 = vld [vmem:[%s0] sm:$0xf]
  %v82 = vld [vmem:[%s0 + $0x4] sm:$0xf]
  %v83 = vld [vmem:[%s0 + $0x8] sm:$0xf]
  %v84 = vld [vmem:[%s0 + $0xc] sm:$0xf]
  %v85 = vld [vmem:[%s0 + $0x10] sm:$0xf]
  %v86 = vld [vmem:[%s0 + $0x14] sm:$0xf]
  %v87 = vld [vmem:[%s0 + $0x18] sm:$0xf]
  %v88 = vld [vmem:[%s0 + $0x1c] sm:$0xf]
  %v89 = vld [vmem:[%s0 + $0x20] sm:$0xf]
  %v90 = vld [vmem:[%s0 + $0x24] sm:$0xf]
  %v91 = vld [vmem:[%s0 + $0x28] sm:$0xf]
  %v92 = vld [vmem:[%s0 + $0x2c] sm:$0xf]
  %v93 = vld [vmem:[%s0 + $0x30] sm:$0xf]
  %v94 = vld [vmem:[%s0 + $0x34] sm:$0xf]
  %v95 = vld [vmem:[%s0 + $0x38] sm:$0xf]
  %v96 = vld [vmem:[%s0 + $0x3c] sm:$0xf]
  %v97 = vld [vmem:[%s0 + $0x40] sm:$0xf]
  %v98 = vld [vmem:[%s0 + $0x44] sm:$0xf]
  %v99 = vld [vmem:[%s0 + $0x48] sm:$0xf]
  %v100 = vld [vmem:[%s0 + $0x4c] sm:$0xf]
  %v101 = vld [vmem:[%s0 + $0x50] sm:$0xf]
  %v102 = vld [vmem:[%s0 + $0x54] sm:$0xf]
  %v103 = vld [vmem:[%s0 + $0x58] sm:$0xf]
  %v104 = vld [vmem:[%s0 + $0x5c] sm:$0xf]
  %v105 = vld [vmem:[%s0 + $0x60] sm:$0xf]
  %v106 = vld [vmem:[%s0 + $0x64] sm:$0xf]
  %v107 = vld [vmem:[%s0 + $0x68] sm:$0xf]
  %v108 = vld [vmem:[%s0 + $0x6c] sm:$0xf]
  %v109 = vld [vmem:[%s0 + $0x70] sm:$0xf]
  %v110 = vld [vmem:[%s0 + $0x74] sm:$0xf]
  %v111 = vld [vmem:[%s0 + $0x78] sm:$0xf]
  %v112 = vld [vmem:[%s0 + $0x7c] sm:$0xf]
  %v113 = vld [vmem:[%s0 + $0x80] sm:$0xf]
  %v114 = vld [vmem:[%s0 + $0x84] sm:$0xf]
  %v115 = vld [vmem:[%s0 + $0x88] sm:$0xf]
  %v116 = vld [vmem:[%s0 + $0x8c] sm:$0xf]
  %v117 = vld [vmem:[%s0 + $0x90] sm:$0xf]
  %v118 = vld [vmem:[%s0 + $0x94] sm:$0xf]
  %v119 = vld [vmem:[%s0 + $0x98] sm:$0xf]
  %v120 = vld [vmem:[%s0 + $0x9c] sm:$0xf]
  %v121 = vld [vmem:[%s0 + $0xa0] sm:$0xf]
  %v122 = vld [vmem:[%s0 + $0xa4] sm:$0xf]
  %v123 = vld [vmem:[%s0 + $0xa8] sm:$0xf]
  %v124 = vld [vmem:[%s0 + $0xac] sm:$0xf]
  %v125 = vld [vmem:[%s0 + $0xb0] sm:$0xf]
  %v126 = vld [vmem:[%s0 + $0xb4] sm:$0xf]
  %v127 = vld [vmem:[%s0 + $0xb8] sm:$0xf]
  %v128 = vld [vmem:[%s0 + $0xbc] sm:$0xf]
  %v129 = vld [vmem:[%s0 + $0xc0] sm:$0xf]
  %v130 = vld [vmem:[%s0 + $0xc4] sm:$0xf]
  %v131 = vld [vmem:[%s0 + $0xc8] sm:$0xf]
  %v132 = vld [vmem:[%s0 + $0xcc] sm:$0xf]
  %v133 = vld [vmem:[%s0 + $0xd0] sm:$0xf]
  %v134 = vld [vmem:[%s0 + $0xd4] sm:$0xf]
  %v135 = vld [vmem:[%s0 + $0xd8] sm:$0xf]
  %v136 = vld [vmem:[%s0 + $0xdc] sm:$0xf]
  %v137 = vld [vmem:[%s0 + $0xe0] sm:$0xf]
  %v138 = vld [vmem:[%s0 + $0xe4] sm:$0xf]
  %v139 = vld [vmem:[%s0 + $0xe8] sm:$0xf]
  %v140 = vld [vmem:[%s0 + $0xec] sm:$0xf]
  %v141 = vld [vmem:[%s0 + $0xf0] sm:$0xf]
  %v142 = vld [vmem:[%s0 + $0xf4] sm:$0xf]
  %v143 = vld [vmem:[%s0 + $0xf8] sm:$0xf]
  %v144 = vld [vmem:[%s0 + $0xfc] sm:$0xf]
  %v145 = vld [vmem:[%s1] sm:$0xff]
  %v146 = vld [vmem:[%s1 + $0x8] sm:$0xff]
  %v147 = vld [vmem:[%s1 + $0x10] sm:$0xff]
  %v148 = vld [vmem:[%s1 + $0x18] sm:$0xff]
  %v149 = vld [vmem:[%s1 + $0x20] sm:$0xff]
  %v150 = vld [vmem:[%s1 + $0x28] sm:$0xff]
  %v151 = vld [vmem:[%s1 + $0x30] sm:$0xff]
  %v152 = vld [vmem:[%s1 + $0x38] sm:$0xff]
  %v153 = vld [vmem:[%s1 + $0x40] sm:$0xff]
  %v154 = vld [vmem:[%s1 + $0x48] sm:$0xff]
  %v155 = vld [vmem:[%s1 + $0x50] sm:$0xff]
  %v156 = vld [vmem:[%s1 + $0x58] sm:$0xff]
  %v157 = vld [vmem:[%s1 + $0x60] sm:$0xff]
  %v158 = vld [vmem:[%s1 + $0x68] sm:$0xff]
  %v159 = vld [vmem:[%s1 + $0x70] sm:$0xff]
  %v160 = vld [vmem:[%s1 + $0x78] sm:$0xff]
  %v161 = vld [vmem:[%s1 + $0x80] sm:$0xff]
  %v162 = vld [vmem:[%s1 + $0x88] sm:$0xff]
  %v163 = vld [vmem:[%s1 + $0x90] sm:$0xff]
  %v164 = vld [vmem:[%s1 + $0x98] sm:$0xff]
  %v165 = vld [vmem:[%s1 + $0xa0] sm:$0xff]
  %v166 = vld [vmem:[%s1 + $0xa8] sm:$0xff]
  %v167 = vld [vmem:[%s1 + $0xb0] sm:$0xff]
  %v168 = vld [vmem:[%s1 + $0xb8] sm:$0xff]
  %v169 = vld [vmem:[%s1 + $0xc0] sm:$0xff]
  %v170 = vld [vmem:[%s1 + $0xc8] sm:$0xff]
  %v171 = vld [vmem:[%s1 + $0xd0] sm:$0xff]
  %v172 = vld [vmem:[%s1 + $0xd8] sm:$0xff]
  %v173 = vld [vmem:[%s1 + $0xe0] sm:$0xff]
  %v174 = vld [vmem:[%s1 + $0xe8] sm:$0xff]
  %v175 = vld [vmem:[%s1 + $0xf0] sm:$0xff]
  %v176 = vld [vmem:[%s1 + $0xf8] sm:$0xff]
  %v177 = vld [vmem:[%s1 + $0x100] sm:$0xff]
  %v178 = vld [vmem:[%s1 + $0x108] sm:$0xff]
  %v179 = vld [vmem:[%s1 + $0x110] sm:$0xff]
  %v180 = vld [vmem:[%s1 + $0x118] sm:$0xff]
  %v181 = vld [vmem:[%s1 + $0x120] sm:$0xff]
  %v182 = vld [vmem:[%s1 + $0x128] sm:$0xff]
  %v183 = vld [vmem:[%s1 + $0x130] sm:$0xff]
  %v184 = vld [vmem:[%s1 + $0x138] sm:$0xff]
  %v185 = vld [vmem:[%s1 + $0x140] sm:$0xff]
  %v186 = vld [vmem:[%s1 + $0x148] sm:$0xff]
  %v187 = vld [vmem:[%s1 + $0x150] sm:$0xff]
  %v188 = vld [vmem:[%s1 + $0x158] sm:$0xff]
  %v189 = vld [vmem:[%s1 + $0x160] sm:$0xff]
  %v190 = vld [vmem:[%s1 + $0x168] sm:$0xff]
  %v191 = vld [vmem:[%s1 + $0x170] sm:$0xff]
  %v192 = vld [vmem:[%s1 + $0x178] sm:$0xff]
  %v193 = vld [vmem:[%s1 + $0x180] sm:$0xff]
  %v194 = vld [vmem:[%s1 + $0x188] sm:$0xff]
  %v195 = vld [vmem:[%s1 + $0x190] sm:$0xff]
  %v196 = vld [vmem:[%s1 + $0x198] sm:$0xff]
  %v197 = vld [vmem:[%s1 + $0x1a0] sm:$0xff]
  %v198 = vld [vmem:[%s1 + $0x1a8] sm:$0xff]
  %v199 = vld [vmem:[%s1 + $0x1b0] sm:$0xff]
  %v200 = vld [vmem:[%s1 + $0x1b8] sm:$0xff]
  %v201 = vld [vmem:[%s1 + $0x1c0] sm:$0xff]
  %v202 = vld [vmem:[%s1 + $0x1c8] sm:$0xff]
  %v203 = vld [vmem:[%s1 + $0x1d0] sm:$0xff]
  %v204 = vld [vmem:[%s1 + $0x1d8] sm:$0xff]
  %v205 = vld [vmem:[%s1 + $0x1e0] sm:$0xff]
  %v206 = vld [vmem:[%s1 + $0x1e8] sm:$0xff]
  %v207 = vld [vmem:[%s1 + $0x1f0] sm:$0xff]
  %v208 = vld [vmem:[%s1 + $0x1f8] sm:$0xff]
  %210 = vset.pattern.permute.xlu0 0
  %211 = vperm.xlu0 %210, %v17
  %v212 = vpop.permute.xlu0 %211
  %215 = vset.pattern.permute.xlu0 0
  %216 = vperm.xlu0 %215, %v18
  %v217 = vpop.permute.xlu0 %216
  %220 = vset.pattern.permute.xlu0 0
  %221 = vperm.xlu0 %220, %v19
  %v222 = vpop.permute.xlu0 %221
  %225 = vset.pattern.permute.xlu0 0
  %226 = vperm.xlu0 %225, %v20
  %v227 = vpop.permute.xlu0 %226
  %230 = vset.pattern.permute.xlu0 0
  %231 = vperm.xlu0 %230, %v21
  %v232 = vpop.permute.xlu0 %231
  %235 = vset.pattern.permute.xlu0 0
  %236 = vperm.xlu0 %235, %v22
  %v237 = vpop.permute.xlu0 %236
  %240 = vset.pattern.permute.xlu0 0
  %241 = vperm.xlu0 %240, %v23
  %v242 = vpop.permute.xlu0 %241
  %245 = vset.pattern.permute.xlu0 0
  %246 = vperm.xlu0 %245, %v24
  %v247 = vpop.permute.xlu0 %246
  %250 = vset.pattern.permute.xlu0 0
  %251 = vperm.xlu0 %250, %v25
  %v252 = vpop.permute.xlu0 %251
  %255 = vset.pattern.permute.xlu0 0
  %256 = vperm.xlu0 %255, %v26
  %v257 = vpop.permute.xlu0 %256
  %260 = vset.pattern.permute.xlu0 0
  %261 = vperm.xlu0 %260, %v27
  %v262 = vpop.permute.xlu0 %261
  %265 = vset.pattern.permute.xlu0 0
  %266 = vperm.xlu0 %265, %v28
  %v267 = vpop.permute.xlu0 %266
  %270 = vset.pattern.permute.xlu0 0
  %271 = vperm.xlu0 %270, %v29
  %v272 = vpop.permute.xlu0 %271
  %275 = vset.pattern.permute.xlu0 0
  %276 = vperm.xlu0 %275, %v30
  %v277 = vpop.permute.xlu0 %276
  %280 = vset.pattern.permute.xlu0 0
  %281 = vperm.xlu0 %280, %v31
  %v282 = vpop.permute.xlu0 %281
  %285 = vset.pattern.permute.xlu0 0
  %286 = vperm.xlu0 %285, %v32
  %v287 = vpop.permute.xlu0 %286
  %290 = vset.pattern.permute.xlu0 0
  %291 = vperm.xlu0 %290, %v33
  %v292 = vpop.permute.xlu0 %291
  %295 = vset.pattern.permute.xlu0 0
  %296 = vperm.xlu0 %295, %v34
  %v297 = vpop.permute.xlu0 %296
  %300 = vset.pattern.permute.xlu0 0
  %301 = vperm.xlu0 %300, %v35
  %v302 = vpop.permute.xlu0 %301
  %305 = vset.pattern.permute.xlu0 0
  %306 = vperm.xlu0 %305, %v36
  %v307 = vpop.permute.xlu0 %306
  %310 = vset.pattern.permute.xlu0 0
  %311 = vperm.xlu0 %310, %v37
  %v312 = vpop.permute.xlu0 %311
  %315 = vset.pattern.permute.xlu0 0
  %316 = vperm.xlu0 %315, %v38
  %v317 = vpop.permute.xlu0 %316
  %320 = vset.pattern.permute.xlu0 0
  %321 = vperm.xlu0 %320, %v39
  %v322 = vpop.permute.xlu0 %321
  %325 = vset.pattern.permute.xlu0 0
  %326 = vperm.xlu0 %325, %v40
  %v327 = vpop.permute.xlu0 %326
  %330 = vset.pattern.permute.xlu0 0
  %331 = vperm.xlu0 %330, %v41
  %v332 = vpop.permute.xlu0 %331
  %335 = vset.pattern.permute.xlu0 0
  %336 = vperm.xlu0 %335, %v42
  %v337 = vpop.permute.xlu0 %336
  %340 = vset.pattern.permute.xlu0 0
  %341 = vperm.xlu0 %340, %v43
  %v342 = vpop.permute.xlu0 %341
  %345 = vset.pattern.permute.xlu0 0
  %346 = vperm.xlu0 %345, %v44
  %v347 = vpop.permute.xlu0 %346
  %350 = vset.pattern.permute.xlu0 0
  %351 = vperm.xlu0 %350, %v45
  %v352 = vpop.permute.xlu0 %351
  %355 = vset.pattern.permute.xlu0 0
  %356 = vperm.xlu0 %355, %v46
  %v357 = vpop.permute.xlu0 %356
  %360 = vset.pattern.permute.xlu0 0
  %361 = vperm.xlu0 %360, %v47
  %v362 = vpop.permute.xlu0 %361
  %365 = vset.pattern.permute.xlu0 0
  %366 = vperm.xlu0 %365, %v48
  %v367 = vpop.permute.xlu0 %366
  %v433 = vunpack.c.l.b16 %v145
  %v434 = vunpack.c.h.b16 %v145
  %v435 = vunpack.c.l.b16 %v146
  %v436 = vunpack.c.h.b16 %v146
  %v437 = vunpack.c.l.b16 %v147
  %v438 = vunpack.c.h.b16 %v147
  %v439 = vunpack.c.l.b16 %v148
  %v440 = vunpack.c.h.b16 %v148
  %v441 = vunpack.c.l.b16 %v149
  %v442 = vunpack.c.h.b16 %v149
  %v443 = vunpack.c.l.b16 %v150
  %v444 = vunpack.c.h.b16 %v150
  %v445 = vunpack.c.l.b16 %v151
  %v446 = vunpack.c.h.b16 %v151
  %v447 = vunpack.c.l.b16 %v152
  %v448 = vunpack.c.h.b16 %v152
  %v449 = vunpack.c.l.b16 %v153
  %v450 = vunpack.c.h.b16 %v153
  %v451 = vunpack.c.l.b16 %v154
  %v452 = vunpack.c.h.b16 %v154
  %v453 = vunpack.c.l.b16 %v155
  %v454 = vunpack.c.h.b16 %v155
  %v455 = vunpack.c.l.b16 %v156
  %v456 = vunpack.c.h.b16 %v156
  %v457 = vunpack.c.l.b16 %v157
  %v458 = vunpack.c.h.b16 %v157
  %v459 = vunpack.c.l.b16 %v158
  %v460 = vunpack.c.h.b16 %v158
  %v461 = vunpack.c.l.b16 %v159
  %v462 = vunpack.c.h.b16 %v159
  %v463 = vunpack.c.l.b16 %v160
  %v464 = vunpack.c.h.b16 %v160
  %v465 = vunpack.c.l.b16 %v161
  %v466 = vunpack.c.h.b16 %v161
  %v467 = vunpack.c.l.b16 %v162
  %v468 = vunpack.c.h.b16 %v162
  %v469 = vunpack.c.l.b16 %v163
  %v470 = vunpack.c.h.b16 %v163
  %v471 = vunpack.c.l.b16 %v164
  %v472 = vunpack.c.h.b16 %v164
  %v473 = vunpack.c.l.b16 %v165
  %v474 = vunpack.c.h.b16 %v165
  %v475 = vunpack.c.l.b16 %v166
  %v476 = vunpack.c.h.b16 %v166
  %v477 = vunpack.c.l.b16 %v167
  %v478 = vunpack.c.h.b16 %v167
  %v479 = vunpack.c.l.b16 %v168
  %v480 = vunpack.c.h.b16 %v168
  %v481 = vunpack.c.l.b16 %v169
  %v482 = vunpack.c.h.b16 %v169
  %v483 = vunpack.c.l.b16 %v170
  %v484 = vunpack.c.h.b16 %v170
  %v485 = vunpack.c.l.b16 %v171
  %v486 = vunpack.c.h.b16 %v171
  %v487 = vunpack.c.l.b16 %v172
  %v488 = vunpack.c.h.b16 %v172
  %v489 = vunpack.c.l.b16 %v173
  %v490 = vunpack.c.h.b16 %v173
  %v491 = vunpack.c.l.b16 %v174
  %v492 = vunpack.c.h.b16 %v174
  %v493 = vunpack.c.l.b16 %v175
  %v494 = vunpack.c.h.b16 %v175
  %v495 = vunpack.c.l.b16 %v176
  %v496 = vunpack.c.h.b16 %v176
  %v497 = vunpack.c.l.b16 %v177
  %v498 = vunpack.c.h.b16 %v177
  %v499 = vunpack.c.l.b16 %v178
  %v500 = vunpack.c.h.b16 %v178
  %v501 = vunpack.c.l.b16 %v179
  %v502 = vunpack.c.h.b16 %v179
  %v503 = vunpack.c.l.b16 %v180
  %v504 = vunpack.c.h.b16 %v180
  %v505 = vunpack.c.l.b16 %v181
  %v506 = vunpack.c.h.b16 %v181
  %v507 = vunpack.c.l.b16 %v182
  %v508 = vunpack.c.h.b16 %v182
  %v509 = vunpack.c.l.b16 %v183
  %v510 = vunpack.c.h.b16 %v183
  %v511 = vunpack.c.l.b16 %v184
  %v512 = vunpack.c.h.b16 %v184
  %v513 = vunpack.c.l.b16 %v185
  %v514 = vunpack.c.h.b16 %v185
  %v515 = vunpack.c.l.b16 %v186
  %v516 = vunpack.c.h.b16 %v186
  %v517 = vunpack.c.l.b16 %v187
  %v518 = vunpack.c.h.b16 %v187
  %v519 = vunpack.c.l.b16 %v188
  %v520 = vunpack.c.h.b16 %v188
  %v521 = vunpack.c.l.b16 %v189
  %v522 = vunpack.c.h.b16 %v189
  %v523 = vunpack.c.l.b16 %v190
  %v524 = vunpack.c.h.b16 %v190
  %v525 = vunpack.c.l.b16 %v191
  %v526 = vunpack.c.h.b16 %v191
  %v527 = vunpack.c.l.b16 %v192
  %v528 = vunpack.c.h.b16 %v192
  %v529 = vunpack.c.l.b16 %v193
  %v530 = vunpack.c.h.b16 %v193
  %v531 = vunpack.c.l.b16 %v194
  %v532 = vunpack.c.h.b16 %v194
  %v533 = vunpack.c.l.b16 %v195
  %v534 = vunpack.c.h.b16 %v195
  %v535 = vunpack.c.l.b16 %v196
  %v536 = vunpack.c.h.b16 %v196
  %v537 = vunpack.c.l.b16 %v197
  %v538 = vunpack.c.h.b16 %v197
  %v539 = vunpack.c.l.b16 %v198
  %v540 = vunpack.c.h.b16 %v198
  %v541 = vunpack.c.l.b16 %v199
  %v542 = vunpack.c.h.b16 %v199
  %v543 = vunpack.c.l.b16 %v200
  %v544 = vunpack.c.h.b16 %v200
  %v545 = vunpack.c.l.b16 %v201
  %v546 = vunpack.c.h.b16 %v201
  %v547 = vunpack.c.l.b16 %v202
  %v548 = vunpack.c.h.b16 %v202
  %v549 = vunpack.c.l.b16 %v203
  %v550 = vunpack.c.h.b16 %v203
  %v551 = vunpack.c.l.b16 %v204
  %v552 = vunpack.c.h.b16 %v204
  %v553 = vunpack.c.l.b16 %v205
  %v554 = vunpack.c.h.b16 %v205
  %v555 = vunpack.c.l.b16 %v206
  %v556 = vunpack.c.h.b16 %v206
  %v557 = vunpack.c.l.b16 %v207
  %v558 = vunpack.c.h.b16 %v207
  %v559 = vunpack.c.l.b16 %v208
  %v560 = vunpack.c.h.b16 %v208
  %v561 = vpack.c.b16 %v437, %v433
  %v562 = vpack.c.b16 %v438, %v434
  %v563 = vpack.c.b16 %v439, %v435
  %v564 = vpack.c.b16 %v440, %v436
  %v565 = vpack.c.b16 %v445, %v441
  %v566 = vpack.c.b16 %v446, %v442
  %v567 = vpack.c.b16 %v447, %v443
  %v568 = vpack.c.b16 %v448, %v444
  %v569 = vpack.c.b16 %v453, %v449
  %v570 = vpack.c.b16 %v454, %v450
  %v571 = vpack.c.b16 %v455, %v451
  %v572 = vpack.c.b16 %v456, %v452
  %v573 = vpack.c.b16 %v461, %v457
  %v574 = vpack.c.b16 %v462, %v458
  %v575 = vpack.c.b16 %v463, %v459
  %v576 = vpack.c.b16 %v464, %v460
  %v577 = vpack.c.b16 %v469, %v465
  %v578 = vpack.c.b16 %v470, %v466
  %v579 = vpack.c.b16 %v471, %v467
  %v580 = vpack.c.b16 %v472, %v468
  %v581 = vpack.c.b16 %v477, %v473
  %v582 = vpack.c.b16 %v478, %v474
  %v583 = vpack.c.b16 %v479, %v475
  %v584 = vpack.c.b16 %v480, %v476
  %v585 = vpack.c.b16 %v485, %v481
  %v586 = vpack.c.b16 %v486, %v482
  %v587 = vpack.c.b16 %v487, %v483
  %v588 = vpack.c.b16 %v488, %v484
  %v589 = vpack.c.b16 %v493, %v489
  %v590 = vpack.c.b16 %v494, %v490
  %v591 = vpack.c.b16 %v495, %v491
  %v592 = vpack.c.b16 %v496, %v492
  %v593 = vpack.c.b16 %v501, %v497
  %v594 = vpack.c.b16 %v502, %v498
  %v595 = vpack.c.b16 %v503, %v499
  %v596 = vpack.c.b16 %v504, %v500
  %v597 = vpack.c.b16 %v509, %v505
  %v598 = vpack.c.b16 %v510, %v506
  %v599 = vpack.c.b16 %v511, %v507
  %v600 = vpack.c.b16 %v512, %v508
  %v601 = vpack.c.b16 %v517, %v513
  %v602 = vpack.c.b16 %v518, %v514
  %v603 = vpack.c.b16 %v519, %v515
  %v604 = vpack.c.b16 %v520, %v516
  %v605 = vpack.c.b16 %v525, %v521
  %v606 = vpack.c.b16 %v526, %v522
  %v607 = vpack.c.b16 %v527, %v523
  %v608 = vpack.c.b16 %v528, %v524
  %v609 = vpack.c.b16 %v533, %v529
  %v610 = vpack.c.b16 %v534, %v530
  %v611 = vpack.c.b16 %v535, %v531
  %v612 = vpack.c.b16 %v536, %v532
  %v613 = vpack.c.b16 %v541, %v537
  %v614 = vpack.c.b16 %v542, %v538
  %v615 = vpack.c.b16 %v543, %v539
  %v616 = vpack.c.b16 %v544, %v540
  %v617 = vpack.c.b16 %v549, %v545
  %v618 = vpack.c.b16 %v550, %v546
  %v619 = vpack.c.b16 %v551, %v547
  %v620 = vpack.c.b16 %v552, %v548
  %v621 = vpack.c.b16 %v557, %v553
  %v622 = vpack.c.b16 %v558, %v554
  %v623 = vpack.c.b16 %v559, %v555
  %v624 = vpack.c.b16 %v560, %v556
  %v753 = vunpack.c.l.b16 %v81
  %v754 = vunpack.c.l.b16 %v82
  %v755 = vunpack.c.l.b16 %v83
  %v756 = vunpack.c.l.b16 %v84
  %v757 = vunpack.c.l.b16 %v85
  %v758 = vunpack.c.l.b16 %v86
  %v759 = vunpack.c.l.b16 %v87
  %v760 = vunpack.c.l.b16 %v88
  %v761 = vunpack.c.l.b16 %v89
  %v762 = vunpack.c.l.b16 %v90
  %v763 = vunpack.c.l.b16 %v91
  %v764 = vunpack.c.l.b16 %v92
  %v765 = vunpack.c.l.b16 %v93
  %v766 = vunpack.c.l.b16 %v94
  %v767 = vunpack.c.l.b16 %v95
  %v768 = vunpack.c.l.b16 %v96
  %v769 = vunpack.c.l.b16 %v97
  %v770 = vunpack.c.l.b16 %v98
  %v771 = vunpack.c.l.b16 %v99
  %v772 = vunpack.c.l.b16 %v100
  %v773 = vunpack.c.l.b16 %v101
  %v774 = vunpack.c.l.b16 %v102
  %v775 = vunpack.c.l.b16 %v103
  %v776 = vunpack.c.l.b16 %v104
  %v777 = vunpack.c.l.b16 %v105
  %v778 = vunpack.c.l.b16 %v106
  %v779 = vunpack.c.l.b16 %v107
  %v780 = vunpack.c.l.b16 %v108
  %v781 = vunpack.c.l.b16 %v109
  %v782 = vunpack.c.l.b16 %v110
  %v783 = vunpack.c.l.b16 %v111
  %v784 = vunpack.c.l.b16 %v112
  %v785 = vunpack.c.l.b16 %v113
  %v786 = vunpack.c.l.b16 %v114
  %v787 = vunpack.c.l.b16 %v115
  %v788 = vunpack.c.l.b16 %v116
  %v789 = vunpack.c.l.b16 %v117
  %v790 = vunpack.c.l.b16 %v118
  %v791 = vunpack.c.l.b16 %v119
  %v792 = vunpack.c.l.b16 %v120
  %v793 = vunpack.c.l.b16 %v121
  %v794 = vunpack.c.l.b16 %v122
  %v795 = vunpack.c.l.b16 %v123
  %v796 = vunpack.c.l.b16 %v124
  %v797 = vunpack.c.l.b16 %v125
  %v798 = vunpack.c.l.b16 %v126
  %v799 = vunpack.c.l.b16 %v127
  %v800 = vunpack.c.l.b16 %v128
  %v801 = vunpack.c.l.b16 %v129
  %v802 = vunpack.c.l.b16 %v130
  %v803 = vunpack.c.l.b16 %v131
  %v804 = vunpack.c.l.b16 %v132
  %v805 = vunpack.c.l.b16 %v133
  %v806 = vunpack.c.l.b16 %v134
  %v807 = vunpack.c.l.b16 %v135
  %v808 = vunpack.c.l.b16 %v136
  %v809 = vunpack.c.l.b16 %v137
  %v810 = vunpack.c.l.b16 %v138
  %v811 = vunpack.c.l.b16 %v139
  %v812 = vunpack.c.l.b16 %v140
  %v813 = vunpack.c.l.b16 %v141
  %v814 = vunpack.c.l.b16 %v142
  %v815 = vunpack.c.l.b16 %v143
  %v816 = vunpack.c.l.b16 %v144
  %v817 = vpack.c.b16 %v754, %v753
  %v818 = vpack.c.b16 %v756, %v755
  %v819 = vpack.c.b16 %v758, %v757
  %v820 = vpack.c.b16 %v760, %v759
  %v821 = vpack.c.b16 %v762, %v761
  %v822 = vpack.c.b16 %v764, %v763
  %v823 = vpack.c.b16 %v766, %v765
  %v824 = vpack.c.b16 %v768, %v767
  %v825 = vpack.c.b16 %v770, %v769
  %v826 = vpack.c.b16 %v772, %v771
  %v827 = vpack.c.b16 %v774, %v773
  %v828 = vpack.c.b16 %v776, %v775
  %v829 = vpack.c.b16 %v778, %v777
  %v830 = vpack.c.b16 %v780, %v779
  %v831 = vpack.c.b16 %v782, %v781
  %v832 = vpack.c.b16 %v784, %v783
  %v833 = vpack.c.b16 %v786, %v785
  %v834 = vpack.c.b16 %v788, %v787
  %v835 = vpack.c.b16 %v790, %v789
  %v836 = vpack.c.b16 %v792, %v791
  %v837 = vpack.c.b16 %v794, %v793
  %v838 = vpack.c.b16 %v796, %v795
  %v839 = vpack.c.b16 %v798, %v797
  %v840 = vpack.c.b16 %v800, %v799
  %v841 = vpack.c.b16 %v802, %v801
  %v842 = vpack.c.b16 %v804, %v803
  %v843 = vpack.c.b16 %v806, %v805
  %v844 = vpack.c.b16 %v808, %v807
  %v845 = vpack.c.b16 %v810, %v809
  %v846 = vpack.c.b16 %v812, %v811
  %v847 = vpack.c.b16 %v814, %v813
  %v848 = vpack.c.b16 %v816, %v815
  %881 = vmatpush.bf16.msra.mxu0 %v824
  %882 = vmatpush.bf16.msra.mxu0 %v823
  %883 = vmatpush.bf16.msra.mxu0 %v822
  %884 = vmatpush.bf16.msra.mxu0 %v821
  %885 = vmatpush.bf16.msra.mxu0 %v820
  %886 = vmatpush.bf16.msra.mxu0 %v819
  %887 = vmatpush.bf16.msra.mxu0 %v818
  %888 = vmatpush.bf16.msra.mxu0 %v817
  %889 = vmatmul.bf16.gmra.mxu0 %v561
  %v890 = vpop.f32.mrf.mxu0
  %v891 = vadd.f32 %v212, %v890
  %v892 = vpop.f32.mrf.mxu0
  %v893 = vadd.f32 %v217, %v892
  %894 = vmatmul.bf16.gmra.mxu0 %v565
  %v895 = vpop.f32.mrf.mxu0
  %v896 = vadd.f32 %v222, %v895
  %v897 = vpop.f32.mrf.mxu0
  %v898 = vadd.f32 %v227, %v897
  %899 = vmatmul.bf16.gmra.mxu0 %v569
  %v900 = vpop.f32.mrf.mxu0
  %v901 = vadd.f32 %v232, %v900
  %v902 = vpop.f32.mrf.mxu0
  %v903 = vadd.f32 %v237, %v902
  %904 = vmatmul.bf16.gmra.mxu0 %v573
  %v905 = vpop.f32.mrf.mxu0
  %v906 = vadd.f32 %v242, %v905
  %v907 = vpop.f32.mrf.mxu0
  %v908 = vadd.f32 %v247, %v907
  %909 = vmatmul.bf16.gmra.mxu0 %v577
  %v910 = vpop.f32.mrf.mxu0
  %v911 = vadd.f32 %v252, %v910
  %v912 = vpop.f32.mrf.mxu0
  %v913 = vadd.f32 %v257, %v912
  %914 = vmatmul.bf16.gmra.mxu0 %v581
  %v915 = vpop.f32.mrf.mxu0
  %v916 = vadd.f32 %v262, %v915
  %v917 = vpop.f32.mrf.mxu0
  %v918 = vadd.f32 %v267, %v917
  %919 = vmatmul.bf16.gmra.mxu0 %v585
  %v920 = vpop.f32.mrf.mxu0
  %v921 = vadd.f32 %v272, %v920
  %v922 = vpop.f32.mrf.mxu0
  %v923 = vadd.f32 %v277, %v922
  %924 = vmatmul.bf16.gmra.mxu0 %v589
  %v925 = vpop.f32.mrf.mxu0
  %v926 = vadd.f32 %v282, %v925
  %v927 = vpop.f32.mrf.mxu0
  %v928 = vadd.f32 %v287, %v927
  %929 = vmatmul.bf16.gmra.mxu0 %v593
  %v930 = vpop.f32.mrf.mxu0
  %v931 = vadd.f32 %v292, %v930
  %v932 = vpop.f32.mrf.mxu0
  %v933 = vadd.f32 %v297, %v932
  %934 = vmatmul.bf16.gmra.mxu0 %v597
  %v935 = vpop.f32.mrf.mxu0
  %v936 = vadd.f32 %v302, %v935
  %v937 = vpop.f32.mrf.mxu0
  %v938 = vadd.f32 %v307, %v937
  %939 = vmatmul.bf16.gmra.mxu0 %v601
  %v940 = vpop.f32.mrf.mxu0
  %v941 = vadd.f32 %v312, %v940
  %v942 = vpop.f32.mrf.mxu0
  %v943 = vadd.f32 %v317, %v942
  %944 = vmatmul.bf16.gmra.mxu0 %v605
  %v945 = vpop.f32.mrf.mxu0
  %v946 = vadd.f32 %v322, %v945
  %v947 = vpop.f32.mrf.mxu0
  %v948 = vadd.f32 %v327, %v947
  %949 = vmatmul.bf16.gmra.mxu0 %v609
  %v950 = vpop.f32.mrf.mxu0
  %v951 = vadd.f32 %v332, %v950
  %v952 = vpop.f32.mrf.mxu0
  %v953 = vadd.f32 %v337, %v952
  %954 = vmatmul.bf16.gmra.mxu0 %v613
  %v955 = vpop.f32.mrf.mxu0
  %v956 = vadd.f32 %v342, %v955
  %v957 = vpop.f32.mrf.mxu0
  %v958 = vadd.f32 %v347, %v957
  %959 = vmatmul.bf16.gmra.mxu0 %v617
  %v960 = vpop.f32.mrf.mxu0
  %v961 = vadd.f32 %v352, %v960
  %v962 = vpop.f32.mrf.mxu0
  %v963 = vadd.f32 %v357, %v962
  %964 = vmatmul.bf16.gmra.mxu0 %v621
  %v965 = vpop.f32.mrf.mxu0
  %v966 = vadd.f32 %v362, %v965
  %v967 = vpop.f32.mrf.mxu0
  %v968 = vadd.f32 %v367, %v967
  %969 = vdwg.mxu0
  %970 = vmatpush.bf16.msra.mxu0 %v832
  %971 = vmatpush.bf16.msra.mxu0 %v831
  %972 = vmatpush.bf16.msra.mxu0 %v830
  %973 = vmatpush.bf16.msra.mxu0 %v829
  %974 = vmatpush.bf16.msra.mxu0 %v828
  %975 = vmatpush.bf16.msra.mxu0 %v827
  %976 = vmatpush.bf16.msra.mxu0 %v826
  %977 = vmatpush.bf16.msra.mxu0 %v825
  %978 = vmatmul.bf16.gmra.mxu0 %v562
  %v979 = vpop.f32.mrf.mxu0
  %v980 = vadd.f32 %v891, %v979
  %v981 = vpop.f32.mrf.mxu0
  %v982 = vadd.f32 %v893, %v981
  %983 = vmatmul.bf16.gmra.mxu0 %v566
  %v984 = vpop.f32.mrf.mxu0
  %v985 = vadd.f32 %v896, %v984
  %v986 = vpop.f32.mrf.mxu0
  %v987 = vadd.f32 %v898, %v986
  %988 = vmatmul.bf16.gmra.mxu0 %v570
  %v989 = vpop.f32.mrf.mxu0
  %v990 = vadd.f32 %v901, %v989
  %v991 = vpop.f32.mrf.mxu0
  %v992 = vadd.f32 %v903, %v991
  %993 = vmatmul.bf16.gmra.mxu0 %v574
  %v994 = vpop.f32.mrf.mxu0
  %v995 = vadd.f32 %v906, %v994
  %v996 = vpop.f32.mrf.mxu0
  %v997 = vadd.f32 %v908, %v996
  %998 = vmatmul.bf16.gmra.mxu0 %v578
  %v999 = vpop.f32.mrf.mxu0
  %v1000 = vadd.f32 %v911, %v999
  %v1001 = vpop.f32.mrf.mxu0
  %v1002 = vadd.f32 %v913, %v1001
  %1003 = vmatmul.bf16.gmra.mxu0 %v582
  %v1004 = vpop.f32.mrf.mxu0
  %v1005 = vadd.f32 %v916, %v1004
  %v1006 = vpop.f32.mrf.mxu0
  %v1007 = vadd.f32 %v918, %v1006
  %1008 = vmatmul.bf16.gmra.mxu0 %v586
  %v1009 = vpop.f32.mrf.mxu0
  %v1010 = vadd.f32 %v921, %v1009
  %v1011 = vpop.f32.mrf.mxu0
  %v1012 = vadd.f32 %v923, %v1011
  %1013 = vmatmul.bf16.gmra.mxu0 %v590
  %v1014 = vpop.f32.mrf.mxu0
  %v1015 = vadd.f32 %v926, %v1014
  %v1016 = vpop.f32.mrf.mxu0
  %v1017 = vadd.f32 %v928, %v1016
  %1018 = vmatmul.bf16.gmra.mxu0 %v594
  %v1019 = vpop.f32.mrf.mxu0
  %v1020 = vadd.f32 %v931, %v1019
  %v1021 = vpop.f32.mrf.mxu0
  %v1022 = vadd.f32 %v933, %v1021
  %1023 = vmatmul.bf16.gmra.mxu0 %v598
  %v1024 = vpop.f32.mrf.mxu0
  %v1025 = vadd.f32 %v936, %v1024
  %v1026 = vpop.f32.mrf.mxu0
  %v1027 = vadd.f32 %v938, %v1026
  %1028 = vmatmul.bf16.gmra.mxu0 %v602
  %v1029 = vpop.f32.mrf.mxu0
  %v1030 = vadd.f32 %v941, %v1029
  %v1031 = vpop.f32.mrf.mxu0
  %v1032 = vadd.f32 %v943, %v1031
  %1033 = vmatmul.bf16.gmra.mxu0 %v606
  %v1034 = vpop.f32.mrf.mxu0
  %v1035 = vadd.f32 %v946, %v1034
  %v1036 = vpop.f32.mrf.mxu0
  %v1037 = vadd.f32 %v948, %v1036
  %1038 = vmatmul.bf16.gmra.mxu0 %v610
  %v1039 = vpop.f32.mrf.mxu0
  %v1040 = vadd.f32 %v951, %v1039
  %v1041 = vpop.f32.mrf.mxu0
  %v1042 = vadd.f32 %v953, %v1041
  %1043 = vmatmul.bf16.gmra.mxu0 %v614
  %v1044 = vpop.f32.mrf.mxu0
  %v1045 = vadd.f32 %v956, %v1044
  %v1046 = vpop.f32.mrf.mxu0
  %v1047 = vadd.f32 %v958, %v1046
  %1048 = vmatmul.bf16.gmra.mxu0 %v618
  %v1049 = vpop.f32.mrf.mxu0
  %v1050 = vadd.f32 %v961, %v1049
  %v1051 = vpop.f32.mrf.mxu0
  %v1052 = vadd.f32 %v963, %v1051
  %1053 = vmatmul.bf16.gmra.mxu0 %v622
  %v1054 = vpop.f32.mrf.mxu0
  %v1055 = vadd.f32 %v966, %v1054
  %v1056 = vpop.f32.mrf.mxu0
  %v1057 = vadd.f32 %v968, %v1056
  %1058 = vdwg.mxu0
  %1059 = vmatpush.bf16.msra.mxu0 %v840
  %1060 = vmatpush.bf16.msra.mxu0 %v839
  %1061 = vmatpush.bf16.msra.mxu0 %v838
  %1062 = vmatpush.bf16.msra.mxu0 %v837
  %1063 = vmatpush.bf16.msra.mxu0 %v836
  %1064 = vmatpush.bf16.msra.mxu0 %v835
  %1065 = vmatpush.bf16.msra.mxu0 %v834
  %1066 = vmatpush.bf16.msra.mxu0 %v833
  %1067 = vmatmul.bf16.gmra.mxu0 %v563
  %v1068 = vpop.f32.mrf.mxu0
  %v1069 = vadd.f32 %v980, %v1068
  %v1070 = vpop.f32.mrf.mxu0
  %v1071 = vadd.f32 %v982, %v1070
  %1072 = vmatmul.bf16.gmra.mxu0 %v567
  %v1073 = vpop.f32.mrf.mxu0
  %v1074 = vadd.f32 %v985, %v1073
  %v1075 = vpop.f32.mrf.mxu0
  %v1076 = vadd.f32 %v987, %v1075
  %1077 = vmatmul.bf16.gmra.mxu0 %v571
  %v1078 = vpop.f32.mrf.mxu0
  %v1079 = vadd.f32 %v990, %v1078
  %v1080 = vpop.f32.mrf.mxu0
  %v1081 = vadd.f32 %v992, %v1080
  %1082 = vmatmul.bf16.gmra.mxu0 %v575
  %v1083 = vpop.f32.mrf.mxu0
  %v1084 = vadd.f32 %v995, %v1083
  %v1085 = vpop.f32.mrf.mxu0
  %v1086 = vadd.f32 %v997, %v1085
  %1087 = vmatmul.bf16.gmra.mxu0 %v579
  %v1088 = vpop.f32.mrf.mxu0
  %v1089 = vadd.f32 %v1000, %v1088
  %v1090 = vpop.f32.mrf.mxu0
  %v1091 = vadd.f32 %v1002, %v1090
  %1092 = vmatmul.bf16.gmra.mxu0 %v583
  %v1093 = vpop.f32.mrf.mxu0
  %v1094 = vadd.f32 %v1005, %v1093
  %v1095 = vpop.f32.mrf.mxu0
  %v1096 = vadd.f32 %v1007, %v1095
  %1097 = vmatmul.bf16.gmra.mxu0 %v587
  %v1098 = vpop.f32.mrf.mxu0
  %v1099 = vadd.f32 %v1010, %v1098
  %v1100 = vpop.f32.mrf.mxu0
  %v1101 = vadd.f32 %v1012, %v1100
  %1102 = vmatmul.bf16.gmra.mxu0 %v591
  %v1103 = vpop.f32.mrf.mxu0
  %v1104 = vadd.f32 %v1015, %v1103
  %v1105 = vpop.f32.mrf.mxu0
  %v1106 = vadd.f32 %v1017, %v1105
  %1107 = vmatmul.bf16.gmra.mxu0 %v595
  %v1108 = vpop.f32.mrf.mxu0
  %v1109 = vadd.f32 %v1020, %v1108
  %v1110 = vpop.f32.mrf.mxu0
  %v1111 = vadd.f32 %v1022, %v1110
  %1112 = vmatmul.bf16.gmra.mxu0 %v599
  %v1113 = vpop.f32.mrf.mxu0
  %v1114 = vadd.f32 %v1025, %v1113
  %v1115 = vpop.f32.mrf.mxu0
  %v1116 = vadd.f32 %v1027, %v1115
  %1117 = vmatmul.bf16.gmra.mxu0 %v603
  %v1118 = vpop.f32.mrf.mxu0
  %v1119 = vadd.f32 %v1030, %v1118
  %v1120 = vpop.f32.mrf.mxu0
  %v1121 = vadd.f32 %v1032, %v1120
  %1122 = vmatmul.bf16.gmra.mxu0 %v607
  %v1123 = vpop.f32.mrf.mxu0
  %v1124 = vadd.f32 %v1035, %v1123
  %v1125 = vpop.f32.mrf.mxu0
  %v1126 = vadd.f32 %v1037, %v1125
  %1127 = vmatmul.bf16.gmra.mxu0 %v611
  %v1128 = vpop.f32.mrf.mxu0
  %v1129 = vadd.f32 %v1040, %v1128
  %v1130 = vpop.f32.mrf.mxu0
  %v1131 = vadd.f32 %v1042, %v1130
  %1132 = vmatmul.bf16.gmra.mxu0 %v615
  %v1133 = vpop.f32.mrf.mxu0
  %v1134 = vadd.f32 %v1045, %v1133
  %v1135 = vpop.f32.mrf.mxu0
  %v1136 = vadd.f32 %v1047, %v1135
  %1137 = vmatmul.bf16.gmra.mxu0 %v619
  %v1138 = vpop.f32.mrf.mxu0
  %v1139 = vadd.f32 %v1050, %v1138
  %v1140 = vpop.f32.mrf.mxu0
  %v1141 = vadd.f32 %v1052, %v1140
  %1142 = vmatmul.bf16.gmra.mxu0 %v623
  %v1143 = vpop.f32.mrf.mxu0
  %v1144 = vadd.f32 %v1055, %v1143
  %v1145 = vpop.f32.mrf.mxu0
  %v1146 = vadd.f32 %v1057, %v1145
  %1147 = vdwg.mxu0
  %1148 = vmatpush.bf16.msra.mxu0 %v848
  %1149 = vmatpush.bf16.msra.mxu0 %v847
  %1150 = vmatpush.bf16.msra.mxu0 %v846
  %1151 = vmatpush.bf16.msra.mxu0 %v845
  %1152 = vmatpush.bf16.msra.mxu0 %v844
  %1153 = vmatpush.bf16.msra.mxu0 %v843
  %1154 = vmatpush.bf16.msra.mxu0 %v842
  %1155 = vmatpush.bf16.msra.mxu0 %v841
  %1156 = vmatmul.bf16.gmra.mxu0 %v564
  %v1157 = vpop.f32.mrf.mxu0
  %v1158 = vadd.f32 %v1069, %v1157
  %v1159 = vpop.f32.mrf.mxu0
  %v1160 = vadd.f32 %v1071, %v1159
  %1161 = vmatmul.bf16.gmra.mxu0 %v568
  %v1162 = vpop.f32.mrf.mxu0
  %v1163 = vadd.f32 %v1074, %v1162
  %v1164 = vpop.f32.mrf.mxu0
  %v1165 = vadd.f32 %v1076, %v1164
  %1166 = vmatmul.bf16.gmra.mxu0 %v572
  %v1167 = vpop.f32.mrf.mxu0
  %v1168 = vadd.f32 %v1079, %v1167
  %v1169 = vpop.f32.mrf.mxu0
  %v1170 = vadd.f32 %v1081, %v1169
  %1171 = vmatmul.bf16.gmra.mxu0 %v576
  %v1172 = vpop.f32.mrf.mxu0
  %v1173 = vadd.f32 %v1084, %v1172
  %v1174 = vpop.f32.mrf.mxu0
  %v1175 = vadd.f32 %v1086, %v1174
  %1176 = vmatmul.bf16.gmra.mxu0 %v580
  %v1177 = vpop.f32.mrf.mxu0
  %v1178 = vadd.f32 %v1089, %v1177
  %v1179 = vpop.f32.mrf.mxu0
  %v1180 = vadd.f32 %v1091, %v1179
  %1181 = vmatmul.bf16.gmra.mxu0 %v584
  %v1182 = vpop.f32.mrf.mxu0
  %v1183 = vadd.f32 %v1094, %v1182
  %v1184 = vpop.f32.mrf.mxu0
  %v1185 = vadd.f32 %v1096, %v1184
  %1186 = vmatmul.bf16.gmra.mxu0 %v588
  %v1187 = vpop.f32.mrf.mxu0
  %v1188 = vadd.f32 %v1099, %v1187
  %v1189 = vpop.f32.mrf.mxu0
  %v1190 = vadd.f32 %v1101, %v1189
  %1191 = vmatmul.bf16.gmra.mxu0 %v592
  %v1192 = vpop.f32.mrf.mxu0
  %v1193 = vadd.f32 %v1104, %v1192
  %v1194 = vpop.f32.mrf.mxu0
  %v1195 = vadd.f32 %v1106, %v1194
  %1196 = vmatmul.bf16.gmra.mxu0 %v596
  %v1197 = vpop.f32.mrf.mxu0
  %v1198 = vadd.f32 %v1109, %v1197
  %v1199 = vpop.f32.mrf.mxu0
  %v1200 = vadd.f32 %v1111, %v1199
  %1201 = vmatmul.bf16.gmra.mxu0 %v600
  %v1202 = vpop.f32.mrf.mxu0
  %v1203 = vadd.f32 %v1114, %v1202
  %v1204 = vpop.f32.mrf.mxu0
  %v1205 = vadd.f32 %v1116, %v1204
  %1206 = vmatmul.bf16.gmra.mxu0 %v604
  %v1207 = vpop.f32.mrf.mxu0
  %v1208 = vadd.f32 %v1119, %v1207
  %v1209 = vpop.f32.mrf.mxu0
  %v1210 = vadd.f32 %v1121, %v1209
  %1211 = vmatmul.bf16.gmra.mxu0 %v608
  %v1212 = vpop.f32.mrf.mxu0
  %v1213 = vadd.f32 %v1124, %v1212
  %v1214 = vpop.f32.mrf.mxu0
  %v1215 = vadd.f32 %v1126, %v1214
  %1216 = vmatmul.bf16.gmra.mxu0 %v612
  %v1217 = vpop.f32.mrf.mxu0
  %v1218 = vadd.f32 %v1129, %v1217
  %v1219 = vpop.f32.mrf.mxu0
  %v1220 = vadd.f32 %v1131, %v1219
  %1221 = vmatmul.bf16.gmra.mxu0 %v616
  %v1222 = vpop.f32.mrf.mxu0
  %v1223 = vadd.f32 %v1134, %v1222
  %v1224 = vpop.f32.mrf.mxu0
  %v1225 = vadd.f32 %v1136, %v1224
  %1226 = vmatmul.bf16.gmra.mxu0 %v620
  %v1227 = vpop.f32.mrf.mxu0
  %v1228 = vadd.f32 %v1139, %v1227
  %v1229 = vpop.f32.mrf.mxu0
  %v1230 = vadd.f32 %v1141, %v1229
  %1231 = vmatmul.bf16.gmra.mxu0 %v624
  %v1232 = vpop.f32.mrf.mxu0
  %v1233 = vadd.f32 %v1144, %v1232
  %v1234 = vpop.f32.mrf.mxu0
  %v1235 = vadd.f32 %v1146, %v1234
  %1236 = vdwg.mxu0
  %v1237 = vmax.f32 %v1158, 0.0
  %v1238 = vmax.f32 %v1160, 0.0
  %v1239 = vmax.f32 %v1163, 0.0
  %v1240 = vmax.f32 %v1165, 0.0
  %v1241 = vmax.f32 %v1168, 0.0
  %v1242 = vmax.f32 %v1170, 0.0
  %v1243 = vmax.f32 %v1173, 0.0
  %v1244 = vmax.f32 %v1175, 0.0
  %v1245 = vmax.f32 %v1178, 0.0
  %v1246 = vmax.f32 %v1180, 0.0
  %v1247 = vmax.f32 %v1183, 0.0
  %v1248 = vmax.f32 %v1185, 0.0
  %v1249 = vmax.f32 %v1188, 0.0
  %v1250 = vmax.f32 %v1190, 0.0
  %v1251 = vmax.f32 %v1193, 0.0
  %v1252 = vmax.f32 %v1195, 0.0
  %v1253 = vmax.f32 %v1198, 0.0
  %v1254 = vmax.f32 %v1200, 0.0
  %v1255 = vmax.f32 %v1203, 0.0
  %v1256 = vmax.f32 %v1205, 0.0
  %v1257 = vmax.f32 %v1208, 0.0
  %v1258 = vmax.f32 %v1210, 0.0
  %v1259 = vmax.f32 %v1213, 0.0
  %v1260 = vmax.f32 %v1215, 0.0
  %v1261 = vmax.f32 %v1218, 0.0
  %v1262 = vmax.f32 %v1220, 0.0
  %v1263 = vmax.f32 %v1223, 0.0
  %v1264 = vmax.f32 %v1225, 0.0
  %v1265 = vmax.f32 %v1228, 0.0
  %v1266 = vmax.f32 %v1230, 0.0
  %v1267 = vmax.f32 %v1233, 0.0
  %v1268 = vmax.f32 %v1235, 0.0
  %v1269 = vpack.c.bf16 %v1238, %v1237
  %v1270 = vpack.c.bf16 %v1240, %v1239
  %v1271 = vpack.c.bf16 %v1242, %v1241
  %v1272 = vpack.c.bf16 %v1244, %v1243
  %v1273 = vpack.c.bf16 %v1246, %v1245
  %v1274 = vpack.c.bf16 %v1248, %v1247
  %v1275 = vpack.c.bf16 %v1250, %v1249
  %v1276 = vpack.c.bf16 %v1252, %v1251
  %v1277 = vpack.c.bf16 %v1254, %v1253
  %v1278 = vpack.c.bf16 %v1256, %v1255
  %v1279 = vpack.c.bf16 %v1258, %v1257
  %v1280 = vpack.c.bf16 %v1260, %v1259
  %v1281 = vpack.c.bf16 %v1262, %v1261
  %v1282 = vpack.c.bf16 %v1264, %v1263
  %v1283 = vpack.c.bf16 %v1266, %v1265
  %v1284 = vpack.c.bf16 %v1268, %v1267
  %v1285 = vld [vmem:[%s2] sm:$0xff]
  %v1286 = vld [vmem:[%s2 + $0x8] sm:$0xff]
  %v1287 = vld [vmem:[%s2 + $0x10] sm:$0xff]
  %v1288 = vld [vmem:[%s2 + $0x18] sm:$0xff]
  %v1289 = vld [vmem:[%s2 + $0x20] sm:$0xff]
  %v1290 = vld [vmem:[%s2 + $0x28] sm:$0xff]
  %v1291 = vld [vmem:[%s2 + $0x30] sm:$0xff]
  %v1292 = vld [vmem:[%s2 + $0x38] sm:$0xff]
  %v1293 = vld [vmem:[%s2 + $0x40] sm:$0xff]
  %v1294 = vld [vmem:[%s2 + $0x48] sm:$0xff]
  %v1295 = vld [vmem:[%s2 + $0x50] sm:$0xff]
  %v1296 = vld [vmem:[%s2 + $0x58] sm:$0xff]
  %v1297 = vld [vmem:[%s2 + $0x60] sm:$0xff]
  %v1298 = vld [vmem:[%s2 + $0x68] sm:$0xff]
  %v1299 = vld [vmem:[%s2 + $0x70] sm:$0xff]
  %v1300 = vld [vmem:[%s2 + $0x78] sm:$0xff]
  %v1301 = vld [vmem:[%s2 + $0x80] sm:$0xff]
  %v1302 = vld [vmem:[%s2 + $0x88] sm:$0xff]
  %v1303 = vld [vmem:[%s2 + $0x90] sm:$0xff]
  %v1304 = vld [vmem:[%s2 + $0x98] sm:$0xff]
  %v1305 = vld [vmem:[%s2 + $0xa0] sm:$0xff]
  %v1306 = vld [vmem:[%s2 + $0xa8] sm:$0xff]
  %v1307 = vld [vmem:[%s2 + $0xb0] sm:$0xff]
  %v1308 = vld [vmem:[%s2 + $0xb8] sm:$0xff]
  %v1309 = vld [vmem:[%s2 + $0xc0] sm:$0xff]
  %v1310 = vld [vmem:[%s2 + $0xc8] sm:$0xff]
  %v1311 = vld [vmem:[%s2 + $0xd0] sm:$0xff]
  %v1312 = vld [vmem:[%s2 + $0xd8] sm:$0xff]
  %v1313 = vld [vmem:[%s2 + $0xe0] sm:$0xff]
  %v1314 = vld [vmem:[%s2 + $0xe8] sm:$0xff]
  %v1315 = vld [vmem:[%s2 + $0xf0] sm:$0xff]
  %v1316 = vld [vmem:[%s2 + $0xf8] sm:$0xff]
  %1318 = vset.pattern.permute.xlu0 0
  %1319 = vperm.xlu0 %1318, %v49
  %v1320 = vpop.permute.xlu0 %1319
  %1323 = vset.pattern.permute.xlu0 0
  %1324 = vperm.xlu0 %1323, %v50
  %v1325 = vpop.permute.xlu0 %1324
  %1328 = vset.pattern.permute.xlu0 0
  %1329 = vperm.xlu0 %1328, %v51
  %v1330 = vpop.permute.xlu0 %1329
  %1333 = vset.pattern.permute.xlu0 0
  %1334 = vperm.xlu0 %1333, %v52
  %v1335 = vpop.permute.xlu0 %1334
  %1338 = vset.pattern.permute.xlu0 0
  %1339 = vperm.xlu0 %1338, %v53
  %v1340 = vpop.permute.xlu0 %1339
  %1343 = vset.pattern.permute.xlu0 0
  %1344 = vperm.xlu0 %1343, %v54
  %v1345 = vpop.permute.xlu0 %1344
  %1348 = vset.pattern.permute.xlu0 0
  %1349 = vperm.xlu0 %1348, %v55
  %v1350 = vpop.permute.xlu0 %1349
  %1353 = vset.pattern.permute.xlu0 0
  %1354 = vperm.xlu0 %1353, %v56
  %v1355 = vpop.permute.xlu0 %1354
  %1358 = vset.pattern.permute.xlu0 0
  %1359 = vperm.xlu0 %1358, %v57
  %v1360 = vpop.permute.xlu0 %1359
  %1363 = vset.pattern.permute.xlu0 0
  %1364 = vperm.xlu0 %1363, %v58
  %v1365 = vpop.permute.xlu0 %1364
  %1368 = vset.pattern.permute.xlu0 0
  %1369 = vperm.xlu0 %1368, %v59
  %v1370 = vpop.permute.xlu0 %1369
  %1373 = vset.pattern.permute.xlu0 0
  %1374 = vperm.xlu0 %1373, %v60
  %v1375 = vpop.permute.xlu0 %1374
  %1378 = vset.pattern.permute.xlu0 0
  %1379 = vperm.xlu0 %1378, %v61
  %v1380 = vpop.permute.xlu0 %1379
  %1383 = vset.pattern.permute.xlu0 0
  %1384 = vperm.xlu0 %1383, %v62
  %v1385 = vpop.permute.xlu0 %1384
  %1388 = vset.pattern.permute.xlu0 0
  %1389 = vperm.xlu0 %1388, %v63
  %v1390 = vpop.permute.xlu0 %1389
  %1393 = vset.pattern.permute.xlu0 0
  %1394 = vperm.xlu0 %1393, %v64
  %v1395 = vpop.permute.xlu0 %1394
  %1398 = vset.pattern.permute.xlu0 0
  %1399 = vperm.xlu0 %1398, %v65
  %v1400 = vpop.permute.xlu0 %1399
  %1403 = vset.pattern.permute.xlu0 0
  %1404 = vperm.xlu0 %1403, %v66
  %v1405 = vpop.permute.xlu0 %1404
  %1408 = vset.pattern.permute.xlu0 0
  %1409 = vperm.xlu0 %1408, %v67
  %v1410 = vpop.permute.xlu0 %1409
  %1413 = vset.pattern.permute.xlu0 0
  %1414 = vperm.xlu0 %1413, %v68
  %v1415 = vpop.permute.xlu0 %1414
  %1418 = vset.pattern.permute.xlu0 0
  %1419 = vperm.xlu0 %1418, %v69
  %v1420 = vpop.permute.xlu0 %1419
  %1423 = vset.pattern.permute.xlu0 0
  %1424 = vperm.xlu0 %1423, %v70
  %v1425 = vpop.permute.xlu0 %1424
  %1428 = vset.pattern.permute.xlu0 0
  %1429 = vperm.xlu0 %1428, %v71
  %v1430 = vpop.permute.xlu0 %1429
  %1433 = vset.pattern.permute.xlu0 0
  %1434 = vperm.xlu0 %1433, %v72
  %v1435 = vpop.permute.xlu0 %1434
  %1438 = vset.pattern.permute.xlu0 0
  %1439 = vperm.xlu0 %1438, %v73
  %v1440 = vpop.permute.xlu0 %1439
  %1443 = vset.pattern.permute.xlu0 0
  %1444 = vperm.xlu0 %1443, %v74
  %v1445 = vpop.permute.xlu0 %1444
  %1448 = vset.pattern.permute.xlu0 0
  %1449 = vperm.xlu0 %1448, %v75
  %v1450 = vpop.permute.xlu0 %1449
  %1453 = vset.pattern.permute.xlu0 0
  %1454 = vperm.xlu0 %1453, %v76
  %v1455 = vpop.permute.xlu0 %1454
  %1458 = vset.pattern.permute.xlu0 0
  %1459 = vperm.xlu0 %1458, %v77
  %v1460 = vpop.permute.xlu0 %1459
  %1463 = vset.pattern.permute.xlu0 0
  %1464 = vperm.xlu0 %1463, %v78
  %v1465 = vpop.permute.xlu0 %1464
  %1468 = vset.pattern.permute.xlu0 0
  %1469 = vperm.xlu0 %1468, %v79
  %v1470 = vpop.permute.xlu0 %1469
  %1473 = vset.pattern.permute.xlu0 0
  %1474 = vperm.xlu0 %1473, %v80
  %v1475 = vpop.permute.xlu0 %1474
  %v1509 = vunpack.c.l.b16 %v1285
  %v1510 = vunpack.c.h.b16 %v1285
  %v1511 = vunpack.c.l.b16 %v1286
  %v1512 = vunpack.c.h.b16 %v1286
  %v1513 = vunpack.c.l.b16 %v1287
  %v1514 = vunpack.c.h.b16 %v1287
  %v1515 = vunpack.c.l.b16 %v1288
  %v1516 = vunpack.c.h.b16 %v1288
  %v1517 = vunpack.c.l.b16 %v1289
  %v1518 = vunpack.c.h.b16 %v1289
  %v1519 = vunpack.c.l.b16 %v1290
  %v1520 = vunpack.c.h.b16 %v1290
  %v1521 = vunpack.c.l.b16 %v1291
  %v1522 = vunpack.c.h.b16 %v1291
  %v1523 = vunpack.c.l.b16 %v1292
  %v1524 = vunpack.c.h.b16 %v1292
  %v1525 = vunpack.c.l.b16 %v1293
  %v1526 = vunpack.c.h.b16 %v1293
  %v1527 = vunpack.c.l.b16 %v1294
  %v1528 = vunpack.c.h.b16 %v1294
  %v1529 = vunpack.c.l.b16 %v1295
  %v1530 = vunpack.c.h.b16 %v1295
  %v1531 = vunpack.c.l.b16 %v1296
  %v1532 = vunpack.c.h.b16 %v1296
  %v1533 = vunpack.c.l.b16 %v1297
  %v1534 = vunpack.c.h.b16 %v1297
  %v1535 = vunpack.c.l.b16 %v1298
  %v1536 = vunpack.c.h.b16 %v1298
  %v1537 = vunpack.c.l.b16 %v1299
  %v1538 = vunpack.c.h.b16 %v1299
  %v1539 = vunpack.c.l.b16 %v1300
  %v1540 = vunpack.c.h.b16 %v1300
  %v1541 = vunpack.c.l.b16 %v1301
  %v1542 = vunpack.c.h.b16 %v1301
  %v1543 = vunpack.c.l.b16 %v1302
  %v1544 = vunpack.c.h.b16 %v1302
  %v1545 = vunpack.c.l.b16 %v1303
  %v1546 = vunpack.c.h.b16 %v1303
  %v1547 = vunpack.c.l.b16 %v1304
  %v1548 = vunpack.c.h.b16 %v1304
  %v1549 = vunpack.c.l.b16 %v1305
  %v1550 = vunpack.c.h.b16 %v1305
  %v1551 = vunpack.c.l.b16 %v1306
  %v1552 = vunpack.c.h.b16 %v1306
  %v1553 = vunpack.c.l.b16 %v1307
  %v1554 = vunpack.c.h.b16 %v1307
  %v1555 = vunpack.c.l.b16 %v1308
  %v1556 = vunpack.c.h.b16 %v1308
  %v1557 = vunpack.c.l.b16 %v1309
  %v1558 = vunpack.c.h.b16 %v1309
  %v1559 = vunpack.c.l.b16 %v1310
  %v1560 = vunpack.c.h.b16 %v1310
  %v1561 = vunpack.c.l.b16 %v1311
  %v1562 = vunpack.c.h.b16 %v1311
  %v1563 = vunpack.c.l.b16 %v1312
  %v1564 = vunpack.c.h.b16 %v1312
  %v1565 = vunpack.c.l.b16 %v1313
  %v1566 = vunpack.c.h.b16 %v1313
  %v1567 = vunpack.c.l.b16 %v1314
  %v1568 = vunpack.c.h.b16 %v1314
  %v1569 = vunpack.c.l.b16 %v1315
  %v1570 = vunpack.c.h.b16 %v1315
  %v1571 = vunpack.c.l.b16 %v1316
  %v1572 = vunpack.c.h.b16 %v1316
  %v1573 = vpack.c.b16 %v1511, %v1509
  %v1574 = vpack.c.b16 %v1512, %v1510
  %v1575 = vpack.c.b16 %v1515, %v1513
  %v1576 = vpack.c.b16 %v1516, %v1514
  %v1577 = vpack.c.b16 %v1519, %v1517
  %v1578 = vpack.c.b16 %v1520, %v1518
  %v1579 = vpack.c.b16 %v1523, %v1521
  %v1580 = vpack.c.b16 %v1524, %v1522
  %v1581 = vpack.c.b16 %v1527, %v1525
  %v1582 = vpack.c.b16 %v1528, %v1526
  %v1583 = vpack.c.b16 %v1531, %v1529
  %v1584 = vpack.c.b16 %v1532, %v1530
  %v1585 = vpack.c.b16 %v1535, %v1533
  %v1586 = vpack.c.b16 %v1536, %v1534
  %v1587 = vpack.c.b16 %v1539, %v1537
  %v1588 = vpack.c.b16 %v1540, %v1538
  %v1589 = vpack.c.b16 %v1543, %v1541
  %v1590 = vpack.c.b16 %v1544, %v1542
  %v1591 = vpack.c.b16 %v1547, %v1545
  %v1592 = vpack.c.b16 %v1548, %v1546
  %v1593 = vpack.c.b16 %v1551, %v1549
  %v1594 = vpack.c.b16 %v1552, %v1550
  %v1595 = vpack.c.b16 %v1555, %v1553
  %v1596 = vpack.c.b16 %v1556, %v1554
  %v1597 = vpack.c.b16 %v1559, %v1557
  %v1598 = vpack.c.b16 %v1560, %v1558
  %v1599 = vpack.c.b16 %v1563, %v1561
  %v1600 = vpack.c.b16 %v1564, %v1562
  %v1601 = vpack.c.b16 %v1567, %v1565
  %v1602 = vpack.c.b16 %v1568, %v1566
  %v1603 = vpack.c.b16 %v1571, %v1569
  %v1604 = vpack.c.b16 %v1572, %v1570
  %1637 = vmatpush.bf16.msra.mxu0 %v1276
  %1638 = vmatpush.bf16.msra.mxu0 %v1275
  %1639 = vmatpush.bf16.msra.mxu0 %v1274
  %1640 = vmatpush.bf16.msra.mxu0 %v1273
  %1641 = vmatpush.bf16.msra.mxu0 %v1272
  %1642 = vmatpush.bf16.msra.mxu0 %v1271
  %1643 = vmatpush.bf16.msra.mxu0 %v1270
  %1644 = vmatpush.bf16.msra.mxu0 %v1269
  %1645 = vmatmul.bf16.gmra.mxu0 %v1573
  %v1646 = vpop.f32.mrf.mxu0
  %v1647 = vadd.f32 %v1320, %v1646
  %v1648 = vpop.f32.mrf.mxu0
  %v1649 = vadd.f32 %v1325, %v1648
  %1650 = vmatmul.bf16.gmra.mxu0 %v1575
  %v1651 = vpop.f32.mrf.mxu0
  %v1652 = vadd.f32 %v1330, %v1651
  %v1653 = vpop.f32.mrf.mxu0
  %v1654 = vadd.f32 %v1335, %v1653
  %1655 = vmatmul.bf16.gmra.mxu0 %v1577
  %v1656 = vpop.f32.mrf.mxu0
  %v1657 = vadd.f32 %v1340, %v1656
  %v1658 = vpop.f32.mrf.mxu0
  %v1659 = vadd.f32 %v1345, %v1658
  %1660 = vmatmul.bf16.gmra.mxu0 %v1579
  %v1661 = vpop.f32.mrf.mxu0
  %v1662 = vadd.f32 %v1350, %v1661
  %v1663 = vpop.f32.mrf.mxu0
  %v1664 = vadd.f32 %v1355, %v1663
  %1665 = vmatmul.bf16.gmra.mxu0 %v1581
  %v1666 = vpop.f32.mrf.mxu0
  %v1667 = vadd.f32 %v1360, %v1666
  %v1668 = vpop.f32.mrf.mxu0
  %v1669 = vadd.f32 %v1365, %v1668
  %1670 = vmatmul.bf16.gmra.mxu0 %v1583
  %v1671 = vpop.f32.mrf.mxu0
  %v1672 = vadd.f32 %v1370, %v1671
  %v1673 = vpop.f32.mrf.mxu0
  %v1674 = vadd.f32 %v1375, %v1673
  %1675 = vmatmul.bf16.gmra.mxu0 %v1585
  %v1676 = vpop.f32.mrf.mxu0
  %v1677 = vadd.f32 %v1380, %v1676
  %v1678 = vpop.f32.mrf.mxu0
  %v1679 = vadd.f32 %v1385, %v1678
  %1680 = vmatmul.bf16.gmra.mxu0 %v1587
  %v1681 = vpop.f32.mrf.mxu0
  %v1682 = vadd.f32 %v1390, %v1681
  %v1683 = vpop.f32.mrf.mxu0
  %v1684 = vadd.f32 %v1395, %v1683
  %1685 = vmatmul.bf16.gmra.mxu0 %v1589
  %v1686 = vpop.f32.mrf.mxu0
  %v1687 = vadd.f32 %v1400, %v1686
  %v1688 = vpop.f32.mrf.mxu0
  %v1689 = vadd.f32 %v1405, %v1688
  %1690 = vmatmul.bf16.gmra.mxu0 %v1591
  %v1691 = vpop.f32.mrf.mxu0
  %v1692 = vadd.f32 %v1410, %v1691
  %v1693 = vpop.f32.mrf.mxu0
  %v1694 = vadd.f32 %v1415, %v1693
  %1695 = vmatmul.bf16.gmra.mxu0 %v1593
  %v1696 = vpop.f32.mrf.mxu0
  %v1697 = vadd.f32 %v1420, %v1696
  %v1698 = vpop.f32.mrf.mxu0
  %v1699 = vadd.f32 %v1425, %v1698
  %1700 = vmatmul.bf16.gmra.mxu0 %v1595
  %v1701 = vpop.f32.mrf.mxu0
  %v1702 = vadd.f32 %v1430, %v1701
  %v1703 = vpop.f32.mrf.mxu0
  %v1704 = vadd.f32 %v1435, %v1703
  %1705 = vmatmul.bf16.gmra.mxu0 %v1597
  %v1706 = vpop.f32.mrf.mxu0
  %v1707 = vadd.f32 %v1440, %v1706
  %v1708 = vpop.f32.mrf.mxu0
  %v1709 = vadd.f32 %v1445, %v1708
  %1710 = vmatmul.bf16.gmra.mxu0 %v1599
  %v1711 = vpop.f32.mrf.mxu0
  %v1712 = vadd.f32 %v1450, %v1711
  %v1713 = vpop.f32.mrf.mxu0
  %v1714 = vadd.f32 %v1455, %v1713
  %1715 = vmatmul.bf16.gmra.mxu0 %v1601
  %v1716 = vpop.f32.mrf.mxu0
  %v1717 = vadd.f32 %v1460, %v1716
  %v1718 = vpop.f32.mrf.mxu0
  %v1719 = vadd.f32 %v1465, %v1718
  %1720 = vmatmul.bf16.gmra.mxu0 %v1603
  %v1721 = vpop.f32.mrf.mxu0
  %v1722 = vadd.f32 %v1470, %v1721
  %v1723 = vpop.f32.mrf.mxu0
  %v1724 = vadd.f32 %v1475, %v1723
  %1725 = vdwg.mxu0
  %1726 = vmatpush.bf16.msra.mxu0 %v1284
  %1727 = vmatpush.bf16.msra.mxu0 %v1283
  %1728 = vmatpush.bf16.msra.mxu0 %v1282
  %1729 = vmatpush.bf16.msra.mxu0 %v1281
  %1730 = vmatpush.bf16.msra.mxu0 %v1280
  %1731 = vmatpush.bf16.msra.mxu0 %v1279
  %1732 = vmatpush.bf16.msra.mxu0 %v1278
  %1733 = vmatpush.bf16.msra.mxu0 %v1277
  %1734 = vmatmul.bf16.gmra.mxu0 %v1574
  %v1735 = vpop.f32.mrf.mxu0
  %v1736 = vadd.f32 %v1647, %v1735
  %v1737 = vpop.f32.mrf.mxu0
  %v1738 = vadd.f32 %v1649, %v1737
  %1739 = vmatmul.bf16.gmra.mxu0 %v1576
  %v1740 = vpop.f32.mrf.mxu0
  %v1741 = vadd.f32 %v1652, %v1740
  %v1742 = vpop.f32.mrf.mxu0
  %v1743 = vadd.f32 %v1654, %v1742
  %1744 = vmatmul.bf16.gmra.mxu0 %v1578
  %v1745 = vpop.f32.mrf.mxu0
  %v1746 = vadd.f32 %v1657, %v1745
  %v1747 = vpop.f32.mrf.mxu0
  %v1748 = vadd.f32 %v1659, %v1747
  %1749 = vmatmul.bf16.gmra.mxu0 %v1580
  %v1750 = vpop.f32.mrf.mxu0
  %v1751 = vadd.f32 %v1662, %v1750
  %v1752 = vpop.f32.mrf.mxu0
  %v1753 = vadd.f32 %v1664, %v1752
  %1754 = vmatmul.bf16.gmra.mxu0 %v1582
  %v1755 = vpop.f32.mrf.mxu0
  %v1756 = vadd.f32 %v1667, %v1755
  %v1757 = vpop.f32.mrf.mxu0
  %v1758 = vadd.f32 %v1669, %v1757
  %1759 = vmatmul.bf16.gmra.mxu0 %v1584
  %v1760 = vpop.f32.mrf.mxu0
  %v1761 = vadd.f32 %v1672, %v1760
  %v1762 = vpop.f32.mrf.mxu0
  %v1763 = vadd.f32 %v1674, %v1762
  %1764 = vmatmul.bf16.gmra.mxu0 %v1586
  %v1765 = vpop.f32.mrf.mxu0
  %v1766 = vadd.f32 %v1677, %v1765
  %v1767 = vpop.f32.mrf.mxu0
  %v1768 = vadd.f32 %v1679, %v1767
  %1769 = vmatmul.bf16.gmra.mxu0 %v1588
  %v1770 = vpop.f32.mrf.mxu0
  %v1771 = vadd.f32 %v1682, %v1770
  %v1772 = vpop.f32.mrf.mxu0
  %v1773 = vadd.f32 %v1684, %v1772
  %1774 = vmatmul.bf16.gmra.mxu0 %v1590
  %v1775 = vpop.f32.mrf.mxu0
  %v1776 = vadd.f32 %v1687, %v1775
  %v1777 = vpop.f32.mrf.mxu0
  %v1778 = vadd.f32 %v1689, %v1777
  %1779 = vmatmul.bf16.gmra.mxu0 %v1592
  %v1780 = vpop.f32.mrf.mxu0
  %v1781 = vadd.f32 %v1692, %v1780
  %v1782 = vpop.f32.mrf.mxu0
  %v1783 = vadd.f32 %v1694, %v1782
  %1784 = vmatmul.bf16.gmra.mxu0 %v1594
  %v1785 = vpop.f32.mrf.mxu0
  %v1786 = vadd.f32 %v1697, %v1785
  %v1787 = vpop.f32.mrf.mxu0
  %v1788 = vadd.f32 %v1699, %v1787
  %1789 = vmatmul.bf16.gmra.mxu0 %v1596
  %v1790 = vpop.f32.mrf.mxu0
  %v1791 = vadd.f32 %v1702, %v1790
  %v1792 = vpop.f32.mrf.mxu0
  %v1793 = vadd.f32 %v1704, %v1792
  %1794 = vmatmul.bf16.gmra.mxu0 %v1598
  %v1795 = vpop.f32.mrf.mxu0
  %v1796 = vadd.f32 %v1707, %v1795
  %v1797 = vpop.f32.mrf.mxu0
  %v1798 = vadd.f32 %v1709, %v1797
  %1799 = vmatmul.bf16.gmra.mxu0 %v1600
  %v1800 = vpop.f32.mrf.mxu0
  %v1801 = vadd.f32 %v1712, %v1800
  %v1802 = vpop.f32.mrf.mxu0
  %v1803 = vadd.f32 %v1714, %v1802
  %1804 = vmatmul.bf16.gmra.mxu0 %v1602
  %v1805 = vpop.f32.mrf.mxu0
  %v1806 = vadd.f32 %v1717, %v1805
  %v1807 = vpop.f32.mrf.mxu0
  %v1808 = vadd.f32 %v1719, %v1807
  %1809 = vmatmul.bf16.gmra.mxu0 %v1604
  %v1810 = vpop.f32.mrf.mxu0
  %v1811 = vadd.f32 %v1722, %v1810
  %v1812 = vpop.f32.mrf.mxu0
  %v1813 = vadd.f32 %v1724, %v1812
  %1814 = vdwg.mxu0
  %v1815 = vmax.f32 %v1736, 0.0
  %v1816 = vmax.f32 %v1738, 0.0
  %v1817 = vmax.f32 %v1741, 0.0
  %v1818 = vmax.f32 %v1743, 0.0
  %v1819 = vmax.f32 %v1746, 0.0
  %v1820 = vmax.f32 %v1748, 0.0
  %v1821 = vmax.f32 %v1751, 0.0
  %v1822 = vmax.f32 %v1753, 0.0
  %v1823 = vmax.f32 %v1756, 0.0
  %v1824 = vmax.f32 %v1758, 0.0
  %v1825 = vmax.f32 %v1761, 0.0
  %v1826 = vmax.f32 %v1763, 0.0
  %v1827 = vmax.f32 %v1766, 0.0
  %v1828 = vmax.f32 %v1768, 0.0
  %v1829 = vmax.f32 %v1771, 0.0
  %v1830 = vmax.f32 %v1773, 0.0
  %v1831 = vmax.f32 %v1776, 0.0
  %v1832 = vmax.f32 %v1778, 0.0
  %v1833 = vmax.f32 %v1781, 0.0
  %v1834 = vmax.f32 %v1783, 0.0
  %v1835 = vmax.f32 %v1786, 0.0
  %v1836 = vmax.f32 %v1788, 0.0
  %v1837 = vmax.f32 %v1791, 0.0
  %v1838 = vmax.f32 %v1793, 0.0
  %v1839 = vmax.f32 %v1796, 0.0
  %v1840 = vmax.f32 %v1798, 0.0
  %v1841 = vmax.f32 %v1801, 0.0
  %v1842 = vmax.f32 %v1803, 0.0
  %v1843 = vmax.f32 %v1806, 0.0
  %v1844 = vmax.f32 %v1808, 0.0
  %v1845 = vmax.f32 %v1811, 0.0
  %v1846 = vmax.f32 %v1813, 0.0
  %1847 = vst [vmem:[%s4] sm:$0xff] %v1815
  %1848 = vst [vmem:[%s4 + $0x8] sm:$0xff] %v1816
  %1849 = vst [vmem:[%s4 + $0x10] sm:$0xff] %v1817
  %1850 = vst [vmem:[%s4 + $0x18] sm:$0xff] %v1818
  %1851 = vst [vmem:[%s4 + $0x20] sm:$0xff] %v1819
  %1852 = vst [vmem:[%s4 + $0x28] sm:$0xff] %v1820
  %1853 = vst [vmem:[%s4 + $0x30] sm:$0xff] %v1821
  %1854 = vst [vmem:[%s4 + $0x38] sm:$0xff] %v1822
  %1855 = vst [vmem:[%s4 + $0x40] sm:$0xff] %v1823
  %1856 = vst [vmem:[%s4 + $0x48] sm:$0xff] %v1824
  %1857 = vst [vmem:[%s4 + $0x50] sm:$0xff] %v1825
  %1858 = vst [vmem:[%s4 + $0x58] sm:$0xff] %v1826
  %1859 = vst [vmem:[%s4 + $0x60] sm:$0xff] %v1827
  %1860 = vst [vmem:[%s4 + $0x68] sm:$0xff] %v1828
  %1861 = vst [vmem:[%s4 + $0x70] sm:$0xff] %v1829
  %1862 = vst [vmem:[%s4 + $0x78] sm:$0xff] %v1830
  %1863 = vst [vmem:[%s4 + $0x80] sm:$0xff] %v1831
  %1864 = vst [vmem:[%s4 + $0x88] sm:$0xff] %v1832
  %1865 = vst [vmem:[%s4 + $0x90] sm:$0xff] %v1833
  %1866 = vst [vmem:[%s4 + $0x98] sm:$0xff] %v1834
  %1867 = vst [vmem:[%s4 + $0xa0] sm:$0xff] %v1835
  %1868 = vst [vmem:[%s4 + $0xa8] sm:$0xff] %v1836
  %1869 = vst [vmem:[%s4 + $0xb0] sm:$0xff] %v1837
  %1870 = vst [vmem:[%s4 + $0xb8] sm:$0xff] %v1838
  %1871 = vst [vmem:[%s4 + $0xc0] sm:$0xff] %v1839
  %1872 = vst [vmem:[%s4 + $0xc8] sm:$0xff] %v1840
  %1873 = vst [vmem:[%s4 + $0xd0] sm:$0xff] %v1841
  %1874 = vst [vmem:[%s4 + $0xd8] sm:$0xff] %v1842
  %1875 = vst [vmem:[%s4 + $0xe0] sm:$0xff] %v1843
  %1876 = vst [vmem:[%s4 + $0xe8] sm:$0xff] %v1844
  %1877 = vst [vmem:[%s4 + $0xf0] sm:$0xff] %v1845
  %1878 = vst [vmem:[%s4 + $0xf8] sm:$0xff] %v1846
  // Predicated region
  $region18: #{backbone_forward.21} parent=0 // pred_check
    _
  $region19: #{backbone_forward.21} parent=0 // pred_check_branch
    %1880 = sbr.rel (0) target = $region21
  $region20: #{backbone_forward.21} parent=0 // pred_region
    _
  $region21: #{backbone_forward.21} parent=0 // pred_fallthru
    _
  // Predicated region
  $region22: #{backbone_forward.21} parent=0 // pred_check
    _
  $region23: #{backbone_forward.21} parent=0 // pred_check_branch
    %1882 = sbr.rel (0) target = $region25
  $region24: #{backbone_forward.21} parent=0 // pred_region
    _
  $region25: #{backbone_forward.21} parent=0 // pred_fallthru
    _

</llo_original>
